<compile_context>
chip_gen: v7x
topology: tpu7x:2x2x1
jax: 0.10.0
libtpu: 0.0.40
codegen_flags: <defaults>
</compile_context>

<pallas_src>
import jax
import jax.numpy as jnp
from jax import lax
from jax.experimental import pallas as pl
from jax.experimental.pallas import tpu as pltpu


def _rel_pos_kernel(q_ref, hy_ref, wx_ref, o_ref):
    # q_ref : (W, BH, C)  query rows i = iy*W + t, t in [0, W), in (t, bh, c) order
    # hy_ref: (1, C, N)   h_rep[iy]  (shared by every row of this step)
    # wx_ref: (W, C, N)   w_tiled    (constant block index -> fetched into VMEM once per core)
    # o_ref : (BH, W, N)  output rows for this iy block, already batch-major
    w, bh, c = q_ref.shape
    n = hy_ref.shape[-1]

    q_blk = q_ref[...]                                           # (W, BH, C)

    # y-half: all W*BH rows share h_rep[iy] -> a single (W*BH, C) @ (C, N) MXU matmul (M=128).
    y = jnp.dot(
        q_blk.reshape(w * bh, c), hy_ref[0],
        preferred_element_type=jnp.float32,
        precision=lax.Precision.HIGHEST,
    ).reshape(w, bh, n)

    # x-half: the RHS differs per query column ix == t, so batch over t (W small matmuls on a
    # VMEM-resident operand; FLOPs are negligible, hidden under the output DMA).
    x = lax.dot_general(
        q_blk, wx_ref[...],
        dimension_numbers=(((2,), (1,)), ((0,), (0,))),
        preferred_element_type=jnp.float32,
        precision=lax.Precision.HIGHEST,
    )                                                            # (W, BH, N)

    # (W, BH, N) -> (BH, W, N): cheap in-VMEM relayout (minor/lane dim unchanged) instead of
    # an HBM round-trip transpose in the wrapper.
    o_ref[...] = jnp.swapaxes(y + x, 0, 1).astype(o_ref.dtype)


def _rel_grid(H, W):
    """Static relative-index grids identical to the PyTorch module (down_kv=False)."""
    # TODO(synk): down_kv=True (avg-pooled relative indices) is not implemented; the module default is False.
    y, x = jnp.meshgrid(jnp.arange(H), jnp.arange(W), indexing="ij")
    y = y.reshape(-1)
    x = x.reshape(-1)
    rel_y = y[None, :] - y[:, None] + (H - 1)
    rel_x = x[None, :] - x[:, None] + (W - 1)
    return rel_y.astype(jnp.int32), rel_x.astype(jnp.int32)


def relative_positional_embedding_2d(query, h_emb, w_emb, H, W):
    """query: [B, n_heads, C, H*W]; h_emb: [2H-1, C]; w_emb: [2W-1, C]  ->  [B, n_heads, N, N]."""
    B, n_heads, C, N = query.shape
    assert N == H * W, (N, H, W)
    BH = B * n_heads

    # ---- wrapper glue (all small tensors): factorized relative-embedding slabs ----
    j = jnp.arange(N, dtype=jnp.int32)
    rel_y_rows = (j // W)[None, :] - jnp.arange(H, dtype=jnp.int32)[:, None] + (H - 1)   # (H, N)
    rel_x_rows = (j % W)[None, :] - jnp.arange(W, dtype=jnp.int32)[:, None] + (W - 1)    # (W, N)
    h_rep = jnp.transpose(jnp.take(h_emb, rel_y_rows, axis=0), (0, 2, 1))     # (H, C, N)
    w_tiled = jnp.transpose(jnp.take(w_emb, rel_x_rows, axis=0), (0, 2, 1))   # (W, C, N)

    # query -> (N, BH, C): rows of the per-step matmuls (batch*heads folded into M).
    q_t = query.reshape(BH, C, N).transpose(2, 0, 1)

    # Per-step double-buffered working set (q block's C=32 lane dim is padded to 128).
    itemsize = 4
    vmem_est = 2 * itemsize * (W * BH * max(C, 128) + C * N + W * C * N + BH * W * N)
    vmem_limit = 32 * 1024 * 1024  # within the scoped default on v5e/v6e and v7x (64 MiB/TC)
    assert vmem_est < vmem_limit, (
        f"working set {vmem_est} B exceeds VMEM budget {vmem_limit} B; "
        "tile w_tiled over N_j for this configuration")
    # TODO(synk): for much larger H*W*C, derive the budget from pltpu.get_tpu_info() and tile
    # w_tiled / the output over N_j instead of keeping them step-resident.

    out = pl.pallas_call(
        _rel_pos_kernel,
        out_shape=jax.ShapeDtypeStruct((BH, N, N), jnp.float32),
        grid_spec=pltpu.PrefetchScalarGridSpec(
            num_scalar_prefetch=0,
            grid=(H,),                                            # one step per query-row group iy
            in_specs=[
                pl.BlockSpec((W, BH, C), lambda iy: (iy, 0, 0)),  # q rows of this iy group
                pl.BlockSpec((1, C, N), lambda iy: (iy, 0, 0)),   # h_rep[iy]
                pl.BlockSpec((W, C, N), lambda iy: (0, 0, 0)),    # w_tiled (same block -> DMA'd once)
            ],
            out_specs=pl.BlockSpec((BH, W, N), lambda iy: (0, iy, 0)),
        ),
        compiler_params=pltpu.CompilerParams(
            dimension_semantics=("parallel",),
            vmem_limit_bytes=vmem_limit,
        ),
    )(q_t, h_rep, w_tiled)

    # (BH, N, N) -> [B, n_heads, N, N]: pure reshape, no HBM transpose.
    return out.reshape(B, n_heads, N, N)


def reference(query, h_emb, w_emb, H, W):
    """Pure-JAX reference mirroring the PyTorch forward (down_kv=False)."""
    rel_y, rel_x = _rel_grid(H, W)
    R = jnp.take(h_emb, rel_y, axis=0) + jnp.take(w_emb, rel_x, axis=0)   # (N, N, C)
    return jnp.einsum("bhci,ijc->bhij", query, R, precision=lax.Precision.HIGHEST)


if __name__ == "__main__":
    # Small shapes consistent with the module; N = H*W = 256 keeps the output lane-dense,
    # B*n_heads = 8 keeps the matmul rows sublane-aligned.
    B, n_heads, emb_dim, H, W = 2, 4, 32, 16, 16
    N = H * W

    key = jax.random.PRNGKey(0)
    kq, kh, kw = jax.random.split(key, 3)
    query = jax.random.normal(kq, (B, n_heads, emb_dim, N), jnp.float32)
    h_emb = 0.1 * jax.random.normal(kh, (2 * H - 1, emb_dim), jnp.float32)
    w_emb = 0.1 * jax.random.normal(kw, (2 * W - 1, emb_dim), jnp.float32)

    out = relative_positional_embedding_2d(query, h_emb, w_emb, H, W)
    out = jax.block_until_ready(out)

    ref = reference(query, h_emb, w_emb, H, W)
    err = float(jnp.max(jnp.abs(out - ref)))
    assert out.shape == (B, n_heads, N, N), out.shape
    assert err < 1e-3, f"mismatch vs reference: max abs err {err}"

    print("KERNEL_OK")
</pallas_src>

<mosaic_0001>
module attributes {stable_mosaic.version = 11 : i64} {
  func.func @_rel_pos_kernel(%arg0: i32, %arg1: memref<16x8x32xf32, #tpu.memory_space<vmem>>, %arg2: memref<1x32x256xf32, #tpu.memory_space<vmem>>, %arg3: memref<16x32x256xf32, #tpu.memory_space<vmem>>, %arg4: memref<8x16x256xf32, #tpu.memory_space<vmem>>) attributes {dimension_semantics = [#tpu.dimension_semantics<parallel>], iteration_bounds = array<i64: 16>, scalar_prefetch = 0 : i64, scratch_operands = 0 : i64, tpu.core_type = #tpu.core_type<tc>, window_params = [{transform_indices = @transform_0, window_bounds = array<i64: 16, 8, 32>}, {transform_indices = @transform_1, window_bounds = array<i64: 1, 32, 256>}, {pipeline_mode = #tpu.pipeline_mode<synchronous>, transform_indices = @transform_2, window_bounds = array<i64: 16, 32, 256>}, {transform_indices = @transform_3, window_bounds = array<i64: 8, 16, 256>}]} {
    %c0 = arith.constant 0 : index
    %c0_0 = arith.constant 0 : index
    %c0_1 = arith.constant 0 : index
    %0 = vector.load %arg1[%c0, %c0_0, %c0_1] : memref<16x8x32xf32, #tpu.memory_space<vmem>>, vector<16x8x32xf32>
    %1 = vector.shape_cast %0 : vector<16x8x32xf32> to vector<128x32xf32>
    %c0_2 = arith.constant 0 : index
    %c0_3 = arith.constant 0 : index
    %c0_4 = arith.constant 0 : index
    %2 = vector.load %arg2[%c0_2, %c0_3, %c0_4] : memref<1x32x256xf32, #tpu.memory_space<vmem>>, vector<1x32x256xf32>
    %3 = vector.shape_cast %2 : vector<1x32x256xf32> to vector<32x256xf32>
    %cst = arith.constant dense<0.000000e+00> : vector<128x256xf32>
    %4 = tpu.matmul %1, %3, %cst {dimension_numbers = #tpu.dot_dimension_numbers<[1], [0], [0], [1], [0, 0, 1, 1], [], []>, precision = #tpu.contract_precision<fp32>} : vector<128x32xf32>, vector<32x256xf32>, vector<128x256xf32> -> vector<128x256xf32>
    %5 = vector.shape_cast %4 : vector<128x256xf32> to vector<16x8x256xf32>
    %c0_5 = arith.constant 0 : index
    %c0_6 = arith.constant 0 : index
    %c0_7 = arith.constant 0 : index
    %6 = vector.load %arg3[%c0_5, %c0_6, %c0_7] : memref<16x32x256xf32, #tpu.memory_space<vmem>>, vector<16x32x256xf32>
    %cst_8 = arith.constant dense<0.000000e+00> : vector<16x8x256xf32>
    %7 = tpu.matmul %0, %6, %cst_8 {dimension_numbers = #tpu.dot_dimension_numbers<[2], [1], [1], [2], [0, 0, 0, 1, 1, 2], [0], [0]>, precision = #tpu.contract_precision<fp32>} : vector<16x8x32xf32>, vector<16x32x256xf32>, vector<16x8x256xf32> -> vector<16x8x256xf32>
    %8 = arith.addf %5, %7 : vector<16x8x256xf32>
    %9 = tpu.transpose %8, [1, 0, 2] : vector<16x8x256xf32> -> vector<8x16x256xf32>
    %c0_9 = arith.constant 0 : index
    %c0_10 = arith.constant 0 : index
    %c0_11 = arith.constant 0 : index
    %10 = vector.load %arg4[%c0_9, %c0_10, %c0_11] : memref<8x16x256xf32, #tpu.memory_space<vmem>>, vector<8x16x256xf32>
    tpu.vector_store %arg4[%c0_9, %c0_10, %c0_11], %9 {strides = array<i32>} : memref<8x16x256xf32, #tpu.memory_space<vmem>>, vector<8x16x256xf32>,
    return
  }
  func.func @transform_0(%arg0: i32) -> (i32, i32, i32) {
    %c0_i32 = arith.constant 0 : i32
    %c0_i32_0 = arith.constant 0 : i32
    %c0_i32_1 = arith.constant 0 : i32
    return %arg0, %c0_i32, %c0_i32_0 : i32, i32, i32
  }
  func.func @transform_1(%arg0: i32) -> (i32, i32, i32) {
    %c0_i32 = arith.constant 0 : i32
    %c0_i32_0 = arith.constant 0 : i32
    %c0_i32_1 = arith.constant 0 : i32
    return %arg0, %c0_i32, %c0_i32_0 : i32, i32, i32
  }
  func.func @transform_2(%arg0: i32) -> (i32, i32, i32) {
    %c0_i32 = arith.constant 0 : i32
    %c0_i32_0 = arith.constant 0 : i32
    %c0_i32_1 = arith.constant 0 : i32
    %c0_i32_2 = arith.constant 0 : i32
    return %c0_i32, %c0_i32_0, %c0_i32_1 : i32, i32, i32
  }
  func.func @transform_3(%arg0: i32) -> (i32, i32, i32) {
    %c0_i32 = arith.constant 0 : i32
    %c0_i32_0 = arith.constant 0 : i32
    %c0_i32_1 = arith.constant 0 : i32
    return %c0_i32, %arg0, %c0_i32_0 : i32, i32, i32
  }
}

</mosaic_0001>

<llo_original>
// kernel: tpu_custom_call.1
$region0: #{tpu_custom_call.1}
  #allocation0 [shape = 'u32[]', space=smem, size = 0x4, offset = 0x4, fixed_abs, tag = 'smem constant byte address 0x4 - core index']
  #allocation1 [shape = 'u32[144,128]{1,0:T(1,128)}', space=vmem, size = 0x12000, scoped, tag = 'internal scratch']
  #allocation8 [shape = 's32[]', space=sflag, size = 0x4, offset = 0, fixed_abs, tag = 'sflag constant byte address 0x0 - dummy sync flag']
  %s0 = inlined_call_operand.vmem [shape: f32[256,8,32], index: 0, kind: input, shape index: {}]
  %s1 = inlined_call_operand.hbm [shape: f32[16,32,256], index: 1, kind: input, shape index: {}]
  %s2 = inlined_call_operand.hbm [shape: f32[16,32,256], index: 2, kind: input, shape index: {}]
  %s3 = inlined_call_operand.hbm [shape: f32[8,256,256], index: 3, kind: output, shape index: {}]
  %s4 = sld [smem:[#allocation0]]
  $region53: #{tpu_custom_call.1} parent=0
    _
  %s6 = ssub.s32 1, %s4
  %s7 = scalar_select 0, %s6, %s4
  $region1: #{tpu_custom_call.1} parent=0
    #allocation2 [shape = 'u8[65536]{0}', space=vmem, size = 0x10000, scoped, tag = 'input window, operand 1']
    #allocation3 [shape = 's32[2]{0}', space=sflag, size = 0x8, scoped, tag = 'scoped memory for tpu_custom_call.1']
    #allocation4 [shape = 's32[2]{0}', space=sflag, size = 0x8, scoped, tag = 'scoped memory for tpu_custom_call.1']
    #allocation5 [shape = 'u8[524288]{0}', space=vmem, size = 0x80000, scoped, tag = 'input window, operand 2, single buffered']
    #allocation6 [shape = 's32[1]{0}', space=sflag, size = 0x4, scoped, tag = 'scoped memory for tpu_custom_call.1']
    #allocation7 [shape = 'u8[262144]{0}', space=vmem, size = 0x40000, scoped, tag = 'output window, operand 0']
    %8 = vsyncpa [#allocation3], 0
    %s9 = scalar_lea.sflag [#allocation3], 1
    %10 = vsyncpa %s9, 0
    %11 = vsyncpa [#allocation6], 0
    %12 = vsyncpa [#allocation4], 0
    %s13 = scalar_lea.sflag [#allocation4], 1
    %14 = vsyncpa %s13, 0
    loop: start=0, step=1, limit=18
    $region2: #{tpu_custom_call.1} parent=1 // loop_pre_header
      _
    $region3: #{tpu_custom_call.1} parent=1 // loop_header
      %s16 = sphi 0, %s20
      %p17 = scmp.ge.s32.totalorder %s16, 18
      %s26 = sphi 0, %s28
      %s29 = sphi 0, %s26
      %s30 = sphi 0, %s29
      %s46 = sphi 0, %s30
      %s52 = sphi 0, %s54
      %s55 = sphi 0, %s52
      %s56 = sphi 0, %s55
      %s72 = sphi 0, %s56
      %s76 = sphi 0, %s76
      %s78 = sphi 0, %s76
      %s79 = sphi 0, %s78
      %s93 = sphi 0, %s79
      %s99 = sphi 0, %s101
      %s102 = sphi 0, %s99
      %s103 = sphi 0, %s102
      %s119 = sphi 0, %s103
    $region4: #{tpu_custom_call.1} parent=1 // loop_header_branch
      %19 = sbr.rel (%p17) target = $region8
    $region5: #{tpu_custom_call.1} parent=1 // loop_body
      %s21 = ssub.s32 %s16, 1
      %s22 = ssub.s32 %s16, 2
      %s23 = sadd.s32 %s16, 1
      %s24 = ssub.s32 %s16, %s23
      %p25 = scmp.eq.s32.totalorder %s24, 0
      %s27 = sadd.s32 %s26, 1
      %s28 = scalar_select %p25, %s26, %s27
      %p31 = pneg %p25
      %p32 = scmp.eq.s32.totalorder %s16, 15
      %p33 = por %p31, %p32
      %p34 = scmp.ne.s32.totalorder %s26, %s29
      %p35 = scmp.eq.s32.totalorder %s16, 0
      %p36 = por %p34, %p35
      %p37 = scmp.ne.s32.totalorder %s26, %s29
      %p38 = scmp.eq.s32.totalorder %s21, 15
      %p39 = por %p37, %p38
      %p40 = scmp.ne.s32.totalorder %s29, %s30
      %p41 = scmp.eq.s32.totalorder %s21, 0
      %p42 = por %p40, %p41
      %p43 = scmp.ne.s32.totalorder %s29, %s30
      %p44 = scmp.eq.s32.totalorder %s22, 15
      %p45 = por %p43, %p44
      %p47 = scmp.ne.s32.totalorder %s30, %s46
      %p48 = scmp.eq.s32.totalorder %s22, 0
      %p49 = por %p47, %p48
      %s50 = ssub.s32 %s16, %s23
      %p51 = scmp.eq.s32.totalorder %s50, 0
      %s53 = sadd.s32 %s52, 1
      %s54 = scalar_select %p51, %s52, %s53
      %p57 = pneg %p51
      %p58 = scmp.eq.s32.totalorder %s16, 15
      %p59 = por %p57, %p58
      %p60 = scmp.ne.s32.totalorder %s52, %s55
      %p61 = scmp.eq.s32.totalorder %s16, 0
      %p62 = por %p60, %p61
      %p63 = scmp.ne.s32.totalorder %s52, %s55
      %p64 = scmp.eq.s32.totalorder %s21, 15
      %p65 = por %p63, %p64
      %p66 = scmp.ne.s32.totalorder %s55, %s56
      %p67 = scmp.eq.s32.totalorder %s21, 0
      %p68 = por %p66, %p67
      %p69 = scmp.ne.s32.totalorder %s55, %s56
      %p70 = scmp.eq.s32.totalorder %s22, 15
      %p71 = por %p69, %p70
      %p73 = scmp.ne.s32.totalorder %s56, %s72
      %p74 = scmp.eq.s32.totalorder %s22, 0
      %p75 = por %p73, %p74
      %s77 = sadd.s32 %s76, 1
      %p80 = scmp.eq.s32.totalorder %s16, 15
      %p81 = scmp.ne.s32.totalorder %s76, %s78
      %p82 = scmp.eq.s32.totalorder %s16, 0
      %p83 = por %p81, %p82
      %p84 = scmp.ne.s32.totalorder %s76, %s78
      %p85 = scmp.eq.s32.totalorder %s21, 15
      %p86 = por %p84, %p85
      %p87 = scmp.ne.s32.totalorder %s78, %s79
      %p88 = scmp.eq.s32.totalorder %s21, 0
      %p89 = por %p87, %p88
      %p90 = scmp.ne.s32.totalorder %s78, %s79
      %p91 = scmp.eq.s32.totalorder %s22, 15
      %p92 = por %p90, %p91
      %p94 = scmp.ne.s32.totalorder %s79, %s93
      %p95 = scmp.eq.s32.totalorder %s22, 0
      %p96 = por %p94, %p95
      %s97 = ssub.s32 %s16, %s23
      %p98 = scmp.eq.s32.totalorder %s97, 0
      %s100 = sadd.s32 %s99, 1
      %s101 = scalar_select %p98, %s99, %s100
      %p104 = pneg %p98
      %p105 = scmp.eq.s32.totalorder %s16, 15
      %p106 = por %p104, %p105
      %p107 = scmp.ne.s32.totalorder %s99, %s102
      %p108 = scmp.eq.s32.totalorder %s16, 0
      %p109 = por %p107, %p108
      %p110 = scmp.ne.s32.totalorder %s99, %s102
      %p111 = scmp.eq.s32.totalorder %s21, 15
      %p112 = por %p110, %p111
      %p113 = scmp.ne.s32.totalorder %s102, %s103
      %p114 = scmp.eq.s32.totalorder %s21, 0
      %p115 = por %p113, %p114
      %p116 = scmp.ne.s32.totalorder %s102, %s103
      %p117 = scmp.eq.s32.totalorder %s22, 15
      %p118 = por %p116, %p117
      %p120 = scmp.ne.s32.totalorder %s103, %s119
      %p121 = scmp.eq.s32.totalorder %s22, 0
      %p122 = por %p120, %p121
      %p123 = scmp.le.s32.totalorder 1, %s16
      %p124 = scmp.lt.s32.totalorder %s16, 17
      %p125 = pnand %p123, %p124
      %p126 = pneg %p125
      // Predicated region
      $region9: #{tpu_custom_call.1} parent=5 // pred_check
        _
      $region10: #{tpu_custom_call.1} parent=5 // pred_check_branch
        %128 = sbr.rel (%p125) target = $region12
      $region11: #{tpu_custom_call.1} parent=5 // pred_region
        %s129 = ssub.s32 %s16, 1
        // Predicated region
        $region13: #{tpu_custom_call.1} parent=11 // pred_check
          %p130 = pneg %p89
        $region14: #{tpu_custom_call.1} parent=11 // pred_check_branch
          %132 = sbr.rel (%p130) target = $region16
        $region15: #{tpu_custom_call.1} parent=11 // pred_region
          %s134 = ssub.s32 16384, 16384
          %135 = vsyncadd [#allocation6], %s134
          %s136 = sshll.u32 [#allocation5], 4
          %s137 = int_to_ptr.vmem [resolvable:$true] %s136
          %142 = dma.hbm_to_vmem [thread:$0]  %s2, 16384, %s137, [#allocation6], 256, 256, 16
        $region16: #{tpu_custom_call.1} parent=11 // pred_fallthru
          _
      $region12: #{tpu_custom_call.1} parent=5 // pred_fallthru
        _
      %p143 = scmp.lt.s32.totalorder %s16, 16
      // Predicated region
      $region17: #{tpu_custom_call.1} parent=5 // pred_check
        %p144 = pneg %p143
      $region18: #{tpu_custom_call.1} parent=5 // pred_check_branch
        %146 = sbr.rel (%p144) target = $region20
      $region19: #{tpu_custom_call.1} parent=5 // pred_region
        // Predicated region
        $region21: #{tpu_custom_call.1} parent=19 // pred_check
          %p147 = pneg %p36
        $region22: #{tpu_custom_call.1} parent=19 // pred_check_branch
          %149 = sbr.rel (%p147) target = $region24
        $region23: #{tpu_custom_call.1} parent=19 // pred_region
          %s150 = smul.u32 16, %s16
          %p151 = scmp.lt.s32.totalorder %s150, 255
          %s152 = scalar_select %p151, %s150, 255
          %s153 = smul.addr %s152, 8
          %s154 = scalar_lea.vmem %s0, %s153
          %s155 = smul.u32 16, %s16
        $region24: #{tpu_custom_call.1} parent=19 // pred_fallthru
          _
        // Predicated region
        $region25: #{tpu_custom_call.1} parent=19 // pred_check
          %p156 = pneg %p62
        $region26: #{tpu_custom_call.1} parent=19 // pred_check_branch
          %158 = sbr.rel (%p156) target = $region28
        $region27: #{tpu_custom_call.1} parent=19 // pred_region
          %s159 = sand.u32 %s52, 1
          %s160 = scalar_lea.sflag [#allocation3], %s159
          %s161 = sand.u32 %s52, 1
          %s162 = smul.addr %s161, 64
          %s163 = scalar_lea.vmem [#allocation2], %s162
          %s165 = ssub.s32 1024, 1024
          %166 = vsyncadd %s160, %s165
          %s167 = smul.addr %s16, 8
          %s168 = smul.addr %s167, 128
          %s169 = scalar_lea.hbm %s1, %s168
          %s170 = sshll.u32 %s163, 4
          %s171 = int_to_ptr.vmem [resolvable:$true] %s170
          %176 = dma.hbm_to_vmem [thread:$0]  %s169, 1024, %s171, %s160, 256, 256, 16
        $region28: #{tpu_custom_call.1} parent=19 // pred_fallthru
          _
      $region20: #{tpu_custom_call.1} parent=5 // pred_fallthru
        _
      %p177 = scmp.le.s32.totalorder 1, %s16
      %p178 = scmp.lt.s32.totalorder %s16, 17
      %p179 = pnand %p177, %p178
      %p180 = pneg %p179
      // Predicated region
      $region29: #{tpu_custom_call.1} parent=5 // pred_check
        _
      $region30: #{tpu_custom_call.1} parent=5 // pred_check_branch
        %182 = sbr.rel (%p179) target = $region32
      $region31: #{tpu_custom_call.1} parent=5 // pred_region
        %s183 = ssub.s32 %s16, 1
        %s184 = sand.u32 %s55, 1
        %s185 = scalar_lea.sflag [#allocation3], %s184
        %s186 = sand.u32 %s55, 1
        %s187 = smul.addr %s186, 64
        %s188 = scalar_lea.vmem [#allocation2], %s187
        // Predicated region
        $region33: #{tpu_custom_call.1} parent=31 // pred_check
          %p189 = pneg %p68
        $region34: #{tpu_custom_call.1} parent=31 // pred_check_branch
          %191 = sbr.rel (%p189) target = $region36
        $region35: #{tpu_custom_call.1} parent=31 // pred_region
          %192 = dma.done %s185, 1024
        $region36: #{tpu_custom_call.1} parent=31 // pred_fallthru
          _
        // Predicated region
        $region37: #{tpu_custom_call.1} parent=31 // pred_check
          %p193 = pneg %p89
        $region38: #{tpu_custom_call.1} parent=31 // pred_check_branch
          %195 = sbr.rel (%p193) target = $region40
        $region39: #{tpu_custom_call.1} parent=31 // pred_region
          %196 = dma.done [#allocation6], 16384
        $region40: #{tpu_custom_call.1} parent=31 // pred_fallthru
          _
        %s197 = smul.u32 16, %s21
        %p198 = scmp.lt.s32.totalorder %s197, 255
        %s199 = scalar_select %p198, %s197, 255
        %s200 = smul.addr %s199, 8
        %s201 = scalar_lea.vmem %s0, %s200
        %p202 = pneg %p42
        %p203 = pneg %p39
        %s204 = sand.u32 %s55, 1
        %s205 = scalar_lea.sflag [#allocation3], %s204
        %s206 = sand.u32 %s55, 1
        %s207 = smul.addr %s206, 64
        %s208 = scalar_lea.vmem [#allocation2], %s207
        %p209 = pneg %p68
        %p210 = pneg %p65
        %p211 = pneg %p89
        %p212 = pneg %p86
        %p213 = pneg %p115
        %p214 = pneg %p112
        %s215 = sand.u32 %s102, 1
        %s216 = scalar_lea.sflag [#allocation4], %s215
        %s217 = sand.u32 %s102, 1
        %s218 = smul.addr %s217, 256
        %s219 = scalar_lea.vmem [#allocation7], %s218
        %s220 = smul.u32 16, %s21
        %p221 = scmp.lt.s32.totalorder %s220, 255
        %s222 = scalar_select %p221, %s220, 255
        %s223 = smul.addr %s222, 8
        %s224 = scalar_lea.vmem %s0, %s223
        %s225 = smul.u32 16, %s21
        %s226 = smul.u32 2, %s21
        %v227 = vld [vmem:[%s224] sm:$0xff]
        %v228 = vld [vmem:[%s224 + $0x8] sm:$0xff]
        %v229 = vld [vmem:[%s224 + $0x10] sm:$0xff]
        %v230 = vld [vmem:[%s224 + $0x18] sm:$0xff]
        %v231 = vld [vmem:[%s224 + $0x20] sm:$0xff]
        %v232 = vld [vmem:[%s224 + $0x28] sm:$0xff]
        %v233 = vld [vmem:[%s224 + $0x30] sm:$0xff]
        %v234 = vld [vmem:[%s224 + $0x38] sm:$0xff]
        %v235 = vld [vmem:[%s224 + $0x40] sm:$0xff]
        %v236 = vld [vmem:[%s224 + $0x48] sm:$0xff]
        %v237 = vld [vmem:[%s224 + $0x50] sm:$0xff]
        %v238 = vld [vmem:[%s224 + $0x58] sm:$0xff]
        %v239 = vld [vmem:[%s224 + $0x60] sm:$0xff]
        %v240 = vld [vmem:[%s224 + $0x68] sm:$0xff]
        %v241 = vld [vmem:[%s224 + $0x70] sm:$0xff]
        %v242 = vld [vmem:[%s224 + $0x78] sm:$0xff]
        %v243 = vld [vmem:[%s188] sm:$0xff]
        %v244 = vld [vmem:[%s188 + $0x8] sm:$0xff]
        %v245 = vld [vmem:[%s188 + $0x10] sm:$0xff]
        %v246 = vld [vmem:[%s188 + $0x18] sm:$0xff]
        %v247 = vld [vmem:[%s188 + $0x20] sm:$0xff]
        %v248 = vld [vmem:[%s188 + $0x28] sm:$0xff]
        %v249 = vld [vmem:[%s188 + $0x30] sm:$0xff]
        %v250 = vld [vmem:[%s188 + $0x38] sm:$0xff]
        %vm251 = vcmask 261120
        %v253 = vsel %vm251, %v227, 0
        %v256 = vsel %vm251, %v228, 0
        %v259 = vsel %vm251, %v229, 0
        %v262 = vsel %vm251, %v230, 0
        %v265 = vsel %vm251, %v231, 0
        %v268 = vsel %vm251, %v232, 0
        %v271 = vsel %vm251, %v233, 0
        %v274 = vsel %vm251, %v234, 0
        %v277 = vsel %vm251, %v235, 0
        %v280 = vsel %vm251, %v236, 0
        %v283 = vsel %vm251, %v237, 0
        %v286 = vsel %vm251, %v238, 0
        %v289 = vsel %vm251, %v239, 0
        %v292 = vsel %vm251, %v240, 0
        %v295 = vsel %vm251, %v241, 0
        %v298 = vsel %vm251, %v242, 0
        %v300 = vand.u32 %v244, 4294901760
        %301 = vmatprep.subr.mxu0 %v300
        %v302 = vand.u32 %v243, 4294901760
        %303 = vmatpush1.msra.mxu0 %v302
        %v304 = vand.u32 %v246, 4294901760
        %305 = vmatprep.subr.mxu0 %v304
        %v306 = vand.u32 %v245, 4294901760
        %307 = vmatpush1.msra.mxu0 %v306
        %v308 = vand.u32 %v248, 4294901760
        %309 = vmatprep.subr.mxu0 %v308
        %v310 = vand.u32 %v247, 4294901760
        %311 = vmatpush1.msra.mxu0 %v310
        %v312 = vand.u32 %v250, 4294901760
        %313 = vmatprep.subr.mxu0 %v312
        %v314 = vand.u32 %v249, 4294901760
        %315 = vmatpush1.msra.mxu0 %v314
        %316 = vmatprep.subr.mxu0 0.0
        %317 = vmatpush1.msra.mxu0 0.0
        %318 = vmatprep.subr.mxu0 0.0
        %319 = vmatpush1.msra.mxu0 0.0
        %320 = vmatprep.subr.mxu0 0.0
        %321 = vmatpush1.msra.mxu0 0.0
        %322 = vmatprep.subr.mxu0 0.0
        %323 = vmatpush1.msra.mxu0 0.0
        %324 = vmatprep.subr.mxu0 0.0
        %325 = vmatpush1.msra.mxu0 0.0
        %326 = vmatprep.subr.mxu0 0.0
        %327 = vmatpush1.msra.mxu0 0.0
        %328 = vmatprep.subr.mxu0 0.0
        %329 = vmatpush1.msra.mxu0 0.0
        %330 = vmatprep.subr.mxu0 0.0
        %331 = vmatpush1.msra.mxu0 0.0
        %332 = vmatprep.subr.mxu0 0.0
        %333 = vmatpush1.msra.mxu0 0.0
        %334 = vmatprep.subr.mxu0 0.0
        %335 = vmatpush1.msra.mxu0 0.0
        %336 = vmatprep.subr.mxu0 0.0
        %337 = vmatpush1.msra.mxu0 0.0
        %338 = vmatprep.subr.mxu0 0.0
        %339 = vmatpush1.msra.mxu0 0.0
        %340 = vmatprep.subr.mxu0 0.0
        %341 = vmatpush1.msra.mxu0 0.0
        %342 = vmatprep.subr.mxu0 0.0
        %343 = vmatpush1.msra.mxu0 0.0
        %344 = vmatprep.subr.mxu0 0.0
        %345 = vmatpush1.msra.mxu0 0.0
        %346 = vmatprep.subr.mxu0 0.0
        %347 = vmatpush1.msra.mxu0 0.0
        %348 = vmatprep.subr.mxu0 0.0
        %349 = vmatpush1.msra.mxu0 0.0
        %350 = vmatprep.subr.mxu0 0.0
        %351 = vmatpush1.msra.mxu0 0.0
        %352 = vmatprep.subr.mxu0 0.0
        %353 = vmatpush1.msra.mxu0 0.0
        %354 = vmatprep.subr.mxu0 0.0
        %355 = vmatpush1.msra.mxu0 0.0
        %356 = vmatprep.subr.mxu0 0.0
        %357 = vmatpush1.msra.mxu0 0.0
        %358 = vmatprep.subr.mxu0 0.0
        %359 = vmatpush1.msra.mxu0 0.0
        %360 = vmatprep.subr.mxu0 0.0
        %361 = vmatpush1.msra.mxu0 0.0
        %362 = vmatprep.subr.mxu0 0.0
        %363 = vmatpush1.msra.mxu0 0.0
        %364 = vmatprep.subr.mxu0 0.0
        %365 = vmatpush1.msra.mxu0 0.0
        %366 = vmatprep.subr.mxu0 0.0
        %367 = vmatpush1.msra.mxu0 0.0
        %368 = vmatprep.subr.mxu0 0.0
        %369 = vmatpush1.msra.mxu0 0.0
        %370 = vmatprep.subr.mxu0 0.0
        %371 = vmatpush1.msra.mxu0 0.0
        %372 = vmatprep.mubr.f32.mxu0 0.0
        %v373 = vand.u32 %v253, 4294901760
        %v374 = vsub.f32 %v253, %v373
        %v375 = vand.u32 %v374, 4294901760
        %v376 = vsub.f32 %v374, %v375
        %v377 = vand.u32 %v376, 4294901760
        %378 = vmatmul.mubr.f32.gmra.mrb[0].mxu0 %v377
        %v379 = vpop.f32.mrb[0].mxu0
        %v380 = vadd.f32 0.0, %v379
        %v381 = vpop.f32.mrb[0].mxu0
        %v382 = vadd.f32 0.0, %v381
        %383 = vmatprep.mubr.f32.mxu0 0.0
        %v384 = vand.u32 %v256, 4294901760
        %v385 = vsub.f32 %v256, %v384
        %v386 = vand.u32 %v385, 4294901760
        %v387 = vsub.f32 %v385, %v386
        %v388 = vand.u32 %v387, 4294901760
        %389 = vmatmul.mubr.f32.gmra.mrb[0].mxu0 %v388
        %v390 = vpop.f32.mrb[0].mxu0
        %v391 = vadd.f32 0.0, %v390
        %v392 = vpop.f32.mrb[0].mxu0
        %v393 = vadd.f32 0.0, %v392
        %394 = vmatprep.mubr.f32.mxu0 0.0
        %v395 = vand.u32 %v259, 4294901760
        %v396 = vsub.f32 %v259, %v395
        %v397 = vand.u32 %v396, 4294901760
        %v398 = vsub.f32 %v396, %v397
        %v399 = vand.u32 %v398, 4294901760
        %400 = vmatmul.mubr.f32.gmra.mrb[0].mxu0 %v399
        %v401 = vpop.f32.mrb[0].mxu0
        %v402 = vadd.f32 0.0, %v401
        %v403 = vpop.f32.mrb[0].mxu0
        %v404 = vadd.f32 0.0, %v403
        %405 = vmatprep.mubr.f32.mxu0 0.0
        %v406 = vand.u32 %v262, 4294901760
        %v407 = vsub.f32 %v262, %v406
        %v408 = vand.u32 %v407, 4294901760
        %v409 = vsub.f32 %v407, %v408
        %v410 = vand.u32 %v409, 4294901760
        %411 = vmatmul.mubr.f32.gmra.mrb[0].mxu0 %v410
        %v412 = vpop.f32.mrb[0].mxu0
        %v413 = vadd.f32 0.0, %v412
        %v414 = vpop.f32.mrb[0].mxu0
        %v415 = vadd.f32 0.0, %v414
        %416 = vmatprep.mubr.f32.mxu0 0.0
        %v417 = vand.u32 %v265, 4294901760
        %v418 = vsub.f32 %v265, %v417
        %v419 = vand.u32 %v418, 4294901760
        %v420 = vsub.f32 %v418, %v419
        %v421 = vand.u32 %v420, 4294901760
        %422 = vmatmul.mubr.f32.gmra.mrb[0].mxu0 %v421
        %v423 = vpop.f32.mrb[0].mxu0
        %v424 = vadd.f32 0.0, %v423
        %v425 = vpop.f32.mrb[0].mxu0
        %v426 = vadd.f32 0.0, %v425
        %427 = vmatprep.mubr.f32.mxu0 0.0
        %v428 = vand.u32 %v268, 4294901760
        %v429 = vsub.f32 %v268, %v428
        %v430 = vand.u32 %v429, 4294901760
        %v431 = vsub.f32 %v429, %v430
        %v432 = vand.u32 %v431, 4294901760
        %433 = vmatmul.mubr.f32.gmra.mrb[0].mxu0 %v432
        %v434 = vpop.f32.mrb[0].mxu0
        %v435 = vadd.f32 0.0, %v434
        %v436 = vpop.f32.mrb[0].mxu0
        %v437 = vadd.f32 0.0, %v436
        %438 = vmatprep.mubr.f32.mxu0 0.0
        %v439 = vand.u32 %v271, 4294901760
        %v440 = vsub.f32 %v271, %v439
        %v441 = vand.u32 %v440, 4294901760
        %v442 = vsub.f32 %v440, %v441
        %v443 = vand.u32 %v442, 4294901760
        %444 = vmatmul.mubr.f32.gmra.mrb[0].mxu0 %v443
        %v445 = vpop.f32.mrb[0].mxu0
        %v446 = vadd.f32 0.0, %v445
        %v447 = vpop.f32.mrb[0].mxu0
        %v448 = vadd.f32 0.0, %v447
        %449 = vmatprep.mubr.f32.mxu0 0.0
        %v450 = vand.u32 %v274, 4294901760
        %v451 = vsub.f32 %v274, %v450
        %v452 = vand.u32 %v451, 4294901760
        %v453 = vsub.f32 %v451, %v452
        %v454 = vand.u32 %v453, 4294901760
        %455 = vmatmul.mubr.f32.gmra.mrb[0].mxu0 %v454
        %v456 = vpop.f32.mrb[0].mxu0
        %v457 = vadd.f32 0.0, %v456
        %v458 = vpop.f32.mrb[0].mxu0
        %v459 = vadd.f32 0.0, %v458
        %460 = vmatprep.mubr.f32.mxu0 0.0
        %v461 = vand.u32 %v277, 4294901760
        %v462 = vsub.f32 %v277, %v461
        %v463 = vand.u32 %v462, 4294901760
        %v464 = vsub.f32 %v462, %v463
        %v465 = vand.u32 %v464, 4294901760
        %466 = vmatmul.mubr.f32.gmra.mrb[0].mxu0 %v465
        %v467 = vpop.f32.mrb[0].mxu0
        %v468 = vadd.f32 0.0, %v467
        %v469 = vpop.f32.mrb[0].mxu0
        %v470 = vadd.f32 0.0, %v469
        %471 = vmatprep.mubr.f32.mxu0 0.0
        %v472 = vand.u32 %v280, 4294901760
        %v473 = vsub.f32 %v280, %v472
        %v474 = vand.u32 %v473, 4294901760
        %v475 = vsub.f32 %v473, %v474
        %v476 = vand.u32 %v475, 4294901760
        %477 = vmatmul.mubr.f32.gmra.mrb[0].mxu0 %v476
        %v478 = vpop.f32.mrb[0].mxu0
        %v479 = vadd.f32 0.0, %v478
        %v480 = vpop.f32.mrb[0].mxu0
        %v481 = vadd.f32 0.0, %v480
        %482 = vmatprep.mubr.f32.mxu0 0.0
        %v483 = vand.u32 %v283, 4294901760
        %v484 = vsub.f32 %v283, %v483
        %v485 = vand.u32 %v484, 4294901760
        %v486 = vsub.f32 %v484, %v485
        %v487 = vand.u32 %v486, 4294901760
        %488 = vmatmul.mubr.f32.gmra.mrb[0].mxu0 %v487
        %v489 = vpop.f32.mrb[0].mxu0
        %v490 = vadd.f32 0.0, %v489
        %v491 = vpop.f32.mrb[0].mxu0
        %v492 = vadd.f32 0.0, %v491
        %493 = vmatprep.mubr.f32.mxu0 0.0
        %v494 = vand.u32 %v286, 4294901760
        %v495 = vsub.f32 %v286, %v494
        %v496 = vand.u32 %v495, 4294901760
        %v497 = vsub.f32 %v495, %v496
        %v498 = vand.u32 %v497, 4294901760
        %499 = vmatmul.mubr.f32.gmra.mrb[0].mxu0 %v498
        %v500 = vpop.f32.mrb[0].mxu0
        %v501 = vadd.f32 0.0, %v500
        %v502 = vpop.f32.mrb[0].mxu0
        %v503 = vadd.f32 0.0, %v502
        %504 = vmatprep.mubr.f32.mxu0 0.0
        %v505 = vand.u32 %v289, 4294901760
        %v506 = vsub.f32 %v289, %v505
        %v507 = vand.u32 %v506, 4294901760
        %v508 = vsub.f32 %v506, %v507
        %v509 = vand.u32 %v508, 4294901760
        %510 = vmatmul.mubr.f32.gmra.mrb[0].mxu0 %v509
        %v511 = vpop.f32.mrb[0].mxu0
        %v512 = vadd.f32 0.0, %v511
        %v513 = vpop.f32.mrb[0].mxu0
        %v514 = vadd.f32 0.0, %v513
        %515 = vmatprep.mubr.f32.mxu0 0.0
        %v516 = vand.u32 %v292, 4294901760
        %v517 = vsub.f32 %v292, %v516
        %v518 = vand.u32 %v517, 4294901760
        %v519 = vsub.f32 %v517, %v518
        %v520 = vand.u32 %v519, 4294901760
        %521 = vmatmul.mubr.f32.gmra.mrb[0].mxu0 %v520
        %v522 = vpop.f32.mrb[0].mxu0
        %v523 = vadd.f32 0.0, %v522
        %v524 = vpop.f32.mrb[0].mxu0
        %v525 = vadd.f32 0.0, %v524
        %526 = vmatprep.mubr.f32.mxu0 0.0
        %v527 = vand.u32 %v295, 4294901760
        %v528 = vsub.f32 %v295, %v527
        %v529 = vand.u32 %v528, 4294901760
        %v530 = vsub.f32 %v528, %v529
        %v531 = vand.u32 %v530, 4294901760
        %532 = vmatmul.mubr.f32.gmra.mrb[0].mxu0 %v531
        %v533 = vpop.f32.mrb[0].mxu0
        %v534 = vadd.f32 0.0, %v533
        %v535 = vpop.f32.mrb[0].mxu0
        %v536 = vadd.f32 0.0, %v535
        %537 = vmatprep.mubr.f32.mxu0 0.0
        %v538 = vand.u32 %v298, 4294901760
        %v539 = vsub.f32 %v298, %v538
        %v540 = vand.u32 %v539, 4294901760
        %v541 = vsub.f32 %v539, %v540
        %v542 = vand.u32 %v541, 4294901760
        %543 = vmatmul.mubr.f32.gmra.mrb[0].mxu0 %v542
        %v544 = vpop.f32.mrb[0].mxu0
        %v545 = vadd.f32 0.0, %v544
        %v546 = vpop.f32.mrb[0].mxu0
        %v547 = vadd.f32 0.0, %v546
        %548 = vdwg.mxu0
        %v549 = vand.u32 %v244, 4294901760
        %v550 = vsub.f32 %v244, %v549
        %v551 = vand.u32 %v550, 4294901760
        %v552 = vsub.f32 %v550, %v551
        %v553 = vand.u32 %v552, 4294901760
        %554 = vmatprep.subr.mxu0 %v553
        %v555 = vand.u32 %v243, 4294901760
        %v556 = vsub.f32 %v243, %v555
        %v557 = vand.u32 %v556, 4294901760
        %v558 = vsub.f32 %v556, %v557
        %v559 = vand.u32 %v558, 4294901760
        %560 = vmatpush1.msra.mxu0 %v559
        %v561 = vand.u32 %v246, 4294901760
        %v562 = vsub.f32 %v246, %v561
        %v563 = vand.u32 %v562, 4294901760
        %v564 = vsub.f32 %v562, %v563
        %v565 = vand.u32 %v564, 4294901760
        %566 = vmatprep.subr.mxu0 %v565
        %v567 = vand.u32 %v245, 4294901760
        %v568 = vsub.f32 %v245, %v567
        %v569 = vand.u32 %v568, 4294901760
        %v570 = vsub.f32 %v568, %v569
        %v571 = vand.u32 %v570, 4294901760
        %572 = vmatpush1.msra.mxu0 %v571
        %v573 = vand.u32 %v248, 4294901760
        %v574 = vsub.f32 %v248, %v573
        %v575 = vand.u32 %v574, 4294901760
        %v576 = vsub.f32 %v574, %v575
        %v577 = vand.u32 %v576, 4294901760
        %578 = vmatprep.subr.mxu0 %v577
        %v579 = vand.u32 %v247, 4294901760
        %v580 = vsub.f32 %v247, %v579
        %v581 = vand.u32 %v580, 4294901760
        %v582 = vsub.f32 %v580, %v581
        %v583 = vand.u32 %v582, 4294901760
        %584 = vmatpush1.msra.mxu0 %v583
        %v585 = vand.u32 %v250, 4294901760
        %v586 = vsub.f32 %v250, %v585
        %v587 = vand.u32 %v586, 4294901760
        %v588 = vsub.f32 %v586, %v587
        %v589 = vand.u32 %v588, 4294901760
        %590 = vmatprep.subr.mxu0 %v589
        %v591 = vand.u32 %v249, 4294901760
        %v592 = vsub.f32 %v249, %v591
        %v593 = vand.u32 %v592, 4294901760
        %v594 = vsub.f32 %v592, %v593
        %v595 = vand.u32 %v594, 4294901760
        %596 = vmatpush1.msra.mxu0 %v595
        %597 = vmatprep.subr.mxu0 0.0
        %598 = vmatpush1.msra.mxu0 0.0
        %599 = vmatprep.subr.mxu0 0.0
        %600 = vmatpush1.msra.mxu0 0.0
        %601 = vmatprep.subr.mxu0 0.0
        %602 = vmatpush1.msra.mxu0 0.0
        %603 = vmatprep.subr.mxu0 0.0
        %604 = vmatpush1.msra.mxu0 0.0
        %605 = vmatprep.subr.mxu0 0.0
        %606 = vmatpush1.msra.mxu0 0.0
        %607 = vmatprep.subr.mxu0 0.0
        %608 = vmatpush1.msra.mxu0 0.0
        %609 = vmatprep.subr.mxu0 0.0
        %610 = vmatpush1.msra.mxu0 0.0
        %611 = vmatprep.subr.mxu0 0.0
        %612 = vmatpush1.msra.mxu0 0.0
        %613 = vmatprep.subr.mxu0 0.0
        %614 = vmatpush1.msra.mxu0 0.0
        %615 = vmatprep.subr.mxu0 0.0
        %616 = vmatpush1.msra.mxu0 0.0
        %617 = vmatprep.subr.mxu0 0.0
        %618 = vmatpush1.msra.mxu0 0.0
        %619 = vmatprep.subr.mxu0 0.0
        %620 = vmatpush1.msra.mxu0 0.0
        %621 = vmatprep.subr.mxu0 0.0
        %622 = vmatpush1.msra.mxu0 0.0
        %623 = vmatprep.subr.mxu0 0.0
        %624 = vmatpush1.msra.mxu0 0.0
        %625 = vmatprep.subr.mxu0 0.0
        %626 = vmatpush1.msra.mxu0 0.0
        %627 = vmatprep.subr.mxu0 0.0
        %628 = vmatpush1.msra.mxu0 0.0
        %629 = vmatprep.subr.mxu0 0.0
        %630 = vmatpush1.msra.mxu0 0.0
        %631 = vmatprep.subr.mxu0 0.0
        %632 = vmatpush1.msra.mxu0 0.0
        %633 = vmatprep.subr.mxu0 0.0
        %634 = vmatpush1.msra.mxu0 0.0
        %635 = vmatprep.subr.mxu0 0.0
        %636 = vmatpush1.msra.mxu0 0.0
        %637 = vmatprep.subr.mxu0 0.0
        %638 = vmatpush1.msra.mxu0 0.0
        %639 = vmatprep.subr.mxu0 0.0
        %640 = vmatpush1.msra.mxu0 0.0
        %641 = vmatprep.subr.mxu0 0.0
        %642 = vmatpush1.msra.mxu0 0.0
        %643 = vmatprep.subr.mxu0 0.0
        %644 = vmatpush1.msra.mxu0 0.0
        %645 = vmatprep.subr.mxu0 0.0
        %646 = vmatpush1.msra.mxu0 0.0
        %647 = vmatprep.subr.mxu0 0.0
        %648 = vmatpush1.msra.mxu0 0.0
        %649 = vmatprep.subr.mxu0 0.0
        %650 = vmatpush1.msra.mxu0 0.0
        %651 = vmatprep.subr.mxu0 0.0
        %652 = vmatpush1.msra.mxu0 0.0
        %653 = vmatprep.mubr.f32.mxu0 0.0
        %v654 = vand.u32 %v253, 4294901760
        %655 = vmatmul.mubr.f32.gmra.mrb[0].mxu0 %v654
        %v656 = vpop.f32.mrb[0].mxu0
        %v657 = vadd.f32 %v380, %v656
        %v658 = vpop.f32.mrb[0].mxu0
        %v659 = vadd.f32 %v382, %v658
        %660 = vmatprep.mubr.f32.mxu0 0.0
        %v661 = vand.u32 %v256, 4294901760
        %662 = vmatmul.mubr.f32.gmra.mrb[0].mxu0 %v661
        %v663 = vpop.f32.mrb[0].mxu0
        %v664 = vadd.f32 %v391, %v663
        %v665 = vpop.f32.mrb[0].mxu0
        %v666 = vadd.f32 %v393, %v665
        %667 = vmatprep.mubr.f32.mxu0 0.0
        %v668 = vand.u32 %v259, 4294901760
        %669 = vmatmul.mubr.f32.gmra.mrb[0].mxu0 %v668
        %v670 = vpop.f32.mrb[0].mxu0
        %v671 = vadd.f32 %v402, %v670
        %v672 = vpop.f32.mrb[0].mxu0
        %v673 = vadd.f32 %v404, %v672
        %674 = vmatprep.mubr.f32.mxu0 0.0
        %v675 = vand.u32 %v262, 4294901760
        %676 = vmatmul.mubr.f32.gmra.mrb[0].mxu0 %v675
        %v677 = vpop.f32.mrb[0].mxu0
        %v678 = vadd.f32 %v413, %v677
        %v679 = vpop.f32.mrb[0].mxu0
        %v680 = vadd.f32 %v415, %v679
        %681 = vmatprep.mubr.f32.mxu0 0.0
        %v682 = vand.u32 %v265, 4294901760
        %683 = vmatmul.mubr.f32.gmra.mrb[0].mxu0 %v682
        %v684 = vpop.f32.mrb[0].mxu0
        %v685 = vadd.f32 %v424, %v684
        %v686 = vpop.f32.mrb[0].mxu0
        %v687 = vadd.f32 %v426, %v686
        %688 = vmatprep.mubr.f32.mxu0 0.0
        %v689 = vand.u32 %v268, 4294901760
        %690 = vmatmul.mubr.f32.gmra.mrb[0].mxu0 %v689
        %v691 = vpop.f32.mrb[0].mxu0
        %v692 = vadd.f32 %v435, %v691
        %v693 = vpop.f32.mrb[0].mxu0
        %v694 = vadd.f32 %v437, %v693
        %695 = vmatprep.mubr.f32.mxu0 0.0
        %v696 = vand.u32 %v271, 4294901760
        %697 = vmatmul.mubr.f32.gmra.mrb[0].mxu0 %v696
        %v698 = vpop.f32.mrb[0].mxu0
        %v699 = vadd.f32 %v446, %v698
        %v700 = vpop.f32.mrb[0].mxu0
        %v701 = vadd.f32 %v448, %v700
        %702 = vmatprep.mubr.f32.mxu0 0.0
        %v703 = vand.u32 %v274, 4294901760
        %704 = vmatmul.mubr.f32.gmra.mrb[0].mxu0 %v703
        %v705 = vpop.f32.mrb[0].mxu0
        %v706 = vadd.f32 %v457, %v705
        %v707 = vpop.f32.mrb[0].mxu0
        %v708 = vadd.f32 %v459, %v707
        %709 = vmatprep.mubr.f32.mxu0 0.0
        %v710 = vand.u32 %v277, 4294901760
        %711 = vmatmul.mubr.f32.gmra.mrb[0].mxu0 %v710
        %v712 = vpop.f32.mrb[0].mxu0
        %v713 = vadd.f32 %v468, %v712
        %v714 = vpop.f32.mrb[0].mxu0
        %v715 = vadd.f32 %v470, %v714
        %716 = vmatprep.mubr.f32.mxu0 0.0
        %v717 = vand.u32 %v280, 4294901760
        %718 = vmatmul.mubr.f32.gmra.mrb[0].mxu0 %v717
        %v719 = vpop.f32.mrb[0].mxu0
        %v720 = vadd.f32 %v479, %v719
        %v721 = vpop.f32.mrb[0].mxu0
        %v722 = vadd.f32 %v481, %v721
        %723 = vmatprep.mubr.f32.mxu0 0.0
        %v724 = vand.u32 %v283, 4294901760
        %725 = vmatmul.mubr.f32.gmra.mrb[0].mxu0 %v724
        %v726 = vpop.f32.mrb[0].mxu0
        %v727 = vadd.f32 %v490, %v726
        %v728 = vpop.f32.mrb[0].mxu0
        %v729 = vadd.f32 %v492, %v728
        %730 = vmatprep.mubr.f32.mxu0 0.0
        %v731 = vand.u32 %v286, 4294901760
        %732 = vmatmul.mubr.f32.gmra.mrb[0].mxu0 %v731
        %v733 = vpop.f32.mrb[0].mxu0
        %v734 = vadd.f32 %v501, %v733
        %v735 = vpop.f32.mrb[0].mxu0
        %v736 = vadd.f32 %v503, %v735
        %737 = vmatprep.mubr.f32.mxu0 0.0
        %v738 = vand.u32 %v289, 4294901760
        %739 = vmatmul.mubr.f32.gmra.mrb[0].mxu0 %v738
        %v740 = vpop.f32.mrb[0].mxu0
        %v741 = vadd.f32 %v512, %v740
        %v742 = vpop.f32.mrb[0].mxu0
        %v743 = vadd.f32 %v514, %v742
        %744 = vmatprep.mubr.f32.mxu0 0.0
        %v745 = vand.u32 %v292, 4294901760
        %746 = vmatmul.mubr.f32.gmra.mrb[0].mxu0 %v745
        %v747 = vpop.f32.mrb[0].mxu0
        %v748 = vadd.f32 %v523, %v747
        %v749 = vpop.f32.mrb[0].mxu0
        %v750 = vadd.f32 %v525, %v749
        %751 = vmatprep.mubr.f32.mxu0 0.0
        %v752 = vand.u32 %v295, 4294901760
        %753 = vmatmul.mubr.f32.gmra.mrb[0].mxu0 %v752
        %v754 = vpop.f32.mrb[0].mxu0
        %v755 = vadd.f32 %v534, %v754
        %v756 = vpop.f32.mrb[0].mxu0
        %v757 = vadd.f32 %v536, %v756
        %758 = vmatprep.mubr.f32.mxu0 0.0
        %v759 = vand.u32 %v298, 4294901760
        %760 = vmatmul.mubr.f32.gmra.mrb[0].mxu0 %v759
        %v761 = vpop.f32.mrb[0].mxu0
        %v762 = vadd.f32 %v545, %v761
        %v763 = vpop.f32.mrb[0].mxu0
        %v764 = vadd.f32 %v547, %v763
        %765 = vdwg.mxu0
        %v766 = vand.u32 %v244, 4294901760
        %v767 = vsub.f32 %v244, %v766
        %768 = vmatprep.subr.mxu0 %v767
        %v769 = vand.u32 %v243, 4294901760
        %v770 = vsub.f32 %v243, %v769
        %771 = vmatpush1.msra.mxu0 %v770
        %v772 = vand.u32 %v246, 4294901760
        %v773 = vsub.f32 %v246, %v772
        %774 = vmatprep.subr.mxu0 %v773
        %v775 = vand.u32 %v245, 4294901760
        %v776 = vsub.f32 %v245, %v775
        %777 = vmatpush1.msra.mxu0 %v776
        %v778 = vand.u32 %v248, 4294901760
        %v779 = vsub.f32 %v248, %v778
        %780 = vmatprep.subr.mxu0 %v779
        %v781 = vand.u32 %v247, 4294901760
        %v782 = vsub.f32 %v247, %v781
        %783 = vmatpush1.msra.mxu0 %v782
        %v784 = vand.u32 %v250, 4294901760
        %v785 = vsub.f32 %v250, %v784
        %786 = vmatprep.subr.mxu0 %v785
        %v787 = vand.u32 %v249, 4294901760
        %v788 = vsub.f32 %v249, %v787
        %789 = vmatpush1.msra.mxu0 %v788
        %790 = vmatprep.subr.mxu0 0.0
        %791 = vmatpush1.msra.mxu0 0.0
        %792 = vmatprep.subr.mxu0 0.0
        %793 = vmatpush1.msra.mxu0 0.0
        %794 = vmatprep.subr.mxu0 0.0
        %795 = vmatpush1.msra.mxu0 0.0
        %796 = vmatprep.subr.mxu0 0.0
        %797 = vmatpush1.msra.mxu0 0.0
        %798 = vmatprep.subr.mxu0 0.0
        %799 = vmatpush1.msra.mxu0 0.0
        %800 = vmatprep.subr.mxu0 0.0
        %801 = vmatpush1.msra.mxu0 0.0
        %802 = vmatprep.subr.mxu0 0.0
        %803 = vmatpush1.msra.mxu0 0.0
        %804 = vmatprep.subr.mxu0 0.0
        %805 = vmatpush1.msra.mxu0 0.0
        %806 = vmatprep.subr.mxu0 0.0
        %807 = vmatpush1.msra.mxu0 0.0
        %808 = vmatprep.subr.mxu0 0.0
        %809 = vmatpush1.msra.mxu0 0.0
        %810 = vmatprep.subr.mxu0 0.0
        %811 = vmatpush1.msra.mxu0 0.0
        %812 = vmatprep.subr.mxu0 0.0
        %813 = vmatpush1.msra.mxu0 0.0
        %814 = vmatprep.subr.mxu0 0.0
        %815 = vmatpush1.msra.mxu0 0.0
        %816 = vmatprep.subr.mxu0 0.0
        %817 = vmatpush1.msra.mxu0 0.0
        %818 = vmatprep.subr.mxu0 0.0
        %819 = vmatpush1.msra.mxu0 0.0
        %820 = vmatprep.subr.mxu0 0.0
        %821 = vmatpush1.msra.mxu0 0.0
        %822 = vmatprep.subr.mxu0 0.0
        %823 = vmatpush1.msra.mxu0 0.0
        %824 = vmatprep.subr.mxu0 0.0
        %825 = vmatpush1.msra.mxu0 0.0
        %826 = vmatprep.subr.mxu0 0.0
        %827 = vmatpush1.msra.mxu0 0.0
        %828 = vmatprep.subr.mxu0 0.0
        %829 = vmatpush1.msra.mxu0 0.0
        %830 = vmatprep.subr.mxu0 0.0
        %831 = vmatpush1.msra.mxu0 0.0
        %832 = vmatprep.subr.mxu0 0.0
        %833 = vmatpush1.msra.mxu0 0.0
        %834 = vmatprep.subr.mxu0 0.0
        %835 = vmatpush1.msra.mxu0 0.0
        %836 = vmatprep.subr.mxu0 0.0
        %837 = vmatpush1.msra.mxu0 0.0
        %838 = vmatprep.subr.mxu0 0.0
        %839 = vmatpush1.msra.mxu0 0.0
        %840 = vmatprep.subr.mxu0 0.0
        %841 = vmatpush1.msra.mxu0 0.0
        %842 = vmatprep.subr.mxu0 0.0
        %843 = vmatpush1.msra.mxu0 0.0
        %844 = vmatprep.subr.mxu0 0.0
        %845 = vmatpush1.msra.mxu0 0.0
        %846 = vmatprep.mubr.f32.mxu0 0.0
        %v847 = vand.u32 %v253, 4294901760
        %v848 = vsub.f32 %v253, %v847
        %849 = vmatmul.mubr.f32.gmra.mrb[0].mxu0 %v848
        %v850 = vpop.f32.mrb[0].mxu0
        %v851 = vadd.f32 %v657, %v850
        %v852 = vpop.f32.mrb[0].mxu0
        %v853 = vadd.f32 %v659, %v852
        %854 = vmatprep.mubr.f32.mxu0 0.0
        %v855 = vand.u32 %v256, 4294901760
        %v856 = vsub.f32 %v256, %v855
        %857 = vmatmul.mubr.f32.gmra.mrb[0].mxu0 %v856
        %v858 = vpop.f32.mrb[0].mxu0
        %v859 = vadd.f32 %v664, %v858
        %v860 = vpop.f32.mrb[0].mxu0
        %v861 = vadd.f32 %v666, %v860
        %862 = vmatprep.mubr.f32.mxu0 0.0
        %v863 = vand.u32 %v259, 4294901760
        %v864 = vsub.f32 %v259, %v863
        %865 = vmatmul.mubr.f32.gmra.mrb[0].mxu0 %v864
        %v866 = vpop.f32.mrb[0].mxu0
        %v867 = vadd.f32 %v671, %v866
        %v868 = vpop.f32.mrb[0].mxu0
        %v869 = vadd.f32 %v673, %v868
        %870 = vmatprep.mubr.f32.mxu0 0.0
        %v871 = vand.u32 %v262, 4294901760
        %v872 = vsub.f32 %v262, %v871
        %873 = vmatmul.mubr.f32.gmra.mrb[0].mxu0 %v872
        %v874 = vpop.f32.mrb[0].mxu0
        %v875 = vadd.f32 %v678, %v874
        %v876 = vpop.f32.mrb[0].mxu0
        %v877 = vadd.f32 %v680, %v876
        %878 = vmatprep.mubr.f32.mxu0 0.0
        %v879 = vand.u32 %v265, 4294901760
        %v880 = vsub.f32 %v265, %v879
        %881 = vmatmul.mubr.f32.gmra.mrb[0].mxu0 %v880
        %v882 = vpop.f32.mrb[0].mxu0
        %v883 = vadd.f32 %v685, %v882
        %v884 = vpop.f32.mrb[0].mxu0
        %v885 = vadd.f32 %v687, %v884
        %886 = vmatprep.mubr.f32.mxu0 0.0
        %v887 = vand.u32 %v268, 4294901760
        %v888 = vsub.f32 %v268, %v887
        %889 = vmatmul.mubr.f32.gmra.mrb[0].mxu0 %v888
        %v890 = vpop.f32.mrb[0].mxu0
        %v891 = vadd.f32 %v692, %v890
        %v892 = vpop.f32.mrb[0].mxu0
        %v893 = vadd.f32 %v694, %v892
        %894 = vmatprep.mubr.f32.mxu0 0.0
        %v895 = vand.u32 %v271, 4294901760
        %v896 = vsub.f32 %v271, %v895
        %897 = vmatmul.mubr.f32.gmra.mrb[0].mxu0 %v896
        %v898 = vpop.f32.mrb[0].mxu0
        %v899 = vadd.f32 %v699, %v898
        %v900 = vpop.f32.mrb[0].mxu0
        %v901 = vadd.f32 %v701, %v900
        %902 = vmatprep.mubr.f32.mxu0 0.0
        %v903 = vand.u32 %v274, 4294901760
        %v904 = vsub.f32 %v274, %v903
        %905 = vmatmul.mubr.f32.gmra.mrb[0].mxu0 %v904
        %v906 = vpop.f32.mrb[0].mxu0
        %v907 = vadd.f32 %v706, %v906
        %v908 = vpop.f32.mrb[0].mxu0
        %v909 = vadd.f32 %v708, %v908
        %910 = vmatprep.mubr.f32.mxu0 0.0
        %v911 = vand.u32 %v277, 4294901760
        %v912 = vsub.f32 %v277, %v911
        %913 = vmatmul.mubr.f32.gmra.mrb[0].mxu0 %v912
        %v914 = vpop.f32.mrb[0].mxu0
        %v915 = vadd.f32 %v713, %v914
        %v916 = vpop.f32.mrb[0].mxu0
        %v917 = vadd.f32 %v715, %v916
        %918 = vmatprep.mubr.f32.mxu0 0.0
        %v919 = vand.u32 %v280, 4294901760
        %v920 = vsub.f32 %v280, %v919
        %921 = vmatmul.mubr.f32.gmra.mrb[0].mxu0 %v920
        %v922 = vpop.f32.mrb[0].mxu0
        %v923 = vadd.f32 %v720, %v922
        %v924 = vpop.f32.mrb[0].mxu0
        %v925 = vadd.f32 %v722, %v924
        %926 = vmatprep.mubr.f32.mxu0 0.0
        %v927 = vand.u32 %v283, 4294901760
        %v928 = vsub.f32 %v283, %v927
        %929 = vmatmul.mubr.f32.gmra.mrb[0].mxu0 %v928
        %v930 = vpop.f32.mrb[0].mxu0
        %v931 = vadd.f32 %v727, %v930
        %v932 = vpop.f32.mrb[0].mxu0
        %v933 = vadd.f32 %v729, %v932
        %934 = vmatprep.mubr.f32.mxu0 0.0
        %v935 = vand.u32 %v286, 4294901760
        %v936 = vsub.f32 %v286, %v935
        %937 = vmatmul.mubr.f32.gmra.mrb[0].mxu0 %v936
        %v938 = vpop.f32.mrb[0].mxu0
        %v939 = vadd.f32 %v734, %v938
        %v940 = vpop.f32.mrb[0].mxu0
        %v941 = vadd.f32 %v736, %v940
        %942 = vmatprep.mubr.f32.mxu0 0.0
        %v943 = vand.u32 %v289, 4294901760
        %v944 = vsub.f32 %v289, %v943
        %945 = vmatmul.mubr.f32.gmra.mrb[0].mxu0 %v944
        %v946 = vpop.f32.mrb[0].mxu0
        %v947 = vadd.f32 %v741, %v946
        %v948 = vpop.f32.mrb[0].mxu0
        %v949 = vadd.f32 %v743, %v948
        %950 = vmatprep.mubr.f32.mxu0 0.0
        %v951 = vand.u32 %v292, 4294901760
        %v952 = vsub.f32 %v292, %v951
        %953 = vmatmul.mubr.f32.gmra.mrb[0].mxu0 %v952
        %v954 = vpop.f32.mrb[0].mxu0
        %v955 = vadd.f32 %v748, %v954
        %v956 = vpop.f32.mrb[0].mxu0
        %v957 = vadd.f32 %v750, %v956
        %958 = vmatprep.mubr.f32.mxu0 0.0
        %v959 = vand.u32 %v295, 4294901760
        %v960 = vsub.f32 %v295, %v959
        %961 = vmatmul.mubr.f32.gmra.mrb[0].mxu0 %v960
        %v962 = vpop.f32.mrb[0].mxu0
        %v963 = vadd.f32 %v755, %v962
        %v964 = vpop.f32.mrb[0].mxu0
        %v965 = vadd.f32 %v757, %v964
        %966 = vmatprep.mubr.f32.mxu0 0.0
        %v967 = vand.u32 %v298, 4294901760
        %v968 = vsub.f32 %v298, %v967
        %969 = vmatmul.mubr.f32.gmra.mrb[0].mxu0 %v968
        %v970 = vpop.f32.mrb[0].mxu0
        %v971 = vadd.f32 %v762, %v970
        %v972 = vpop.f32.mrb[0].mxu0
        %v973 = vadd.f32 %v764, %v972
        %974 = vdwg.mxu0
        %v975 = vand.u32 %v244, 4294901760
        %976 = vmatprep.subr.mxu0 %v975
        %v977 = vand.u32 %v243, 4294901760
        %978 = vmatpush1.msra.mxu0 %v977
        %v979 = vand.u32 %v246, 4294901760
        %980 = vmatprep.subr.mxu0 %v979
        %v981 = vand.u32 %v245, 4294901760
        %982 = vmatpush1.msra.mxu0 %v981
        %v983 = vand.u32 %v248, 4294901760
        %984 = vmatprep.subr.mxu0 %v983
        %v985 = vand.u32 %v247, 4294901760
        %986 = vmatpush1.msra.mxu0 %v985
        %v987 = vand.u32 %v250, 4294901760
        %988 = vmatprep.subr.mxu0 %v987
        %v989 = vand.u32 %v249, 4294901760
        %990 = vmatpush1.msra.mxu0 %v989
        %991 = vmatprep.subr.mxu0 0.0
        %992 = vmatpush1.msra.mxu0 0.0
        %993 = vmatprep.subr.mxu0 0.0
        %994 = vmatpush1.msra.mxu0 0.0
        %995 = vmatprep.subr.mxu0 0.0
        %996 = vmatpush1.msra.mxu0 0.0
        %997 = vmatprep.subr.mxu0 0.0
        %998 = vmatpush1.msra.mxu0 0.0
        %999 = vmatprep.subr.mxu0 0.0
        %1000 = vmatpush1.msra.mxu0 0.0
        %1001 = vmatprep.subr.mxu0 0.0
        %1002 = vmatpush1.msra.mxu0 0.0
        %1003 = vmatprep.subr.mxu0 0.0
        %1004 = vmatpush1.msra.mxu0 0.0
        %1005 = vmatprep.subr.mxu0 0.0
        %1006 = vmatpush1.msra.mxu0 0.0
        %1007 = vmatprep.subr.mxu0 0.0
        %1008 = vmatpush1.msra.mxu0 0.0
        %1009 = vmatprep.subr.mxu0 0.0
        %1010 = vmatpush1.msra.mxu0 0.0
        %1011 = vmatprep.subr.mxu0 0.0
        %1012 = vmatpush1.msra.mxu0 0.0
        %1013 = vmatprep.subr.mxu0 0.0
        %1014 = vmatpush1.msra.mxu0 0.0
        %1015 = vmatprep.subr.mxu0 0.0
        %1016 = vmatpush1.msra.mxu0 0.0
        %1017 = vmatprep.subr.mxu0 0.0
        %1018 = vmatpush1.msra.mxu0 0.0
        %1019 = vmatprep.subr.mxu0 0.0
        %1020 = vmatpush1.msra.mxu0 0.0
        %1021 = vmatprep.subr.mxu0 0.0
        %1022 = vmatpush1.msra.mxu0 0.0
        %1023 = vmatprep.subr.mxu0 0.0
        %1024 = vmatpush1.msra.mxu0 0.0
        %1025 = vmatprep.subr.mxu0 0.0
        %1026 = vmatpush1.msra.mxu0 0.0
        %1027 = vmatprep.subr.mxu0 0.0
        %1028 = vmatpush1.msra.mxu0 0.0
        %1029 = vmatprep.subr.mxu0 0.0
        %1030 = vmatpush1.msra.mxu0 0.0
        %1031 = vmatprep.subr.mxu0 0.0
        %1032 = vmatpush1.msra.mxu0 0.0
        %1033 = vmatprep.subr.mxu0 0.0
        %1034 = vmatpush1.msra.mxu0 0.0
        %1035 = vmatprep.subr.mxu0 0.0
        %1036 = vmatpush1.msra.mxu0 0.0
        %1037 = vmatprep.subr.mxu0 0.0
        %1038 = vmatpush1.msra.mxu0 0.0
        %1039 = vmatprep.subr.mxu0 0.0
        %1040 = vmatpush1.msra.mxu0 0.0
        %1041 = vmatprep.subr.mxu0 0.0
        %1042 = vmatpush1.msra.mxu0 0.0
        %1043 = vmatprep.subr.mxu0 0.0
        %1044 = vmatpush1.msra.mxu0 0.0
        %1045 = vmatprep.subr.mxu0 0.0
        %1046 = vmatpush1.msra.mxu0 0.0
        %1047 = vmatprep.mubr.f32.mxu0 0.0
        %v1048 = vand.u32 %v253, 4294901760
        %v1049 = vsub.f32 %v253, %v1048
        %v1050 = vand.u32 %v1049, 4294901760
        %1051 = vmatmul.mubr.f32.gmra.mrb[0].mxu0 %v1050
        %v1052 = vpop.f32.mrb[0].mxu0
        %v1053 = vadd.f32 %v851, %v1052
        %v1054 = vpop.f32.mrb[0].mxu0
        %v1055 = vadd.f32 %v853, %v1054
        %1056 = vmatprep.mubr.f32.mxu0 0.0
        %v1057 = vand.u32 %v256, 4294901760
        %v1058 = vsub.f32 %v256, %v1057
        %v1059 = vand.u32 %v1058, 4294901760
        %1060 = vmatmul.mubr.f32.gmra.mrb[0].mxu0 %v1059
        %v1061 = vpop.f32.mrb[0].mxu0
        %v1062 = vadd.f32 %v859, %v1061
        %v1063 = vpop.f32.mrb[0].mxu0
        %v1064 = vadd.f32 %v861, %v1063
        %1065 = vmatprep.mubr.f32.mxu0 0.0
        %v1066 = vand.u32 %v259, 4294901760
        %v1067 = vsub.f32 %v259, %v1066
        %v1068 = vand.u32 %v1067, 4294901760
        %1069 = vmatmul.mubr.f32.gmra.mrb[0].mxu0 %v1068
        %v1070 = vpop.f32.mrb[0].mxu0
        %v1071 = vadd.f32 %v867, %v1070
        %v1072 = vpop.f32.mrb[0].mxu0
        %v1073 = vadd.f32 %v869, %v1072
        %1074 = vmatprep.mubr.f32.mxu0 0.0
        %v1075 = vand.u32 %v262, 4294901760
        %v1076 = vsub.f32 %v262, %v1075
        %v1077 = vand.u32 %v1076, 4294901760
        %1078 = vmatmul.mubr.f32.gmra.mrb[0].mxu0 %v1077
        %v1079 = vpop.f32.mrb[0].mxu0
        %v1080 = vadd.f32 %v875, %v1079
        %v1081 = vpop.f32.mrb[0].mxu0
        %v1082 = vadd.f32 %v877, %v1081
        %1083 = vmatprep.mubr.f32.mxu0 0.0
        %v1084 = vand.u32 %v265, 4294901760
        %v1085 = vsub.f32 %v265, %v1084
        %v1086 = vand.u32 %v1085, 4294901760
        %1087 = vmatmul.mubr.f32.gmra.mrb[0].mxu0 %v1086
        %v1088 = vpop.f32.mrb[0].mxu0
        %v1089 = vadd.f32 %v883, %v1088
        %v1090 = vpop.f32.mrb[0].mxu0
        %v1091 = vadd.f32 %v885, %v1090
        %1092 = vmatprep.mubr.f32.mxu0 0.0
        %v1093 = vand.u32 %v268, 4294901760
        %v1094 = vsub.f32 %v268, %v1093
        %v1095 = vand.u32 %v1094, 4294901760
        %1096 = vmatmul.mubr.f32.gmra.mrb[0].mxu0 %v1095
        %v1097 = vpop.f32.mrb[0].mxu0
        %v1098 = vadd.f32 %v891, %v1097
        %v1099 = vpop.f32.mrb[0].mxu0
        %v1100 = vadd.f32 %v893, %v1099
        %1101 = vmatprep.mubr.f32.mxu0 0.0
        %v1102 = vand.u32 %v271, 4294901760
        %v1103 = vsub.f32 %v271, %v1102
        %v1104 = vand.u32 %v1103, 4294901760
        %1105 = vmatmul.mubr.f32.gmra.mrb[0].mxu0 %v1104
        %v1106 = vpop.f32.mrb[0].mxu0
        %v1107 = vadd.f32 %v899, %v1106
        %v1108 = vpop.f32.mrb[0].mxu0
        %v1109 = vadd.f32 %v901, %v1108
        %1110 = vmatprep.mubr.f32.mxu0 0.0
        %v1111 = vand.u32 %v274, 4294901760
        %v1112 = vsub.f32 %v274, %v1111
        %v1113 = vand.u32 %v1112, 4294901760
        %1114 = vmatmul.mubr.f32.gmra.mrb[0].mxu0 %v1113
        %v1115 = vpop.f32.mrb[0].mxu0
        %v1116 = vadd.f32 %v907, %v1115
        %v1117 = vpop.f32.mrb[0].mxu0
        %v1118 = vadd.f32 %v909, %v1117
        %1119 = vmatprep.mubr.f32.mxu0 0.0
        %v1120 = vand.u32 %v277, 4294901760
        %v1121 = vsub.f32 %v277, %v1120
        %v1122 = vand.u32 %v1121, 4294901760
        %1123 = vmatmul.mubr.f32.gmra.mrb[0].mxu0 %v1122
        %v1124 = vpop.f32.mrb[0].mxu0
        %v1125 = vadd.f32 %v915, %v1124
        %v1126 = vpop.f32.mrb[0].mxu0
        %v1127 = vadd.f32 %v917, %v1126
        %1128 = vmatprep.mubr.f32.mxu0 0.0
        %v1129 = vand.u32 %v280, 4294901760
        %v1130 = vsub.f32 %v280, %v1129
        %v1131 = vand.u32 %v1130, 4294901760
        %1132 = vmatmul.mubr.f32.gmra.mrb[0].mxu0 %v1131
        %v1133 = vpop.f32.mrb[0].mxu0
        %v1134 = vadd.f32 %v923, %v1133
        %v1135 = vpop.f32.mrb[0].mxu0
        %v1136 = vadd.f32 %v925, %v1135
        %1137 = vmatprep.mubr.f32.mxu0 0.0
        %v1138 = vand.u32 %v283, 4294901760
        %v1139 = vsub.f32 %v283, %v1138
        %v1140 = vand.u32 %v1139, 4294901760
        %1141 = vmatmul.mubr.f32.gmra.mrb[0].mxu0 %v1140
        %v1142 = vpop.f32.mrb[0].mxu0
        %v1143 = vadd.f32 %v931, %v1142
        %v1144 = vpop.f32.mrb[0].mxu0
        %v1145 = vadd.f32 %v933, %v1144
        %1146 = vmatprep.mubr.f32.mxu0 0.0
        %v1147 = vand.u32 %v286, 4294901760
        %v1148 = vsub.f32 %v286, %v1147
        %v1149 = vand.u32 %v1148, 4294901760
        %1150 = vmatmul.mubr.f32.gmra.mrb[0].mxu0 %v1149
        %v1151 = vpop.f32.mrb[0].mxu0
        %v1152 = vadd.f32 %v939, %v1151
        %v1153 = vpop.f32.mrb[0].mxu0
        %v1154 = vadd.f32 %v941, %v1153
        %1155 = vmatprep.mubr.f32.mxu0 0.0
        %v1156 = vand.u32 %v289, 4294901760
        %v1157 = vsub.f32 %v289, %v1156
        %v1158 = vand.u32 %v1157, 4294901760
        %1159 = vmatmul.mubr.f32.gmra.mrb[0].mxu0 %v1158
        %v1160 = vpop.f32.mrb[0].mxu0
        %v1161 = vadd.f32 %v947, %v1160
        %v1162 = vpop.f32.mrb[0].mxu0
        %v1163 = vadd.f32 %v949, %v1162
        %1164 = vmatprep.mubr.f32.mxu0 0.0
        %v1165 = vand.u32 %v292, 4294901760
        %v1166 = vsub.f32 %v292, %v1165
        %v1167 = vand.u32 %v1166, 4294901760
        %1168 = vmatmul.mubr.f32.gmra.mrb[0].mxu0 %v1167
        %v1169 = vpop.f32.mrb[0].mxu0
        %v1170 = vadd.f32 %v955, %v1169
        %v1171 = vpop.f32.mrb[0].mxu0
        %v1172 = vadd.f32 %v957, %v1171
        %1173 = vmatprep.mubr.f32.mxu0 0.0
        %v1174 = vand.u32 %v295, 4294901760
        %v1175 = vsub.f32 %v295, %v1174
        %v1176 = vand.u32 %v1175, 4294901760
        %1177 = vmatmul.mubr.f32.gmra.mrb[0].mxu0 %v1176
        %v1178 = vpop.f32.mrb[0].mxu0
        %v1179 = vadd.f32 %v963, %v1178
        %v1180 = vpop.f32.mrb[0].mxu0
        %v1181 = vadd.f32 %v965, %v1180
        %1182 = vmatprep.mubr.f32.mxu0 0.0
        %v1183 = vand.u32 %v298, 4294901760
        %v1184 = vsub.f32 %v298, %v1183
        %v1185 = vand.u32 %v1184, 4294901760
        %1186 = vmatmul.mubr.f32.gmra.mrb[0].mxu0 %v1185
        %v1187 = vpop.f32.mrb[0].mxu0
        %v1188 = vadd.f32 %v971, %v1187
        %v1189 = vpop.f32.mrb[0].mxu0
        %v1190 = vadd.f32 %v973, %v1189
        %1191 = vdwg.mxu0
        %v1192 = vand.u32 %v244, 4294901760
        %v1193 = vsub.f32 %v244, %v1192
        %v1194 = vand.u32 %v1193, 4294901760
        %1195 = vmatprep.subr.mxu0 %v1194
        %v1196 = vand.u32 %v243, 4294901760
        %v1197 = vsub.f32 %v243, %v1196
        %v1198 = vand.u32 %v1197, 4294901760
        %1199 = vmatpush1.msra.mxu0 %v1198
        %v1200 = vand.u32 %v246, 4294901760
        %v1201 = vsub.f32 %v246, %v1200
        %v1202 = vand.u32 %v1201, 4294901760
        %1203 = vmatprep.subr.mxu0 %v1202
        %v1204 = vand.u32 %v245, 4294901760
        %v1205 = vsub.f32 %v245, %v1204
        %v1206 = vand.u32 %v1205, 4294901760
        %1207 = vmatpush1.msra.mxu0 %v1206
        %v1208 = vand.u32 %v248, 4294901760
        %v1209 = vsub.f32 %v248, %v1208
        %v1210 = vand.u32 %v1209, 4294901760
        %1211 = vmatprep.subr.mxu0 %v1210
        %v1212 = vand.u32 %v247, 4294901760
        %v1213 = vsub.f32 %v247, %v1212
        %v1214 = vand.u32 %v1213, 4294901760
        %1215 = vmatpush1.msra.mxu0 %v1214
        %v1216 = vand.u32 %v250, 4294901760
        %v1217 = vsub.f32 %v250, %v1216
        %v1218 = vand.u32 %v1217, 4294901760
        %1219 = vmatprep.subr.mxu0 %v1218
        %v1220 = vand.u32 %v249, 4294901760
        %v1221 = vsub.f32 %v249, %v1220
        %v1222 = vand.u32 %v1221, 4294901760
        %1223 = vmatpush1.msra.mxu0 %v1222
        %1224 = vmatprep.subr.mxu0 0.0
        %1225 = vmatpush1.msra.mxu0 0.0
        %1226 = vmatprep.subr.mxu0 0.0
        %1227 = vmatpush1.msra.mxu0 0.0
        %1228 = vmatprep.subr.mxu0 0.0
        %1229 = vmatpush1.msra.mxu0 0.0
        %1230 = vmatprep.subr.mxu0 0.0
        %1231 = vmatpush1.msra.mxu0 0.0
        %1232 = vmatprep.subr.mxu0 0.0
        %1233 = vmatpush1.msra.mxu0 0.0
        %1234 = vmatprep.subr.mxu0 0.0
        %1235 = vmatpush1.msra.mxu0 0.0
        %1236 = vmatprep.subr.mxu0 0.0
        %1237 = vmatpush1.msra.mxu0 0.0
        %1238 = vmatprep.subr.mxu0 0.0
        %1239 = vmatpush1.msra.mxu0 0.0
        %1240 = vmatprep.subr.mxu0 0.0
        %1241 = vmatpush1.msra.mxu0 0.0
        %1242 = vmatprep.subr.mxu0 0.0
        %1243 = vmatpush1.msra.mxu0 0.0
        %1244 = vmatprep.subr.mxu0 0.0
        %1245 = vmatpush1.msra.mxu0 0.0
        %1246 = vmatprep.subr.mxu0 0.0
        %1247 = vmatpush1.msra.mxu0 0.0
        %1248 = vmatprep.subr.mxu0 0.0
        %1249 = vmatpush1.msra.mxu0 0.0
        %1250 = vmatprep.subr.mxu0 0.0
        %1251 = vmatpush1.msra.mxu0 0.0
        %1252 = vmatprep.subr.mxu0 0.0
        %1253 = vmatpush1.msra.mxu0 0.0
        %1254 = vmatprep.subr.mxu0 0.0
        %1255 = vmatpush1.msra.mxu0 0.0
        %1256 = vmatprep.subr.mxu0 0.0
        %1257 = vmatpush1.msra.mxu0 0.0
        %1258 = vmatprep.subr.mxu0 0.0
        %1259 = vmatpush1.msra.mxu0 0.0
        %1260 = vmatprep.subr.mxu0 0.0
        %1261 = vmatpush1.msra.mxu0 0.0
        %1262 = vmatprep.subr.mxu0 0.0
        %1263 = vmatpush1.msra.mxu0 0.0
        %1264 = vmatprep.subr.mxu0 0.0
        %1265 = vmatpush1.msra.mxu0 0.0
        %1266 = vmatprep.subr.mxu0 0.0
        %1267 = vmatpush1.msra.mxu0 0.0
        %1268 = vmatprep.subr.mxu0 0.0
        %1269 = vmatpush1.msra.mxu0 0.0
        %1270 = vmatprep.subr.mxu0 0.0
        %1271 = vmatpush1.msra.mxu0 0.0
        %1272 = vmatprep.subr.mxu0 0.0
        %1273 = vmatpush1.msra.mxu0 0.0
        %1274 = vmatprep.subr.mxu0 0.0
        %1275 = vmatpush1.msra.mxu0 0.0
        %1276 = vmatprep.subr.mxu0 0.0
        %1277 = vmatpush1.msra.mxu0 0.0
        %1278 = vmatprep.subr.mxu0 0.0
        %1279 = vmatpush1.msra.mxu0 0.0
        %1280 = vmatprep.mubr.f32.mxu0 0.0
        %v1281 = vand.u32 %v253, 4294901760
        %1282 = vmatmul.mubr.f32.gmra.mrb[0].mxu0 %v1281
        %v1283 = vpop.f32.mrb[0].mxu0
        %v1284 = vadd.f32 %v1053, %v1283
        %v1285 = vpop.f32.mrb[0].mxu0
        %v1286 = vadd.f32 %v1055, %v1285
        %1287 = vmatprep.mubr.f32.mxu0 0.0
        %v1288 = vand.u32 %v256, 4294901760
        %1289 = vmatmul.mubr.f32.gmra.mrb[0].mxu0 %v1288
        %v1290 = vpop.f32.mrb[0].mxu0
        %v1291 = vadd.f32 %v1062, %v1290
        %v1292 = vpop.f32.mrb[0].mxu0
        %v1293 = vadd.f32 %v1064, %v1292
        %1294 = vmatprep.mubr.f32.mxu0 0.0
        %v1295 = vand.u32 %v259, 4294901760
        %1296 = vmatmul.mubr.f32.gmra.mrb[0].mxu0 %v1295
        %v1297 = vpop.f32.mrb[0].mxu0
        %v1298 = vadd.f32 %v1071, %v1297
        %v1299 = vpop.f32.mrb[0].mxu0
        %v1300 = vadd.f32 %v1073, %v1299
        %1301 = vmatprep.mubr.f32.mxu0 0.0
        %v1302 = vand.u32 %v262, 4294901760
        %1303 = vmatmul.mubr.f32.gmra.mrb[0].mxu0 %v1302
        %v1304 = vpop.f32.mrb[0].mxu0
        %v1305 = vadd.f32 %v1080, %v1304
        %v1306 = vpop.f32.mrb[0].mxu0
        %v1307 = vadd.f32 %v1082, %v1306
        %1308 = vmatprep.mubr.f32.mxu0 0.0
        %v1309 = vand.u32 %v265, 4294901760
        %1310 = vmatmul.mubr.f32.gmra.mrb[0].mxu0 %v1309
        %v1311 = vpop.f32.mrb[0].mxu0
        %v1312 = vadd.f32 %v1089, %v1311
        %v1313 = vpop.f32.mrb[0].mxu0
        %v1314 = vadd.f32 %v1091, %v1313
        %1315 = vmatprep.mubr.f32.mxu0 0.0
        %v1316 = vand.u32 %v268, 4294901760
        %1317 = vmatmul.mubr.f32.gmra.mrb[0].mxu0 %v1316
        %v1318 = vpop.f32.mrb[0].mxu0
        %v1319 = vadd.f32 %v1098, %v1318
        %v1320 = vpop.f32.mrb[0].mxu0
        %v1321 = vadd.f32 %v1100, %v1320
        %1322 = vmatprep.mubr.f32.mxu0 0.0
        %v1323 = vand.u32 %v271, 4294901760
        %1324 = vmatmul.mubr.f32.gmra.mrb[0].mxu0 %v1323
        %v1325 = vpop.f32.mrb[0].mxu0
        %v1326 = vadd.f32 %v1107, %v1325
        %v1327 = vpop.f32.mrb[0].mxu0
        %v1328 = vadd.f32 %v1109, %v1327
        %1329 = vmatprep.mubr.f32.mxu0 0.0
        %v1330 = vand.u32 %v274, 4294901760
        %1331 = vmatmul.mubr.f32.gmra.mrb[0].mxu0 %v1330
        %v1332 = vpop.f32.mrb[0].mxu0
        %v1333 = vadd.f32 %v1116, %v1332
        %v1334 = vpop.f32.mrb[0].mxu0
        %v1335 = vadd.f32 %v1118, %v1334
        %1336 = vmatprep.mubr.f32.mxu0 0.0
        %v1337 = vand.u32 %v277, 4294901760
        %1338 = vmatmul.mubr.f32.gmra.mrb[0].mxu0 %v1337
        %v1339 = vpop.f32.mrb[0].mxu0
        %v1340 = vadd.f32 %v1125, %v1339
        %v1341 = vpop.f32.mrb[0].mxu0
        %v1342 = vadd.f32 %v1127, %v1341
        %1343 = vmatprep.mubr.f32.mxu0 0.0
        %v1344 = vand.u32 %v280, 4294901760
        %1345 = vmatmul.mubr.f32.gmra.mrb[0].mxu0 %v1344
        %v1346 = vpop.f32.mrb[0].mxu0
        %v1347 = vadd.f32 %v1134, %v1346
        %v1348 = vpop.f32.mrb[0].mxu0
        %v1349 = vadd.f32 %v1136, %v1348
        %1350 = vmatprep.mubr.f32.mxu0 0.0
        %v1351 = vand.u32 %v283, 4294901760
        %1352 = vmatmul.mubr.f32.gmra.mrb[0].mxu0 %v1351
        %v1353 = vpop.f32.mrb[0].mxu0
        %v1354 = vadd.f32 %v1143, %v1353
        %v1355 = vpop.f32.mrb[0].mxu0
        %v1356 = vadd.f32 %v1145, %v1355
        %1357 = vmatprep.mubr.f32.mxu0 0.0
        %v1358 = vand.u32 %v286, 4294901760
        %1359 = vmatmul.mubr.f32.gmra.mrb[0].mxu0 %v1358
        %v1360 = vpop.f32.mrb[0].mxu0
        %v1361 = vadd.f32 %v1152, %v1360
        %v1362 = vpop.f32.mrb[0].mxu0
        %v1363 = vadd.f32 %v1154, %v1362
        %1364 = vmatprep.mubr.f32.mxu0 0.0
        %v1365 = vand.u32 %v289, 4294901760
        %1366 = vmatmul.mubr.f32.gmra.mrb[0].mxu0 %v1365
        %v1367 = vpop.f32.mrb[0].mxu0
        %v1368 = vadd.f32 %v1161, %v1367
        %v1369 = vpop.f32.mrb[0].mxu0
        %v1370 = vadd.f32 %v1163, %v1369
        %1371 = vmatprep.mubr.f32.mxu0 0.0
        %v1372 = vand.u32 %v292, 4294901760
        %1373 = vmatmul.mubr.f32.gmra.mrb[0].mxu0 %v1372
        %v1374 = vpop.f32.mrb[0].mxu0
        %v1375 = vadd.f32 %v1170, %v1374
        %v1376 = vpop.f32.mrb[0].mxu0
        %v1377 = vadd.f32 %v1172, %v1376
        %1378 = vmatprep.mubr.f32.mxu0 0.0
        %v1379 = vand.u32 %v295, 4294901760
        %1380 = vmatmul.mubr.f32.gmra.mrb[0].mxu0 %v1379
        %v1381 = vpop.f32.mrb[0].mxu0
        %v1382 = vadd.f32 %v1179, %v1381
        %v1383 = vpop.f32.mrb[0].mxu0
        %v1384 = vadd.f32 %v1181, %v1383
        %1385 = vmatprep.mubr.f32.mxu0 0.0
        %v1386 = vand.u32 %v298, 4294901760
        %1387 = vmatmul.mubr.f32.gmra.mrb[0].mxu0 %v1386
        %v1388 = vpop.f32.mrb[0].mxu0
        %v1389 = vadd.f32 %v1188, %v1388
        %v1390 = vpop.f32.mrb[0].mxu0
        %v1391 = vadd.f32 %v1190, %v1390
        %1392 = vdwg.mxu0
        %v1393 = vand.u32 %v244, 4294901760
        %1394 = vmatprep.subr.mxu0 %v1393
        %v1395 = vand.u32 %v243, 4294901760
        %1396 = vmatpush1.msra.mxu0 %v1395
        %v1397 = vand.u32 %v246, 4294901760
        %1398 = vmatprep.subr.mxu0 %v1397
        %v1399 = vand.u32 %v245, 4294901760
        %1400 = vmatpush1.msra.mxu0 %v1399
        %v1401 = vand.u32 %v248, 4294901760
        %1402 = vmatprep.subr.mxu0 %v1401
        %v1403 = vand.u32 %v247, 4294901760
        %1404 = vmatpush1.msra.mxu0 %v1403
        %v1405 = vand.u32 %v250, 4294901760
        %1406 = vmatprep.subr.mxu0 %v1405
        %v1407 = vand.u32 %v249, 4294901760
        %1408 = vmatpush1.msra.mxu0 %v1407
        %1409 = vmatprep.subr.mxu0 0.0
        %1410 = vmatpush1.msra.mxu0 0.0
        %1411 = vmatprep.subr.mxu0 0.0
        %1412 = vmatpush1.msra.mxu0 0.0
        %1413 = vmatprep.subr.mxu0 0.0
        %1414 = vmatpush1.msra.mxu0 0.0
        %1415 = vmatprep.subr.mxu0 0.0
        %1416 = vmatpush1.msra.mxu0 0.0
        %1417 = vmatprep.subr.mxu0 0.0
        %1418 = vmatpush1.msra.mxu0 0.0
        %1419 = vmatprep.subr.mxu0 0.0
        %1420 = vmatpush1.msra.mxu0 0.0
        %1421 = vmatprep.subr.mxu0 0.0
        %1422 = vmatpush1.msra.mxu0 0.0
        %1423 = vmatprep.subr.mxu0 0.0
        %1424 = vmatpush1.msra.mxu0 0.0
        %1425 = vmatprep.subr.mxu0 0.0
        %1426 = vmatpush1.msra.mxu0 0.0
        %1427 = vmatprep.subr.mxu0 0.0
        %1428 = vmatpush1.msra.mxu0 0.0
        %1429 = vmatprep.subr.mxu0 0.0
        %1430 = vmatpush1.msra.mxu0 0.0
        %1431 = vmatprep.subr.mxu0 0.0
        %1432 = vmatpush1.msra.mxu0 0.0
        %1433 = vmatprep.subr.mxu0 0.0
        %1434 = vmatpush1.msra.mxu0 0.0
        %1435 = vmatprep.subr.mxu0 0.0
        %1436 = vmatpush1.msra.mxu0 0.0
        %1437 = vmatprep.subr.mxu0 0.0
        %1438 = vmatpush1.msra.mxu0 0.0
        %1439 = vmatprep.subr.mxu0 0.0
        %1440 = vmatpush1.msra.mxu0 0.0
        %1441 = vmatprep.subr.mxu0 0.0
        %1442 = vmatpush1.msra.mxu0 0.0
        %1443 = vmatprep.subr.mxu0 0.0
        %1444 = vmatpush1.msra.mxu0 0.0
        %1445 = vmatprep.subr.mxu0 0.0
        %1446 = vmatpush1.msra.mxu0 0.0
        %1447 = vmatprep.subr.mxu0 0.0
        %1448 = vmatpush1.msra.mxu0 0.0
        %1449 = vmatprep.subr.mxu0 0.0
        %1450 = vmatpush1.msra.mxu0 0.0
        %1451 = vmatprep.subr.mxu0 0.0
        %1452 = vmatpush1.msra.mxu0 0.0
        %1453 = vmatprep.subr.mxu0 0.0
        %1454 = vmatpush1.msra.mxu0 0.0
        %1455 = vmatprep.subr.mxu0 0.0
        %1456 = vmatpush1.msra.mxu0 0.0
        %1457 = vmatprep.subr.mxu0 0.0
        %1458 = vmatpush1.msra.mxu0 0.0
        %1459 = vmatprep.subr.mxu0 0.0
        %1460 = vmatpush1.msra.mxu0 0.0
        %1461 = vmatprep.subr.mxu0 0.0
        %1462 = vmatpush1.msra.mxu0 0.0
        %1463 = vmatprep.subr.mxu0 0.0
        %1464 = vmatpush1.msra.mxu0 0.0
        %1465 = vmatprep.mubr.f32.mxu0 0.0
        %v1466 = vand.u32 %v253, 4294901760
        %1467 = vmatmul.mubr.f32.gmra.mrb[0].mxu0 %v1466
        %v1468 = vpop.f32.mrb[0].mxu0
        %v1469 = vadd.f32 %v1284, %v1468
        %v1470 = vpop.f32.mrb[0].mxu0
        %v1471 = vadd.f32 %v1286, %v1470
        %1472 = vmatprep.mubr.f32.mxu0 0.0
        %v1473 = vand.u32 %v256, 4294901760
        %1474 = vmatmul.mubr.f32.gmra.mrb[0].mxu0 %v1473
        %v1475 = vpop.f32.mrb[0].mxu0
        %v1476 = vadd.f32 %v1291, %v1475
        %v1477 = vpop.f32.mrb[0].mxu0
        %v1478 = vadd.f32 %v1293, %v1477
        %1479 = vmatprep.mubr.f32.mxu0 0.0
        %v1480 = vand.u32 %v259, 4294901760
        %1481 = vmatmul.mubr.f32.gmra.mrb[0].mxu0 %v1480
        %v1482 = vpop.f32.mrb[0].mxu0
        %v1483 = vadd.f32 %v1298, %v1482
        %v1484 = vpop.f32.mrb[0].mxu0
        %v1485 = vadd.f32 %v1300, %v1484
        %1486 = vmatprep.mubr.f32.mxu0 0.0
        %v1487 = vand.u32 %v262, 4294901760
        %1488 = vmatmul.mubr.f32.gmra.mrb[0].mxu0 %v1487
        %v1489 = vpop.f32.mrb[0].mxu0
        %v1490 = vadd.f32 %v1305, %v1489
        %v1491 = vpop.f32.mrb[0].mxu0
        %v1492 = vadd.f32 %v1307, %v1491
        %1493 = vmatprep.mubr.f32.mxu0 0.0
        %v1494 = vand.u32 %v265, 4294901760
        %1495 = vmatmul.mubr.f32.gmra.mrb[0].mxu0 %v1494
        %v1496 = vpop.f32.mrb[0].mxu0
        %v1497 = vadd.f32 %v1312, %v1496
        %v1498 = vpop.f32.mrb[0].mxu0
        %v1499 = vadd.f32 %v1314, %v1498
        %1500 = vmatprep.mubr.f32.mxu0 0.0
        %v1501 = vand.u32 %v268, 4294901760
        %1502 = vmatmul.mubr.f32.gmra.mrb[0].mxu0 %v1501
        %v1503 = vpop.f32.mrb[0].mxu0
        %v1504 = vadd.f32 %v1319, %v1503
        %v1505 = vpop.f32.mrb[0].mxu0
        %v1506 = vadd.f32 %v1321, %v1505
        %1507 = vmatprep.mubr.f32.mxu0 0.0
        %v1508 = vand.u32 %v271, 4294901760
        %1509 = vmatmul.mubr.f32.gmra.mrb[0].mxu0 %v1508
        %v1510 = vpop.f32.mrb[0].mxu0
        %v1511 = vadd.f32 %v1326, %v1510
        %v1512 = vpop.f32.mrb[0].mxu0
        %v1513 = vadd.f32 %v1328, %v1512
        %1514 = vmatprep.mubr.f32.mxu0 0.0
        %v1515 = vand.u32 %v274, 4294901760
        %1516 = vmatmul.mubr.f32.gmra.mrb[0].mxu0 %v1515
        %v1517 = vpop.f32.mrb[0].mxu0
        %v1518 = vadd.f32 %v1333, %v1517
        %v1519 = vpop.f32.mrb[0].mxu0
        %v1520 = vadd.f32 %v1335, %v1519
        %1521 = vmatprep.mubr.f32.mxu0 0.0
        %v1522 = vand.u32 %v277, 4294901760
        %1523 = vmatmul.mubr.f32.gmra.mrb[0].mxu0 %v1522
        %v1524 = vpop.f32.mrb[0].mxu0
        %v1525 = vadd.f32 %v1340, %v1524
        %v1526 = vpop.f32.mrb[0].mxu0
        %v1527 = vadd.f32 %v1342, %v1526
        %1528 = vmatprep.mubr.f32.mxu0 0.0
        %v1529 = vand.u32 %v280, 4294901760
        %1530 = vmatmul.mubr.f32.gmra.mrb[0].mxu0 %v1529
        %v1531 = vpop.f32.mrb[0].mxu0
        %v1532 = vadd.f32 %v1347, %v1531
        %v1533 = vpop.f32.mrb[0].mxu0
        %v1534 = vadd.f32 %v1349, %v1533
        %1535 = vmatprep.mubr.f32.mxu0 0.0
        %v1536 = vand.u32 %v283, 4294901760
        %1537 = vmatmul.mubr.f32.gmra.mrb[0].mxu0 %v1536
        %v1538 = vpop.f32.mrb[0].mxu0
        %v1539 = vadd.f32 %v1354, %v1538
        %v1540 = vpop.f32.mrb[0].mxu0
        %v1541 = vadd.f32 %v1356, %v1540
        %1542 = vmatprep.mubr.f32.mxu0 0.0
        %v1543 = vand.u32 %v286, 4294901760
        %1544 = vmatmul.mubr.f32.gmra.mrb[0].mxu0 %v1543
        %v1545 = vpop.f32.mrb[0].mxu0
        %v1546 = vadd.f32 %v1361, %v1545
        %v1547 = vpop.f32.mrb[0].mxu0
        %v1548 = vadd.f32 %v1363, %v1547
        %1549 = vmatprep.mubr.f32.mxu0 0.0
        %v1550 = vand.u32 %v289, 4294901760
        %1551 = vmatmul.mubr.f32.gmra.mrb[0].mxu0 %v1550
        %v1552 = vpop.f32.mrb[0].mxu0
        %v1553 = vadd.f32 %v1368, %v1552
        %v1554 = vpop.f32.mrb[0].mxu0
        %v1555 = vadd.f32 %v1370, %v1554
        %1556 = vmatprep.mubr.f32.mxu0 0.0
        %v1557 = vand.u32 %v292, 4294901760
        %1558 = vmatmul.mubr.f32.gmra.mrb[0].mxu0 %v1557
        %v1559 = vpop.f32.mrb[0].mxu0
        %v1560 = vadd.f32 %v1375, %v1559
        %v1561 = vpop.f32.mrb[0].mxu0
        %v1562 = vadd.f32 %v1377, %v1561
        %1563 = vmatprep.mubr.f32.mxu0 0.0
        %v1564 = vand.u32 %v295, 4294901760
        %1565 = vmatmul.mubr.f32.gmra.mrb[0].mxu0 %v1564
        %v1566 = vpop.f32.mrb[0].mxu0
        %v1567 = vadd.f32 %v1382, %v1566
        %v1568 = vpop.f32.mrb[0].mxu0
        %v1569 = vadd.f32 %v1384, %v1568
        %1570 = vmatprep.mubr.f32.mxu0 0.0
        %v1571 = vand.u32 %v298, 4294901760
        %1572 = vmatmul.mubr.f32.gmra.mrb[0].mxu0 %v1571
        %v1573 = vpop.f32.mrb[0].mxu0
        %v1574 = vadd.f32 %v1389, %v1573
        %v1575 = vpop.f32.mrb[0].mxu0
        %v1576 = vadd.f32 %v1391, %v1575
        %1577 = vdwg.mxu0
        %v1578 = vld [vmem:[#allocation5] sm:$0xff]
        %v1579 = vld [vmem:[#allocation5 + $0x8] sm:$0xff]
        %v1580 = vld [vmem:[#allocation5 + $0x10] sm:$0xff]
        %v1581 = vld [vmem:[#allocation5 + $0x18] sm:$0xff]
        %v1582 = vld [vmem:[#allocation5 + $0x20] sm:$0xff]
        %v1583 = vld [vmem:[#allocation5 + $0x28] sm:$0xff]
        %v1584 = vld [vmem:[#allocation5 + $0x30] sm:$0xff]
        %v1585 = vld [vmem:[#allocation5 + $0x38] sm:$0xff]
        %v1586 = vld [vmem:[#allocation5 + $0x40] sm:$0xff]
        %v1587 = vld [vmem:[#allocation5 + $0x48] sm:$0xff]
        %v1588 = vld [vmem:[#allocation5 + $0x50] sm:$0xff]
        %v1589 = vld [vmem:[#allocation5 + $0x58] sm:$0xff]
        %v1590 = vld [vmem:[#allocation5 + $0x60] sm:$0xff]
        %v1591 = vld [vmem:[#allocation5 + $0x68] sm:$0xff]
        %v1592 = vld [vmem:[#allocation5 + $0x70] sm:$0xff]
        %v1593 = vld [vmem:[#allocation5 + $0x78] sm:$0xff]
        %v1594 = vld [vmem:[#allocation5 + $0x80] sm:$0xff]
        %v1595 = vld [vmem:[#allocation5 + $0x88] sm:$0xff]
        %v1596 = vld [vmem:[#allocation5 + $0x90] sm:$0xff]
        %v1597 = vld [vmem:[#allocation5 + $0x98] sm:$0xff]
        %v1598 = vld [vmem:[#allocation5 + $0xa0] sm:$0xff]
        %v1599 = vld [vmem:[#allocation5 + $0xa8] sm:$0xff]
        %v1600 = vld [vmem:[#allocation5 + $0xb0] sm:$0xff]
        %v1601 = vld [vmem:[#allocation5 + $0xb8] sm:$0xff]
        %v1602 = vld [vmem:[#allocation5 + $0xc0] sm:$0xff]
        %v1603 = vld [vmem:[#allocation5 + $0xc8] sm:$0xff]
        %v1604 = vld [vmem:[#allocation5 + $0xd0] sm:$0xff]
        %v1605 = vld [vmem:[#allocation5 + $0xd8] sm:$0xff]
        %v1606 = vld [vmem:[#allocation5 + $0xe0] sm:$0xff]
        %v1607 = vld [vmem:[#allocation5 + $0xe8] sm:$0xff]
        %v1608 = vld [vmem:[#allocation5 + $0xf0] sm:$0xff]
        %v1609 = vld [vmem:[#allocation5 + $0xf8] sm:$0xff]
        %v1610 = vld [vmem:[#allocation5 + $0x100] sm:$0xff]
        %v1611 = vld [vmem:[#allocation5 + $0x108] sm:$0xff]
        %v1612 = vld [vmem:[#allocation5 + $0x110] sm:$0xff]
        %v1613 = vld [vmem:[#allocation5 + $0x118] sm:$0xff]
        %v1614 = vld [vmem:[#allocation5 + $0x120] sm:$0xff]
        %v1615 = vld [vmem:[#allocation5 + $0x128] sm:$0xff]
        %v1616 = vld [vmem:[#allocation5 + $0x130] sm:$0xff]
        %v1617 = vld [vmem:[#allocation5 + $0x138] sm:$0xff]
        %v1618 = vld [vmem:[#allocation5 + $0x140] sm:$0xff]
        %v1619 = vld [vmem:[#allocation5 + $0x148] sm:$0xff]
        %v1620 = vld [vmem:[#allocation5 + $0x150] sm:$0xff]
        %v1621 = vld [vmem:[#allocation5 + $0x158] sm:$0xff]
        %v1622 = vld [vmem:[#allocation5 + $0x160] sm:$0xff]
        %v1623 = vld [vmem:[#allocation5 + $0x168] sm:$0xff]
        %v1624 = vld [vmem:[#allocation5 + $0x170] sm:$0xff]
        %v1625 = vld [vmem:[#allocation5 + $0x178] sm:$0xff]
        %v1626 = vld [vmem:[#allocation5 + $0x180] sm:$0xff]
        %v1627 = vld [vmem:[#allocation5 + $0x188] sm:$0xff]
        %v1628 = vld [vmem:[#allocation5 + $0x190] sm:$0xff]
        %v1629 = vld [vmem:[#allocation5 + $0x198] sm:$0xff]
        %v1630 = vld [vmem:[#allocation5 + $0x1a0] sm:$0xff]
        %v1631 = vld [vmem:[#allocation5 + $0x1a8] sm:$0xff]
        %v1632 = vld [vmem:[#allocation5 + $0x1b0] sm:$0xff]
        %v1633 = vld [vmem:[#allocation5 + $0x1b8] sm:$0xff]
        %v1634 = vld [vmem:[#allocation5 + $0x1c0] sm:$0xff]
        %v1635 = vld [vmem:[#allocation5 + $0x1c8] sm:$0xff]
        %v1636 = vld [vmem:[#allocation5 + $0x1d0] sm:$0xff]
        %v1637 = vld [vmem:[#allocation5 + $0x1d8] sm:$0xff]
        %v1638 = vld [vmem:[#allocation5 + $0x1e0] sm:$0xff]
        %v1639 = vld [vmem:[#allocation5 + $0x1e8] sm:$0xff]
        %v1640 = vld [vmem:[#allocation5 + $0x1f0] sm:$0xff]
        %v1641 = vld [vmem:[#allocation5 + $0x1f8] sm:$0xff]
        %v1642 = vld [vmem:[#allocation5 + $0x200] sm:$0xff]
        %v1643 = vld [vmem:[#allocation5 + $0x208] sm:$0xff]
        %v1644 = vld [vmem:[#allocation5 + $0x210] sm:$0xff]
        %v1645 = vld [vmem:[#allocation5 + $0x218] sm:$0xff]
        %v1646 = vld [vmem:[#allocation5 + $0x220] sm:$0xff]
        %v1647 = vld [vmem:[#allocation5 + $0x228] sm:$0xff]
        %v1648 = vld [vmem:[#allocation5 + $0x230] sm:$0xff]
        %v1649 = vld [vmem:[#allocation5 + $0x238] sm:$0xff]
        %v1650 = vld [vmem:[#allocation5 + $0x240] sm:$0xff]
        %v1651 = vld [vmem:[#allocation5 + $0x248] sm:$0xff]
        %v1652 = vld [vmem:[#allocation5 + $0x250] sm:$0xff]
        %v1653 = vld [vmem:[#allocation5 + $0x258] sm:$0xff]
        %v1654 = vld [vmem:[#allocation5 + $0x260] sm:$0xff]
        %v1655 = vld [vmem:[#allocation5 + $0x268] sm:$0xff]
        %v1656 = vld [vmem:[#allocation5 + $0x270] sm:$0xff]
        %v1657 = vld [vmem:[#allocation5 + $0x278] sm:$0xff]
        %v1658 = vld [vmem:[#allocation5 + $0x280] sm:$0xff]
        %v1659 = vld [vmem:[#allocation5 + $0x288] sm:$0xff]
        %v1660 = vld [vmem:[#allocation5 + $0x290] sm:$0xff]
        %v1661 = vld [vmem:[#allocation5 + $0x298] sm:$0xff]
        %v1662 = vld [vmem:[#allocation5 + $0x2a0] sm:$0xff]
        %v1663 = vld [vmem:[#allocation5 + $0x2a8] sm:$0xff]
        %v1664 = vld [vmem:[#allocation5 + $0x2b0] sm:$0xff]
        %v1665 = vld [vmem:[#allocation5 + $0x2b8] sm:$0xff]
        %v1666 = vld [vmem:[#allocation5 + $0x2c0] sm:$0xff]
        %v1667 = vld [vmem:[#allocation5 + $0x2c8] sm:$0xff]
        %v1668 = vld [vmem:[#allocation5 + $0x2d0] sm:$0xff]
        %v1669 = vld [vmem:[#allocation5 + $0x2d8] sm:$0xff]
        %v1670 = vld [vmem:[#allocation5 + $0x2e0] sm:$0xff]
        %v1671 = vld [vmem:[#allocation5 + $0x2e8] sm:$0xff]
        %v1672 = vld [vmem:[#allocation5 + $0x2f0] sm:$0xff]
        %v1673 = vld [vmem:[#allocation5 + $0x2f8] sm:$0xff]
        %v1674 = vld [vmem:[#allocation5 + $0x300] sm:$0xff]
        %v1675 = vld [vmem:[#allocation5 + $0x308] sm:$0xff]
        %v1676 = vld [vmem:[#allocation5 + $0x310] sm:$0xff]
        %v1677 = vld [vmem:[#allocation5 + $0x318] sm:$0xff]
        %v1678 = vld [vmem:[#allocation5 + $0x320] sm:$0xff]
        %v1679 = vld [vmem:[#allocation5 + $0x328] sm:$0xff]
        %v1680 = vld [vmem:[#allocation5 + $0x330] sm:$0xff]
        %v1681 = vld [vmem:[#allocation5 + $0x338] sm:$0xff]
        %v1682 = vld [vmem:[#allocation5 + $0x340] sm:$0xff]
        %v1683 = vld [vmem:[#allocation5 + $0x348] sm:$0xff]
        %v1684 = vld [vmem:[#allocation5 + $0x350] sm:$0xff]
        %v1685 = vld [vmem:[#allocation5 + $0x358] sm:$0xff]
        %v1686 = vld [vmem:[#allocation5 + $0x360] sm:$0xff]
        %v1687 = vld [vmem:[#allocation5 + $0x368] sm:$0xff]
        %v1688 = vld [vmem:[#allocation5 + $0x370] sm:$0xff]
        %v1689 = vld [vmem:[#allocation5 + $0x378] sm:$0xff]
        %v1690 = vld [vmem:[#allocation5 + $0x380] sm:$0xff]
        %v1691 = vld [vmem:[#allocation5 + $0x388] sm:$0xff]
        %v1692 = vld [vmem:[#allocation5 + $0x390] sm:$0xff]
        %v1693 = vld [vmem:[#allocation5 + $0x398] sm:$0xff]
        %v1694 = vld [vmem:[#allocation5 + $0x3a0] sm:$0xff]
        %v1695 = vld [vmem:[#allocation5 + $0x3a8] sm:$0xff]
        %v1696 = vld [vmem:[#allocation5 + $0x3b0] sm:$0xff]
        %v1697 = vld [vmem:[#allocation5 + $0x3b8] sm:$0xff]
        %v1698 = vld [vmem:[#allocation5 + $0x3c0] sm:$0xff]
        %v1699 = vld [vmem:[#allocation5 + $0x3c8] sm:$0xff]
        %v1700 = vld [vmem:[#allocation5 + $0x3d0] sm:$0xff]
        %v1701 = vld [vmem:[#allocation5 + $0x3d8] sm:$0xff]
        %v1702 = vld [vmem:[#allocation5 + $0x3e0] sm:$0xff]
        %v1703 = vld [vmem:[#allocation5 + $0x3e8] sm:$0xff]
        %v1704 = vld [vmem:[#allocation5 + $0x3f0] sm:$0xff]
        %v1705 = vld [vmem:[#allocation5 + $0x3f8] sm:$0xff]
        %v1706 = vand.u32 %v1579, 4294901760
        %1707 = vmatprep.subr.mxu0 %v1706
        %v1708 = vand.u32 %v1578, 4294901760
        %1709 = vmatpush1.msra.mxu0 %v1708
        %v1710 = vand.u32 %v1581, 4294901760
        %1711 = vmatprep.subr.mxu0 %v1710
        %v1712 = vand.u32 %v1580, 4294901760
        %1713 = vmatpush1.msra.mxu0 %v1712
        %v1714 = vand.u32 %v1583, 4294901760
        %1715 = vmatprep.subr.mxu0 %v1714
        %v1716 = vand.u32 %v1582, 4294901760
        %1717 = vmatpush1.msra.mxu0 %v1716
        %v1718 = vand.u32 %v1585, 4294901760
        %1719 = vmatprep.subr.mxu0 %v1718
        %v1720 = vand.u32 %v1584, 4294901760
        %1721 = vmatpush1.msra.mxu0 %v1720
        %1722 = vmatprep.subr.mxu0 0.0
        %1723 = vmatpush1.msra.mxu0 0.0
        %1724 = vmatprep.subr.mxu0 0.0
        %1725 = vmatpush1.msra.mxu0 0.0
        %1726 = vmatprep.subr.mxu0 0.0
        %1727 = vmatpush1.msra.mxu0 0.0
        %1728 = vmatprep.subr.mxu0 0.0
        %1729 = vmatpush1.msra.mxu0 0.0
        %1730 = vmatprep.subr.mxu0 0.0
        %1731 = vmatpush1.msra.mxu0 0.0
        %1732 = vmatprep.subr.mxu0 0.0
        %1733 = vmatpush1.msra.mxu0 0.0
        %1734 = vmatprep.subr.mxu0 0.0
        %1735 = vmatpush1.msra.mxu0 0.0
        %1736 = vmatprep.subr.mxu0 0.0
        %1737 = vmatpush1.msra.mxu0 0.0
        %1738 = vmatprep.subr.mxu0 0.0
        %1739 = vmatpush1.msra.mxu0 0.0
        %1740 = vmatprep.subr.mxu0 0.0
        %1741 = vmatpush1.msra.mxu0 0.0
        %1742 = vmatprep.subr.mxu0 0.0
        %1743 = vmatpush1.msra.mxu0 0.0
        %1744 = vmatprep.subr.mxu0 0.0
        %1745 = vmatpush1.msra.mxu0 0.0
        %1746 = vmatprep.subr.mxu0 0.0
        %1747 = vmatpush1.msra.mxu0 0.0
        %1748 = vmatprep.subr.mxu0 0.0
        %1749 = vmatpush1.msra.mxu0 0.0
        %1750 = vmatprep.subr.mxu0 0.0
        %1751 = vmatpush1.msra.mxu0 0.0
        %1752 = vmatprep.subr.mxu0 0.0
        %1753 = vmatpush1.msra.mxu0 0.0
        %1754 = vmatprep.subr.mxu0 0.0
        %1755 = vmatpush1.msra.mxu0 0.0
        %1756 = vmatprep.subr.mxu0 0.0
        %1757 = vmatpush1.msra.mxu0 0.0
        %1758 = vmatprep.subr.mxu0 0.0
        %1759 = vmatpush1.msra.mxu0 0.0
        %1760 = vmatprep.subr.mxu0 0.0
        %1761 = vmatpush1.msra.mxu0 0.0
        %1762 = vmatprep.subr.mxu0 0.0
        %1763 = vmatpush1.msra.mxu0 0.0
        %1764 = vmatprep.subr.mxu0 0.0
        %1765 = vmatpush1.msra.mxu0 0.0
        %1766 = vmatprep.subr.mxu0 0.0
        %1767 = vmatpush1.msra.mxu0 0.0
        %1768 = vmatprep.subr.mxu0 0.0
        %1769 = vmatpush1.msra.mxu0 0.0
        %1770 = vmatprep.subr.mxu0 0.0
        %1771 = vmatpush1.msra.mxu0 0.0
        %1772 = vmatprep.subr.mxu0 0.0
        %1773 = vmatpush1.msra.mxu0 0.0
        %1774 = vmatprep.subr.mxu0 0.0
        %1775 = vmatpush1.msra.mxu0 0.0
        %1776 = vmatprep.subr.mxu0 0.0
        %1777 = vmatpush1.msra.mxu0 0.0
        %1778 = vmatprep.mubr.f32.mxu0 0.0
        %v1779 = vand.u32 %v253, 4294901760
        %v1780 = vsub.f32 %v253, %v1779
        %v1781 = vand.u32 %v1780, 4294901760
        %v1782 = vsub.f32 %v1780, %v1781
        %v1783 = vand.u32 %v1782, 4294901760
        %1784 = vmatmul.mubr.f32.gmra.mrb[0].mxu0 %v1783
        %v1785 = vpop.f32.mrb[0].mxu0
        %v1786 = vadd.f32 0.0, %v1785
        %v1787 = vpop.f32.mrb[0].mxu0
        %v1788 = vadd.f32 0.0, %v1787
        %1789 = vdwg.mxu0
        %v1790 = vand.u32 %v1579, 4294901760
        %v1791 = vsub.f32 %v1579, %v1790
        %v1792 = vand.u32 %v1791, 4294901760
        %v1793 = vsub.f32 %v1791, %v1792
        %v1794 = vand.u32 %v1793, 4294901760
        %1795 = vmatprep.subr.mxu0 %v1794
        %v1796 = vand.u32 %v1578, 4294901760
        %v1797 = vsub.f32 %v1578, %v1796
        %v1798 = vand.u32 %v1797, 4294901760
        %v1799 = vsub.f32 %v1797, %v1798
        %v1800 = vand.u32 %v1799, 4294901760
        %1801 = vmatpush1.msra.mxu0 %v1800
        %v1802 = vand.u32 %v1581, 4294901760
        %v1803 = vsub.f32 %v1581, %v1802
        %v1804 = vand.u32 %v1803, 4294901760
        %v1805 = vsub.f32 %v1803, %v1804
        %v1806 = vand.u32 %v1805, 4294901760
        %1807 = vmatprep.subr.mxu0 %v1806
        %v1808 = vand.u32 %v1580, 4294901760
        %v1809 = vsub.f32 %v1580, %v1808
        %v1810 = vand.u32 %v1809, 4294901760
        %v1811 = vsub.f32 %v1809, %v1810
        %v1812 = vand.u32 %v1811, 4294901760
        %1813 = vmatpush1.msra.mxu0 %v1812
        %v1814 = vand.u32 %v1583, 4294901760
        %v1815 = vsub.f32 %v1583, %v1814
        %v1816 = vand.u32 %v1815, 4294901760
        %v1817 = vsub.f32 %v1815, %v1816
        %v1818 = vand.u32 %v1817, 4294901760
        %1819 = vmatprep.subr.mxu0 %v1818
        %v1820 = vand.u32 %v1582, 4294901760
        %v1821 = vsub.f32 %v1582, %v1820
        %v1822 = vand.u32 %v1821, 4294901760
        %v1823 = vsub.f32 %v1821, %v1822
        %v1824 = vand.u32 %v1823, 4294901760
        %1825 = vmatpush1.msra.mxu0 %v1824
        %v1826 = vand.u32 %v1585, 4294901760
        %v1827 = vsub.f32 %v1585, %v1826
        %v1828 = vand.u32 %v1827, 4294901760
        %v1829 = vsub.f32 %v1827, %v1828
        %v1830 = vand.u32 %v1829, 4294901760
        %1831 = vmatprep.subr.mxu0 %v1830
        %v1832 = vand.u32 %v1584, 4294901760
        %v1833 = vsub.f32 %v1584, %v1832
        %v1834 = vand.u32 %v1833, 4294901760
        %v1835 = vsub.f32 %v1833, %v1834
        %v1836 = vand.u32 %v1835, 4294901760
        %1837 = vmatpush1.msra.mxu0 %v1836
        %1838 = vmatprep.subr.mxu0 0.0
        %1839 = vmatpush1.msra.mxu0 0.0
        %1840 = vmatprep.subr.mxu0 0.0
        %1841 = vmatpush1.msra.mxu0 0.0
        %1842 = vmatprep.subr.mxu0 0.0
        %1843 = vmatpush1.msra.mxu0 0.0
        %1844 = vmatprep.subr.mxu0 0.0
        %1845 = vmatpush1.msra.mxu0 0.0
        %1846 = vmatprep.subr.mxu0 0.0
        %1847 = vmatpush1.msra.mxu0 0.0
        %1848 = vmatprep.subr.mxu0 0.0
        %1849 = vmatpush1.msra.mxu0 0.0
        %1850 = vmatprep.subr.mxu0 0.0
        %1851 = vmatpush1.msra.mxu0 0.0
        %1852 = vmatprep.subr.mxu0 0.0
        %1853 = vmatpush1.msra.mxu0 0.0
        %1854 = vmatprep.subr.mxu0 0.0
        %1855 = vmatpush1.msra.mxu0 0.0
        %1856 = vmatprep.subr.mxu0 0.0
        %1857 = vmatpush1.msra.mxu0 0.0
        %1858 = vmatprep.subr.mxu0 0.0
        %1859 = vmatpush1.msra.mxu0 0.0
        %1860 = vmatprep.subr.mxu0 0.0
        %1861 = vmatpush1.msra.mxu0 0.0
        %1862 = vmatprep.subr.mxu0 0.0
        %1863 = vmatpush1.msra.mxu0 0.0
        %1864 = vmatprep.subr.mxu0 0.0
        %1865 = vmatpush1.msra.mxu0 0.0
        %1866 = vmatprep.subr.mxu0 0.0
        %1867 = vmatpush1.msra.mxu0 0.0
        %1868 = vmatprep.subr.mxu0 0.0
        %1869 = vmatpush1.msra.mxu0 0.0
        %1870 = vmatprep.subr.mxu0 0.0
        %1871 = vmatpush1.msra.mxu0 0.0
        %1872 = vmatprep.subr.mxu0 0.0
        %1873 = vmatpush1.msra.mxu0 0.0
        %1874 = vmatprep.subr.mxu0 0.0
        %1875 = vmatpush1.msra.mxu0 0.0
        %1876 = vmatprep.subr.mxu0 0.0
        %1877 = vmatpush1.msra.mxu0 0.0
        %1878 = vmatprep.subr.mxu0 0.0
        %1879 = vmatpush1.msra.mxu0 0.0
        %1880 = vmatprep.subr.mxu0 0.0
        %1881 = vmatpush1.msra.mxu0 0.0
        %1882 = vmatprep.subr.mxu0 0.0
        %1883 = vmatpush1.msra.mxu0 0.0
        %1884 = vmatprep.subr.mxu0 0.0
        %1885 = vmatpush1.msra.mxu0 0.0
        %1886 = vmatprep.subr.mxu0 0.0
        %1887 = vmatpush1.msra.mxu0 0.0
        %1888 = vmatprep.subr.mxu0 0.0
        %1889 = vmatpush1.msra.mxu0 0.0
        %1890 = vmatprep.subr.mxu0 0.0
        %1891 = vmatpush1.msra.mxu0 0.0
        %1892 = vmatprep.subr.mxu0 0.0
        %1893 = vmatpush1.msra.mxu0 0.0
        %1894 = vmatprep.mubr.f32.mxu0 0.0
        %v1895 = vand.u32 %v253, 4294901760
        %1896 = vmatmul.mubr.f32.gmra.mrb[0].mxu0 %v1895
        %v1897 = vpop.f32.mrb[0].mxu0
        %v1898 = vadd.f32 %v1786, %v1897
        %v1899 = vpop.f32.mrb[0].mxu0
        %v1900 = vadd.f32 %v1788, %v1899
        %1901 = vdwg.mxu0
        %v1902 = vand.u32 %v1579, 4294901760
        %v1903 = vsub.f32 %v1579, %v1902
        %1904 = vmatprep.subr.mxu0 %v1903
        %v1905 = vand.u32 %v1578, 4294901760
        %v1906 = vsub.f32 %v1578, %v1905
        %1907 = vmatpush1.msra.mxu0 %v1906
        %v1908 = vand.u32 %v1581, 4294901760
        %v1909 = vsub.f32 %v1581, %v1908
        %1910 = vmatprep.subr.mxu0 %v1909
        %v1911 = vand.u32 %v1580, 4294901760
        %v1912 = vsub.f32 %v1580, %v1911
        %1913 = vmatpush1.msra.mxu0 %v1912
        %v1914 = vand.u32 %v1583, 4294901760
        %v1915 = vsub.f32 %v1583, %v1914
        %1916 = vmatprep.subr.mxu0 %v1915
        %v1917 = vand.u32 %v1582, 4294901760
        %v1918 = vsub.f32 %v1582, %v1917
        %1919 = vmatpush1.msra.mxu0 %v1918
        %v1920 = vand.u32 %v1585, 4294901760
        %v1921 = vsub.f32 %v1585, %v1920
        %1922 = vmatprep.subr.mxu0 %v1921
        %v1923 = vand.u32 %v1584, 4294901760
        %v1924 = vsub.f32 %v1584, %v1923
        %1925 = vmatpush1.msra.mxu0 %v1924
        %1926 = vmatprep.subr.mxu0 0.0
        %1927 = vmatpush1.msra.mxu0 0.0
        %1928 = vmatprep.subr.mxu0 0.0
        %1929 = vmatpush1.msra.mxu0 0.0
        %1930 = vmatprep.subr.mxu0 0.0
        %1931 = vmatpush1.msra.mxu0 0.0
        %1932 = vmatprep.subr.mxu0 0.0
        %1933 = vmatpush1.msra.mxu0 0.0
        %1934 = vmatprep.subr.mxu0 0.0
        %1935 = vmatpush1.msra.mxu0 0.0
        %1936 = vmatprep.subr.mxu0 0.0
        %1937 = vmatpush1.msra.mxu0 0.0
        %1938 = vmatprep.subr.mxu0 0.0
        %1939 = vmatpush1.msra.mxu0 0.0
        %1940 = vmatprep.subr.mxu0 0.0
        %1941 = vmatpush1.msra.mxu0 0.0
        %1942 = vmatprep.subr.mxu0 0.0
        %1943 = vmatpush1.msra.mxu0 0.0
        %1944 = vmatprep.subr.mxu0 0.0
        %1945 = vmatpush1.msra.mxu0 0.0
        %1946 = vmatprep.subr.mxu0 0.0
        %1947 = vmatpush1.msra.mxu0 0.0
        %1948 = vmatprep.subr.mxu0 0.0
        %1949 = vmatpush1.msra.mxu0 0.0
        %1950 = vmatprep.subr.mxu0 0.0
        %1951 = vmatpush1.msra.mxu0 0.0
        %1952 = vmatprep.subr.mxu0 0.0
        %1953 = vmatpush1.msra.mxu0 0.0
        %1954 = vmatprep.subr.mxu0 0.0
        %1955 = vmatpush1.msra.mxu0 0.0
        %1956 = vmatprep.subr.mxu0 0.0
        %1957 = vmatpush1.msra.mxu0 0.0
        %1958 = vmatprep.subr.mxu0 0.0
        %1959 = vmatpush1.msra.mxu0 0.0
        %1960 = vmatprep.subr.mxu0 0.0
        %1961 = vmatpush1.msra.mxu0 0.0
        %1962 = vmatprep.subr.mxu0 0.0
        %1963 = vmatpush1.msra.mxu0 0.0
        %1964 = vmatprep.subr.mxu0 0.0
        %1965 = vmatpush1.msra.mxu0 0.0
        %1966 = vmatprep.subr.mxu0 0.0
        %1967 = vmatpush1.msra.mxu0 0.0
        %1968 = vmatprep.subr.mxu0 0.0
        %1969 = vmatpush1.msra.mxu0 0.0
        %1970 = vmatprep.subr.mxu0 0.0
        %1971 = vmatpush1.msra.mxu0 0.0
        %1972 = vmatprep.subr.mxu0 0.0
        %1973 = vmatpush1.msra.mxu0 0.0
        %1974 = vmatprep.subr.mxu0 0.0
        %1975 = vmatpush1.msra.mxu0 0.0
        %1976 = vmatprep.subr.mxu0 0.0
        %1977 = vmatpush1.msra.mxu0 0.0
        %1978 = vmatprep.subr.mxu0 0.0
        %1979 = vmatpush1.msra.mxu0 0.0
        %1980 = vmatprep.subr.mxu0 0.0
        %1981 = vmatpush1.msra.mxu0 0.0
        %1982 = vmatprep.mubr.f32.mxu0 0.0
        %v1983 = vand.u32 %v253, 4294901760
        %v1984 = vsub.f32 %v253, %v1983
        %1985 = vmatmul.mubr.f32.gmra.mrb[0].mxu0 %v1984
        %v1986 = vpop.f32.mrb[0].mxu0
        %v1987 = vadd.f32 %v1898, %v1986
        %v1988 = vpop.f32.mrb[0].mxu0
        %v1989 = vadd.f32 %v1900, %v1988
        %1990 = vdwg.mxu0
        %v1991 = vand.u32 %v1579, 4294901760
        %1992 = vmatprep.subr.mxu0 %v1991
        %v1993 = vand.u32 %v1578, 4294901760
        %1994 = vmatpush1.msra.mxu0 %v1993
        %v1995 = vand.u32 %v1581, 4294901760
        %1996 = vmatprep.subr.mxu0 %v1995
        %v1997 = vand.u32 %v1580, 4294901760
        %1998 = vmatpush1.msra.mxu0 %v1997
        %v1999 = vand.u32 %v1583, 4294901760
        %2000 = vmatprep.subr.mxu0 %v1999
        %v2001 = vand.u32 %v1582, 4294901760
        %2002 = vmatpush1.msra.mxu0 %v2001
        %v2003 = vand.u32 %v1585, 4294901760
        %2004 = vmatprep.subr.mxu0 %v2003
        %v2005 = vand.u32 %v1584, 4294901760
        %2006 = vmatpush1.msra.mxu0 %v2005
        %2007 = vmatprep.subr.mxu0 0.0
        %2008 = vmatpush1.msra.mxu0 0.0
        %2009 = vmatprep.subr.mxu0 0.0
        %2010 = vmatpush1.msra.mxu0 0.0
        %2011 = vmatprep.subr.mxu0 0.0
        %2012 = vmatpush1.msra.mxu0 0.0
        %2013 = vmatprep.subr.mxu0 0.0
        %2014 = vmatpush1.msra.mxu0 0.0
        %2015 = vmatprep.subr.mxu0 0.0
        %2016 = vmatpush1.msra.mxu0 0.0
        %2017 = vmatprep.subr.mxu0 0.0
        %2018 = vmatpush1.msra.mxu0 0.0
        %2019 = vmatprep.subr.mxu0 0.0
        %2020 = vmatpush1.msra.mxu0 0.0
        %2021 = vmatprep.subr.mxu0 0.0
        %2022 = vmatpush1.msra.mxu0 0.0
        %2023 = vmatprep.subr.mxu0 0.0
        %2024 = vmatpush1.msra.mxu0 0.0
        %2025 = vmatprep.subr.mxu0 0.0
        %2026 = vmatpush1.msra.mxu0 0.0
        %2027 = vmatprep.subr.mxu0 0.0
        %2028 = vmatpush1.msra.mxu0 0.0
        %2029 = vmatprep.subr.mxu0 0.0
        %2030 = vmatpush1.msra.mxu0 0.0
        %2031 = vmatprep.subr.mxu0 0.0
        %2032 = vmatpush1.msra.mxu0 0.0
        %2033 = vmatprep.subr.mxu0 0.0
        %2034 = vmatpush1.msra.mxu0 0.0
        %2035 = vmatprep.subr.mxu0 0.0
        %2036 = vmatpush1.msra.mxu0 0.0
        %2037 = vmatprep.subr.mxu0 0.0
        %2038 = vmatpush1.msra.mxu0 0.0
        %2039 = vmatprep.subr.mxu0 0.0
        %2040 = vmatpush1.msra.mxu0 0.0
        %2041 = vmatprep.subr.mxu0 0.0
        %2042 = vmatpush1.msra.mxu0 0.0
        %2043 = vmatprep.subr.mxu0 0.0
        %2044 = vmatpush1.msra.mxu0 0.0
        %2045 = vmatprep.subr.mxu0 0.0
        %2046 = vmatpush1.msra.mxu0 0.0
        %2047 = vmatprep.subr.mxu0 0.0
        %2048 = vmatpush1.msra.mxu0 0.0
        %2049 = vmatprep.subr.mxu0 0.0
        %2050 = vmatpush1.msra.mxu0 0.0
        %2051 = vmatprep.subr.mxu0 0.0
        %2052 = vmatpush1.msra.mxu0 0.0
        %2053 = vmatprep.subr.mxu0 0.0
        %2054 = vmatpush1.msra.mxu0 0.0
        %2055 = vmatprep.subr.mxu0 0.0
        %2056 = vmatpush1.msra.mxu0 0.0
        %2057 = vmatprep.subr.mxu0 0.0
        %2058 = vmatpush1.msra.mxu0 0.0
        %2059 = vmatprep.subr.mxu0 0.0
        %2060 = vmatpush1.msra.mxu0 0.0
        %2061 = vmatprep.subr.mxu0 0.0
        %2062 = vmatpush1.msra.mxu0 0.0
        %2063 = vmatprep.mubr.f32.mxu0 0.0
        %v2064 = vand.u32 %v253, 4294901760
        %v2065 = vsub.f32 %v253, %v2064
        %v2066 = vand.u32 %v2065, 4294901760
        %2067 = vmatmul.mubr.f32.gmra.mrb[0].mxu0 %v2066
        %v2068 = vpop.f32.mrb[0].mxu0
        %v2069 = vadd.f32 %v1987, %v2068
        %v2070 = vpop.f32.mrb[0].mxu0
        %v2071 = vadd.f32 %v1989, %v2070
        %2072 = vdwg.mxu0
        %v2073 = vand.u32 %v1579, 4294901760
        %v2074 = vsub.f32 %v1579, %v2073
        %v2075 = vand.u32 %v2074, 4294901760
        %2076 = vmatprep.subr.mxu0 %v2075
        %v2077 = vand.u32 %v1578, 4294901760
        %v2078 = vsub.f32 %v1578, %v2077
        %v2079 = vand.u32 %v2078, 4294901760
        %2080 = vmatpush1.msra.mxu0 %v2079
        %v2081 = vand.u32 %v1581, 4294901760
        %v2082 = vsub.f32 %v1581, %v2081
        %v2083 = vand.u32 %v2082, 4294901760
        %2084 = vmatprep.subr.mxu0 %v2083
        %v2085 = vand.u32 %v1580, 4294901760
        %v2086 = vsub.f32 %v1580, %v2085
        %v2087 = vand.u32 %v2086, 4294901760
        %2088 = vmatpush1.msra.mxu0 %v2087
        %v2089 = vand.u32 %v1583, 4294901760
        %v2090 = vsub.f32 %v1583, %v2089
        %v2091 = vand.u32 %v2090, 4294901760
        %2092 = vmatprep.subr.mxu0 %v2091
        %v2093 = vand.u32 %v1582, 4294901760
        %v2094 = vsub.f32 %v1582, %v2093
        %v2095 = vand.u32 %v2094, 4294901760
        %2096 = vmatpush1.msra.mxu0 %v2095
        %v2097 = vand.u32 %v1585, 4294901760
        %v2098 = vsub.f32 %v1585, %v2097
        %v2099 = vand.u32 %v2098, 4294901760
        %2100 = vmatprep.subr.mxu0 %v2099
        %v2101 = vand.u32 %v1584, 4294901760
        %v2102 = vsub.f32 %v1584, %v2101
        %v2103 = vand.u32 %v2102, 4294901760
        %2104 = vmatpush1.msra.mxu0 %v2103
        %2105 = vmatprep.subr.mxu0 0.0
        %2106 = vmatpush1.msra.mxu0 0.0
        %2107 = vmatprep.subr.mxu0 0.0
        %2108 = vmatpush1.msra.mxu0 0.0
        %2109 = vmatprep.subr.mxu0 0.0
        %2110 = vmatpush1.msra.mxu0 0.0
        %2111 = vmatprep.subr.mxu0 0.0
        %2112 = vmatpush1.msra.mxu0 0.0
        %2113 = vmatprep.subr.mxu0 0.0
        %2114 = vmatpush1.msra.mxu0 0.0
        %2115 = vmatprep.subr.mxu0 0.0
        %2116 = vmatpush1.msra.mxu0 0.0
        %2117 = vmatprep.subr.mxu0 0.0
        %2118 = vmatpush1.msra.mxu0 0.0
        %2119 = vmatprep.subr.mxu0 0.0
        %2120 = vmatpush1.msra.mxu0 0.0
        %2121 = vmatprep.subr.mxu0 0.0
        %2122 = vmatpush1.msra.mxu0 0.0
        %2123 = vmatprep.subr.mxu0 0.0
        %2124 = vmatpush1.msra.mxu0 0.0
        %2125 = vmatprep.subr.mxu0 0.0
        %2126 = vmatpush1.msra.mxu0 0.0
        %2127 = vmatprep.subr.mxu0 0.0
        %2128 = vmatpush1.msra.mxu0 0.0
        %2129 = vmatprep.subr.mxu0 0.0
        %2130 = vmatpush1.msra.mxu0 0.0
        %2131 = vmatprep.subr.mxu0 0.0
        %2132 = vmatpush1.msra.mxu0 0.0
        %2133 = vmatprep.subr.mxu0 0.0
        %2134 = vmatpush1.msra.mxu0 0.0
        %2135 = vmatprep.subr.mxu0 0.0
        %2136 = vmatpush1.msra.mxu0 0.0
        %2137 = vmatprep.subr.mxu0 0.0
        %2138 = vmatpush1.msra.mxu0 0.0
        %2139 = vmatprep.subr.mxu0 0.0
        %2140 = vmatpush1.msra.mxu0 0.0
        %2141 = vmatprep.subr.mxu0 0.0
        %2142 = vmatpush1.msra.mxu0 0.0
        %2143 = vmatprep.subr.mxu0 0.0
        %2144 = vmatpush1.msra.mxu0 0.0
        %2145 = vmatprep.subr.mxu0 0.0
        %2146 = vmatpush1.msra.mxu0 0.0
        %2147 = vmatprep.subr.mxu0 0.0
        %2148 = vmatpush1.msra.mxu0 0.0
        %2149 = vmatprep.subr.mxu0 0.0
        %2150 = vmatpush1.msra.mxu0 0.0
        %2151 = vmatprep.subr.mxu0 0.0
        %2152 = vmatpush1.msra.mxu0 0.0
        %2153 = vmatprep.subr.mxu0 0.0
        %2154 = vmatpush1.msra.mxu0 0.0
        %2155 = vmatprep.subr.mxu0 0.0
        %2156 = vmatpush1.msra.mxu0 0.0
        %2157 = vmatprep.subr.mxu0 0.0
        %2158 = vmatpush1.msra.mxu0 0.0
        %2159 = vmatprep.subr.mxu0 0.0
        %2160 = vmatpush1.msra.mxu0 0.0
        %2161 = vmatprep.mubr.f32.mxu0 0.0
        %v2162 = vand.u32 %v253, 4294901760
        %2163 = vmatmul.mubr.f32.gmra.mrb[0].mxu0 %v2162
        %v2164 = vpop.f32.mrb[0].mxu0
        %v2165 = vadd.f32 %v2069, %v2164
        %v2166 = vpop.f32.mrb[0].mxu0
        %v2167 = vadd.f32 %v2071, %v2166
        %2168 = vdwg.mxu0
        %v2169 = vand.u32 %v1579, 4294901760
        %2170 = vmatprep.subr.mxu0 %v2169
        %v2171 = vand.u32 %v1578, 4294901760
        %2172 = vmatpush1.msra.mxu0 %v2171
        %v2173 = vand.u32 %v1581, 4294901760
        %2174 = vmatprep.subr.mxu0 %v2173
        %v2175 = vand.u32 %v1580, 4294901760
        %2176 = vmatpush1.msra.mxu0 %v2175
        %v2177 = vand.u32 %v1583, 4294901760
        %2178 = vmatprep.subr.mxu0 %v2177
        %v2179 = vand.u32 %v1582, 4294901760
        %2180 = vmatpush1.msra.mxu0 %v2179
        %v2181 = vand.u32 %v1585, 4294901760
        %2182 = vmatprep.subr.mxu0 %v2181
        %v2183 = vand.u32 %v1584, 4294901760
        %2184 = vmatpush1.msra.mxu0 %v2183
        %2185 = vmatprep.subr.mxu0 0.0
        %2186 = vmatpush1.msra.mxu0 0.0
        %2187 = vmatprep.subr.mxu0 0.0
        %2188 = vmatpush1.msra.mxu0 0.0
        %2189 = vmatprep.subr.mxu0 0.0
        %2190 = vmatpush1.msra.mxu0 0.0
        %2191 = vmatprep.subr.mxu0 0.0
        %2192 = vmatpush1.msra.mxu0 0.0
        %2193 = vmatprep.subr.mxu0 0.0
        %2194 = vmatpush1.msra.mxu0 0.0
        %2195 = vmatprep.subr.mxu0 0.0
        %2196 = vmatpush1.msra.mxu0 0.0
        %2197 = vmatprep.subr.mxu0 0.0
        %2198 = vmatpush1.msra.mxu0 0.0
        %2199 = vmatprep.subr.mxu0 0.0
        %2200 = vmatpush1.msra.mxu0 0.0
        %2201 = vmatprep.subr.mxu0 0.0
        %2202 = vmatpush1.msra.mxu0 0.0
        %2203 = vmatprep.subr.mxu0 0.0
        %2204 = vmatpush1.msra.mxu0 0.0
        %2205 = vmatprep.subr.mxu0 0.0
        %2206 = vmatpush1.msra.mxu0 0.0
        %2207 = vmatprep.subr.mxu0 0.0
        %2208 = vmatpush1.msra.mxu0 0.0
        %2209 = vmatprep.subr.mxu0 0.0
        %2210 = vmatpush1.msra.mxu0 0.0
        %2211 = vmatprep.subr.mxu0 0.0
        %2212 = vmatpush1.msra.mxu0 0.0
        %2213 = vmatprep.subr.mxu0 0.0
        %2214 = vmatpush1.msra.mxu0 0.0
        %2215 = vmatprep.subr.mxu0 0.0
        %2216 = vmatpush1.msra.mxu0 0.0
        %2217 = vmatprep.subr.mxu0 0.0
        %2218 = vmatpush1.msra.mxu0 0.0
        %2219 = vmatprep.subr.mxu0 0.0
        %2220 = vmatpush1.msra.mxu0 0.0
        %2221 = vmatprep.subr.mxu0 0.0
        %2222 = vmatpush1.msra.mxu0 0.0
        %2223 = vmatprep.subr.mxu0 0.0
        %2224 = vmatpush1.msra.mxu0 0.0
        %2225 = vmatprep.subr.mxu0 0.0
        %2226 = vmatpush1.msra.mxu0 0.0
        %2227 = vmatprep.subr.mxu0 0.0
        %2228 = vmatpush1.msra.mxu0 0.0
        %2229 = vmatprep.subr.mxu0 0.0
        %2230 = vmatpush1.msra.mxu0 0.0
        %2231 = vmatprep.subr.mxu0 0.0
        %2232 = vmatpush1.msra.mxu0 0.0
        %2233 = vmatprep.subr.mxu0 0.0
        %2234 = vmatpush1.msra.mxu0 0.0
        %2235 = vmatprep.subr.mxu0 0.0
        %2236 = vmatpush1.msra.mxu0 0.0
        %2237 = vmatprep.subr.mxu0 0.0
        %2238 = vmatpush1.msra.mxu0 0.0
        %2239 = vmatprep.subr.mxu0 0.0
        %2240 = vmatpush1.msra.mxu0 0.0
        %2241 = vmatprep.mubr.f32.mxu0 0.0
        %v2242 = vand.u32 %v253, 4294901760
        %2243 = vmatmul.mubr.f32.gmra.mrb[0].mxu0 %v2242
        %v2244 = vpop.f32.mrb[0].mxu0
        %v2245 = vadd.f32 %v2165, %v2244
        %v2246 = vpop.f32.mrb[0].mxu0
        %v2247 = vadd.f32 %v2167, %v2246
        %2248 = vdwg.mxu0
        %v2249 = vand.u32 %v1587, 4294901760
        %2250 = vmatprep.subr.mxu0 %v2249
        %v2251 = vand.u32 %v1586, 4294901760
        %2252 = vmatpush1.msra.mxu0 %v2251
        %v2253 = vand.u32 %v1589, 4294901760
        %2254 = vmatprep.subr.mxu0 %v2253
        %v2255 = vand.u32 %v1588, 4294901760
        %2256 = vmatpush1.msra.mxu0 %v2255
        %v2257 = vand.u32 %v1591, 4294901760
        %2258 = vmatprep.subr.mxu0 %v2257
        %v2259 = vand.u32 %v1590, 4294901760
        %2260 = vmatpush1.msra.mxu0 %v2259
        %v2261 = vand.u32 %v1593, 4294901760
        %2262 = vmatprep.subr.mxu0 %v2261
        %v2263 = vand.u32 %v1592, 4294901760
        %2264 = vmatpush1.msra.mxu0 %v2263
        %2265 = vmatprep.subr.mxu0 0.0
        %2266 = vmatpush1.msra.mxu0 0.0
        %2267 = vmatprep.subr.mxu0 0.0
        %2268 = vmatpush1.msra.mxu0 0.0
        %2269 = vmatprep.subr.mxu0 0.0
        %2270 = vmatpush1.msra.mxu0 0.0
        %2271 = vmatprep.subr.mxu0 0.0
        %2272 = vmatpush1.msra.mxu0 0.0
        %2273 = vmatprep.subr.mxu0 0.0
        %2274 = vmatpush1.msra.mxu0 0.0
        %2275 = vmatprep.subr.mxu0 0.0
        %2276 = vmatpush1.msra.mxu0 0.0
        %2277 = vmatprep.subr.mxu0 0.0
        %2278 = vmatpush1.msra.mxu0 0.0
        %2279 = vmatprep.subr.mxu0 0.0
        %2280 = vmatpush1.msra.mxu0 0.0
        %2281 = vmatprep.subr.mxu0 0.0
        %2282 = vmatpush1.msra.mxu0 0.0
        %2283 = vmatprep.subr.mxu0 0.0
        %2284 = vmatpush1.msra.mxu0 0.0
        %2285 = vmatprep.subr.mxu0 0.0
        %2286 = vmatpush1.msra.mxu0 0.0
        %2287 = vmatprep.subr.mxu0 0.0
        %2288 = vmatpush1.msra.mxu0 0.0
        %2289 = vmatprep.subr.mxu0 0.0
        %2290 = vmatpush1.msra.mxu0 0.0
        %2291 = vmatprep.subr.mxu0 0.0
        %2292 = vmatpush1.msra.mxu0 0.0
        %2293 = vmatprep.subr.mxu0 0.0
        %2294 = vmatpush1.msra.mxu0 0.0
        %2295 = vmatprep.subr.mxu0 0.0
        %2296 = vmatpush1.msra.mxu0 0.0
        %2297 = vmatprep.subr.mxu0 0.0
        %2298 = vmatpush1.msra.mxu0 0.0
        %2299 = vmatprep.subr.mxu0 0.0
        %2300 = vmatpush1.msra.mxu0 0.0
        %2301 = vmatprep.subr.mxu0 0.0
        %2302 = vmatpush1.msra.mxu0 0.0
        %2303 = vmatprep.subr.mxu0 0.0
        %2304 = vmatpush1.msra.mxu0 0.0
        %2305 = vmatprep.subr.mxu0 0.0
        %2306 = vmatpush1.msra.mxu0 0.0
        %2307 = vmatprep.subr.mxu0 0.0
        %2308 = vmatpush1.msra.mxu0 0.0
        %2309 = vmatprep.subr.mxu0 0.0
        %2310 = vmatpush1.msra.mxu0 0.0
        %2311 = vmatprep.subr.mxu0 0.0
        %2312 = vmatpush1.msra.mxu0 0.0
        %2313 = vmatprep.subr.mxu0 0.0
        %2314 = vmatpush1.msra.mxu0 0.0
        %2315 = vmatprep.subr.mxu0 0.0
        %2316 = vmatpush1.msra.mxu0 0.0
        %2317 = vmatprep.subr.mxu0 0.0
        %2318 = vmatpush1.msra.mxu0 0.0
        %2319 = vmatprep.subr.mxu0 0.0
        %2320 = vmatpush1.msra.mxu0 0.0
        %2321 = vmatprep.mubr.f32.mxu0 0.0
        %v2322 = vand.u32 %v256, 4294901760
        %v2323 = vsub.f32 %v256, %v2322
        %v2324 = vand.u32 %v2323, 4294901760
        %v2325 = vsub.f32 %v2323, %v2324
        %v2326 = vand.u32 %v2325, 4294901760
        %2327 = vmatmul.mubr.f32.gmra.mrb[0].mxu0 %v2326
        %v2328 = vpop.f32.mrb[0].mxu0
        %v2329 = vadd.f32 0.0, %v2328
        %v2330 = vpop.f32.mrb[0].mxu0
        %v2331 = vadd.f32 0.0, %v2330
        %2332 = vdwg.mxu0
        %v2333 = vand.u32 %v1587, 4294901760
        %v2334 = vsub.f32 %v1587, %v2333
        %v2335 = vand.u32 %v2334, 4294901760
        %v2336 = vsub.f32 %v2334, %v2335
        %v2337 = vand.u32 %v2336, 4294901760
        %2338 = vmatprep.subr.mxu0 %v2337
        %v2339 = vand.u32 %v1586, 4294901760
        %v2340 = vsub.f32 %v1586, %v2339
        %v2341 = vand.u32 %v2340, 4294901760
        %v2342 = vsub.f32 %v2340, %v2341
        %v2343 = vand.u32 %v2342, 4294901760
        %2344 = vmatpush1.msra.mxu0 %v2343
        %v2345 = vand.u32 %v1589, 4294901760
        %v2346 = vsub.f32 %v1589, %v2345
        %v2347 = vand.u32 %v2346, 4294901760
        %v2348 = vsub.f32 %v2346, %v2347
        %v2349 = vand.u32 %v2348, 4294901760
        %2350 = vmatprep.subr.mxu0 %v2349
        %v2351 = vand.u32 %v1588, 4294901760
        %v2352 = vsub.f32 %v1588, %v2351
        %v2353 = vand.u32 %v2352, 4294901760
        %v2354 = vsub.f32 %v2352, %v2353
        %v2355 = vand.u32 %v2354, 4294901760
        %2356 = vmatpush1.msra.mxu0 %v2355
        %v2357 = vand.u32 %v1591, 4294901760
        %v2358 = vsub.f32 %v1591, %v2357
        %v2359 = vand.u32 %v2358, 4294901760
        %v2360 = vsub.f32 %v2358, %v2359
        %v2361 = vand.u32 %v2360, 4294901760
        %2362 = vmatprep.subr.mxu0 %v2361
        %v2363 = vand.u32 %v1590, 4294901760
        %v2364 = vsub.f32 %v1590, %v2363
        %v2365 = vand.u32 %v2364, 4294901760
        %v2366 = vsub.f32 %v2364, %v2365
        %v2367 = vand.u32 %v2366, 4294901760
        %2368 = vmatpush1.msra.mxu0 %v2367
        %v2369 = vand.u32 %v1593, 4294901760
        %v2370 = vsub.f32 %v1593, %v2369
        %v2371 = vand.u32 %v2370, 4294901760
        %v2372 = vsub.f32 %v2370, %v2371
        %v2373 = vand.u32 %v2372, 4294901760
        %2374 = vmatprep.subr.mxu0 %v2373
        %v2375 = vand.u32 %v1592, 4294901760
        %v2376 = vsub.f32 %v1592, %v2375
        %v2377 = vand.u32 %v2376, 4294901760
        %v2378 = vsub.f32 %v2376, %v2377
        %v2379 = vand.u32 %v2378, 4294901760
        %2380 = vmatpush1.msra.mxu0 %v2379
        %2381 = vmatprep.subr.mxu0 0.0
        %2382 = vmatpush1.msra.mxu0 0.0
        %2383 = vmatprep.subr.mxu0 0.0
        %2384 = vmatpush1.msra.mxu0 0.0
        %2385 = vmatprep.subr.mxu0 0.0
        %2386 = vmatpush1.msra.mxu0 0.0
        %2387 = vmatprep.subr.mxu0 0.0
        %2388 = vmatpush1.msra.mxu0 0.0
        %2389 = vmatprep.subr.mxu0 0.0
        %2390 = vmatpush1.msra.mxu0 0.0
        %2391 = vmatprep.subr.mxu0 0.0
        %2392 = vmatpush1.msra.mxu0 0.0
        %2393 = vmatprep.subr.mxu0 0.0
        %2394 = vmatpush1.msra.mxu0 0.0
        %2395 = vmatprep.subr.mxu0 0.0
        %2396 = vmatpush1.msra.mxu0 0.0
        %2397 = vmatprep.subr.mxu0 0.0
        %2398 = vmatpush1.msra.mxu0 0.0
        %2399 = vmatprep.subr.mxu0 0.0
        %2400 = vmatpush1.msra.mxu0 0.0
        %2401 = vmatprep.subr.mxu0 0.0
        %2402 = vmatpush1.msra.mxu0 0.0
        %2403 = vmatprep.subr.mxu0 0.0
        %2404 = vmatpush1.msra.mxu0 0.0
        %2405 = vmatprep.subr.mxu0 0.0
        %2406 = vmatpush1.msra.mxu0 0.0
        %2407 = vmatprep.subr.mxu0 0.0
        %2408 = vmatpush1.msra.mxu0 0.0
        %2409 = vmatprep.subr.mxu0 0.0
        %2410 = vmatpush1.msra.mxu0 0.0
        %2411 = vmatprep.subr.mxu0 0.0
        %2412 = vmatpush1.msra.mxu0 0.0
        %2413 = vmatprep.subr.mxu0 0.0
        %2414 = vmatpush1.msra.mxu0 0.0
        %2415 = vmatprep.subr.mxu0 0.0
        %2416 = vmatpush1.msra.mxu0 0.0
        %2417 = vmatprep.subr.mxu0 0.0
        %2418 = vmatpush1.msra.mxu0 0.0
        %2419 = vmatprep.subr.mxu0 0.0
        %2420 = vmatpush1.msra.mxu0 0.0
        %2421 = vmatprep.subr.mxu0 0.0
        %2422 = vmatpush1.msra.mxu0 0.0
        %2423 = vmatprep.subr.mxu0 0.0
        %2424 = vmatpush1.msra.mxu0 0.0
        %2425 = vmatprep.subr.mxu0 0.0
        %2426 = vmatpush1.msra.mxu0 0.0
        %2427 = vmatprep.subr.mxu0 0.0
        %2428 = vmatpush1.msra.mxu0 0.0
        %2429 = vmatprep.subr.mxu0 0.0
        %2430 = vmatpush1.msra.mxu0 0.0
        %2431 = vmatprep.subr.mxu0 0.0
        %2432 = vmatpush1.msra.mxu0 0.0
        %2433 = vmatprep.subr.mxu0 0.0
        %2434 = vmatpush1.msra.mxu0 0.0
        %2435 = vmatprep.subr.mxu0 0.0
        %2436 = vmatpush1.msra.mxu0 0.0
        %2437 = vmatprep.mubr.f32.mxu0 0.0
        %v2438 = vand.u32 %v256, 4294901760
        %2439 = vmatmul.mubr.f32.gmra.mrb[0].mxu0 %v2438
        %v2440 = vpop.f32.mrb[0].mxu0
        %v2441 = vadd.f32 %v2329, %v2440
        %v2442 = vpop.f32.mrb[0].mxu0
        %v2443 = vadd.f32 %v2331, %v2442
        %2444 = vdwg.mxu0
        %v2445 = vand.u32 %v1587, 4294901760
        %v2446 = vsub.f32 %v1587, %v2445
        %2447 = vmatprep.subr.mxu0 %v2446
        %v2448 = vand.u32 %v1586, 4294901760
        %v2449 = vsub.f32 %v1586, %v2448
        %2450 = vmatpush1.msra.mxu0 %v2449
        %v2451 = vand.u32 %v1589, 4294901760
        %v2452 = vsub.f32 %v1589, %v2451
        %2453 = vmatprep.subr.mxu0 %v2452
        %v2454 = vand.u32 %v1588, 4294901760
        %v2455 = vsub.f32 %v1588, %v2454
        %2456 = vmatpush1.msra.mxu0 %v2455
        %v2457 = vand.u32 %v1591, 4294901760
        %v2458 = vsub.f32 %v1591, %v2457
        %2459 = vmatprep.subr.mxu0 %v2458
        %v2460 = vand.u32 %v1590, 4294901760
        %v2461 = vsub.f32 %v1590, %v2460
        %2462 = vmatpush1.msra.mxu0 %v2461
        %v2463 = vand.u32 %v1593, 4294901760
        %v2464 = vsub.f32 %v1593, %v2463
        %2465 = vmatprep.subr.mxu0 %v2464
        %v2466 = vand.u32 %v1592, 4294901760
        %v2467 = vsub.f32 %v1592, %v2466
        %2468 = vmatpush1.msra.mxu0 %v2467
        %2469 = vmatprep.subr.mxu0 0.0
        %2470 = vmatpush1.msra.mxu0 0.0
        %2471 = vmatprep.subr.mxu0 0.0
        %2472 = vmatpush1.msra.mxu0 0.0
        %2473 = vmatprep.subr.mxu0 0.0
        %2474 = vmatpush1.msra.mxu0 0.0
        %2475 = vmatprep.subr.mxu0 0.0
        %2476 = vmatpush1.msra.mxu0 0.0
        %2477 = vmatprep.subr.mxu0 0.0
        %2478 = vmatpush1.msra.mxu0 0.0
        %2479 = vmatprep.subr.mxu0 0.0
        %2480 = vmatpush1.msra.mxu0 0.0
        %2481 = vmatprep.subr.mxu0 0.0
        %2482 = vmatpush1.msra.mxu0 0.0
        %2483 = vmatprep.subr.mxu0 0.0
        %2484 = vmatpush1.msra.mxu0 0.0
        %2485 = vmatprep.subr.mxu0 0.0
        %2486 = vmatpush1.msra.mxu0 0.0
        %2487 = vmatprep.subr.mxu0 0.0
        %2488 = vmatpush1.msra.mxu0 0.0
        %2489 = vmatprep.subr.mxu0 0.0
        %2490 = vmatpush1.msra.mxu0 0.0
        %2491 = vmatprep.subr.mxu0 0.0
        %2492 = vmatpush1.msra.mxu0 0.0
        %2493 = vmatprep.subr.mxu0 0.0
        %2494 = vmatpush1.msra.mxu0 0.0
        %2495 = vmatprep.subr.mxu0 0.0
        %2496 = vmatpush1.msra.mxu0 0.0
        %2497 = vmatprep.subr.mxu0 0.0
        %2498 = vmatpush1.msra.mxu0 0.0
        %2499 = vmatprep.subr.mxu0 0.0
        %2500 = vmatpush1.msra.mxu0 0.0
        %2501 = vmatprep.subr.mxu0 0.0
        %2502 = vmatpush1.msra.mxu0 0.0
        %2503 = vmatprep.subr.mxu0 0.0
        %2504 = vmatpush1.msra.mxu0 0.0
        %2505 = vmatprep.subr.mxu0 0.0
        %2506 = vmatpush1.msra.mxu0 0.0
        %2507 = vmatprep.subr.mxu0 0.0
        %2508 = vmatpush1.msra.mxu0 0.0
        %2509 = vmatprep.subr.mxu0 0.0
        %2510 = vmatpush1.msra.mxu0 0.0
        %2511 = vmatprep.subr.mxu0 0.0
        %2512 = vmatpush1.msra.mxu0 0.0
        %2513 = vmatprep.subr.mxu0 0.0
        %2514 = vmatpush1.msra.mxu0 0.0
        %2515 = vmatprep.subr.mxu0 0.0
        %2516 = vmatpush1.msra.mxu0 0.0
        %2517 = vmatprep.subr.mxu0 0.0
        %2518 = vmatpush1.msra.mxu0 0.0
        %2519 = vmatprep.subr.mxu0 0.0
        %2520 = vmatpush1.msra.mxu0 0.0
        %2521 = vmatprep.subr.mxu0 0.0
        %2522 = vmatpush1.msra.mxu0 0.0
        %2523 = vmatprep.subr.mxu0 0.0
        %2524 = vmatpush1.msra.mxu0 0.0
        %2525 = vmatprep.mubr.f32.mxu0 0.0
        %v2526 = vand.u32 %v256, 4294901760
        %v2527 = vsub.f32 %v256, %v2526
        %2528 = vmatmul.mubr.f32.gmra.mrb[0].mxu0 %v2527
        %v2529 = vpop.f32.mrb[0].mxu0
        %v2530 = vadd.f32 %v2441, %v2529
        %v2531 = vpop.f32.mrb[0].mxu0
        %v2532 = vadd.f32 %v2443, %v2531
        %2533 = vdwg.mxu0
        %v2534 = vand.u32 %v1587, 4294901760
        %2535 = vmatprep.subr.mxu0 %v2534
        %v2536 = vand.u32 %v1586, 4294901760
        %2537 = vmatpush1.msra.mxu0 %v2536
        %v2538 = vand.u32 %v1589, 4294901760
        %2539 = vmatprep.subr.mxu0 %v2538
        %v2540 = vand.u32 %v1588, 4294901760
        %2541 = vmatpush1.msra.mxu0 %v2540
        %v2542 = vand.u32 %v1591, 4294901760
        %2543 = vmatprep.subr.mxu0 %v2542
        %v2544 = vand.u32 %v1590, 4294901760
        %2545 = vmatpush1.msra.mxu0 %v2544
        %v2546 = vand.u32 %v1593, 4294901760
        %2547 = vmatprep.subr.mxu0 %v2546
        %v2548 = vand.u32 %v1592, 4294901760
        %2549 = vmatpush1.msra.mxu0 %v2548
        %2550 = vmatprep.subr.mxu0 0.0
        %2551 = vmatpush1.msra.mxu0 0.0
        %2552 = vmatprep.subr.mxu0 0.0
        %2553 = vmatpush1.msra.mxu0 0.0
        %2554 = vmatprep.subr.mxu0 0.0
        %2555 = vmatpush1.msra.mxu0 0.0
        %2556 = vmatprep.subr.mxu0 0.0
        %2557 = vmatpush1.msra.mxu0 0.0
        %2558 = vmatprep.subr.mxu0 0.0
        %2559 = vmatpush1.msra.mxu0 0.0
        %2560 = vmatprep.subr.mxu0 0.0
        %2561 = vmatpush1.msra.mxu0 0.0
        %2562 = vmatprep.subr.mxu0 0.0
        %2563 = vmatpush1.msra.mxu0 0.0
        %2564 = vmatprep.subr.mxu0 0.0
        %2565 = vmatpush1.msra.mxu0 0.0
        %2566 = vmatprep.subr.mxu0 0.0
        %2567 = vmatpush1.msra.mxu0 0.0
        %2568 = vmatprep.subr.mxu0 0.0
        %2569 = vmatpush1.msra.mxu0 0.0
        %2570 = vmatprep.subr.mxu0 0.0
        %2571 = vmatpush1.msra.mxu0 0.0
        %2572 = vmatprep.subr.mxu0 0.0
        %2573 = vmatpush1.msra.mxu0 0.0
        %2574 = vmatprep.subr.mxu0 0.0
        %2575 = vmatpush1.msra.mxu0 0.0
        %2576 = vmatprep.subr.mxu0 0.0
        %2577 = vmatpush1.msra.mxu0 0.0
        %2578 = vmatprep.subr.mxu0 0.0
        %2579 = vmatpush1.msra.mxu0 0.0
        %2580 = vmatprep.subr.mxu0 0.0
        %2581 = vmatpush1.msra.mxu0 0.0
        %2582 = vmatprep.subr.mxu0 0.0
        %2583 = vmatpush1.msra.mxu0 0.0
        %2584 = vmatprep.subr.mxu0 0.0
        %2585 = vmatpush1.msra.mxu0 0.0
        %2586 = vmatprep.subr.mxu0 0.0
        %2587 = vmatpush1.msra.mxu0 0.0
        %2588 = vmatprep.subr.mxu0 0.0
        %2589 = vmatpush1.msra.mxu0 0.0
        %2590 = vmatprep.subr.mxu0 0.0
        %2591 = vmatpush1.msra.mxu0 0.0
        %2592 = vmatprep.subr.mxu0 0.0
        %2593 = vmatpush1.msra.mxu0 0.0
        %2594 = vmatprep.subr.mxu0 0.0
        %2595 = vmatpush1.msra.mxu0 0.0
        %2596 = vmatprep.subr.mxu0 0.0
        %2597 = vmatpush1.msra.mxu0 0.0
        %2598 = vmatprep.subr.mxu0 0.0
        %2599 = vmatpush1.msra.mxu0 0.0
        %2600 = vmatprep.subr.mxu0 0.0
        %2601 = vmatpush1.msra.mxu0 0.0
        %2602 = vmatprep.subr.mxu0 0.0
        %2603 = vmatpush1.msra.mxu0 0.0
        %2604 = vmatprep.subr.mxu0 0.0
        %2605 = vmatpush1.msra.mxu0 0.0
        %2606 = vmatprep.mubr.f32.mxu0 0.0
        %v2607 = vand.u32 %v256, 4294901760
        %v2608 = vsub.f32 %v256, %v2607
        %v2609 = vand.u32 %v2608, 4294901760
        %2610 = vmatmul.mubr.f32.gmra.mrb[0].mxu0 %v2609
        %v2611 = vpop.f32.mrb[0].mxu0
        %v2612 = vadd.f32 %v2530, %v2611
        %v2613 = vpop.f32.mrb[0].mxu0
        %v2614 = vadd.f32 %v2532, %v2613
        %2615 = vdwg.mxu0
        %v2616 = vand.u32 %v1587, 4294901760
        %v2617 = vsub.f32 %v1587, %v2616
        %v2618 = vand.u32 %v2617, 4294901760
        %2619 = vmatprep.subr.mxu0 %v2618
        %v2620 = vand.u32 %v1586, 4294901760
        %v2621 = vsub.f32 %v1586, %v2620
        %v2622 = vand.u32 %v2621, 4294901760
        %2623 = vmatpush1.msra.mxu0 %v2622
        %v2624 = vand.u32 %v1589, 4294901760
        %v2625 = vsub.f32 %v1589, %v2624
        %v2626 = vand.u32 %v2625, 4294901760
        %2627 = vmatprep.subr.mxu0 %v2626
        %v2628 = vand.u32 %v1588, 4294901760
        %v2629 = vsub.f32 %v1588, %v2628
        %v2630 = vand.u32 %v2629, 4294901760
        %2631 = vmatpush1.msra.mxu0 %v2630
        %v2632 = vand.u32 %v1591, 4294901760
        %v2633 = vsub.f32 %v1591, %v2632
        %v2634 = vand.u32 %v2633, 4294901760
        %2635 = vmatprep.subr.mxu0 %v2634
        %v2636 = vand.u32 %v1590, 4294901760
        %v2637 = vsub.f32 %v1590, %v2636
        %v2638 = vand.u32 %v2637, 4294901760
        %2639 = vmatpush1.msra.mxu0 %v2638
        %v2640 = vand.u32 %v1593, 4294901760
        %v2641 = vsub.f32 %v1593, %v2640
        %v2642 = vand.u32 %v2641, 4294901760
        %2643 = vmatprep.subr.mxu0 %v2642
        %v2644 = vand.u32 %v1592, 4294901760
        %v2645 = vsub.f32 %v1592, %v2644
        %v2646 = vand.u32 %v2645, 4294901760
        %2647 = vmatpush1.msra.mxu0 %v2646
        %2648 = vmatprep.subr.mxu0 0.0
        %2649 = vmatpush1.msra.mxu0 0.0
        %2650 = vmatprep.subr.mxu0 0.0
        %2651 = vmatpush1.msra.mxu0 0.0
        %2652 = vmatprep.subr.mxu0 0.0
        %2653 = vmatpush1.msra.mxu0 0.0
        %2654 = vmatprep.subr.mxu0 0.0
        %2655 = vmatpush1.msra.mxu0 0.0
        %2656 = vmatprep.subr.mxu0 0.0
        %2657 = vmatpush1.msra.mxu0 0.0
        %2658 = vmatprep.subr.mxu0 0.0
        %2659 = vmatpush1.msra.mxu0 0.0
        %2660 = vmatprep.subr.mxu0 0.0
        %2661 = vmatpush1.msra.mxu0 0.0
        %2662 = vmatprep.subr.mxu0 0.0
        %2663 = vmatpush1.msra.mxu0 0.0
        %2664 = vmatprep.subr.mxu0 0.0
        %2665 = vmatpush1.msra.mxu0 0.0
        %2666 = vmatprep.subr.mxu0 0.0
        %2667 = vmatpush1.msra.mxu0 0.0
        %2668 = vmatprep.subr.mxu0 0.0
        %2669 = vmatpush1.msra.mxu0 0.0
        %2670 = vmatprep.subr.mxu0 0.0
        %2671 = vmatpush1.msra.mxu0 0.0
        %2672 = vmatprep.subr.mxu0 0.0
        %2673 = vmatpush1.msra.mxu0 0.0
        %2674 = vmatprep.subr.mxu0 0.0
        %2675 = vmatpush1.msra.mxu0 0.0
        %2676 = vmatprep.subr.mxu0 0.0
        %2677 = vmatpush1.msra.mxu0 0.0
        %2678 = vmatprep.subr.mxu0 0.0
        %2679 = vmatpush1.msra.mxu0 0.0
        %2680 = vmatprep.subr.mxu0 0.0
        %2681 = vmatpush1.msra.mxu0 0.0
        %2682 = vmatprep.subr.mxu0 0.0
        %2683 = vmatpush1.msra.mxu0 0.0
        %2684 = vmatprep.subr.mxu0 0.0
        %2685 = vmatpush1.msra.mxu0 0.0
        %2686 = vmatprep.subr.mxu0 0.0
        %2687 = vmatpush1.msra.mxu0 0.0
        %2688 = vmatprep.subr.mxu0 0.0
        %2689 = vmatpush1.msra.mxu0 0.0
        %2690 = vmatprep.subr.mxu0 0.0
        %2691 = vmatpush1.msra.mxu0 0.0
        %2692 = vmatprep.subr.mxu0 0.0
        %2693 = vmatpush1.msra.mxu0 0.0
        %2694 = vmatprep.subr.mxu0 0.0
        %2695 = vmatpush1.msra.mxu0 0.0
        %2696 = vmatprep.subr.mxu0 0.0
        %2697 = vmatpush1.msra.mxu0 0.0
        %2698 = vmatprep.subr.mxu0 0.0
        %2699 = vmatpush1.msra.mxu0 0.0
        %2700 = vmatprep.subr.mxu0 0.0
        %2701 = vmatpush1.msra.mxu0 0.0
        %2702 = vmatprep.subr.mxu0 0.0
        %2703 = vmatpush1.msra.mxu0 0.0
        %2704 = vmatprep.mubr.f32.mxu0 0.0
        %v2705 = vand.u32 %v256, 4294901760
        %2706 = vmatmul.mubr.f32.gmra.mrb[0].mxu0 %v2705
        %v2707 = vpop.f32.mrb[0].mxu0
        %v2708 = vadd.f32 %v2612, %v2707
        %v2709 = vpop.f32.mrb[0].mxu0
        %v2710 = vadd.f32 %v2614, %v2709
        %2711 = vdwg.mxu0
        %v2712 = vand.u32 %v1587, 4294901760
        %2713 = vmatprep.subr.mxu0 %v2712
        %v2714 = vand.u32 %v1586, 4294901760
        %2715 = vmatpush1.msra.mxu0 %v2714
        %v2716 = vand.u32 %v1589, 4294901760
        %2717 = vmatprep.subr.mxu0 %v2716
        %v2718 = vand.u32 %v1588, 4294901760
        %2719 = vmatpush1.msra.mxu0 %v2718
        %v2720 = vand.u32 %v1591, 4294901760
        %2721 = vmatprep.subr.mxu0 %v2720
        %v2722 = vand.u32 %v1590, 4294901760
        %2723 = vmatpush1.msra.mxu0 %v2722
        %v2724 = vand.u32 %v1593, 4294901760
        %2725 = vmatprep.subr.mxu0 %v2724
        %v2726 = vand.u32 %v1592, 4294901760
        %2727 = vmatpush1.msra.mxu0 %v2726
        %2728 = vmatprep.subr.mxu0 0.0
        %2729 = vmatpush1.msra.mxu0 0.0
        %2730 = vmatprep.subr.mxu0 0.0
        %2731 = vmatpush1.msra.mxu0 0.0
        %2732 = vmatprep.subr.mxu0 0.0
        %2733 = vmatpush1.msra.mxu0 0.0
        %2734 = vmatprep.subr.mxu0 0.0
        %2735 = vmatpush1.msra.mxu0 0.0
        %2736 = vmatprep.subr.mxu0 0.0
        %2737 = vmatpush1.msra.mxu0 0.0
        %2738 = vmatprep.subr.mxu0 0.0
        %2739 = vmatpush1.msra.mxu0 0.0
        %2740 = vmatprep.subr.mxu0 0.0
        %2741 = vmatpush1.msra.mxu0 0.0
        %2742 = vmatprep.subr.mxu0 0.0
        %2743 = vmatpush1.msra.mxu0 0.0
        %2744 = vmatprep.subr.mxu0 0.0
        %2745 = vmatpush1.msra.mxu0 0.0
        %2746 = vmatprep.subr.mxu0 0.0
        %2747 = vmatpush1.msra.mxu0 0.0
        %2748 = vmatprep.subr.mxu0 0.0
        %2749 = vmatpush1.msra.mxu0 0.0
        %2750 = vmatprep.subr.mxu0 0.0
        %2751 = vmatpush1.msra.mxu0 0.0
        %2752 = vmatprep.subr.mxu0 0.0
        %2753 = vmatpush1.msra.mxu0 0.0
        %2754 = vmatprep.subr.mxu0 0.0
        %2755 = vmatpush1.msra.mxu0 0.0
        %2756 = vmatprep.subr.mxu0 0.0
        %2757 = vmatpush1.msra.mxu0 0.0
        %2758 = vmatprep.subr.mxu0 0.0
        %2759 = vmatpush1.msra.mxu0 0.0
        %2760 = vmatprep.subr.mxu0 0.0
        %2761 = vmatpush1.msra.mxu0 0.0
        %2762 = vmatprep.subr.mxu0 0.0
        %2763 = vmatpush1.msra.mxu0 0.0
        %2764 = vmatprep.subr.mxu0 0.0
        %2765 = vmatpush1.msra.mxu0 0.0
        %2766 = vmatprep.subr.mxu0 0.0
        %2767 = vmatpush1.msra.mxu0 0.0
        %2768 = vmatprep.subr.mxu0 0.0
        %2769 = vmatpush1.msra.mxu0 0.0
        %2770 = vmatprep.subr.mxu0 0.0
        %2771 = vmatpush1.msra.mxu0 0.0
        %2772 = vmatprep.subr.mxu0 0.0
        %2773 = vmatpush1.msra.mxu0 0.0
        %2774 = vmatprep.subr.mxu0 0.0
        %2775 = vmatpush1.msra.mxu0 0.0
        %2776 = vmatprep.subr.mxu0 0.0
        %2777 = vmatpush1.msra.mxu0 0.0
        %2778 = vmatprep.subr.mxu0 0.0
        %2779 = vmatpush1.msra.mxu0 0.0
        %2780 = vmatprep.subr.mxu0 0.0
        %2781 = vmatpush1.msra.mxu0 0.0
        %2782 = vmatprep.subr.mxu0 0.0
        %2783 = vmatpush1.msra.mxu0 0.0
        %2784 = vmatprep.mubr.f32.mxu0 0.0
        %v2785 = vand.u32 %v256, 4294901760
        %2786 = vmatmul.mubr.f32.gmra.mrb[0].mxu0 %v2785
        %v2787 = vpop.f32.mrb[0].mxu0
        %v2788 = vadd.f32 %v2708, %v2787
        %v2789 = vpop.f32.mrb[0].mxu0
        %v2790 = vadd.f32 %v2710, %v2789
        %2791 = vdwg.mxu0
        %v2792 = vand.u32 %v1595, 4294901760
        %2793 = vmatprep.subr.mxu0 %v2792
        %v2794 = vand.u32 %v1594, 4294901760
        %2795 = vmatpush1.msra.mxu0 %v2794
        %v2796 = vand.u32 %v1597, 4294901760
        %2797 = vmatprep.subr.mxu0 %v2796
        %v2798 = vand.u32 %v1596, 4294901760
        %2799 = vmatpush1.msra.mxu0 %v2798
        %v2800 = vand.u32 %v1599, 4294901760
        %2801 = vmatprep.subr.mxu0 %v2800
        %v2802 = vand.u32 %v1598, 4294901760
        %2803 = vmatpush1.msra.mxu0 %v2802
        %v2804 = vand.u32 %v1601, 4294901760
        %2805 = vmatprep.subr.mxu0 %v2804
        %v2806 = vand.u32 %v1600, 4294901760
        %2807 = vmatpush1.msra.mxu0 %v2806
        %2808 = vmatprep.subr.mxu0 0.0
        %2809 = vmatpush1.msra.mxu0 0.0
        %2810 = vmatprep.subr.mxu0 0.0
        %2811 = vmatpush1.msra.mxu0 0.0
        %2812 = vmatprep.subr.mxu0 0.0
        %2813 = vmatpush1.msra.mxu0 0.0
        %2814 = vmatprep.subr.mxu0 0.0
        %2815 = vmatpush1.msra.mxu0 0.0
        %2816 = vmatprep.subr.mxu0 0.0
        %2817 = vmatpush1.msra.mxu0 0.0
        %2818 = vmatprep.subr.mxu0 0.0
        %2819 = vmatpush1.msra.mxu0 0.0
        %2820 = vmatprep.subr.mxu0 0.0
        %2821 = vmatpush1.msra.mxu0 0.0
        %2822 = vmatprep.subr.mxu0 0.0
        %2823 = vmatpush1.msra.mxu0 0.0
        %2824 = vmatprep.subr.mxu0 0.0
        %2825 = vmatpush1.msra.mxu0 0.0
        %2826 = vmatprep.subr.mxu0 0.0
        %2827 = vmatpush1.msra.mxu0 0.0
        %2828 = vmatprep.subr.mxu0 0.0
        %2829 = vmatpush1.msra.mxu0 0.0
        %2830 = vmatprep.subr.mxu0 0.0
        %2831 = vmatpush1.msra.mxu0 0.0
        %2832 = vmatprep.subr.mxu0 0.0
        %2833 = vmatpush1.msra.mxu0 0.0
        %2834 = vmatprep.subr.mxu0 0.0
        %2835 = vmatpush1.msra.mxu0 0.0
        %2836 = vmatprep.subr.mxu0 0.0
        %2837 = vmatpush1.msra.mxu0 0.0
        %2838 = vmatprep.subr.mxu0 0.0
        %2839 = vmatpush1.msra.mxu0 0.0
        %2840 = vmatprep.subr.mxu0 0.0
        %2841 = vmatpush1.msra.mxu0 0.0
        %2842 = vmatprep.subr.mxu0 0.0
        %2843 = vmatpush1.msra.mxu0 0.0
        %2844 = vmatprep.subr.mxu0 0.0
        %2845 = vmatpush1.msra.mxu0 0.0
        %2846 = vmatprep.subr.mxu0 0.0
        %2847 = vmatpush1.msra.mxu0 0.0
        %2848 = vmatprep.subr.mxu0 0.0
        %2849 = vmatpush1.msra.mxu0 0.0
        %2850 = vmatprep.subr.mxu0 0.0
        %2851 = vmatpush1.msra.mxu0 0.0
        %2852 = vmatprep.subr.mxu0 0.0
        %2853 = vmatpush1.msra.mxu0 0.0
        %2854 = vmatprep.subr.mxu0 0.0
        %2855 = vmatpush1.msra.mxu0 0.0
        %2856 = vmatprep.subr.mxu0 0.0
        %2857 = vmatpush1.msra.mxu0 0.0
        %2858 = vmatprep.subr.mxu0 0.0
        %2859 = vmatpush1.msra.mxu0 0.0
        %2860 = vmatprep.subr.mxu0 0.0
        %2861 = vmatpush1.msra.mxu0 0.0
        %2862 = vmatprep.subr.mxu0 0.0
        %2863 = vmatpush1.msra.mxu0 0.0
        %2864 = vmatprep.mubr.f32.mxu0 0.0
        %v2865 = vand.u32 %v259, 4294901760
        %v2866 = vsub.f32 %v259, %v2865
        %v2867 = vand.u32 %v2866, 4294901760
        %v2868 = vsub.f32 %v2866, %v2867
        %v2869 = vand.u32 %v2868, 4294901760
        %2870 = vmatmul.mubr.f32.gmra.mrb[0].mxu0 %v2869
        %v2871 = vpop.f32.mrb[0].mxu0
        %v2872 = vadd.f32 0.0, %v2871
        %v2873 = vpop.f32.mrb[0].mxu0
        %v2874 = vadd.f32 0.0, %v2873
        %2875 = vdwg.mxu0
        %v2876 = vand.u32 %v1595, 4294901760
        %v2877 = vsub.f32 %v1595, %v2876
        %v2878 = vand.u32 %v2877, 4294901760
        %v2879 = vsub.f32 %v2877, %v2878
        %v2880 = vand.u32 %v2879, 4294901760
        %2881 = vmatprep.subr.mxu0 %v2880
        %v2882 = vand.u32 %v1594, 4294901760
        %v2883 = vsub.f32 %v1594, %v2882
        %v2884 = vand.u32 %v2883, 4294901760
        %v2885 = vsub.f32 %v2883, %v2884
        %v2886 = vand.u32 %v2885, 4294901760
        %2887 = vmatpush1.msra.mxu0 %v2886
        %v2888 = vand.u32 %v1597, 4294901760
        %v2889 = vsub.f32 %v1597, %v2888
        %v2890 = vand.u32 %v2889, 4294901760
        %v2891 = vsub.f32 %v2889, %v2890
        %v2892 = vand.u32 %v2891, 4294901760
        %2893 = vmatprep.subr.mxu0 %v2892
        %v2894 = vand.u32 %v1596, 4294901760
        %v2895 = vsub.f32 %v1596, %v2894
        %v2896 = vand.u32 %v2895, 4294901760
        %v2897 = vsub.f32 %v2895, %v2896
        %v2898 = vand.u32 %v2897, 4294901760
        %2899 = vmatpush1.msra.mxu0 %v2898
        %v2900 = vand.u32 %v1599, 4294901760
        %v2901 = vsub.f32 %v1599, %v2900
        %v2902 = vand.u32 %v2901, 4294901760
        %v2903 = vsub.f32 %v2901, %v2902
        %v2904 = vand.u32 %v2903, 4294901760
        %2905 = vmatprep.subr.mxu0 %v2904
        %v2906 = vand.u32 %v1598, 4294901760
        %v2907 = vsub.f32 %v1598, %v2906
        %v2908 = vand.u32 %v2907, 4294901760
        %v2909 = vsub.f32 %v2907, %v2908
        %v2910 = vand.u32 %v2909, 4294901760
        %2911 = vmatpush1.msra.mxu0 %v2910
        %v2912 = vand.u32 %v1601, 4294901760
        %v2913 = vsub.f32 %v1601, %v2912
        %v2914 = vand.u32 %v2913, 4294901760
        %v2915 = vsub.f32 %v2913, %v2914
        %v2916 = vand.u32 %v2915, 4294901760
        %2917 = vmatprep.subr.mxu0 %v2916
        %v2918 = vand.u32 %v1600, 4294901760
        %v2919 = vsub.f32 %v1600, %v2918
        %v2920 = vand.u32 %v2919, 4294901760
        %v2921 = vsub.f32 %v2919, %v2920
        %v2922 = vand.u32 %v2921, 4294901760
        %2923 = vmatpush1.msra.mxu0 %v2922
        %2924 = vmatprep.subr.mxu0 0.0
        %2925 = vmatpush1.msra.mxu0 0.0
        %2926 = vmatprep.subr.mxu0 0.0
        %2927 = vmatpush1.msra.mxu0 0.0
        %2928 = vmatprep.subr.mxu0 0.0
        %2929 = vmatpush1.msra.mxu0 0.0
        %2930 = vmatprep.subr.mxu0 0.0
        %2931 = vmatpush1.msra.mxu0 0.0
        %2932 = vmatprep.subr.mxu0 0.0
        %2933 = vmatpush1.msra.mxu0 0.0
        %2934 = vmatprep.subr.mxu0 0.0
        %2935 = vmatpush1.msra.mxu0 0.0
        %2936 = vmatprep.subr.mxu0 0.0
        %2937 = vmatpush1.msra.mxu0 0.0
        %2938 = vmatprep.subr.mxu0 0.0
        %2939 = vmatpush1.msra.mxu0 0.0
        %2940 = vmatprep.subr.mxu0 0.0
        %2941 = vmatpush1.msra.mxu0 0.0
        %2942 = vmatprep.subr.mxu0 0.0
        %2943 = vmatpush1.msra.mxu0 0.0
        %2944 = vmatprep.subr.mxu0 0.0
        %2945 = vmatpush1.msra.mxu0 0.0
        %2946 = vmatprep.subr.mxu0 0.0
        %2947 = vmatpush1.msra.mxu0 0.0
        %2948 = vmatprep.subr.mxu0 0.0
        %2949 = vmatpush1.msra.mxu0 0.0
        %2950 = vmatprep.subr.mxu0 0.0
        %2951 = vmatpush1.msra.mxu0 0.0
        %2952 = vmatprep.subr.mxu0 0.0
        %2953 = vmatpush1.msra.mxu0 0.0
        %2954 = vmatprep.subr.mxu0 0.0
        %2955 = vmatpush1.msra.mxu0 0.0
        %2956 = vmatprep.subr.mxu0 0.0
        %2957 = vmatpush1.msra.mxu0 0.0
        %2958 = vmatprep.subr.mxu0 0.0
        %2959 = vmatpush1.msra.mxu0 0.0
        %2960 = vmatprep.subr.mxu0 0.0
        %2961 = vmatpush1.msra.mxu0 0.0
        %2962 = vmatprep.subr.mxu0 0.0
        %2963 = vmatpush1.msra.mxu0 0.0
        %2964 = vmatprep.subr.mxu0 0.0
        %2965 = vmatpush1.msra.mxu0 0.0
        %2966 = vmatprep.subr.mxu0 0.0
        %2967 = vmatpush1.msra.mxu0 0.0
        %2968 = vmatprep.subr.mxu0 0.0
        %2969 = vmatpush1.msra.mxu0 0.0
        %2970 = vmatprep.subr.mxu0 0.0
        %2971 = vmatpush1.msra.mxu0 0.0
        %2972 = vmatprep.subr.mxu0 0.0
        %2973 = vmatpush1.msra.mxu0 0.0
        %2974 = vmatprep.subr.mxu0 0.0
        %2975 = vmatpush1.msra.mxu0 0.0
        %2976 = vmatprep.subr.mxu0 0.0
        %2977 = vmatpush1.msra.mxu0 0.0
        %2978 = vmatprep.subr.mxu0 0.0
        %2979 = vmatpush1.msra.mxu0 0.0
        %2980 = vmatprep.mubr.f32.mxu0 0.0
        %v2981 = vand.u32 %v259, 4294901760
        %2982 = vmatmul.mubr.f32.gmra.mrb[0].mxu0 %v2981
        %v2983 = vpop.f32.mrb[0].mxu0
        %v2984 = vadd.f32 %v2872, %v2983
        %v2985 = vpop.f32.mrb[0].mxu0
        %v2986 = vadd.f32 %v2874, %v2985
        %2987 = vdwg.mxu0
        %v2988 = vand.u32 %v1595, 4294901760
        %v2989 = vsub.f32 %v1595, %v2988
        %2990 = vmatprep.subr.mxu0 %v2989
        %v2991 = vand.u32 %v1594, 4294901760
        %v2992 = vsub.f32 %v1594, %v2991
        %2993 = vmatpush1.msra.mxu0 %v2992
        %v2994 = vand.u32 %v1597, 4294901760
        %v2995 = vsub.f32 %v1597, %v2994
        %2996 = vmatprep.subr.mxu0 %v2995
        %v2997 = vand.u32 %v1596, 4294901760
        %v2998 = vsub.f32 %v1596, %v2997
        %2999 = vmatpush1.msra.mxu0 %v2998
        %v3000 = vand.u32 %v1599, 4294901760
        %v3001 = vsub.f32 %v1599, %v3000
        %3002 = vmatprep.subr.mxu0 %v3001
        %v3003 = vand.u32 %v1598, 4294901760
        %v3004 = vsub.f32 %v1598, %v3003
        %3005 = vmatpush1.msra.mxu0 %v3004
        %v3006 = vand.u32 %v1601, 4294901760
        %v3007 = vsub.f32 %v1601, %v3006
        %3008 = vmatprep.subr.mxu0 %v3007
        %v3009 = vand.u32 %v1600, 4294901760
        %v3010 = vsub.f32 %v1600, %v3009
        %3011 = vmatpush1.msra.mxu0 %v3010
        %3012 = vmatprep.subr.mxu0 0.0
        %3013 = vmatpush1.msra.mxu0 0.0
        %3014 = vmatprep.subr.mxu0 0.0
        %3015 = vmatpush1.msra.mxu0 0.0
        %3016 = vmatprep.subr.mxu0 0.0
        %3017 = vmatpush1.msra.mxu0 0.0
        %3018 = vmatprep.subr.mxu0 0.0
        %3019 = vmatpush1.msra.mxu0 0.0
        %3020 = vmatprep.subr.mxu0 0.0
        %3021 = vmatpush1.msra.mxu0 0.0
        %3022 = vmatprep.subr.mxu0 0.0
        %3023 = vmatpush1.msra.mxu0 0.0
        %3024 = vmatprep.subr.mxu0 0.0
        %3025 = vmatpush1.msra.mxu0 0.0
        %3026 = vmatprep.subr.mxu0 0.0
        %3027 = vmatpush1.msra.mxu0 0.0
        %3028 = vmatprep.subr.mxu0 0.0
        %3029 = vmatpush1.msra.mxu0 0.0
        %3030 = vmatprep.subr.mxu0 0.0
        %3031 = vmatpush1.msra.mxu0 0.0
        %3032 = vmatprep.subr.mxu0 0.0
        %3033 = vmatpush1.msra.mxu0 0.0
        %3034 = vmatprep.subr.mxu0 0.0
        %3035 = vmatpush1.msra.mxu0 0.0
        %3036 = vmatprep.subr.mxu0 0.0
        %3037 = vmatpush1.msra.mxu0 0.0
        %3038 = vmatprep.subr.mxu0 0.0
        %3039 = vmatpush1.msra.mxu0 0.0
        %3040 = vmatprep.subr.mxu0 0.0
        %3041 = vmatpush1.msra.mxu0 0.0
        %3042 = vmatprep.subr.mxu0 0.0
        %3043 = vmatpush1.msra.mxu0 0.0
        %3044 = vmatprep.subr.mxu0 0.0
        %3045 = vmatpush1.msra.mxu0 0.0
        %3046 = vmatprep.subr.mxu0 0.0
        %3047 = vmatpush1.msra.mxu0 0.0
        %3048 = vmatprep.subr.mxu0 0.0
        %3049 = vmatpush1.msra.mxu0 0.0
        %3050 = vmatprep.subr.mxu0 0.0
        %3051 = vmatpush1.msra.mxu0 0.0
        %3052 = vmatprep.subr.mxu0 0.0
        %3053 = vmatpush1.msra.mxu0 0.0
        %3054 = vmatprep.subr.mxu0 0.0
        %3055 = vmatpush1.msra.mxu0 0.0
        %3056 = vmatprep.subr.mxu0 0.0
        %3057 = vmatpush1.msra.mxu0 0.0
        %3058 = vmatprep.subr.mxu0 0.0
        %3059 = vmatpush1.msra.mxu0 0.0
        %3060 = vmatprep.subr.mxu0 0.0
        %3061 = vmatpush1.msra.mxu0 0.0
        %3062 = vmatprep.subr.mxu0 0.0
        %3063 = vmatpush1.msra.mxu0 0.0
        %3064 = vmatprep.subr.mxu0 0.0
        %3065 = vmatpush1.msra.mxu0 0.0
        %3066 = vmatprep.subr.mxu0 0.0
        %3067 = vmatpush1.msra.mxu0 0.0
        %3068 = vmatprep.mubr.f32.mxu0 0.0
        %v3069 = vand.u32 %v259, 4294901760
        %v3070 = vsub.f32 %v259, %v3069
        %3071 = vmatmul.mubr.f32.gmra.mrb[0].mxu0 %v3070
        %v3072 = vpop.f32.mrb[0].mxu0
        %v3073 = vadd.f32 %v2984, %v3072
        %v3074 = vpop.f32.mrb[0].mxu0
        %v3075 = vadd.f32 %v2986, %v3074
        %3076 = vdwg.mxu0
        %v3077 = vand.u32 %v1595, 4294901760
        %3078 = vmatprep.subr.mxu0 %v3077
        %v3079 = vand.u32 %v1594, 4294901760
        %3080 = vmatpush1.msra.mxu0 %v3079
        %v3081 = vand.u32 %v1597, 4294901760
        %3082 = vmatprep.subr.mxu0 %v3081
        %v3083 = vand.u32 %v1596, 4294901760
        %3084 = vmatpush1.msra.mxu0 %v3083
        %v3085 = vand.u32 %v1599, 4294901760
        %3086 = vmatprep.subr.mxu0 %v3085
        %v3087 = vand.u32 %v1598, 4294901760
        %3088 = vmatpush1.msra.mxu0 %v3087
        %v3089 = vand.u32 %v1601, 4294901760
        %3090 = vmatprep.subr.mxu0 %v3089
        %v3091 = vand.u32 %v1600, 4294901760
        %3092 = vmatpush1.msra.mxu0 %v3091
        %3093 = vmatprep.subr.mxu0 0.0
        %3094 = vmatpush1.msra.mxu0 0.0
        %3095 = vmatprep.subr.mxu0 0.0
        %3096 = vmatpush1.msra.mxu0 0.0
        %3097 = vmatprep.subr.mxu0 0.0
        %3098 = vmatpush1.msra.mxu0 0.0
        %3099 = vmatprep.subr.mxu0 0.0
        %3100 = vmatpush1.msra.mxu0 0.0
        %3101 = vmatprep.subr.mxu0 0.0
        %3102 = vmatpush1.msra.mxu0 0.0
        %3103 = vmatprep.subr.mxu0 0.0
        %3104 = vmatpush1.msra.mxu0 0.0
        %3105 = vmatprep.subr.mxu0 0.0
        %3106 = vmatpush1.msra.mxu0 0.0
        %3107 = vmatprep.subr.mxu0 0.0
        %3108 = vmatpush1.msra.mxu0 0.0
        %3109 = vmatprep.subr.mxu0 0.0
        %3110 = vmatpush1.msra.mxu0 0.0
        %3111 = vmatprep.subr.mxu0 0.0
        %3112 = vmatpush1.msra.mxu0 0.0
        %3113 = vmatprep.subr.mxu0 0.0
        %3114 = vmatpush1.msra.mxu0 0.0
        %3115 = vmatprep.subr.mxu0 0.0
        %3116 = vmatpush1.msra.mxu0 0.0
        %3117 = vmatprep.subr.mxu0 0.0
        %3118 = vmatpush1.msra.mxu0 0.0
        %3119 = vmatprep.subr.mxu0 0.0
        %3120 = vmatpush1.msra.mxu0 0.0
        %3121 = vmatprep.subr.mxu0 0.0
        %3122 = vmatpush1.msra.mxu0 0.0
        %3123 = vmatprep.subr.mxu0 0.0
        %3124 = vmatpush1.msra.mxu0 0.0
        %3125 = vmatprep.subr.mxu0 0.0
        %3126 = vmatpush1.msra.mxu0 0.0
        %3127 = vmatprep.subr.mxu0 0.0
        %3128 = vmatpush1.msra.mxu0 0.0
        %3129 = vmatprep.subr.mxu0 0.0
        %3130 = vmatpush1.msra.mxu0 0.0
        %3131 = vmatprep.subr.mxu0 0.0
        %3132 = vmatpush1.msra.mxu0 0.0
        %3133 = vmatprep.subr.mxu0 0.0
        %3134 = vmatpush1.msra.mxu0 0.0
        %3135 = vmatprep.subr.mxu0 0.0
        %3136 = vmatpush1.msra.mxu0 0.0
        %3137 = vmatprep.subr.mxu0 0.0
        %3138 = vmatpush1.msra.mxu0 0.0
        %3139 = vmatprep.subr.mxu0 0.0
        %3140 = vmatpush1.msra.mxu0 0.0
        %3141 = vmatprep.subr.mxu0 0.0
        %3142 = vmatpush1.msra.mxu0 0.0
        %3143 = vmatprep.subr.mxu0 0.0
        %3144 = vmatpush1.msra.mxu0 0.0
        %3145 = vmatprep.subr.mxu0 0.0
        %3146 = vmatpush1.msra.mxu0 0.0
        %3147 = vmatprep.subr.mxu0 0.0
        %3148 = vmatpush1.msra.mxu0 0.0
        %3149 = vmatprep.mubr.f32.mxu0 0.0
        %v3150 = vand.u32 %v259, 4294901760
        %v3151 = vsub.f32 %v259, %v3150
        %v3152 = vand.u32 %v3151, 4294901760
        %3153 = vmatmul.mubr.f32.gmra.mrb[0].mxu0 %v3152
        %v3154 = vpop.f32.mrb[0].mxu0
        %v3155 = vadd.f32 %v3073, %v3154
        %v3156 = vpop.f32.mrb[0].mxu0
        %v3157 = vadd.f32 %v3075, %v3156
        %3158 = vdwg.mxu0
        %v3159 = vand.u32 %v1595, 4294901760
        %v3160 = vsub.f32 %v1595, %v3159
        %v3161 = vand.u32 %v3160, 4294901760
        %3162 = vmatprep.subr.mxu0 %v3161
        %v3163 = vand.u32 %v1594, 4294901760
        %v3164 = vsub.f32 %v1594, %v3163
        %v3165 = vand.u32 %v3164, 4294901760
        %3166 = vmatpush1.msra.mxu0 %v3165
        %v3167 = vand.u32 %v1597, 4294901760
        %v3168 = vsub.f32 %v1597, %v3167
        %v3169 = vand.u32 %v3168, 4294901760
        %3170 = vmatprep.subr.mxu0 %v3169
        %v3171 = vand.u32 %v1596, 4294901760
        %v3172 = vsub.f32 %v1596, %v3171
        %v3173 = vand.u32 %v3172, 4294901760
        %3174 = vmatpush1.msra.mxu0 %v3173
        %v3175 = vand.u32 %v1599, 4294901760
        %v3176 = vsub.f32 %v1599, %v3175
        %v3177 = vand.u32 %v3176, 4294901760
        %3178 = vmatprep.subr.mxu0 %v3177
        %v3179 = vand.u32 %v1598, 4294901760
        %v3180 = vsub.f32 %v1598, %v3179
        %v3181 = vand.u32 %v3180, 4294901760
        %3182 = vmatpush1.msra.mxu0 %v3181
        %v3183 = vand.u32 %v1601, 4294901760
        %v3184 = vsub.f32 %v1601, %v3183
        %v3185 = vand.u32 %v3184, 4294901760
        %3186 = vmatprep.subr.mxu0 %v3185
        %v3187 = vand.u32 %v1600, 4294901760
        %v3188 = vsub.f32 %v1600, %v3187
        %v3189 = vand.u32 %v3188, 4294901760
        %3190 = vmatpush1.msra.mxu0 %v3189
        %3191 = vmatprep.subr.mxu0 0.0
        %3192 = vmatpush1.msra.mxu0 0.0
        %3193 = vmatprep.subr.mxu0 0.0
        %3194 = vmatpush1.msra.mxu0 0.0
        %3195 = vmatprep.subr.mxu0 0.0
        %3196 = vmatpush1.msra.mxu0 0.0
        %3197 = vmatprep.subr.mxu0 0.0
        %3198 = vmatpush1.msra.mxu0 0.0
        %3199 = vmatprep.subr.mxu0 0.0
        %3200 = vmatpush1.msra.mxu0 0.0
        %3201 = vmatprep.subr.mxu0 0.0
        %3202 = vmatpush1.msra.mxu0 0.0
        %3203 = vmatprep.subr.mxu0 0.0
        %3204 = vmatpush1.msra.mxu0 0.0
        %3205 = vmatprep.subr.mxu0 0.0
        %3206 = vmatpush1.msra.mxu0 0.0
        %3207 = vmatprep.subr.mxu0 0.0
        %3208 = vmatpush1.msra.mxu0 0.0
        %3209 = vmatprep.subr.mxu0 0.0
        %3210 = vmatpush1.msra.mxu0 0.0
        %3211 = vmatprep.subr.mxu0 0.0
        %3212 = vmatpush1.msra.mxu0 0.0
        %3213 = vmatprep.subr.mxu0 0.0
        %3214 = vmatpush1.msra.mxu0 0.0
        %3215 = vmatprep.subr.mxu0 0.0
        %3216 = vmatpush1.msra.mxu0 0.0
        %3217 = vmatprep.subr.mxu0 0.0
        %3218 = vmatpush1.msra.mxu0 0.0
        %3219 = vmatprep.subr.mxu0 0.0
        %3220 = vmatpush1.msra.mxu0 0.0
        %3221 = vmatprep.subr.mxu0 0.0
        %3222 = vmatpush1.msra.mxu0 0.0
        %3223 = vmatprep.subr.mxu0 0.0
        %3224 = vmatpush1.msra.mxu0 0.0
        %3225 = vmatprep.subr.mxu0 0.0
        %3226 = vmatpush1.msra.mxu0 0.0
        %3227 = vmatprep.subr.mxu0 0.0
        %3228 = vmatpush1.msra.mxu0 0.0
        %3229 = vmatprep.subr.mxu0 0.0
        %3230 = vmatpush1.msra.mxu0 0.0
        %3231 = vmatprep.subr.mxu0 0.0
        %3232 = vmatpush1.msra.mxu0 0.0
        %3233 = vmatprep.subr.mxu0 0.0
        %3234 = vmatpush1.msra.mxu0 0.0
        %3235 = vmatprep.subr.mxu0 0.0
        %3236 = vmatpush1.msra.mxu0 0.0
        %3237 = vmatprep.subr.mxu0 0.0
        %3238 = vmatpush1.msra.mxu0 0.0
        %3239 = vmatprep.subr.mxu0 0.0
        %3240 = vmatpush1.msra.mxu0 0.0
        %3241 = vmatprep.subr.mxu0 0.0
        %3242 = vmatpush1.msra.mxu0 0.0
        %3243 = vmatprep.subr.mxu0 0.0
        %3244 = vmatpush1.msra.mxu0 0.0
        %3245 = vmatprep.subr.mxu0 0.0
        %3246 = vmatpush1.msra.mxu0 0.0
        %3247 = vmatprep.mubr.f32.mxu0 0.0
        %v3248 = vand.u32 %v259, 4294901760
        %3249 = vmatmul.mubr.f32.gmra.mrb[0].mxu0 %v3248
        %v3250 = vpop.f32.mrb[0].mxu0
        %v3251 = vadd.f32 %v3155, %v3250
        %v3252 = vpop.f32.mrb[0].mxu0
        %v3253 = vadd.f32 %v3157, %v3252
        %3254 = vdwg.mxu0
        %v3255 = vand.u32 %v1595, 4294901760
        %3256 = vmatprep.subr.mxu0 %v3255
        %v3257 = vand.u32 %v1594, 4294901760
        %3258 = vmatpush1.msra.mxu0 %v3257
        %v3259 = vand.u32 %v1597, 4294901760
        %3260 = vmatprep.subr.mxu0 %v3259
        %v3261 = vand.u32 %v1596, 4294901760
        %3262 = vmatpush1.msra.mxu0 %v3261
        %v3263 = vand.u32 %v1599, 4294901760
        %3264 = vmatprep.subr.mxu0 %v3263
        %v3265 = vand.u32 %v1598, 4294901760
        %3266 = vmatpush1.msra.mxu0 %v3265
        %v3267 = vand.u32 %v1601, 4294901760
        %3268 = vmatprep.subr.mxu0 %v3267
        %v3269 = vand.u32 %v1600, 4294901760
        %3270 = vmatpush1.msra.mxu0 %v3269
        %3271 = vmatprep.subr.mxu0 0.0
        %3272 = vmatpush1.msra.mxu0 0.0
        %3273 = vmatprep.subr.mxu0 0.0
        %3274 = vmatpush1.msra.mxu0 0.0
        %3275 = vmatprep.subr.mxu0 0.0
        %3276 = vmatpush1.msra.mxu0 0.0
        %3277 = vmatprep.subr.mxu0 0.0
        %3278 = vmatpush1.msra.mxu0 0.0
        %3279 = vmatprep.subr.mxu0 0.0
        %3280 = vmatpush1.msra.mxu0 0.0
        %3281 = vmatprep.subr.mxu0 0.0
        %3282 = vmatpush1.msra.mxu0 0.0
        %3283 = vmatprep.subr.mxu0 0.0
        %3284 = vmatpush1.msra.mxu0 0.0
        %3285 = vmatprep.subr.mxu0 0.0
        %3286 = vmatpush1.msra.mxu0 0.0
        %3287 = vmatprep.subr.mxu0 0.0
        %3288 = vmatpush1.msra.mxu0 0.0
        %3289 = vmatprep.subr.mxu0 0.0
        %3290 = vmatpush1.msra.mxu0 0.0
        %3291 = vmatprep.subr.mxu0 0.0
        %3292 = vmatpush1.msra.mxu0 0.0
        %3293 = vmatprep.subr.mxu0 0.0
        %3294 = vmatpush1.msra.mxu0 0.0
        %3295 = vmatprep.subr.mxu0 0.0
        %3296 = vmatpush1.msra.mxu0 0.0
        %3297 = vmatprep.subr.mxu0 0.0
        %3298 = vmatpush1.msra.mxu0 0.0
        %3299 = vmatprep.subr.mxu0 0.0
        %3300 = vmatpush1.msra.mxu0 0.0
        %3301 = vmatprep.subr.mxu0 0.0
        %3302 = vmatpush1.msra.mxu0 0.0
        %3303 = vmatprep.subr.mxu0 0.0
        %3304 = vmatpush1.msra.mxu0 0.0
        %3305 = vmatprep.subr.mxu0 0.0
        %3306 = vmatpush1.msra.mxu0 0.0
        %3307 = vmatprep.subr.mxu0 0.0
        %3308 = vmatpush1.msra.mxu0 0.0
        %3309 = vmatprep.subr.mxu0 0.0
        %3310 = vmatpush1.msra.mxu0 0.0
        %3311 = vmatprep.subr.mxu0 0.0
        %3312 = vmatpush1.msra.mxu0 0.0
        %3313 = vmatprep.subr.mxu0 0.0
        %3314 = vmatpush1.msra.mxu0 0.0
        %3315 = vmatprep.subr.mxu0 0.0
        %3316 = vmatpush1.msra.mxu0 0.0
        %3317 = vmatprep.subr.mxu0 0.0
        %3318 = vmatpush1.msra.mxu0 0.0
        %3319 = vmatprep.subr.mxu0 0.0
        %3320 = vmatpush1.msra.mxu0 0.0
        %3321 = vmatprep.subr.mxu0 0.0
        %3322 = vmatpush1.msra.mxu0 0.0
        %3323 = vmatprep.subr.mxu0 0.0
        %3324 = vmatpush1.msra.mxu0 0.0
        %3325 = vmatprep.subr.mxu0 0.0
        %3326 = vmatpush1.msra.mxu0 0.0
        %3327 = vmatprep.mubr.f32.mxu0 0.0
        %v3328 = vand.u32 %v259, 4294901760
        %3329 = vmatmul.mubr.f32.gmra.mrb[0].mxu0 %v3328
        %v3330 = vpop.f32.mrb[0].mxu0
        %v3331 = vadd.f32 %v3251, %v3330
        %v3332 = vpop.f32.mrb[0].mxu0
        %v3333 = vadd.f32 %v3253, %v3332
        %3334 = vdwg.mxu0
        %v3335 = vand.u32 %v1603, 4294901760
        %3336 = vmatprep.subr.mxu0 %v3335
        %v3337 = vand.u32 %v1602, 4294901760
        %3338 = vmatpush1.msra.mxu0 %v3337
        %v3339 = vand.u32 %v1605, 4294901760
        %3340 = vmatprep.subr.mxu0 %v3339
        %v3341 = vand.u32 %v1604, 4294901760
        %3342 = vmatpush1.msra.mxu0 %v3341
        %v3343 = vand.u32 %v1607, 4294901760
        %3344 = vmatprep.subr.mxu0 %v3343
        %v3345 = vand.u32 %v1606, 4294901760
        %3346 = vmatpush1.msra.mxu0 %v3345
        %v3347 = vand.u32 %v1609, 4294901760
        %3348 = vmatprep.subr.mxu0 %v3347
        %v3349 = vand.u32 %v1608, 4294901760
        %3350 = vmatpush1.msra.mxu0 %v3349
        %3351 = vmatprep.subr.mxu0 0.0
        %3352 = vmatpush1.msra.mxu0 0.0
        %3353 = vmatprep.subr.mxu0 0.0
        %3354 = vmatpush1.msra.mxu0 0.0
        %3355 = vmatprep.subr.mxu0 0.0
        %3356 = vmatpush1.msra.mxu0 0.0
        %3357 = vmatprep.subr.mxu0 0.0
        %3358 = vmatpush1.msra.mxu0 0.0
        %3359 = vmatprep.subr.mxu0 0.0
        %3360 = vmatpush1.msra.mxu0 0.0
        %3361 = vmatprep.subr.mxu0 0.0
        %3362 = vmatpush1.msra.mxu0 0.0
        %3363 = vmatprep.subr.mxu0 0.0
        %3364 = vmatpush1.msra.mxu0 0.0
        %3365 = vmatprep.subr.mxu0 0.0
        %3366 = vmatpush1.msra.mxu0 0.0
        %3367 = vmatprep.subr.mxu0 0.0
        %3368 = vmatpush1.msra.mxu0 0.0
        %3369 = vmatprep.subr.mxu0 0.0
        %3370 = vmatpush1.msra.mxu0 0.0
        %3371 = vmatprep.subr.mxu0 0.0
        %3372 = vmatpush1.msra.mxu0 0.0
        %3373 = vmatprep.subr.mxu0 0.0
        %3374 = vmatpush1.msra.mxu0 0.0
        %3375 = vmatprep.subr.mxu0 0.0
        %3376 = vmatpush1.msra.mxu0 0.0
        %3377 = vmatprep.subr.mxu0 0.0
        %3378 = vmatpush1.msra.mxu0 0.0
        %3379 = vmatprep.subr.mxu0 0.0
        %3380 = vmatpush1.msra.mxu0 0.0
        %3381 = vmatprep.subr.mxu0 0.0
        %3382 = vmatpush1.msra.mxu0 0.0
        %3383 = vmatprep.subr.mxu0 0.0
        %3384 = vmatpush1.msra.mxu0 0.0
        %3385 = vmatprep.subr.mxu0 0.0
        %3386 = vmatpush1.msra.mxu0 0.0
        %3387 = vmatprep.subr.mxu0 0.0
        %3388 = vmatpush1.msra.mxu0 0.0
        %3389 = vmatprep.subr.mxu0 0.0
        %3390 = vmatpush1.msra.mxu0 0.0
        %3391 = vmatprep.subr.mxu0 0.0
        %3392 = vmatpush1.msra.mxu0 0.0
        %3393 = vmatprep.subr.mxu0 0.0
        %3394 = vmatpush1.msra.mxu0 0.0
        %3395 = vmatprep.subr.mxu0 0.0
        %3396 = vmatpush1.msra.mxu0 0.0
        %3397 = vmatprep.subr.mxu0 0.0
        %3398 = vmatpush1.msra.mxu0 0.0
        %3399 = vmatprep.subr.mxu0 0.0
        %3400 = vmatpush1.msra.mxu0 0.0
        %3401 = vmatprep.subr.mxu0 0.0
        %3402 = vmatpush1.msra.mxu0 0.0
        %3403 = vmatprep.subr.mxu0 0.0
        %3404 = vmatpush1.msra.mxu0 0.0
        %3405 = vmatprep.subr.mxu0 0.0
        %3406 = vmatpush1.msra.mxu0 0.0
        %3407 = vmatprep.mubr.f32.mxu0 0.0
        %v3408 = vand.u32 %v262, 4294901760
        %v3409 = vsub.f32 %v262, %v3408
        %v3410 = vand.u32 %v3409, 4294901760
        %v3411 = vsub.f32 %v3409, %v3410
        %v3412 = vand.u32 %v3411, 4294901760
        %3413 = vmatmul.mubr.f32.gmra.mrb[0].mxu0 %v3412
        %v3414 = vpop.f32.mrb[0].mxu0
        %v3415 = vadd.f32 0.0, %v3414
        %v3416 = vpop.f32.mrb[0].mxu0
        %v3417 = vadd.f32 0.0, %v3416
        %3418 = vdwg.mxu0
        %v3419 = vand.u32 %v1603, 4294901760
        %v3420 = vsub.f32 %v1603, %v3419
        %v3421 = vand.u32 %v3420, 4294901760
        %v3422 = vsub.f32 %v3420, %v3421
        %v3423 = vand.u32 %v3422, 4294901760
        %3424 = vmatprep.subr.mxu0 %v3423
        %v3425 = vand.u32 %v1602, 4294901760
        %v3426 = vsub.f32 %v1602, %v3425
        %v3427 = vand.u32 %v3426, 4294901760
        %v3428 = vsub.f32 %v3426, %v3427
        %v3429 = vand.u32 %v3428, 4294901760
        %3430 = vmatpush1.msra.mxu0 %v3429
        %v3431 = vand.u32 %v1605, 4294901760
        %v3432 = vsub.f32 %v1605, %v3431
        %v3433 = vand.u32 %v3432, 4294901760
        %v3434 = vsub.f32 %v3432, %v3433
        %v3435 = vand.u32 %v3434, 4294901760
        %3436 = vmatprep.subr.mxu0 %v3435
        %v3437 = vand.u32 %v1604, 4294901760
        %v3438 = vsub.f32 %v1604, %v3437
        %v3439 = vand.u32 %v3438, 4294901760
        %v3440 = vsub.f32 %v3438, %v3439
        %v3441 = vand.u32 %v3440, 4294901760
        %3442 = vmatpush1.msra.mxu0 %v3441
        %v3443 = vand.u32 %v1607, 4294901760
        %v3444 = vsub.f32 %v1607, %v3443
        %v3445 = vand.u32 %v3444, 4294901760
        %v3446 = vsub.f32 %v3444, %v3445
        %v3447 = vand.u32 %v3446, 4294901760
        %3448 = vmatprep.subr.mxu0 %v3447
        %v3449 = vand.u32 %v1606, 4294901760
        %v3450 = vsub.f32 %v1606, %v3449
        %v3451 = vand.u32 %v3450, 4294901760
        %v3452 = vsub.f32 %v3450, %v3451
        %v3453 = vand.u32 %v3452, 4294901760
        %3454 = vmatpush1.msra.mxu0 %v3453
        %v3455 = vand.u32 %v1609, 4294901760
        %v3456 = vsub.f32 %v1609, %v3455
        %v3457 = vand.u32 %v3456, 4294901760
        %v3458 = vsub.f32 %v3456, %v3457
        %v3459 = vand.u32 %v3458, 4294901760
        %3460 = vmatprep.subr.mxu0 %v3459
        %v3461 = vand.u32 %v1608, 4294901760
        %v3462 = vsub.f32 %v1608, %v3461
        %v3463 = vand.u32 %v3462, 4294901760
        %v3464 = vsub.f32 %v3462, %v3463
        %v3465 = vand.u32 %v3464, 4294901760
        %3466 = vmatpush1.msra.mxu0 %v3465
        %3467 = vmatprep.subr.mxu0 0.0
        %3468 = vmatpush1.msra.mxu0 0.0
        %3469 = vmatprep.subr.mxu0 0.0
        %3470 = vmatpush1.msra.mxu0 0.0
        %3471 = vmatprep.subr.mxu0 0.0
        %3472 = vmatpush1.msra.mxu0 0.0
        %3473 = vmatprep.subr.mxu0 0.0
        %3474 = vmatpush1.msra.mxu0 0.0
        %3475 = vmatprep.subr.mxu0 0.0
        %3476 = vmatpush1.msra.mxu0 0.0
        %3477 = vmatprep.subr.mxu0 0.0
        %3478 = vmatpush1.msra.mxu0 0.0
        %3479 = vmatprep.subr.mxu0 0.0
        %3480 = vmatpush1.msra.mxu0 0.0
        %3481 = vmatprep.subr.mxu0 0.0
        %3482 = vmatpush1.msra.mxu0 0.0
        %3483 = vmatprep.subr.mxu0 0.0
        %3484 = vmatpush1.msra.mxu0 0.0
        %3485 = vmatprep.subr.mxu0 0.0
        %3486 = vmatpush1.msra.mxu0 0.0
        %3487 = vmatprep.subr.mxu0 0.0
        %3488 = vmatpush1.msra.mxu0 0.0
        %3489 = vmatprep.subr.mxu0 0.0
        %3490 = vmatpush1.msra.mxu0 0.0
        %3491 = vmatprep.subr.mxu0 0.0
        %3492 = vmatpush1.msra.mxu0 0.0
        %3493 = vmatprep.subr.mxu0 0.0
        %3494 = vmatpush1.msra.mxu0 0.0
        %3495 = vmatprep.subr.mxu0 0.0
        %3496 = vmatpush1.msra.mxu0 0.0
        %3497 = vmatprep.subr.mxu0 0.0
        %3498 = vmatpush1.msra.mxu0 0.0
        %3499 = vmatprep.subr.mxu0 0.0
        %3500 = vmatpush1.msra.mxu0 0.0
        %3501 = vmatprep.subr.mxu0 0.0
        %3502 = vmatpush1.msra.mxu0 0.0
        %3503 = vmatprep.subr.mxu0 0.0
        %3504 = vmatpush1.msra.mxu0 0.0
        %3505 = vmatprep.subr.mxu0 0.0
        %3506 = vmatpush1.msra.mxu0 0.0
        %3507 = vmatprep.subr.mxu0 0.0
        %3508 = vmatpush1.msra.mxu0 0.0
        %3509 = vmatprep.subr.mxu0 0.0
        %3510 = vmatpush1.msra.mxu0 0.0
        %3511 = vmatprep.subr.mxu0 0.0
        %3512 = vmatpush1.msra.mxu0 0.0
        %3513 = vmatprep.subr.mxu0 0.0
        %3514 = vmatpush1.msra.mxu0 0.0
        %3515 = vmatprep.subr.mxu0 0.0
        %3516 = vmatpush1.msra.mxu0 0.0
        %3517 = vmatprep.subr.mxu0 0.0
        %3518 = vmatpush1.msra.mxu0 0.0
        %3519 = vmatprep.subr.mxu0 0.0
        %3520 = vmatpush1.msra.mxu0 0.0
        %3521 = vmatprep.subr.mxu0 0.0
        %3522 = vmatpush1.msra.mxu0 0.0
        %3523 = vmatprep.mubr.f32.mxu0 0.0
        %v3524 = vand.u32 %v262, 4294901760
        %3525 = vmatmul.mubr.f32.gmra.mrb[0].mxu0 %v3524
        %v3526 = vpop.f32.mrb[0].mxu0
        %v3527 = vadd.f32 %v3415, %v3526
        %v3528 = vpop.f32.mrb[0].mxu0
        %v3529 = vadd.f32 %v3417, %v3528
        %3530 = vdwg.mxu0
        %v3531 = vand.u32 %v1603, 4294901760
        %v3532 = vsub.f32 %v1603, %v3531
        %3533 = vmatprep.subr.mxu0 %v3532
        %v3534 = vand.u32 %v1602, 4294901760
        %v3535 = vsub.f32 %v1602, %v3534
        %3536 = vmatpush1.msra.mxu0 %v3535
        %v3537 = vand.u32 %v1605, 4294901760
        %v3538 = vsub.f32 %v1605, %v3537
        %3539 = vmatprep.subr.mxu0 %v3538
        %v3540 = vand.u32 %v1604, 4294901760
        %v3541 = vsub.f32 %v1604, %v3540
        %3542 = vmatpush1.msra.mxu0 %v3541
        %v3543 = vand.u32 %v1607, 4294901760
        %v3544 = vsub.f32 %v1607, %v3543
        %3545 = vmatprep.subr.mxu0 %v3544
        %v3546 = vand.u32 %v1606, 4294901760
        %v3547 = vsub.f32 %v1606, %v3546
        %3548 = vmatpush1.msra.mxu0 %v3547
        %v3549 = vand.u32 %v1609, 4294901760
        %v3550 = vsub.f32 %v1609, %v3549
        %3551 = vmatprep.subr.mxu0 %v3550
        %v3552 = vand.u32 %v1608, 4294901760
        %v3553 = vsub.f32 %v1608, %v3552
        %3554 = vmatpush1.msra.mxu0 %v3553
        %3555 = vmatprep.subr.mxu0 0.0
        %3556 = vmatpush1.msra.mxu0 0.0
        %3557 = vmatprep.subr.mxu0 0.0
        %3558 = vmatpush1.msra.mxu0 0.0
        %3559 = vmatprep.subr.mxu0 0.0
        %3560 = vmatpush1.msra.mxu0 0.0
        %3561 = vmatprep.subr.mxu0 0.0
        %3562 = vmatpush1.msra.mxu0 0.0
        %3563 = vmatprep.subr.mxu0 0.0
        %3564 = vmatpush1.msra.mxu0 0.0
        %3565 = vmatprep.subr.mxu0 0.0
        %3566 = vmatpush1.msra.mxu0 0.0
        %3567 = vmatprep.subr.mxu0 0.0
        %3568 = vmatpush1.msra.mxu0 0.0
        %3569 = vmatprep.subr.mxu0 0.0
        %3570 = vmatpush1.msra.mxu0 0.0
        %3571 = vmatprep.subr.mxu0 0.0
        %3572 = vmatpush1.msra.mxu0 0.0
        %3573 = vmatprep.subr.mxu0 0.0
        %3574 = vmatpush1.msra.mxu0 0.0
        %3575 = vmatprep.subr.mxu0 0.0
        %3576 = vmatpush1.msra.mxu0 0.0
        %3577 = vmatprep.subr.mxu0 0.0
        %3578 = vmatpush1.msra.mxu0 0.0
        %3579 = vmatprep.subr.mxu0 0.0
        %3580 = vmatpush1.msra.mxu0 0.0
        %3581 = vmatprep.subr.mxu0 0.0
        %3582 = vmatpush1.msra.mxu0 0.0
        %3583 = vmatprep.subr.mxu0 0.0
        %3584 = vmatpush1.msra.mxu0 0.0
        %3585 = vmatprep.subr.mxu0 0.0
        %3586 = vmatpush1.msra.mxu0 0.0
        %3587 = vmatprep.subr.mxu0 0.0
        %3588 = vmatpush1.msra.mxu0 0.0
        %3589 = vmatprep.subr.mxu0 0.0
        %3590 = vmatpush1.msra.mxu0 0.0
        %3591 = vmatprep.subr.mxu0 0.0
        %3592 = vmatpush1.msra.mxu0 0.0
        %3593 = vmatprep.subr.mxu0 0.0
        %3594 = vmatpush1.msra.mxu0 0.0
        %3595 = vmatprep.subr.mxu0 0.0
        %3596 = vmatpush1.msra.mxu0 0.0
        %3597 = vmatprep.subr.mxu0 0.0
        %3598 = vmatpush1.msra.mxu0 0.0
        %3599 = vmatprep.subr.mxu0 0.0
        %3600 = vmatpush1.msra.mxu0 0.0
        %3601 = vmatprep.subr.mxu0 0.0
        %3602 = vmatpush1.msra.mxu0 0.0
        %3603 = vmatprep.subr.mxu0 0.0
        %3604 = vmatpush1.msra.mxu0 0.0
        %3605 = vmatprep.subr.mxu0 0.0
        %3606 = vmatpush1.msra.mxu0 0.0
        %3607 = vmatprep.subr.mxu0 0.0
        %3608 = vmatpush1.msra.mxu0 0.0
        %3609 = vmatprep.subr.mxu0 0.0
        %3610 = vmatpush1.msra.mxu0 0.0
        %3611 = vmatprep.mubr.f32.mxu0 0.0
        %v3612 = vand.u32 %v262, 4294901760
        %v3613 = vsub.f32 %v262, %v3612
        %3614 = vmatmul.mubr.f32.gmra.mrb[0].mxu0 %v3613
        %v3615 = vpop.f32.mrb[0].mxu0
        %v3616 = vadd.f32 %v3527, %v3615
        %v3617 = vpop.f32.mrb[0].mxu0
        %v3618 = vadd.f32 %v3529, %v3617
        %3619 = vdwg.mxu0
        %v3620 = vand.u32 %v1603, 4294901760
        %3621 = vmatprep.subr.mxu0 %v3620
        %v3622 = vand.u32 %v1602, 4294901760
        %3623 = vmatpush1.msra.mxu0 %v3622
        %v3624 = vand.u32 %v1605, 4294901760
        %3625 = vmatprep.subr.mxu0 %v3624
        %v3626 = vand.u32 %v1604, 4294901760
        %3627 = vmatpush1.msra.mxu0 %v3626
        %v3628 = vand.u32 %v1607, 4294901760
        %3629 = vmatprep.subr.mxu0 %v3628
        %v3630 = vand.u32 %v1606, 4294901760
        %3631 = vmatpush1.msra.mxu0 %v3630
        %v3632 = vand.u32 %v1609, 4294901760
        %3633 = vmatprep.subr.mxu0 %v3632
        %v3634 = vand.u32 %v1608, 4294901760
        %3635 = vmatpush1.msra.mxu0 %v3634
        %3636 = vmatprep.subr.mxu0 0.0
        %3637 = vmatpush1.msra.mxu0 0.0
        %3638 = vmatprep.subr.mxu0 0.0
        %3639 = vmatpush1.msra.mxu0 0.0
        %3640 = vmatprep.subr.mxu0 0.0
        %3641 = vmatpush1.msra.mxu0 0.0
        %3642 = vmatprep.subr.mxu0 0.0
        %3643 = vmatpush1.msra.mxu0 0.0
        %3644 = vmatprep.subr.mxu0 0.0
        %3645 = vmatpush1.msra.mxu0 0.0
        %3646 = vmatprep.subr.mxu0 0.0
        %3647 = vmatpush1.msra.mxu0 0.0
        %3648 = vmatprep.subr.mxu0 0.0
        %3649 = vmatpush1.msra.mxu0 0.0
        %3650 = vmatprep.subr.mxu0 0.0
        %3651 = vmatpush1.msra.mxu0 0.0
        %3652 = vmatprep.subr.mxu0 0.0
        %3653 = vmatpush1.msra.mxu0 0.0
        %3654 = vmatprep.subr.mxu0 0.0
        %3655 = vmatpush1.msra.mxu0 0.0
        %3656 = vmatprep.subr.mxu0 0.0
        %3657 = vmatpush1.msra.mxu0 0.0
        %3658 = vmatprep.subr.mxu0 0.0
        %3659 = vmatpush1.msra.mxu0 0.0
        %3660 = vmatprep.subr.mxu0 0.0
        %3661 = vmatpush1.msra.mxu0 0.0
        %3662 = vmatprep.subr.mxu0 0.0
        %3663 = vmatpush1.msra.mxu0 0.0
        %3664 = vmatprep.subr.mxu0 0.0
        %3665 = vmatpush1.msra.mxu0 0.0
        %3666 = vmatprep.subr.mxu0 0.0
        %3667 = vmatpush1.msra.mxu0 0.0
        %3668 = vmatprep.subr.mxu0 0.0
        %3669 = vmatpush1.msra.mxu0 0.0
        %3670 = vmatprep.subr.mxu0 0.0
        %3671 = vmatpush1.msra.mxu0 0.0
        %3672 = vmatprep.subr.mxu0 0.0
        %3673 = vmatpush1.msra.mxu0 0.0
        %3674 = vmatprep.subr.mxu0 0.0
        %3675 = vmatpush1.msra.mxu0 0.0
        %3676 = vmatprep.subr.mxu0 0.0
        %3677 = vmatpush1.msra.mxu0 0.0
        %3678 = vmatprep.subr.mxu0 0.0
        %3679 = vmatpush1.msra.mxu0 0.0
        %3680 = vmatprep.subr.mxu0 0.0
        %3681 = vmatpush1.msra.mxu0 0.0
        %3682 = vmatprep.subr.mxu0 0.0
        %3683 = vmatpush1.msra.mxu0 0.0
        %3684 = vmatprep.subr.mxu0 0.0
        %3685 = vmatpush1.msra.mxu0 0.0
        %3686 = vmatprep.subr.mxu0 0.0
        %3687 = vmatpush1.msra.mxu0 0.0
        %3688 = vmatprep.subr.mxu0 0.0
        %3689 = vmatpush1.msra.mxu0 0.0
        %3690 = vmatprep.subr.mxu0 0.0
        %3691 = vmatpush1.msra.mxu0 0.0
        %3692 = vmatprep.mubr.f32.mxu0 0.0
        %v3693 = vand.u32 %v262, 4294901760
        %v3694 = vsub.f32 %v262, %v3693
        %v3695 = vand.u32 %v3694, 4294901760
        %3696 = vmatmul.mubr.f32.gmra.mrb[0].mxu0 %v3695
        %v3697 = vpop.f32.mrb[0].mxu0
        %v3698 = vadd.f32 %v3616, %v3697
        %v3699 = vpop.f32.mrb[0].mxu0
        %v3700 = vadd.f32 %v3618, %v3699
        %3701 = vdwg.mxu0
        %v3702 = vand.u32 %v1603, 4294901760
        %v3703 = vsub.f32 %v1603, %v3702
        %v3704 = vand.u32 %v3703, 4294901760
        %3705 = vmatprep.subr.mxu0 %v3704
        %v3706 = vand.u32 %v1602, 4294901760
        %v3707 = vsub.f32 %v1602, %v3706
        %v3708 = vand.u32 %v3707, 4294901760
        %3709 = vmatpush1.msra.mxu0 %v3708
        %v3710 = vand.u32 %v1605, 4294901760
        %v3711 = vsub.f32 %v1605, %v3710
        %v3712 = vand.u32 %v3711, 4294901760
        %3713 = vmatprep.subr.mxu0 %v3712
        %v3714 = vand.u32 %v1604, 4294901760
        %v3715 = vsub.f32 %v1604, %v3714
        %v3716 = vand.u32 %v3715, 4294901760
        %3717 = vmatpush1.msra.mxu0 %v3716
        %v3718 = vand.u32 %v1607, 4294901760
        %v3719 = vsub.f32 %v1607, %v3718
        %v3720 = vand.u32 %v3719, 4294901760
        %3721 = vmatprep.subr.mxu0 %v3720
        %v3722 = vand.u32 %v1606, 4294901760
        %v3723 = vsub.f32 %v1606, %v3722
        %v3724 = vand.u32 %v3723, 4294901760
        %3725 = vmatpush1.msra.mxu0 %v3724
        %v3726 = vand.u32 %v1609, 4294901760
        %v3727 = vsub.f32 %v1609, %v3726
        %v3728 = vand.u32 %v3727, 4294901760
        %3729 = vmatprep.subr.mxu0 %v3728
        %v3730 = vand.u32 %v1608, 4294901760
        %v3731 = vsub.f32 %v1608, %v3730
        %v3732 = vand.u32 %v3731, 4294901760
        %3733 = vmatpush1.msra.mxu0 %v3732
        %3734 = vmatprep.subr.mxu0 0.0
        %3735 = vmatpush1.msra.mxu0 0.0
        %3736 = vmatprep.subr.mxu0 0.0
        %3737 = vmatpush1.msra.mxu0 0.0
        %3738 = vmatprep.subr.mxu0 0.0
        %3739 = vmatpush1.msra.mxu0 0.0
        %3740 = vmatprep.subr.mxu0 0.0
        %3741 = vmatpush1.msra.mxu0 0.0
        %3742 = vmatprep.subr.mxu0 0.0
        %3743 = vmatpush1.msra.mxu0 0.0
        %3744 = vmatprep.subr.mxu0 0.0
        %3745 = vmatpush1.msra.mxu0 0.0
        %3746 = vmatprep.subr.mxu0 0.0
        %3747 = vmatpush1.msra.mxu0 0.0
        %3748 = vmatprep.subr.mxu0 0.0
        %3749 = vmatpush1.msra.mxu0 0.0
        %3750 = vmatprep.subr.mxu0 0.0
        %3751 = vmatpush1.msra.mxu0 0.0
        %3752 = vmatprep.subr.mxu0 0.0
        %3753 = vmatpush1.msra.mxu0 0.0
        %3754 = vmatprep.subr.mxu0 0.0
        %3755 = vmatpush1.msra.mxu0 0.0
        %3756 = vmatprep.subr.mxu0 0.0
        %3757 = vmatpush1.msra.mxu0 0.0
        %3758 = vmatprep.subr.mxu0 0.0
        %3759 = vmatpush1.msra.mxu0 0.0
        %3760 = vmatprep.subr.mxu0 0.0
        %3761 = vmatpush1.msra.mxu0 0.0
        %3762 = vmatprep.subr.mxu0 0.0
        %3763 = vmatpush1.msra.mxu0 0.0
        %3764 = vmatprep.subr.mxu0 0.0
        %3765 = vmatpush1.msra.mxu0 0.0
        %3766 = vmatprep.subr.mxu0 0.0
        %3767 = vmatpush1.msra.mxu0 0.0
        %3768 = vmatprep.subr.mxu0 0.0
        %3769 = vmatpush1.msra.mxu0 0.0
        %3770 = vmatprep.subr.mxu0 0.0
        %3771 = vmatpush1.msra.mxu0 0.0
        %3772 = vmatprep.subr.mxu0 0.0
        %3773 = vmatpush1.msra.mxu0 0.0
        %3774 = vmatprep.subr.mxu0 0.0
        %3775 = vmatpush1.msra.mxu0 0.0
        %3776 = vmatprep.subr.mxu0 0.0
        %3777 = vmatpush1.msra.mxu0 0.0
        %3778 = vmatprep.subr.mxu0 0.0
        %3779 = vmatpush1.msra.mxu0 0.0
        %3780 = vmatprep.subr.mxu0 0.0
        %3781 = vmatpush1.msra.mxu0 0.0
        %3782 = vmatprep.subr.mxu0 0.0
        %3783 = vmatpush1.msra.mxu0 0.0
        %3784 = vmatprep.subr.mxu0 0.0
        %3785 = vmatpush1.msra.mxu0 0.0
        %3786 = vmatprep.subr.mxu0 0.0
        %3787 = vmatpush1.msra.mxu0 0.0
        %3788 = vmatprep.subr.mxu0 0.0
        %3789 = vmatpush1.msra.mxu0 0.0
        %3790 = vmatprep.mubr.f32.mxu0 0.0
        %v3791 = vand.u32 %v262, 4294901760
        %3792 = vmatmul.mubr.f32.gmra.mrb[0].mxu0 %v3791
        %v3793 = vpop.f32.mrb[0].mxu0
        %v3794 = vadd.f32 %v3698, %v3793
        %v3795 = vpop.f32.mrb[0].mxu0
        %v3796 = vadd.f32 %v3700, %v3795
        %3797 = vdwg.mxu0
        %v3798 = vand.u32 %v1603, 4294901760
        %3799 = vmatprep.subr.mxu0 %v3798
        %v3800 = vand.u32 %v1602, 4294901760
        %3801 = vmatpush1.msra.mxu0 %v3800
        %v3802 = vand.u32 %v1605, 4294901760
        %3803 = vmatprep.subr.mxu0 %v3802
        %v3804 = vand.u32 %v1604, 4294901760
        %3805 = vmatpush1.msra.mxu0 %v3804
        %v3806 = vand.u32 %v1607, 4294901760
        %3807 = vmatprep.subr.mxu0 %v3806
        %v3808 = vand.u32 %v1606, 4294901760
        %3809 = vmatpush1.msra.mxu0 %v3808
        %v3810 = vand.u32 %v1609, 4294901760
        %3811 = vmatprep.subr.mxu0 %v3810
        %v3812 = vand.u32 %v1608, 4294901760
        %3813 = vmatpush1.msra.mxu0 %v3812
        %3814 = vmatprep.subr.mxu0 0.0
        %3815 = vmatpush1.msra.mxu0 0.0
        %3816 = vmatprep.subr.mxu0 0.0
        %3817 = vmatpush1.msra.mxu0 0.0
        %3818 = vmatprep.subr.mxu0 0.0
        %3819 = vmatpush1.msra.mxu0 0.0
        %3820 = vmatprep.subr.mxu0 0.0
        %3821 = vmatpush1.msra.mxu0 0.0
        %3822 = vmatprep.subr.mxu0 0.0
        %3823 = vmatpush1.msra.mxu0 0.0
        %3824 = vmatprep.subr.mxu0 0.0
        %3825 = vmatpush1.msra.mxu0 0.0
        %3826 = vmatprep.subr.mxu0 0.0
        %3827 = vmatpush1.msra.mxu0 0.0
        %3828 = vmatprep.subr.mxu0 0.0
        %3829 = vmatpush1.msra.mxu0 0.0
        %3830 = vmatprep.subr.mxu0 0.0
        %3831 = vmatpush1.msra.mxu0 0.0
        %3832 = vmatprep.subr.mxu0 0.0
        %3833 = vmatpush1.msra.mxu0 0.0
        %3834 = vmatprep.subr.mxu0 0.0
        %3835 = vmatpush1.msra.mxu0 0.0
        %3836 = vmatprep.subr.mxu0 0.0
        %3837 = vmatpush1.msra.mxu0 0.0
        %3838 = vmatprep.subr.mxu0 0.0
        %3839 = vmatpush1.msra.mxu0 0.0
        %3840 = vmatprep.subr.mxu0 0.0
        %3841 = vmatpush1.msra.mxu0 0.0
        %3842 = vmatprep.subr.mxu0 0.0
        %3843 = vmatpush1.msra.mxu0 0.0
        %3844 = vmatprep.subr.mxu0 0.0
        %3845 = vmatpush1.msra.mxu0 0.0
        %3846 = vmatprep.subr.mxu0 0.0
        %3847 = vmatpush1.msra.mxu0 0.0
        %3848 = vmatprep.subr.mxu0 0.0
        %3849 = vmatpush1.msra.mxu0 0.0
        %3850 = vmatprep.subr.mxu0 0.0
        %3851 = vmatpush1.msra.mxu0 0.0
        %3852 = vmatprep.subr.mxu0 0.0
        %3853 = vmatpush1.msra.mxu0 0.0
        %3854 = vmatprep.subr.mxu0 0.0
        %3855 = vmatpush1.msra.mxu0 0.0
        %3856 = vmatprep.subr.mxu0 0.0
        %3857 = vmatpush1.msra.mxu0 0.0
        %3858 = vmatprep.subr.mxu0 0.0
        %3859 = vmatpush1.msra.mxu0 0.0
        %3860 = vmatprep.subr.mxu0 0.0
        %3861 = vmatpush1.msra.mxu0 0.0
        %3862 = vmatprep.subr.mxu0 0.0
        %3863 = vmatpush1.msra.mxu0 0.0
        %3864 = vmatprep.subr.mxu0 0.0
        %3865 = vmatpush1.msra.mxu0 0.0
        %3866 = vmatprep.subr.mxu0 0.0
        %3867 = vmatpush1.msra.mxu0 0.0
        %3868 = vmatprep.subr.mxu0 0.0
        %3869 = vmatpush1.msra.mxu0 0.0
        %3870 = vmatprep.mubr.f32.mxu0 0.0
        %v3871 = vand.u32 %v262, 4294901760
        %3872 = vmatmul.mubr.f32.gmra.mrb[0].mxu0 %v3871
        %v3873 = vpop.f32.mrb[0].mxu0
        %v3874 = vadd.f32 %v3794, %v3873
        %v3875 = vpop.f32.mrb[0].mxu0
        %v3876 = vadd.f32 %v3796, %v3875
        %3877 = vdwg.mxu0
        %v3878 = vand.u32 %v1611, 4294901760
        %3879 = vmatprep.subr.mxu0 %v3878
        %v3880 = vand.u32 %v1610, 4294901760
        %3881 = vmatpush1.msra.mxu0 %v3880
        %v3882 = vand.u32 %v1613, 4294901760
        %3883 = vmatprep.subr.mxu0 %v3882
        %v3884 = vand.u32 %v1612, 4294901760
        %3885 = vmatpush1.msra.mxu0 %v3884
        %v3886 = vand.u32 %v1615, 4294901760
        %3887 = vmatprep.subr.mxu0 %v3886
        %v3888 = vand.u32 %v1614, 4294901760
        %3889 = vmatpush1.msra.mxu0 %v3888
        %v3890 = vand.u32 %v1617, 4294901760
        %3891 = vmatprep.subr.mxu0 %v3890
        %v3892 = vand.u32 %v1616, 4294901760
        %3893 = vmatpush1.msra.mxu0 %v3892
        %3894 = vmatprep.subr.mxu0 0.0
        %3895 = vmatpush1.msra.mxu0 0.0
        %3896 = vmatprep.subr.mxu0 0.0
        %3897 = vmatpush1.msra.mxu0 0.0
        %3898 = vmatprep.subr.mxu0 0.0
        %3899 = vmatpush1.msra.mxu0 0.0
        %3900 = vmatprep.subr.mxu0 0.0
        %3901 = vmatpush1.msra.mxu0 0.0
        %3902 = vmatprep.subr.mxu0 0.0
        %3903 = vmatpush1.msra.mxu0 0.0
        %3904 = vmatprep.subr.mxu0 0.0
        %3905 = vmatpush1.msra.mxu0 0.0
        %3906 = vmatprep.subr.mxu0 0.0
        %3907 = vmatpush1.msra.mxu0 0.0
        %3908 = vmatprep.subr.mxu0 0.0
        %3909 = vmatpush1.msra.mxu0 0.0
        %3910 = vmatprep.subr.mxu0 0.0
        %3911 = vmatpush1.msra.mxu0 0.0
        %3912 = vmatprep.subr.mxu0 0.0
        %3913 = vmatpush1.msra.mxu0 0.0
        %3914 = vmatprep.subr.mxu0 0.0
        %3915 = vmatpush1.msra.mxu0 0.0
        %3916 = vmatprep.subr.mxu0 0.0
        %3917 = vmatpush1.msra.mxu0 0.0
        %3918 = vmatprep.subr.mxu0 0.0
        %3919 = vmatpush1.msra.mxu0 0.0
        %3920 = vmatprep.subr.mxu0 0.0
        %3921 = vmatpush1.msra.mxu0 0.0
        %3922 = vmatprep.subr.mxu0 0.0
        %3923 = vmatpush1.msra.mxu0 0.0
        %3924 = vmatprep.subr.mxu0 0.0
        %3925 = vmatpush1.msra.mxu0 0.0
        %3926 = vmatprep.subr.mxu0 0.0
        %3927 = vmatpush1.msra.mxu0 0.0
        %3928 = vmatprep.subr.mxu0 0.0
        %3929 = vmatpush1.msra.mxu0 0.0
        %3930 = vmatprep.subr.mxu0 0.0
        %3931 = vmatpush1.msra.mxu0 0.0
        %3932 = vmatprep.subr.mxu0 0.0
        %3933 = vmatpush1.msra.mxu0 0.0
        %3934 = vmatprep.subr.mxu0 0.0
        %3935 = vmatpush1.msra.mxu0 0.0
        %3936 = vmatprep.subr.mxu0 0.0
        %3937 = vmatpush1.msra.mxu0 0.0
        %3938 = vmatprep.subr.mxu0 0.0
        %3939 = vmatpush1.msra.mxu0 0.0
        %3940 = vmatprep.subr.mxu0 0.0
        %3941 = vmatpush1.msra.mxu0 0.0
        %3942 = vmatprep.subr.mxu0 0.0
        %3943 = vmatpush1.msra.mxu0 0.0
        %3944 = vmatprep.subr.mxu0 0.0
        %3945 = vmatpush1.msra.mxu0 0.0
        %3946 = vmatprep.subr.mxu0 0.0
        %3947 = vmatpush1.msra.mxu0 0.0
        %3948 = vmatprep.subr.mxu0 0.0
        %3949 = vmatpush1.msra.mxu0 0.0
        %3950 = vmatprep.mubr.f32.mxu0 0.0
        %v3951 = vand.u32 %v265, 4294901760
        %v3952 = vsub.f32 %v265, %v3951
        %v3953 = vand.u32 %v3952, 4294901760
        %v3954 = vsub.f32 %v3952, %v3953
        %v3955 = vand.u32 %v3954, 4294901760
        %3956 = vmatmul.mubr.f32.gmra.mrb[0].mxu0 %v3955
        %v3957 = vpop.f32.mrb[0].mxu0
        %v3958 = vadd.f32 0.0, %v3957
        %v3959 = vpop.f32.mrb[0].mxu0
        %v3960 = vadd.f32 0.0, %v3959
        %3961 = vdwg.mxu0
        %v3962 = vand.u32 %v1611, 4294901760
        %v3963 = vsub.f32 %v1611, %v3962
        %v3964 = vand.u32 %v3963, 4294901760
        %v3965 = vsub.f32 %v3963, %v3964
        %v3966 = vand.u32 %v3965, 4294901760
        %3967 = vmatprep.subr.mxu0 %v3966
        %v3968 = vand.u32 %v1610, 4294901760
        %v3969 = vsub.f32 %v1610, %v3968
        %v3970 = vand.u32 %v3969, 4294901760
        %v3971 = vsub.f32 %v3969, %v3970
        %v3972 = vand.u32 %v3971, 4294901760
        %3973 = vmatpush1.msra.mxu0 %v3972
        %v3974 = vand.u32 %v1613, 4294901760
        %v3975 = vsub.f32 %v1613, %v3974
        %v3976 = vand.u32 %v3975, 4294901760
        %v3977 = vsub.f32 %v3975, %v3976
        %v3978 = vand.u32 %v3977, 4294901760
        %3979 = vmatprep.subr.mxu0 %v3978
        %v3980 = vand.u32 %v1612, 4294901760
        %v3981 = vsub.f32 %v1612, %v3980
        %v3982 = vand.u32 %v3981, 4294901760
        %v3983 = vsub.f32 %v3981, %v3982
        %v3984 = vand.u32 %v3983, 4294901760
        %3985 = vmatpush1.msra.mxu0 %v3984
        %v3986 = vand.u32 %v1615, 4294901760
        %v3987 = vsub.f32 %v1615, %v3986
        %v3988 = vand.u32 %v3987, 4294901760
        %v3989 = vsub.f32 %v3987, %v3988
        %v3990 = vand.u32 %v3989, 4294901760
        %3991 = vmatprep.subr.mxu0 %v3990
        %v3992 = vand.u32 %v1614, 4294901760
        %v3993 = vsub.f32 %v1614, %v3992
        %v3994 = vand.u32 %v3993, 4294901760
        %v3995 = vsub.f32 %v3993, %v3994
        %v3996 = vand.u32 %v3995, 4294901760
        %3997 = vmatpush1.msra.mxu0 %v3996
        %v3998 = vand.u32 %v1617, 4294901760
        %v3999 = vsub.f32 %v1617, %v3998
        %v4000 = vand.u32 %v3999, 4294901760
        %v4001 = vsub.f32 %v3999, %v4000
        %v4002 = vand.u32 %v4001, 4294901760
        %4003 = vmatprep.subr.mxu0 %v4002
        %v4004 = vand.u32 %v1616, 4294901760
        %v4005 = vsub.f32 %v1616, %v4004
        %v4006 = vand.u32 %v4005, 4294901760
        %v4007 = vsub.f32 %v4005, %v4006
        %v4008 = vand.u32 %v4007, 4294901760
        %4009 = vmatpush1.msra.mxu0 %v4008
        %4010 = vmatprep.subr.mxu0 0.0
        %4011 = vmatpush1.msra.mxu0 0.0
        %4012 = vmatprep.subr.mxu0 0.0
        %4013 = vmatpush1.msra.mxu0 0.0
        %4014 = vmatprep.subr.mxu0 0.0
        %4015 = vmatpush1.msra.mxu0 0.0
        %4016 = vmatprep.subr.mxu0 0.0
        %4017 = vmatpush1.msra.mxu0 0.0
        %4018 = vmatprep.subr.mxu0 0.0
        %4019 = vmatpush1.msra.mxu0 0.0
        %4020 = vmatprep.subr.mxu0 0.0
        %4021 = vmatpush1.msra.mxu0 0.0
        %4022 = vmatprep.subr.mxu0 0.0
        %4023 = vmatpush1.msra.mxu0 0.0
        %4024 = vmatprep.subr.mxu0 0.0
        %4025 = vmatpush1.msra.mxu0 0.0
        %4026 = vmatprep.subr.mxu0 0.0
        %4027 = vmatpush1.msra.mxu0 0.0
        %4028 = vmatprep.subr.mxu0 0.0
        %4029 = vmatpush1.msra.mxu0 0.0
        %4030 = vmatprep.subr.mxu0 0.0
        %4031 = vmatpush1.msra.mxu0 0.0
        %4032 = vmatprep.subr.mxu0 0.0
        %4033 = vmatpush1.msra.mxu0 0.0
        %4034 = vmatprep.subr.mxu0 0.0
        %4035 = vmatpush1.msra.mxu0 0.0
        %4036 = vmatprep.subr.mxu0 0.0
        %4037 = vmatpush1.msra.mxu0 0.0
        %4038 = vmatprep.subr.mxu0 0.0
        %4039 = vmatpush1.msra.mxu0 0.0
        %4040 = vmatprep.subr.mxu0 0.0
        %4041 = vmatpush1.msra.mxu0 0.0
        %4042 = vmatprep.subr.mxu0 0.0
        %4043 = vmatpush1.msra.mxu0 0.0
        %4044 = vmatprep.subr.mxu0 0.0
        %4045 = vmatpush1.msra.mxu0 0.0
        %4046 = vmatprep.subr.mxu0 0.0
        %4047 = vmatpush1.msra.mxu0 0.0
        %4048 = vmatprep.subr.mxu0 0.0
        %4049 = vmatpush1.msra.mxu0 0.0
        %4050 = vmatprep.subr.mxu0 0.0
        %4051 = vmatpush1.msra.mxu0 0.0
        %4052 = vmatprep.subr.mxu0 0.0
        %4053 = vmatpush1.msra.mxu0 0.0
        %4054 = vmatprep.subr.mxu0 0.0
        %4055 = vmatpush1.msra.mxu0 0.0
        %4056 = vmatprep.subr.mxu0 0.0
        %4057 = vmatpush1.msra.mxu0 0.0
        %4058 = vmatprep.subr.mxu0 0.0
        %4059 = vmatpush1.msra.mxu0 0.0
        %4060 = vmatprep.subr.mxu0 0.0
        %4061 = vmatpush1.msra.mxu0 0.0
        %4062 = vmatprep.subr.mxu0 0.0
        %4063 = vmatpush1.msra.mxu0 0.0
        %4064 = vmatprep.subr.mxu0 0.0
        %4065 = vmatpush1.msra.mxu0 0.0
        %4066 = vmatprep.mubr.f32.mxu0 0.0
        %v4067 = vand.u32 %v265, 4294901760
        %4068 = vmatmul.mubr.f32.gmra.mrb[0].mxu0 %v4067
        %v4069 = vpop.f32.mrb[0].mxu0
        %v4070 = vadd.f32 %v3958, %v4069
        %v4071 = vpop.f32.mrb[0].mxu0
        %v4072 = vadd.f32 %v3960, %v4071
        %4073 = vdwg.mxu0
        %v4074 = vand.u32 %v1611, 4294901760
        %v4075 = vsub.f32 %v1611, %v4074
        %4076 = vmatprep.subr.mxu0 %v4075
        %v4077 = vand.u32 %v1610, 4294901760
        %v4078 = vsub.f32 %v1610, %v4077
        %4079 = vmatpush1.msra.mxu0 %v4078
        %v4080 = vand.u32 %v1613, 4294901760
        %v4081 = vsub.f32 %v1613, %v4080
        %4082 = vmatprep.subr.mxu0 %v4081
        %v4083 = vand.u32 %v1612, 4294901760
        %v4084 = vsub.f32 %v1612, %v4083
        %4085 = vmatpush1.msra.mxu0 %v4084
        %v4086 = vand.u32 %v1615, 4294901760
        %v4087 = vsub.f32 %v1615, %v4086
        %4088 = vmatprep.subr.mxu0 %v4087
        %v4089 = vand.u32 %v1614, 4294901760
        %v4090 = vsub.f32 %v1614, %v4089
        %4091 = vmatpush1.msra.mxu0 %v4090
        %v4092 = vand.u32 %v1617, 4294901760
        %v4093 = vsub.f32 %v1617, %v4092
        %4094 = vmatprep.subr.mxu0 %v4093
        %v4095 = vand.u32 %v1616, 4294901760
        %v4096 = vsub.f32 %v1616, %v4095
        %4097 = vmatpush1.msra.mxu0 %v4096
        %4098 = vmatprep.subr.mxu0 0.0
        %4099 = vmatpush1.msra.mxu0 0.0
        %4100 = vmatprep.subr.mxu0 0.0
        %4101 = vmatpush1.msra.mxu0 0.0
        %4102 = vmatprep.subr.mxu0 0.0
        %4103 = vmatpush1.msra.mxu0 0.0
        %4104 = vmatprep.subr.mxu0 0.0
        %4105 = vmatpush1.msra.mxu0 0.0
        %4106 = vmatprep.subr.mxu0 0.0
        %4107 = vmatpush1.msra.mxu0 0.0
        %4108 = vmatprep.subr.mxu0 0.0
        %4109 = vmatpush1.msra.mxu0 0.0
        %4110 = vmatprep.subr.mxu0 0.0
        %4111 = vmatpush1.msra.mxu0 0.0
        %4112 = vmatprep.subr.mxu0 0.0
        %4113 = vmatpush1.msra.mxu0 0.0
        %4114 = vmatprep.subr.mxu0 0.0
        %4115 = vmatpush1.msra.mxu0 0.0
        %4116 = vmatprep.subr.mxu0 0.0
        %4117 = vmatpush1.msra.mxu0 0.0
        %4118 = vmatprep.subr.mxu0 0.0
        %4119 = vmatpush1.msra.mxu0 0.0
        %4120 = vmatprep.subr.mxu0 0.0
        %4121 = vmatpush1.msra.mxu0 0.0
        %4122 = vmatprep.subr.mxu0 0.0
        %4123 = vmatpush1.msra.mxu0 0.0
        %4124 = vmatprep.subr.mxu0 0.0
        %4125 = vmatpush1.msra.mxu0 0.0
        %4126 = vmatprep.subr.mxu0 0.0
        %4127 = vmatpush1.msra.mxu0 0.0
        %4128 = vmatprep.subr.mxu0 0.0
        %4129 = vmatpush1.msra.mxu0 0.0
        %4130 = vmatprep.subr.mxu0 0.0
        %4131 = vmatpush1.msra.mxu0 0.0
        %4132 = vmatprep.subr.mxu0 0.0
        %4133 = vmatpush1.msra.mxu0 0.0
        %4134 = vmatprep.subr.mxu0 0.0
        %4135 = vmatpush1.msra.mxu0 0.0
        %4136 = vmatprep.subr.mxu0 0.0
        %4137 = vmatpush1.msra.mxu0 0.0
        %4138 = vmatprep.subr.mxu0 0.0
        %4139 = vmatpush1.msra.mxu0 0.0
        %4140 = vmatprep.subr.mxu0 0.0
        %4141 = vmatpush1.msra.mxu0 0.0
        %4142 = vmatprep.subr.mxu0 0.0
        %4143 = vmatpush1.msra.mxu0 0.0
        %4144 = vmatprep.subr.mxu0 0.0
        %4145 = vmatpush1.msra.mxu0 0.0
        %4146 = vmatprep.subr.mxu0 0.0
        %4147 = vmatpush1.msra.mxu0 0.0
        %4148 = vmatprep.subr.mxu0 0.0
        %4149 = vmatpush1.msra.mxu0 0.0
        %4150 = vmatprep.subr.mxu0 0.0
        %4151 = vmatpush1.msra.mxu0 0.0
        %4152 = vmatprep.subr.mxu0 0.0
        %4153 = vmatpush1.msra.mxu0 0.0
        %4154 = vmatprep.mubr.f32.mxu0 0.0
        %v4155 = vand.u32 %v265, 4294901760
        %v4156 = vsub.f32 %v265, %v4155
        %4157 = vmatmul.mubr.f32.gmra.mrb[0].mxu0 %v4156
        %v4158 = vpop.f32.mrb[0].mxu0
        %v4159 = vadd.f32 %v4070, %v4158
        %v4160 = vpop.f32.mrb[0].mxu0
        %v4161 = vadd.f32 %v4072, %v4160
        %4162 = vdwg.mxu0
        %v4163 = vand.u32 %v1611, 4294901760
        %4164 = vmatprep.subr.mxu0 %v4163
        %v4165 = vand.u32 %v1610, 4294901760
        %4166 = vmatpush1.msra.mxu0 %v4165
        %v4167 = vand.u32 %v1613, 4294901760
        %4168 = vmatprep.subr.mxu0 %v4167
        %v4169 = vand.u32 %v1612, 4294901760
        %4170 = vmatpush1.msra.mxu0 %v4169
        %v4171 = vand.u32 %v1615, 4294901760
        %4172 = vmatprep.subr.mxu0 %v4171
        %v4173 = vand.u32 %v1614, 4294901760
        %4174 = vmatpush1.msra.mxu0 %v4173
        %v4175 = vand.u32 %v1617, 4294901760
        %4176 = vmatprep.subr.mxu0 %v4175
        %v4177 = vand.u32 %v1616, 4294901760
        %4178 = vmatpush1.msra.mxu0 %v4177
        %4179 = vmatprep.subr.mxu0 0.0
        %4180 = vmatpush1.msra.mxu0 0.0
        %4181 = vmatprep.subr.mxu0 0.0
        %4182 = vmatpush1.msra.mxu0 0.0
        %4183 = vmatprep.subr.mxu0 0.0
        %4184 = vmatpush1.msra.mxu0 0.0
        %4185 = vmatprep.subr.mxu0 0.0
        %4186 = vmatpush1.msra.mxu0 0.0
        %4187 = vmatprep.subr.mxu0 0.0
        %4188 = vmatpush1.msra.mxu0 0.0
        %4189 = vmatprep.subr.mxu0 0.0
        %4190 = vmatpush1.msra.mxu0 0.0
        %4191 = vmatprep.subr.mxu0 0.0
        %4192 = vmatpush1.msra.mxu0 0.0
        %4193 = vmatprep.subr.mxu0 0.0
        %4194 = vmatpush1.msra.mxu0 0.0
        %4195 = vmatprep.subr.mxu0 0.0
        %4196 = vmatpush1.msra.mxu0 0.0
        %4197 = vmatprep.subr.mxu0 0.0
        %4198 = vmatpush1.msra.mxu0 0.0
        %4199 = vmatprep.subr.mxu0 0.0
        %4200 = vmatpush1.msra.mxu0 0.0
        %4201 = vmatprep.subr.mxu0 0.0
        %4202 = vmatpush1.msra.mxu0 0.0
        %4203 = vmatprep.subr.mxu0 0.0
        %4204 = vmatpush1.msra.mxu0 0.0
        %4205 = vmatprep.subr.mxu0 0.0
        %4206 = vmatpush1.msra.mxu0 0.0
        %4207 = vmatprep.subr.mxu0 0.0
        %4208 = vmatpush1.msra.mxu0 0.0
        %4209 = vmatprep.subr.mxu0 0.0
        %4210 = vmatpush1.msra.mxu0 0.0
        %4211 = vmatprep.subr.mxu0 0.0
        %4212 = vmatpush1.msra.mxu0 0.0
        %4213 = vmatprep.subr.mxu0 0.0
        %4214 = vmatpush1.msra.mxu0 0.0
        %4215 = vmatprep.subr.mxu0 0.0
        %4216 = vmatpush1.msra.mxu0 0.0
        %4217 = vmatprep.subr.mxu0 0.0
        %4218 = vmatpush1.msra.mxu0 0.0
        %4219 = vmatprep.subr.mxu0 0.0
        %4220 = vmatpush1.msra.mxu0 0.0
        %4221 = vmatprep.subr.mxu0 0.0
        %4222 = vmatpush1.msra.mxu0 0.0
        %4223 = vmatprep.subr.mxu0 0.0
        %4224 = vmatpush1.msra.mxu0 0.0
        %4225 = vmatprep.subr.mxu0 0.0
        %4226 = vmatpush1.msra.mxu0 0.0
        %4227 = vmatprep.subr.mxu0 0.0
        %4228 = vmatpush1.msra.mxu0 0.0
        %4229 = vmatprep.subr.mxu0 0.0
        %4230 = vmatpush1.msra.mxu0 0.0
        %4231 = vmatprep.subr.mxu0 0.0
        %4232 = vmatpush1.msra.mxu0 0.0
        %4233 = vmatprep.subr.mxu0 0.0
        %4234 = vmatpush1.msra.mxu0 0.0
        %4235 = vmatprep.mubr.f32.mxu0 0.0
        %v4236 = vand.u32 %v265, 4294901760
        %v4237 = vsub.f32 %v265, %v4236
        %v4238 = vand.u32 %v4237, 4294901760
        %4239 = vmatmul.mubr.f32.gmra.mrb[0].mxu0 %v4238
        %v4240 = vpop.f32.mrb[0].mxu0
        %v4241 = vadd.f32 %v4159, %v4240
        %v4242 = vpop.f32.mrb[0].mxu0
        %v4243 = vadd.f32 %v4161, %v4242
        %4244 = vdwg.mxu0
        %v4245 = vand.u32 %v1611, 4294901760
        %v4246 = vsub.f32 %v1611, %v4245
        %v4247 = vand.u32 %v4246, 4294901760
        %4248 = vmatprep.subr.mxu0 %v4247
        %v4249 = vand.u32 %v1610, 4294901760
        %v4250 = vsub.f32 %v1610, %v4249
        %v4251 = vand.u32 %v4250, 4294901760
        %4252 = vmatpush1.msra.mxu0 %v4251
        %v4253 = vand.u32 %v1613, 4294901760
        %v4254 = vsub.f32 %v1613, %v4253
        %v4255 = vand.u32 %v4254, 4294901760
        %4256 = vmatprep.subr.mxu0 %v4255
        %v4257 = vand.u32 %v1612, 4294901760
        %v4258 = vsub.f32 %v1612, %v4257
        %v4259 = vand.u32 %v4258, 4294901760
        %4260 = vmatpush1.msra.mxu0 %v4259
        %v4261 = vand.u32 %v1615, 4294901760
        %v4262 = vsub.f32 %v1615, %v4261
        %v4263 = vand.u32 %v4262, 4294901760
        %4264 = vmatprep.subr.mxu0 %v4263
        %v4265 = vand.u32 %v1614, 4294901760
        %v4266 = vsub.f32 %v1614, %v4265
        %v4267 = vand.u32 %v4266, 4294901760
        %4268 = vmatpush1.msra.mxu0 %v4267
        %v4269 = vand.u32 %v1617, 4294901760
        %v4270 = vsub.f32 %v1617, %v4269
        %v4271 = vand.u32 %v4270, 4294901760
        %4272 = vmatprep.subr.mxu0 %v4271
        %v4273 = vand.u32 %v1616, 4294901760
        %v4274 = vsub.f32 %v1616, %v4273
        %v4275 = vand.u32 %v4274, 4294901760
        %4276 = vmatpush1.msra.mxu0 %v4275
        %4277 = vmatprep.subr.mxu0 0.0
        %4278 = vmatpush1.msra.mxu0 0.0
        %4279 = vmatprep.subr.mxu0 0.0
        %4280 = vmatpush1.msra.mxu0 0.0
        %4281 = vmatprep.subr.mxu0 0.0
        %4282 = vmatpush1.msra.mxu0 0.0
        %4283 = vmatprep.subr.mxu0 0.0
        %4284 = vmatpush1.msra.mxu0 0.0
        %4285 = vmatprep.subr.mxu0 0.0
        %4286 = vmatpush1.msra.mxu0 0.0
        %4287 = vmatprep.subr.mxu0 0.0
        %4288 = vmatpush1.msra.mxu0 0.0
        %4289 = vmatprep.subr.mxu0 0.0
        %4290 = vmatpush1.msra.mxu0 0.0
        %4291 = vmatprep.subr.mxu0 0.0
        %4292 = vmatpush1.msra.mxu0 0.0
        %4293 = vmatprep.subr.mxu0 0.0
        %4294 = vmatpush1.msra.mxu0 0.0
        %4295 = vmatprep.subr.mxu0 0.0
        %4296 = vmatpush1.msra.mxu0 0.0
        %4297 = vmatprep.subr.mxu0 0.0
        %4298 = vmatpush1.msra.mxu0 0.0
        %4299 = vmatprep.subr.mxu0 0.0
        %4300 = vmatpush1.msra.mxu0 0.0
        %4301 = vmatprep.subr.mxu0 0.0
        %4302 = vmatpush1.msra.mxu0 0.0
        %4303 = vmatprep.subr.mxu0 0.0
        %4304 = vmatpush1.msra.mxu0 0.0
        %4305 = vmatprep.subr.mxu0 0.0
        %4306 = vmatpush1.msra.mxu0 0.0
        %4307 = vmatprep.subr.mxu0 0.0
        %4308 = vmatpush1.msra.mxu0 0.0
        %4309 = vmatprep.subr.mxu0 0.0
        %4310 = vmatpush1.msra.mxu0 0.0
        %4311 = vmatprep.subr.mxu0 0.0
        %4312 = vmatpush1.msra.mxu0 0.0
        %4313 = vmatprep.subr.mxu0 0.0
        %4314 = vmatpush1.msra.mxu0 0.0
        %4315 = vmatprep.subr.mxu0 0.0
        %4316 = vmatpush1.msra.mxu0 0.0
        %4317 = vmatprep.subr.mxu0 0.0
        %4318 = vmatpush1.msra.mxu0 0.0
        %4319 = vmatprep.subr.mxu0 0.0
        %4320 = vmatpush1.msra.mxu0 0.0
        %4321 = vmatprep.subr.mxu0 0.0
        %4322 = vmatpush1.msra.mxu0 0.0
        %4323 = vmatprep.subr.mxu0 0.0
        %4324 = vmatpush1.msra.mxu0 0.0
        %4325 = vmatprep.subr.mxu0 0.0
        %4326 = vmatpush1.msra.mxu0 0.0
        %4327 = vmatprep.subr.mxu0 0.0
        %4328 = vmatpush1.msra.mxu0 0.0
        %4329 = vmatprep.subr.mxu0 0.0
        %4330 = vmatpush1.msra.mxu0 0.0
        %4331 = vmatprep.subr.mxu0 0.0
        %4332 = vmatpush1.msra.mxu0 0.0
        %4333 = vmatprep.mubr.f32.mxu0 0.0
        %v4334 = vand.u32 %v265, 4294901760
        %4335 = vmatmul.mubr.f32.gmra.mrb[0].mxu0 %v4334
        %v4336 = vpop.f32.mrb[0].mxu0
        %v4337 = vadd.f32 %v4241, %v4336
        %v4338 = vpop.f32.mrb[0].mxu0
        %v4339 = vadd.f32 %v4243, %v4338
        %4340 = vdwg.mxu0
        %v4341 = vand.u32 %v1611, 4294901760
        %4342 = vmatprep.subr.mxu0 %v4341
        %v4343 = vand.u32 %v1610, 4294901760
        %4344 = vmatpush1.msra.mxu0 %v4343
        %v4345 = vand.u32 %v1613, 4294901760
        %4346 = vmatprep.subr.mxu0 %v4345
        %v4347 = vand.u32 %v1612, 4294901760
        %4348 = vmatpush1.msra.mxu0 %v4347
        %v4349 = vand.u32 %v1615, 4294901760
        %4350 = vmatprep.subr.mxu0 %v4349
        %v4351 = vand.u32 %v1614, 4294901760
        %4352 = vmatpush1.msra.mxu0 %v4351
        %v4353 = vand.u32 %v1617, 4294901760
        %4354 = vmatprep.subr.mxu0 %v4353
        %v4355 = vand.u32 %v1616, 4294901760
        %4356 = vmatpush1.msra.mxu0 %v4355
        %4357 = vmatprep.subr.mxu0 0.0
        %4358 = vmatpush1.msra.mxu0 0.0
        %4359 = vmatprep.subr.mxu0 0.0
        %4360 = vmatpush1.msra.mxu0 0.0
        %4361 = vmatprep.subr.mxu0 0.0
        %4362 = vmatpush1.msra.mxu0 0.0
        %4363 = vmatprep.subr.mxu0 0.0
        %4364 = vmatpush1.msra.mxu0 0.0
        %4365 = vmatprep.subr.mxu0 0.0
        %4366 = vmatpush1.msra.mxu0 0.0
        %4367 = vmatprep.subr.mxu0 0.0
        %4368 = vmatpush1.msra.mxu0 0.0
        %4369 = vmatprep.subr.mxu0 0.0
        %4370 = vmatpush1.msra.mxu0 0.0
        %4371 = vmatprep.subr.mxu0 0.0
        %4372 = vmatpush1.msra.mxu0 0.0
        %4373 = vmatprep.subr.mxu0 0.0
        %4374 = vmatpush1.msra.mxu0 0.0
        %4375 = vmatprep.subr.mxu0 0.0
        %4376 = vmatpush1.msra.mxu0 0.0
        %4377 = vmatprep.subr.mxu0 0.0
        %4378 = vmatpush1.msra.mxu0 0.0
        %4379 = vmatprep.subr.mxu0 0.0
        %4380 = vmatpush1.msra.mxu0 0.0
        %4381 = vmatprep.subr.mxu0 0.0
        %4382 = vmatpush1.msra.mxu0 0.0
        %4383 = vmatprep.subr.mxu0 0.0
        %4384 = vmatpush1.msra.mxu0 0.0
        %4385 = vmatprep.subr.mxu0 0.0
        %4386 = vmatpush1.msra.mxu0 0.0
        %4387 = vmatprep.subr.mxu0 0.0
        %4388 = vmatpush1.msra.mxu0 0.0
        %4389 = vmatprep.subr.mxu0 0.0
        %4390 = vmatpush1.msra.mxu0 0.0
        %4391 = vmatprep.subr.mxu0 0.0
        %4392 = vmatpush1.msra.mxu0 0.0
        %4393 = vmatprep.subr.mxu0 0.0
        %4394 = vmatpush1.msra.mxu0 0.0
        %4395 = vmatprep.subr.mxu0 0.0
        %4396 = vmatpush1.msra.mxu0 0.0
        %4397 = vmatprep.subr.mxu0 0.0
        %4398 = vmatpush1.msra.mxu0 0.0
        %4399 = vmatprep.subr.mxu0 0.0
        %4400 = vmatpush1.msra.mxu0 0.0
        %4401 = vmatprep.subr.mxu0 0.0
        %4402 = vmatpush1.msra.mxu0 0.0
        %4403 = vmatprep.subr.mxu0 0.0
        %4404 = vmatpush1.msra.mxu0 0.0
        %4405 = vmatprep.subr.mxu0 0.0
        %4406 = vmatpush1.msra.mxu0 0.0
        %4407 = vmatprep.subr.mxu0 0.0
        %4408 = vmatpush1.msra.mxu0 0.0
        %4409 = vmatprep.subr.mxu0 0.0
        %4410 = vmatpush1.msra.mxu0 0.0
        %4411 = vmatprep.subr.mxu0 0.0
        %4412 = vmatpush1.msra.mxu0 0.0
        %4413 = vmatprep.mubr.f32.mxu0 0.0
        %v4414 = vand.u32 %v265, 4294901760
        %4415 = vmatmul.mubr.f32.gmra.mrb[0].mxu0 %v4414
        %v4416 = vpop.f32.mrb[0].mxu0
        %v4417 = vadd.f32 %v4337, %v4416
        %v4418 = vpop.f32.mrb[0].mxu0
        %v4419 = vadd.f32 %v4339, %v4418
        %4420 = vdwg.mxu0
        %v4421 = vand.u32 %v1619, 4294901760
        %4422 = vmatprep.subr.mxu0 %v4421
        %v4423 = vand.u32 %v1618, 4294901760
        %4424 = vmatpush1.msra.mxu0 %v4423
        %v4425 = vand.u32 %v1621, 4294901760
        %4426 = vmatprep.subr.mxu0 %v4425
        %v4427 = vand.u32 %v1620, 4294901760
        %4428 = vmatpush1.msra.mxu0 %v4427
        %v4429 = vand.u32 %v1623, 4294901760
        %4430 = vmatprep.subr.mxu0 %v4429
        %v4431 = vand.u32 %v1622, 4294901760
        %4432 = vmatpush1.msra.mxu0 %v4431
        %v4433 = vand.u32 %v1625, 4294901760
        %4434 = vmatprep.subr.mxu0 %v4433
        %v4435 = vand.u32 %v1624, 4294901760
        %4436 = vmatpush1.msra.mxu0 %v4435
        %4437 = vmatprep.subr.mxu0 0.0
        %4438 = vmatpush1.msra.mxu0 0.0
        %4439 = vmatprep.subr.mxu0 0.0
        %4440 = vmatpush1.msra.mxu0 0.0
        %4441 = vmatprep.subr.mxu0 0.0
        %4442 = vmatpush1.msra.mxu0 0.0
        %4443 = vmatprep.subr.mxu0 0.0
        %4444 = vmatpush1.msra.mxu0 0.0
        %4445 = vmatprep.subr.mxu0 0.0
        %4446 = vmatpush1.msra.mxu0 0.0
        %4447 = vmatprep.subr.mxu0 0.0
        %4448 = vmatpush1.msra.mxu0 0.0
        %4449 = vmatprep.subr.mxu0 0.0
        %4450 = vmatpush1.msra.mxu0 0.0
        %4451 = vmatprep.subr.mxu0 0.0
        %4452 = vmatpush1.msra.mxu0 0.0
        %4453 = vmatprep.subr.mxu0 0.0
        %4454 = vmatpush1.msra.mxu0 0.0
        %4455 = vmatprep.subr.mxu0 0.0
        %4456 = vmatpush1.msra.mxu0 0.0
        %4457 = vmatprep.subr.mxu0 0.0
        %4458 = vmatpush1.msra.mxu0 0.0
        %4459 = vmatprep.subr.mxu0 0.0
        %4460 = vmatpush1.msra.mxu0 0.0
        %4461 = vmatprep.subr.mxu0 0.0
        %4462 = vmatpush1.msra.mxu0 0.0
        %4463 = vmatprep.subr.mxu0 0.0
        %4464 = vmatpush1.msra.mxu0 0.0
        %4465 = vmatprep.subr.mxu0 0.0
        %4466 = vmatpush1.msra.mxu0 0.0
        %4467 = vmatprep.subr.mxu0 0.0
        %4468 = vmatpush1.msra.mxu0 0.0
        %4469 = vmatprep.subr.mxu0 0.0
        %4470 = vmatpush1.msra.mxu0 0.0
        %4471 = vmatprep.subr.mxu0 0.0
        %4472 = vmatpush1.msra.mxu0 0.0
        %4473 = vmatprep.subr.mxu0 0.0
        %4474 = vmatpush1.msra.mxu0 0.0
        %4475 = vmatprep.subr.mxu0 0.0
        %4476 = vmatpush1.msra.mxu0 0.0
        %4477 = vmatprep.subr.mxu0 0.0
        %4478 = vmatpush1.msra.mxu0 0.0
        %4479 = vmatprep.subr.mxu0 0.0
        %4480 = vmatpush1.msra.mxu0 0.0
        %4481 = vmatprep.subr.mxu0 0.0
        %4482 = vmatpush1.msra.mxu0 0.0
        %4483 = vmatprep.subr.mxu0 0.0
        %4484 = vmatpush1.msra.mxu0 0.0
        %4485 = vmatprep.subr.mxu0 0.0
        %4486 = vmatpush1.msra.mxu0 0.0
        %4487 = vmatprep.subr.mxu0 0.0
        %4488 = vmatpush1.msra.mxu0 0.0
        %4489 = vmatprep.subr.mxu0 0.0
        %4490 = vmatpush1.msra.mxu0 0.0
        %4491 = vmatprep.subr.mxu0 0.0
        %4492 = vmatpush1.msra.mxu0 0.0
        %4493 = vmatprep.mubr.f32.mxu0 0.0
        %v4494 = vand.u32 %v268, 4294901760
        %v4495 = vsub.f32 %v268, %v4494
        %v4496 = vand.u32 %v4495, 4294901760
        %v4497 = vsub.f32 %v4495, %v4496
        %v4498 = vand.u32 %v4497, 4294901760
        %4499 = vmatmul.mubr.f32.gmra.mrb[0].mxu0 %v4498
        %v4500 = vpop.f32.mrb[0].mxu0
        %v4501 = vadd.f32 0.0, %v4500
        %v4502 = vpop.f32.mrb[0].mxu0
        %v4503 = vadd.f32 0.0, %v4502
        %4504 = vdwg.mxu0
        %v4505 = vand.u32 %v1619, 4294901760
        %v4506 = vsub.f32 %v1619, %v4505
        %v4507 = vand.u32 %v4506, 4294901760
        %v4508 = vsub.f32 %v4506, %v4507
        %v4509 = vand.u32 %v4508, 4294901760
        %4510 = vmatprep.subr.mxu0 %v4509
        %v4511 = vand.u32 %v1618, 4294901760
        %v4512 = vsub.f32 %v1618, %v4511
        %v4513 = vand.u32 %v4512, 4294901760
        %v4514 = vsub.f32 %v4512, %v4513
        %v4515 = vand.u32 %v4514, 4294901760
        %4516 = vmatpush1.msra.mxu0 %v4515
        %v4517 = vand.u32 %v1621, 4294901760
        %v4518 = vsub.f32 %v1621, %v4517
        %v4519 = vand.u32 %v4518, 4294901760
        %v4520 = vsub.f32 %v4518, %v4519
        %v4521 = vand.u32 %v4520, 4294901760
        %4522 = vmatprep.subr.mxu0 %v4521
        %v4523 = vand.u32 %v1620, 4294901760
        %v4524 = vsub.f32 %v1620, %v4523
        %v4525 = vand.u32 %v4524, 4294901760
        %v4526 = vsub.f32 %v4524, %v4525
        %v4527 = vand.u32 %v4526, 4294901760
        %4528 = vmatpush1.msra.mxu0 %v4527
        %v4529 = vand.u32 %v1623, 4294901760
        %v4530 = vsub.f32 %v1623, %v4529
        %v4531 = vand.u32 %v4530, 4294901760
        %v4532 = vsub.f32 %v4530, %v4531
        %v4533 = vand.u32 %v4532, 4294901760
        %4534 = vmatprep.subr.mxu0 %v4533
        %v4535 = vand.u32 %v1622, 4294901760
        %v4536 = vsub.f32 %v1622, %v4535
        %v4537 = vand.u32 %v4536, 4294901760
        %v4538 = vsub.f32 %v4536, %v4537
        %v4539 = vand.u32 %v4538, 4294901760
        %4540 = vmatpush1.msra.mxu0 %v4539
        %v4541 = vand.u32 %v1625, 4294901760
        %v4542 = vsub.f32 %v1625, %v4541
        %v4543 = vand.u32 %v4542, 4294901760
        %v4544 = vsub.f32 %v4542, %v4543
        %v4545 = vand.u32 %v4544, 4294901760
        %4546 = vmatprep.subr.mxu0 %v4545
        %v4547 = vand.u32 %v1624, 4294901760
        %v4548 = vsub.f32 %v1624, %v4547
        %v4549 = vand.u32 %v4548, 4294901760
        %v4550 = vsub.f32 %v4548, %v4549
        %v4551 = vand.u32 %v4550, 4294901760
        %4552 = vmatpush1.msra.mxu0 %v4551
        %4553 = vmatprep.subr.mxu0 0.0
        %4554 = vmatpush1.msra.mxu0 0.0
        %4555 = vmatprep.subr.mxu0 0.0
        %4556 = vmatpush1.msra.mxu0 0.0
        %4557 = vmatprep.subr.mxu0 0.0
        %4558 = vmatpush1.msra.mxu0 0.0
        %4559 = vmatprep.subr.mxu0 0.0
        %4560 = vmatpush1.msra.mxu0 0.0
        %4561 = vmatprep.subr.mxu0 0.0
        %4562 = vmatpush1.msra.mxu0 0.0
        %4563 = vmatprep.subr.mxu0 0.0
        %4564 = vmatpush1.msra.mxu0 0.0
        %4565 = vmatprep.subr.mxu0 0.0
        %4566 = vmatpush1.msra.mxu0 0.0
        %4567 = vmatprep.subr.mxu0 0.0
        %4568 = vmatpush1.msra.mxu0 0.0
        %4569 = vmatprep.subr.mxu0 0.0
        %4570 = vmatpush1.msra.mxu0 0.0
        %4571 = vmatprep.subr.mxu0 0.0
        %4572 = vmatpush1.msra.mxu0 0.0
        %4573 = vmatprep.subr.mxu0 0.0
        %4574 = vmatpush1.msra.mxu0 0.0
        %4575 = vmatprep.subr.mxu0 0.0
        %4576 = vmatpush1.msra.mxu0 0.0
        %4577 = vmatprep.subr.mxu0 0.0
        %4578 = vmatpush1.msra.mxu0 0.0
        %4579 = vmatprep.subr.mxu0 0.0
        %4580 = vmatpush1.msra.mxu0 0.0
        %4581 = vmatprep.subr.mxu0 0.0
        %4582 = vmatpush1.msra.mxu0 0.0
        %4583 = vmatprep.subr.mxu0 0.0
        %4584 = vmatpush1.msra.mxu0 0.0
        %4585 = vmatprep.subr.mxu0 0.0
        %4586 = vmatpush1.msra.mxu0 0.0
        %4587 = vmatprep.subr.mxu0 0.0
        %4588 = vmatpush1.msra.mxu0 0.0
        %4589 = vmatprep.subr.mxu0 0.0
        %4590 = vmatpush1.msra.mxu0 0.0
        %4591 = vmatprep.subr.mxu0 0.0
        %4592 = vmatpush1.msra.mxu0 0.0
        %4593 = vmatprep.subr.mxu0 0.0
        %4594 = vmatpush1.msra.mxu0 0.0
        %4595 = vmatprep.subr.mxu0 0.0
        %4596 = vmatpush1.msra.mxu0 0.0
        %4597 = vmatprep.subr.mxu0 0.0
        %4598 = vmatpush1.msra.mxu0 0.0
        %4599 = vmatprep.subr.mxu0 0.0
        %4600 = vmatpush1.msra.mxu0 0.0
        %4601 = vmatprep.subr.mxu0 0.0
        %4602 = vmatpush1.msra.mxu0 0.0
        %4603 = vmatprep.subr.mxu0 0.0
        %4604 = vmatpush1.msra.mxu0 0.0
        %4605 = vmatprep.subr.mxu0 0.0
        %4606 = vmatpush1.msra.mxu0 0.0
        %4607 = vmatprep.subr.mxu0 0.0
        %4608 = vmatpush1.msra.mxu0 0.0
        %4609 = vmatprep.mubr.f32.mxu0 0.0
        %v4610 = vand.u32 %v268, 4294901760
        %4611 = vmatmul.mubr.f32.gmra.mrb[0].mxu0 %v4610
        %v4612 = vpop.f32.mrb[0].mxu0
        %v4613 = vadd.f32 %v4501, %v4612
        %v4614 = vpop.f32.mrb[0].mxu0
        %v4615 = vadd.f32 %v4503, %v4614
        %4616 = vdwg.mxu0
        %v4617 = vand.u32 %v1619, 4294901760
        %v4618 = vsub.f32 %v1619, %v4617
        %4619 = vmatprep.subr.mxu0 %v4618
        %v4620 = vand.u32 %v1618, 4294901760
        %v4621 = vsub.f32 %v1618, %v4620
        %4622 = vmatpush1.msra.mxu0 %v4621
        %v4623 = vand.u32 %v1621, 4294901760
        %v4624 = vsub.f32 %v1621, %v4623
        %4625 = vmatprep.subr.mxu0 %v4624
        %v4626 = vand.u32 %v1620, 4294901760
        %v4627 = vsub.f32 %v1620, %v4626
        %4628 = vmatpush1.msra.mxu0 %v4627
        %v4629 = vand.u32 %v1623, 4294901760
        %v4630 = vsub.f32 %v1623, %v4629
        %4631 = vmatprep.subr.mxu0 %v4630
        %v4632 = vand.u32 %v1622, 4294901760
        %v4633 = vsub.f32 %v1622, %v4632
        %4634 = vmatpush1.msra.mxu0 %v4633
        %v4635 = vand.u32 %v1625, 4294901760
        %v4636 = vsub.f32 %v1625, %v4635
        %4637 = vmatprep.subr.mxu0 %v4636
        %v4638 = vand.u32 %v1624, 4294901760
        %v4639 = vsub.f32 %v1624, %v4638
        %4640 = vmatpush1.msra.mxu0 %v4639
        %4641 = vmatprep.subr.mxu0 0.0
        %4642 = vmatpush1.msra.mxu0 0.0
        %4643 = vmatprep.subr.mxu0 0.0
        %4644 = vmatpush1.msra.mxu0 0.0
        %4645 = vmatprep.subr.mxu0 0.0
        %4646 = vmatpush1.msra.mxu0 0.0
        %4647 = vmatprep.subr.mxu0 0.0
        %4648 = vmatpush1.msra.mxu0 0.0
        %4649 = vmatprep.subr.mxu0 0.0
        %4650 = vmatpush1.msra.mxu0 0.0
        %4651 = vmatprep.subr.mxu0 0.0
        %4652 = vmatpush1.msra.mxu0 0.0
        %4653 = vmatprep.subr.mxu0 0.0
        %4654 = vmatpush1.msra.mxu0 0.0
        %4655 = vmatprep.subr.mxu0 0.0
        %4656 = vmatpush1.msra.mxu0 0.0
        %4657 = vmatprep.subr.mxu0 0.0
        %4658 = vmatpush1.msra.mxu0 0.0
        %4659 = vmatprep.subr.mxu0 0.0
        %4660 = vmatpush1.msra.mxu0 0.0
        %4661 = vmatprep.subr.mxu0 0.0
        %4662 = vmatpush1.msra.mxu0 0.0
        %4663 = vmatprep.subr.mxu0 0.0
        %4664 = vmatpush1.msra.mxu0 0.0
        %4665 = vmatprep.subr.mxu0 0.0
        %4666 = vmatpush1.msra.mxu0 0.0
        %4667 = vmatprep.subr.mxu0 0.0
        %4668 = vmatpush1.msra.mxu0 0.0
        %4669 = vmatprep.subr.mxu0 0.0
        %4670 = vmatpush1.msra.mxu0 0.0
        %4671 = vmatprep.subr.mxu0 0.0
        %4672 = vmatpush1.msra.mxu0 0.0
        %4673 = vmatprep.subr.mxu0 0.0
        %4674 = vmatpush1.msra.mxu0 0.0
        %4675 = vmatprep.subr.mxu0 0.0
        %4676 = vmatpush1.msra.mxu0 0.0
        %4677 = vmatprep.subr.mxu0 0.0
        %4678 = vmatpush1.msra.mxu0 0.0
        %4679 = vmatprep.subr.mxu0 0.0
        %4680 = vmatpush1.msra.mxu0 0.0
        %4681 = vmatprep.subr.mxu0 0.0
        %4682 = vmatpush1.msra.mxu0 0.0
        %4683 = vmatprep.subr.mxu0 0.0
        %4684 = vmatpush1.msra.mxu0 0.0
        %4685 = vmatprep.subr.mxu0 0.0
        %4686 = vmatpush1.msra.mxu0 0.0
        %4687 = vmatprep.subr.mxu0 0.0
        %4688 = vmatpush1.msra.mxu0 0.0
        %4689 = vmatprep.subr.mxu0 0.0
        %4690 = vmatpush1.msra.mxu0 0.0
        %4691 = vmatprep.subr.mxu0 0.0
        %4692 = vmatpush1.msra.mxu0 0.0
        %4693 = vmatprep.subr.mxu0 0.0
        %4694 = vmatpush1.msra.mxu0 0.0
        %4695 = vmatprep.subr.mxu0 0.0
        %4696 = vmatpush1.msra.mxu0 0.0
        %4697 = vmatprep.mubr.f32.mxu0 0.0
        %v4698 = vand.u32 %v268, 4294901760
        %v4699 = vsub.f32 %v268, %v4698
        %4700 = vmatmul.mubr.f32.gmra.mrb[0].mxu0 %v4699
        %v4701 = vpop.f32.mrb[0].mxu0
        %v4702 = vadd.f32 %v4613, %v4701
        %v4703 = vpop.f32.mrb[0].mxu0
        %v4704 = vadd.f32 %v4615, %v4703
        %4705 = vdwg.mxu0
        %v4706 = vand.u32 %v1619, 4294901760
        %4707 = vmatprep.subr.mxu0 %v4706
        %v4708 = vand.u32 %v1618, 4294901760
        %4709 = vmatpush1.msra.mxu0 %v4708
        %v4710 = vand.u32 %v1621, 4294901760
        %4711 = vmatprep.subr.mxu0 %v4710
        %v4712 = vand.u32 %v1620, 4294901760
        %4713 = vmatpush1.msra.mxu0 %v4712
        %v4714 = vand.u32 %v1623, 4294901760
        %4715 = vmatprep.subr.mxu0 %v4714
        %v4716 = vand.u32 %v1622, 4294901760
        %4717 = vmatpush1.msra.mxu0 %v4716
        %v4718 = vand.u32 %v1625, 4294901760
        %4719 = vmatprep.subr.mxu0 %v4718
        %v4720 = vand.u32 %v1624, 4294901760
        %4721 = vmatpush1.msra.mxu0 %v4720
        %4722 = vmatprep.subr.mxu0 0.0
        %4723 = vmatpush1.msra.mxu0 0.0
        %4724 = vmatprep.subr.mxu0 0.0
        %4725 = vmatpush1.msra.mxu0 0.0
        %4726 = vmatprep.subr.mxu0 0.0
        %4727 = vmatpush1.msra.mxu0 0.0
        %4728 = vmatprep.subr.mxu0 0.0
        %4729 = vmatpush1.msra.mxu0 0.0
        %4730 = vmatprep.subr.mxu0 0.0
        %4731 = vmatpush1.msra.mxu0 0.0
        %4732 = vmatprep.subr.mxu0 0.0
        %4733 = vmatpush1.msra.mxu0 0.0
        %4734 = vmatprep.subr.mxu0 0.0
        %4735 = vmatpush1.msra.mxu0 0.0
        %4736 = vmatprep.subr.mxu0 0.0
        %4737 = vmatpush1.msra.mxu0 0.0
        %4738 = vmatprep.subr.mxu0 0.0
        %4739 = vmatpush1.msra.mxu0 0.0
        %4740 = vmatprep.subr.mxu0 0.0
        %4741 = vmatpush1.msra.mxu0 0.0
        %4742 = vmatprep.subr.mxu0 0.0
        %4743 = vmatpush1.msra.mxu0 0.0
        %4744 = vmatprep.subr.mxu0 0.0
        %4745 = vmatpush1.msra.mxu0 0.0
        %4746 = vmatprep.subr.mxu0 0.0
        %4747 = vmatpush1.msra.mxu0 0.0
        %4748 = vmatprep.subr.mxu0 0.0
        %4749 = vmatpush1.msra.mxu0 0.0
        %4750 = vmatprep.subr.mxu0 0.0
        %4751 = vmatpush1.msra.mxu0 0.0
        %4752 = vmatprep.subr.mxu0 0.0
        %4753 = vmatpush1.msra.mxu0 0.0
        %4754 = vmatprep.subr.mxu0 0.0
        %4755 = vmatpush1.msra.mxu0 0.0
        %4756 = vmatprep.subr.mxu0 0.0
        %4757 = vmatpush1.msra.mxu0 0.0
        %4758 = vmatprep.subr.mxu0 0.0
        %4759 = vmatpush1.msra.mxu0 0.0
        %4760 = vmatprep.subr.mxu0 0.0
        %4761 = vmatpush1.msra.mxu0 0.0
        %4762 = vmatprep.subr.mxu0 0.0
        %4763 = vmatpush1.msra.mxu0 0.0
        %4764 = vmatprep.subr.mxu0 0.0
        %4765 = vmatpush1.msra.mxu0 0.0
        %4766 = vmatprep.subr.mxu0 0.0
        %4767 = vmatpush1.msra.mxu0 0.0
        %4768 = vmatprep.subr.mxu0 0.0
        %4769 = vmatpush1.msra.mxu0 0.0
        %4770 = vmatprep.subr.mxu0 0.0
        %4771 = vmatpush1.msra.mxu0 0.0
        %4772 = vmatprep.subr.mxu0 0.0
        %4773 = vmatpush1.msra.mxu0 0.0
        %4774 = vmatprep.subr.mxu0 0.0
        %4775 = vmatpush1.msra.mxu0 0.0
        %4776 = vmatprep.subr.mxu0 0.0
        %4777 = vmatpush1.msra.mxu0 0.0
        %4778 = vmatprep.mubr.f32.mxu0 0.0
        %v4779 = vand.u32 %v268, 4294901760
        %v4780 = vsub.f32 %v268, %v4779
        %v4781 = vand.u32 %v4780, 4294901760
        %4782 = vmatmul.mubr.f32.gmra.mrb[0].mxu0 %v4781
        %v4783 = vpop.f32.mrb[0].mxu0
        %v4784 = vadd.f32 %v4702, %v4783
        %v4785 = vpop.f32.mrb[0].mxu0
        %v4786 = vadd.f32 %v4704, %v4785
        %4787 = vdwg.mxu0
        %v4788 = vand.u32 %v1619, 4294901760
        %v4789 = vsub.f32 %v1619, %v4788
        %v4790 = vand.u32 %v4789, 4294901760
        %4791 = vmatprep.subr.mxu0 %v4790
        %v4792 = vand.u32 %v1618, 4294901760
        %v4793 = vsub.f32 %v1618, %v4792
        %v4794 = vand.u32 %v4793, 4294901760
        %4795 = vmatpush1.msra.mxu0 %v4794
        %v4796 = vand.u32 %v1621, 4294901760
        %v4797 = vsub.f32 %v1621, %v4796
        %v4798 = vand.u32 %v4797, 4294901760
        %4799 = vmatprep.subr.mxu0 %v4798
        %v4800 = vand.u32 %v1620, 4294901760
        %v4801 = vsub.f32 %v1620, %v4800
        %v4802 = vand.u32 %v4801, 4294901760
        %4803 = vmatpush1.msra.mxu0 %v4802
        %v4804 = vand.u32 %v1623, 4294901760
        %v4805 = vsub.f32 %v1623, %v4804
        %v4806 = vand.u32 %v4805, 4294901760
        %4807 = vmatprep.subr.mxu0 %v4806
        %v4808 = vand.u32 %v1622, 4294901760
        %v4809 = vsub.f32 %v1622, %v4808
        %v4810 = vand.u32 %v4809, 4294901760
        %4811 = vmatpush1.msra.mxu0 %v4810
        %v4812 = vand.u32 %v1625, 4294901760
        %v4813 = vsub.f32 %v1625, %v4812
        %v4814 = vand.u32 %v4813, 4294901760
        %4815 = vmatprep.subr.mxu0 %v4814
        %v4816 = vand.u32 %v1624, 4294901760
        %v4817 = vsub.f32 %v1624, %v4816
        %v4818 = vand.u32 %v4817, 4294901760
        %4819 = vmatpush1.msra.mxu0 %v4818
        %4820 = vmatprep.subr.mxu0 0.0
        %4821 = vmatpush1.msra.mxu0 0.0
        %4822 = vmatprep.subr.mxu0 0.0
        %4823 = vmatpush1.msra.mxu0 0.0
        %4824 = vmatprep.subr.mxu0 0.0
        %4825 = vmatpush1.msra.mxu0 0.0
        %4826 = vmatprep.subr.mxu0 0.0
        %4827 = vmatpush1.msra.mxu0 0.0
        %4828 = vmatprep.subr.mxu0 0.0
        %4829 = vmatpush1.msra.mxu0 0.0
        %4830 = vmatprep.subr.mxu0 0.0
        %4831 = vmatpush1.msra.mxu0 0.0
        %4832 = vmatprep.subr.mxu0 0.0
        %4833 = vmatpush1.msra.mxu0 0.0
        %4834 = vmatprep.subr.mxu0 0.0
        %4835 = vmatpush1.msra.mxu0 0.0
        %4836 = vmatprep.subr.mxu0 0.0
        %4837 = vmatpush1.msra.mxu0 0.0
        %4838 = vmatprep.subr.mxu0 0.0
        %4839 = vmatpush1.msra.mxu0 0.0
        %4840 = vmatprep.subr.mxu0 0.0
        %4841 = vmatpush1.msra.mxu0 0.0
        %4842 = vmatprep.subr.mxu0 0.0
        %4843 = vmatpush1.msra.mxu0 0.0
        %4844 = vmatprep.subr.mxu0 0.0
        %4845 = vmatpush1.msra.mxu0 0.0
        %4846 = vmatprep.subr.mxu0 0.0
        %4847 = vmatpush1.msra.mxu0 0.0
        %4848 = vmatprep.subr.mxu0 0.0
        %4849 = vmatpush1.msra.mxu0 0.0
        %4850 = vmatprep.subr.mxu0 0.0
        %4851 = vmatpush1.msra.mxu0 0.0
        %4852 = vmatprep.subr.mxu0 0.0
        %4853 = vmatpush1.msra.mxu0 0.0
        %4854 = vmatprep.subr.mxu0 0.0
        %4855 = vmatpush1.msra.mxu0 0.0
        %4856 = vmatprep.subr.mxu0 0.0
        %4857 = vmatpush1.msra.mxu0 0.0
        %4858 = vmatprep.subr.mxu0 0.0
        %4859 = vmatpush1.msra.mxu0 0.0
        %4860 = vmatprep.subr.mxu0 0.0
        %4861 = vmatpush1.msra.mxu0 0.0
        %4862 = vmatprep.subr.mxu0 0.0
        %4863 = vmatpush1.msra.mxu0 0.0
        %4864 = vmatprep.subr.mxu0 0.0
        %4865 = vmatpush1.msra.mxu0 0.0
        %4866 = vmatprep.subr.mxu0 0.0
        %4867 = vmatpush1.msra.mxu0 0.0
        %4868 = vmatprep.subr.mxu0 0.0
        %4869 = vmatpush1.msra.mxu0 0.0
        %4870 = vmatprep.subr.mxu0 0.0
        %4871 = vmatpush1.msra.mxu0 0.0
        %4872 = vmatprep.subr.mxu0 0.0
        %4873 = vmatpush1.msra.mxu0 0.0
        %4874 = vmatprep.subr.mxu0 0.0
        %4875 = vmatpush1.msra.mxu0 0.0
        %4876 = vmatprep.mubr.f32.mxu0 0.0
        %v4877 = vand.u32 %v268, 4294901760
        %4878 = vmatmul.mubr.f32.gmra.mrb[0].mxu0 %v4877
        %v4879 = vpop.f32.mrb[0].mxu0
        %v4880 = vadd.f32 %v4784, %v4879
        %v4881 = vpop.f32.mrb[0].mxu0
        %v4882 = vadd.f32 %v4786, %v4881
        %4883 = vdwg.mxu0
        %v4884 = vand.u32 %v1619, 4294901760
        %4885 = vmatprep.subr.mxu0 %v4884
        %v4886 = vand.u32 %v1618, 4294901760
        %4887 = vmatpush1.msra.mxu0 %v4886
        %v4888 = vand.u32 %v1621, 4294901760
        %4889 = vmatprep.subr.mxu0 %v4888
        %v4890 = vand.u32 %v1620, 4294901760
        %4891 = vmatpush1.msra.mxu0 %v4890
        %v4892 = vand.u32 %v1623, 4294901760
        %4893 = vmatprep.subr.mxu0 %v4892
        %v4894 = vand.u32 %v1622, 4294901760
        %4895 = vmatpush1.msra.mxu0 %v4894
        %v4896 = vand.u32 %v1625, 4294901760
        %4897 = vmatprep.subr.mxu0 %v4896
        %v4898 = vand.u32 %v1624, 4294901760
        %4899 = vmatpush1.msra.mxu0 %v4898
        %4900 = vmatprep.subr.mxu0 0.0
        %4901 = vmatpush1.msra.mxu0 0.0
        %4902 = vmatprep.subr.mxu0 0.0
        %4903 = vmatpush1.msra.mxu0 0.0
        %4904 = vmatprep.subr.mxu0 0.0
        %4905 = vmatpush1.msra.mxu0 0.0
        %4906 = vmatprep.subr.mxu0 0.0
        %4907 = vmatpush1.msra.mxu0 0.0
        %4908 = vmatprep.subr.mxu0 0.0
        %4909 = vmatpush1.msra.mxu0 0.0
        %4910 = vmatprep.subr.mxu0 0.0
        %4911 = vmatpush1.msra.mxu0 0.0
        %4912 = vmatprep.subr.mxu0 0.0
        %4913 = vmatpush1.msra.mxu0 0.0
        %4914 = vmatprep.subr.mxu0 0.0
        %4915 = vmatpush1.msra.mxu0 0.0
        %4916 = vmatprep.subr.mxu0 0.0
        %4917 = vmatpush1.msra.mxu0 0.0
        %4918 = vmatprep.subr.mxu0 0.0
        %4919 = vmatpush1.msra.mxu0 0.0
        %4920 = vmatprep.subr.mxu0 0.0
        %4921 = vmatpush1.msra.mxu0 0.0
        %4922 = vmatprep.subr.mxu0 0.0
        %4923 = vmatpush1.msra.mxu0 0.0
        %4924 = vmatprep.subr.mxu0 0.0
        %4925 = vmatpush1.msra.mxu0 0.0
        %4926 = vmatprep.subr.mxu0 0.0
        %4927 = vmatpush1.msra.mxu0 0.0
        %4928 = vmatprep.subr.mxu0 0.0
        %4929 = vmatpush1.msra.mxu0 0.0
        %4930 = vmatprep.subr.mxu0 0.0
        %4931 = vmatpush1.msra.mxu0 0.0
        %4932 = vmatprep.subr.mxu0 0.0
        %4933 = vmatpush1.msra.mxu0 0.0
        %4934 = vmatprep.subr.mxu0 0.0
        %4935 = vmatpush1.msra.mxu0 0.0
        %4936 = vmatprep.subr.mxu0 0.0
        %4937 = vmatpush1.msra.mxu0 0.0
        %4938 = vmatprep.subr.mxu0 0.0
        %4939 = vmatpush1.msra.mxu0 0.0
        %4940 = vmatprep.subr.mxu0 0.0
        %4941 = vmatpush1.msra.mxu0 0.0
        %4942 = vmatprep.subr.mxu0 0.0
        %4943 = vmatpush1.msra.mxu0 0.0
        %4944 = vmatprep.subr.mxu0 0.0
        %4945 = vmatpush1.msra.mxu0 0.0
        %4946 = vmatprep.subr.mxu0 0.0
        %4947 = vmatpush1.msra.mxu0 0.0
        %4948 = vmatprep.subr.mxu0 0.0
        %4949 = vmatpush1.msra.mxu0 0.0
        %4950 = vmatprep.subr.mxu0 0.0
        %4951 = vmatpush1.msra.mxu0 0.0
        %4952 = vmatprep.subr.mxu0 0.0
        %4953 = vmatpush1.msra.mxu0 0.0
        %4954 = vmatprep.subr.mxu0 0.0
        %4955 = vmatpush1.msra.mxu0 0.0
        %4956 = vmatprep.mubr.f32.mxu0 0.0
        %v4957 = vand.u32 %v268, 4294901760
        %4958 = vmatmul.mubr.f32.gmra.mrb[0].mxu0 %v4957
        %v4959 = vpop.f32.mrb[0].mxu0
        %v4960 = vadd.f32 %v4880, %v4959
        %v4961 = vpop.f32.mrb[0].mxu0
        %v4962 = vadd.f32 %v4882, %v4961
        %4963 = vdwg.mxu0
        %v4964 = vand.u32 %v1627, 4294901760
        %4965 = vmatprep.subr.mxu0 %v4964
        %v4966 = vand.u32 %v1626, 4294901760
        %4967 = vmatpush1.msra.mxu0 %v4966
        %v4968 = vand.u32 %v1629, 4294901760
        %4969 = vmatprep.subr.mxu0 %v4968
        %v4970 = vand.u32 %v1628, 4294901760
        %4971 = vmatpush1.msra.mxu0 %v4970
        %v4972 = vand.u32 %v1631, 4294901760
        %4973 = vmatprep.subr.mxu0 %v4972
        %v4974 = vand.u32 %v1630, 4294901760
        %4975 = vmatpush1.msra.mxu0 %v4974
        %v4976 = vand.u32 %v1633, 4294901760
        %4977 = vmatprep.subr.mxu0 %v4976
        %v4978 = vand.u32 %v1632, 4294901760
        %4979 = vmatpush1.msra.mxu0 %v4978
        %4980 = vmatprep.subr.mxu0 0.0
        %4981 = vmatpush1.msra.mxu0 0.0
        %4982 = vmatprep.subr.mxu0 0.0
        %4983 = vmatpush1.msra.mxu0 0.0
        %4984 = vmatprep.subr.mxu0 0.0
        %4985 = vmatpush1.msra.mxu0 0.0
        %4986 = vmatprep.subr.mxu0 0.0
        %4987 = vmatpush1.msra.mxu0 0.0
        %4988 = vmatprep.subr.mxu0 0.0
        %4989 = vmatpush1.msra.mxu0 0.0
        %4990 = vmatprep.subr.mxu0 0.0
        %4991 = vmatpush1.msra.mxu0 0.0
        %4992 = vmatprep.subr.mxu0 0.0
        %4993 = vmatpush1.msra.mxu0 0.0
        %4994 = vmatprep.subr.mxu0 0.0
        %4995 = vmatpush1.msra.mxu0 0.0
        %4996 = vmatprep.subr.mxu0 0.0
        %4997 = vmatpush1.msra.mxu0 0.0
        %4998 = vmatprep.subr.mxu0 0.0
        %4999 = vmatpush1.msra.mxu0 0.0
        %5000 = vmatprep.subr.mxu0 0.0
        %5001 = vmatpush1.msra.mxu0 0.0
        %5002 = vmatprep.subr.mxu0 0.0
        %5003 = vmatpush1.msra.mxu0 0.0
        %5004 = vmatprep.subr.mxu0 0.0
        %5005 = vmatpush1.msra.mxu0 0.0
        %5006 = vmatprep.subr.mxu0 0.0
        %5007 = vmatpush1.msra.mxu0 0.0
        %5008 = vmatprep.subr.mxu0 0.0
        %5009 = vmatpush1.msra.mxu0 0.0
        %5010 = vmatprep.subr.mxu0 0.0
        %5011 = vmatpush1.msra.mxu0 0.0
        %5012 = vmatprep.subr.mxu0 0.0
        %5013 = vmatpush1.msra.mxu0 0.0
        %5014 = vmatprep.subr.mxu0 0.0
        %5015 = vmatpush1.msra.mxu0 0.0
        %5016 = vmatprep.subr.mxu0 0.0
        %5017 = vmatpush1.msra.mxu0 0.0
        %5018 = vmatprep.subr.mxu0 0.0
        %5019 = vmatpush1.msra.mxu0 0.0
        %5020 = vmatprep.subr.mxu0 0.0
        %5021 = vmatpush1.msra.mxu0 0.0
        %5022 = vmatprep.subr.mxu0 0.0
        %5023 = vmatpush1.msra.mxu0 0.0
        %5024 = vmatprep.subr.mxu0 0.0
        %5025 = vmatpush1.msra.mxu0 0.0
        %5026 = vmatprep.subr.mxu0 0.0
        %5027 = vmatpush1.msra.mxu0 0.0
        %5028 = vmatprep.subr.mxu0 0.0
        %5029 = vmatpush1.msra.mxu0 0.0
        %5030 = vmatprep.subr.mxu0 0.0
        %5031 = vmatpush1.msra.mxu0 0.0
        %5032 = vmatprep.subr.mxu0 0.0
        %5033 = vmatpush1.msra.mxu0 0.0
        %5034 = vmatprep.subr.mxu0 0.0
        %5035 = vmatpush1.msra.mxu0 0.0
        %5036 = vmatprep.mubr.f32.mxu0 0.0
        %v5037 = vand.u32 %v271, 4294901760
        %v5038 = vsub.f32 %v271, %v5037
        %v5039 = vand.u32 %v5038, 4294901760
        %v5040 = vsub.f32 %v5038, %v5039
        %v5041 = vand.u32 %v5040, 4294901760
        %5042 = vmatmul.mubr.f32.gmra.mrb[0].mxu0 %v5041
        %v5043 = vpop.f32.mrb[0].mxu0
        %v5044 = vadd.f32 0.0, %v5043
        %v5045 = vpop.f32.mrb[0].mxu0
        %v5046 = vadd.f32 0.0, %v5045
        %5047 = vdwg.mxu0
        %v5048 = vand.u32 %v1627, 4294901760
        %v5049 = vsub.f32 %v1627, %v5048
        %v5050 = vand.u32 %v5049, 4294901760
        %v5051 = vsub.f32 %v5049, %v5050
        %v5052 = vand.u32 %v5051, 4294901760
        %5053 = vmatprep.subr.mxu0 %v5052
        %v5054 = vand.u32 %v1626, 4294901760
        %v5055 = vsub.f32 %v1626, %v5054
        %v5056 = vand.u32 %v5055, 4294901760
        %v5057 = vsub.f32 %v5055, %v5056
        %v5058 = vand.u32 %v5057, 4294901760
        %5059 = vmatpush1.msra.mxu0 %v5058
        %v5060 = vand.u32 %v1629, 4294901760
        %v5061 = vsub.f32 %v1629, %v5060
        %v5062 = vand.u32 %v5061, 4294901760
        %v5063 = vsub.f32 %v5061, %v5062
        %v5064 = vand.u32 %v5063, 4294901760
        %5065 = vmatprep.subr.mxu0 %v5064
        %v5066 = vand.u32 %v1628, 4294901760
        %v5067 = vsub.f32 %v1628, %v5066
        %v5068 = vand.u32 %v5067, 4294901760
        %v5069 = vsub.f32 %v5067, %v5068
        %v5070 = vand.u32 %v5069, 4294901760
        %5071 = vmatpush1.msra.mxu0 %v5070
        %v5072 = vand.u32 %v1631, 4294901760
        %v5073 = vsub.f32 %v1631, %v5072
        %v5074 = vand.u32 %v5073, 4294901760
        %v5075 = vsub.f32 %v5073, %v5074
        %v5076 = vand.u32 %v5075, 4294901760
        %5077 = vmatprep.subr.mxu0 %v5076
        %v5078 = vand.u32 %v1630, 4294901760
        %v5079 = vsub.f32 %v1630, %v5078
        %v5080 = vand.u32 %v5079, 4294901760
        %v5081 = vsub.f32 %v5079, %v5080
        %v5082 = vand.u32 %v5081, 4294901760
        %5083 = vmatpush1.msra.mxu0 %v5082
        %v5084 = vand.u32 %v1633, 4294901760
        %v5085 = vsub.f32 %v1633, %v5084
        %v5086 = vand.u32 %v5085, 4294901760
        %v5087 = vsub.f32 %v5085, %v5086
        %v5088 = vand.u32 %v5087, 4294901760
        %5089 = vmatprep.subr.mxu0 %v5088
        %v5090 = vand.u32 %v1632, 4294901760
        %v5091 = vsub.f32 %v1632, %v5090
        %v5092 = vand.u32 %v5091, 4294901760
        %v5093 = vsub.f32 %v5091, %v5092
        %v5094 = vand.u32 %v5093, 4294901760
        %5095 = vmatpush1.msra.mxu0 %v5094
        %5096 = vmatprep.subr.mxu0 0.0
        %5097 = vmatpush1.msra.mxu0 0.0
        %5098 = vmatprep.subr.mxu0 0.0
        %5099 = vmatpush1.msra.mxu0 0.0
        %5100 = vmatprep.subr.mxu0 0.0
        %5101 = vmatpush1.msra.mxu0 0.0
        %5102 = vmatprep.subr.mxu0 0.0
        %5103 = vmatpush1.msra.mxu0 0.0
        %5104 = vmatprep.subr.mxu0 0.0
        %5105 = vmatpush1.msra.mxu0 0.0
        %5106 = vmatprep.subr.mxu0 0.0
        %5107 = vmatpush1.msra.mxu0 0.0
        %5108 = vmatprep.subr.mxu0 0.0
        %5109 = vmatpush1.msra.mxu0 0.0
        %5110 = vmatprep.subr.mxu0 0.0
        %5111 = vmatpush1.msra.mxu0 0.0
        %5112 = vmatprep.subr.mxu0 0.0
        %5113 = vmatpush1.msra.mxu0 0.0
        %5114 = vmatprep.subr.mxu0 0.0
        %5115 = vmatpush1.msra.mxu0 0.0
        %5116 = vmatprep.subr.mxu0 0.0
        %5117 = vmatpush1.msra.mxu0 0.0
        %5118 = vmatprep.subr.mxu0 0.0
        %5119 = vmatpush1.msra.mxu0 0.0
        %5120 = vmatprep.subr.mxu0 0.0
        %5121 = vmatpush1.msra.mxu0 0.0
        %5122 = vmatprep.subr.mxu0 0.0
        %5123 = vmatpush1.msra.mxu0 0.0
        %5124 = vmatprep.subr.mxu0 0.0
        %5125 = vmatpush1.msra.mxu0 0.0
        %5126 = vmatprep.subr.mxu0 0.0
        %5127 = vmatpush1.msra.mxu0 0.0
        %5128 = vmatprep.subr.mxu0 0.0
        %5129 = vmatpush1.msra.mxu0 0.0
        %5130 = vmatprep.subr.mxu0 0.0
        %5131 = vmatpush1.msra.mxu0 0.0
        %5132 = vmatprep.subr.mxu0 0.0
        %5133 = vmatpush1.msra.mxu0 0.0
        %5134 = vmatprep.subr.mxu0 0.0
        %5135 = vmatpush1.msra.mxu0 0.0
        %5136 = vmatprep.subr.mxu0 0.0
        %5137 = vmatpush1.msra.mxu0 0.0
        %5138 = vmatprep.subr.mxu0 0.0
        %5139 = vmatpush1.msra.mxu0 0.0
        %5140 = vmatprep.subr.mxu0 0.0
        %5141 = vmatpush1.msra.mxu0 0.0
        %5142 = vmatprep.subr.mxu0 0.0
        %5143 = vmatpush1.msra.mxu0 0.0
        %5144 = vmatprep.subr.mxu0 0.0
        %5145 = vmatpush1.msra.mxu0 0.0
        %5146 = vmatprep.subr.mxu0 0.0
        %5147 = vmatpush1.msra.mxu0 0.0
        %5148 = vmatprep.subr.mxu0 0.0
        %5149 = vmatpush1.msra.mxu0 0.0
        %5150 = vmatprep.subr.mxu0 0.0
        %5151 = vmatpush1.msra.mxu0 0.0
        %5152 = vmatprep.mubr.f32.mxu0 0.0
        %v5153 = vand.u32 %v271, 4294901760
        %5154 = vmatmul.mubr.f32.gmra.mrb[0].mxu0 %v5153
        %v5155 = vpop.f32.mrb[0].mxu0
        %v5156 = vadd.f32 %v5044, %v5155
        %v5157 = vpop.f32.mrb[0].mxu0
        %v5158 = vadd.f32 %v5046, %v5157
        %5159 = vdwg.mxu0
        %v5160 = vand.u32 %v1627, 4294901760
        %v5161 = vsub.f32 %v1627, %v5160
        %5162 = vmatprep.subr.mxu0 %v5161
        %v5163 = vand.u32 %v1626, 4294901760
        %v5164 = vsub.f32 %v1626, %v5163
        %5165 = vmatpush1.msra.mxu0 %v5164
        %v5166 = vand.u32 %v1629, 4294901760
        %v5167 = vsub.f32 %v1629, %v5166
        %5168 = vmatprep.subr.mxu0 %v5167
        %v5169 = vand.u32 %v1628, 4294901760
        %v5170 = vsub.f32 %v1628, %v5169
        %5171 = vmatpush1.msra.mxu0 %v5170
        %v5172 = vand.u32 %v1631, 4294901760
        %v5173 = vsub.f32 %v1631, %v5172
        %5174 = vmatprep.subr.mxu0 %v5173
        %v5175 = vand.u32 %v1630, 4294901760
        %v5176 = vsub.f32 %v1630, %v5175
        %5177 = vmatpush1.msra.mxu0 %v5176
        %v5178 = vand.u32 %v1633, 4294901760
        %v5179 = vsub.f32 %v1633, %v5178
        %5180 = vmatprep.subr.mxu0 %v5179
        %v5181 = vand.u32 %v1632, 4294901760
        %v5182 = vsub.f32 %v1632, %v5181
        %5183 = vmatpush1.msra.mxu0 %v5182
        %5184 = vmatprep.subr.mxu0 0.0
        %5185 = vmatpush1.msra.mxu0 0.0
        %5186 = vmatprep.subr.mxu0 0.0
        %5187 = vmatpush1.msra.mxu0 0.0
        %5188 = vmatprep.subr.mxu0 0.0
        %5189 = vmatpush1.msra.mxu0 0.0
        %5190 = vmatprep.subr.mxu0 0.0
        %5191 = vmatpush1.msra.mxu0 0.0
        %5192 = vmatprep.subr.mxu0 0.0
        %5193 = vmatpush1.msra.mxu0 0.0
        %5194 = vmatprep.subr.mxu0 0.0
        %5195 = vmatpush1.msra.mxu0 0.0
        %5196 = vmatprep.subr.mxu0 0.0
        %5197 = vmatpush1.msra.mxu0 0.0
        %5198 = vmatprep.subr.mxu0 0.0
        %5199 = vmatpush1.msra.mxu0 0.0
        %5200 = vmatprep.subr.mxu0 0.0
        %5201 = vmatpush1.msra.mxu0 0.0
        %5202 = vmatprep.subr.mxu0 0.0
        %5203 = vmatpush1.msra.mxu0 0.0
        %5204 = vmatprep.subr.mxu0 0.0
        %5205 = vmatpush1.msra.mxu0 0.0
        %5206 = vmatprep.subr.mxu0 0.0
        %5207 = vmatpush1.msra.mxu0 0.0
        %5208 = vmatprep.subr.mxu0 0.0
        %5209 = vmatpush1.msra.mxu0 0.0
        %5210 = vmatprep.subr.mxu0 0.0
        %5211 = vmatpush1.msra.mxu0 0.0
        %5212 = vmatprep.subr.mxu0 0.0
        %5213 = vmatpush1.msra.mxu0 0.0
        %5214 = vmatprep.subr.mxu0 0.0
        %5215 = vmatpush1.msra.mxu0 0.0
        %5216 = vmatprep.subr.mxu0 0.0
        %5217 = vmatpush1.msra.mxu0 0.0
        %5218 = vmatprep.subr.mxu0 0.0
        %5219 = vmatpush1.msra.mxu0 0.0
        %5220 = vmatprep.subr.mxu0 0.0
        %5221 = vmatpush1.msra.mxu0 0.0
        %5222 = vmatprep.subr.mxu0 0.0
        %5223 = vmatpush1.msra.mxu0 0.0
        %5224 = vmatprep.subr.mxu0 0.0
        %5225 = vmatpush1.msra.mxu0 0.0
        %5226 = vmatprep.subr.mxu0 0.0
        %5227 = vmatpush1.msra.mxu0 0.0
        %5228 = vmatprep.subr.mxu0 0.0
        %5229 = vmatpush1.msra.mxu0 0.0
        %5230 = vmatprep.subr.mxu0 0.0
        %5231 = vmatpush1.msra.mxu0 0.0
        %5232 = vmatprep.subr.mxu0 0.0
        %5233 = vmatpush1.msra.mxu0 0.0
        %5234 = vmatprep.subr.mxu0 0.0
        %5235 = vmatpush1.msra.mxu0 0.0
        %5236 = vmatprep.subr.mxu0 0.0
        %5237 = vmatpush1.msra.mxu0 0.0
        %5238 = vmatprep.subr.mxu0 0.0
        %5239 = vmatpush1.msra.mxu0 0.0
        %5240 = vmatprep.mubr.f32.mxu0 0.0
        %v5241 = vand.u32 %v271, 4294901760
        %v5242 = vsub.f32 %v271, %v5241
        %5243 = vmatmul.mubr.f32.gmra.mrb[0].mxu0 %v5242
        %v5244 = vpop.f32.mrb[0].mxu0
        %v5245 = vadd.f32 %v5156, %v5244
        %v5246 = vpop.f32.mrb[0].mxu0
        %v5247 = vadd.f32 %v5158, %v5246
        %5248 = vdwg.mxu0
        %v5249 = vand.u32 %v1627, 4294901760
        %5250 = vmatprep.subr.mxu0 %v5249
        %v5251 = vand.u32 %v1626, 4294901760
        %5252 = vmatpush1.msra.mxu0 %v5251
        %v5253 = vand.u32 %v1629, 4294901760
        %5254 = vmatprep.subr.mxu0 %v5253
        %v5255 = vand.u32 %v1628, 4294901760
        %5256 = vmatpush1.msra.mxu0 %v5255
        %v5257 = vand.u32 %v1631, 4294901760
        %5258 = vmatprep.subr.mxu0 %v5257
        %v5259 = vand.u32 %v1630, 4294901760
        %5260 = vmatpush1.msra.mxu0 %v5259
        %v5261 = vand.u32 %v1633, 4294901760
        %5262 = vmatprep.subr.mxu0 %v5261
        %v5263 = vand.u32 %v1632, 4294901760
        %5264 = vmatpush1.msra.mxu0 %v5263
        %5265 = vmatprep.subr.mxu0 0.0
        %5266 = vmatpush1.msra.mxu0 0.0
        %5267 = vmatprep.subr.mxu0 0.0
        %5268 = vmatpush1.msra.mxu0 0.0
        %5269 = vmatprep.subr.mxu0 0.0
        %5270 = vmatpush1.msra.mxu0 0.0
        %5271 = vmatprep.subr.mxu0 0.0
        %5272 = vmatpush1.msra.mxu0 0.0
        %5273 = vmatprep.subr.mxu0 0.0
        %5274 = vmatpush1.msra.mxu0 0.0
        %5275 = vmatprep.subr.mxu0 0.0
        %5276 = vmatpush1.msra.mxu0 0.0
        %5277 = vmatprep.subr.mxu0 0.0
        %5278 = vmatpush1.msra.mxu0 0.0
        %5279 = vmatprep.subr.mxu0 0.0
        %5280 = vmatpush1.msra.mxu0 0.0
        %5281 = vmatprep.subr.mxu0 0.0
        %5282 = vmatpush1.msra.mxu0 0.0
        %5283 = vmatprep.subr.mxu0 0.0
        %5284 = vmatpush1.msra.mxu0 0.0
        %5285 = vmatprep.subr.mxu0 0.0
        %5286 = vmatpush1.msra.mxu0 0.0
        %5287 = vmatprep.subr.mxu0 0.0
        %5288 = vmatpush1.msra.mxu0 0.0
        %5289 = vmatprep.subr.mxu0 0.0
        %5290 = vmatpush1.msra.mxu0 0.0
        %5291 = vmatprep.subr.mxu0 0.0
        %5292 = vmatpush1.msra.mxu0 0.0
        %5293 = vmatprep.subr.mxu0 0.0
        %5294 = vmatpush1.msra.mxu0 0.0
        %5295 = vmatprep.subr.mxu0 0.0
        %5296 = vmatpush1.msra.mxu0 0.0
        %5297 = vmatprep.subr.mxu0 0.0
        %5298 = vmatpush1.msra.mxu0 0.0
        %5299 = vmatprep.subr.mxu0 0.0
        %5300 = vmatpush1.msra.mxu0 0.0
        %5301 = vmatprep.subr.mxu0 0.0
        %5302 = vmatpush1.msra.mxu0 0.0
        %5303 = vmatprep.subr.mxu0 0.0
        %5304 = vmatpush1.msra.mxu0 0.0
        %5305 = vmatprep.subr.mxu0 0.0
        %5306 = vmatpush1.msra.mxu0 0.0
        %5307 = vmatprep.subr.mxu0 0.0
        %5308 = vmatpush1.msra.mxu0 0.0
        %5309 = vmatprep.subr.mxu0 0.0
        %5310 = vmatpush1.msra.mxu0 0.0
        %5311 = vmatprep.subr.mxu0 0.0
        %5312 = vmatpush1.msra.mxu0 0.0
        %5313 = vmatprep.subr.mxu0 0.0
        %5314 = vmatpush1.msra.mxu0 0.0
        %5315 = vmatprep.subr.mxu0 0.0
        %5316 = vmatpush1.msra.mxu0 0.0
        %5317 = vmatprep.subr.mxu0 0.0
        %5318 = vmatpush1.msra.mxu0 0.0
        %5319 = vmatprep.subr.mxu0 0.0
        %5320 = vmatpush1.msra.mxu0 0.0
        %5321 = vmatprep.mubr.f32.mxu0 0.0
        %v5322 = vand.u32 %v271, 4294901760
        %v5323 = vsub.f32 %v271, %v5322
        %v5324 = vand.u32 %v5323, 4294901760
        %5325 = vmatmul.mubr.f32.gmra.mrb[0].mxu0 %v5324
        %v5326 = vpop.f32.mrb[0].mxu0
        %v5327 = vadd.f32 %v5245, %v5326
        %v5328 = vpop.f32.mrb[0].mxu0
        %v5329 = vadd.f32 %v5247, %v5328
        %5330 = vdwg.mxu0
        %v5331 = vand.u32 %v1627, 4294901760
        %v5332 = vsub.f32 %v1627, %v5331
        %v5333 = vand.u32 %v5332, 4294901760
        %5334 = vmatprep.subr.mxu0 %v5333
        %v5335 = vand.u32 %v1626, 4294901760
        %v5336 = vsub.f32 %v1626, %v5335
        %v5337 = vand.u32 %v5336, 4294901760
        %5338 = vmatpush1.msra.mxu0 %v5337
        %v5339 = vand.u32 %v1629, 4294901760
        %v5340 = vsub.f32 %v1629, %v5339
        %v5341 = vand.u32 %v5340, 4294901760
        %5342 = vmatprep.subr.mxu0 %v5341
        %v5343 = vand.u32 %v1628, 4294901760
        %v5344 = vsub.f32 %v1628, %v5343
        %v5345 = vand.u32 %v5344, 4294901760
        %5346 = vmatpush1.msra.mxu0 %v5345
        %v5347 = vand.u32 %v1631, 4294901760
        %v5348 = vsub.f32 %v1631, %v5347
        %v5349 = vand.u32 %v5348, 4294901760
        %5350 = vmatprep.subr.mxu0 %v5349
        %v5351 = vand.u32 %v1630, 4294901760
        %v5352 = vsub.f32 %v1630, %v5351
        %v5353 = vand.u32 %v5352, 4294901760
        %5354 = vmatpush1.msra.mxu0 %v5353
        %v5355 = vand.u32 %v1633, 4294901760
        %v5356 = vsub.f32 %v1633, %v5355
        %v5357 = vand.u32 %v5356, 4294901760
        %5358 = vmatprep.subr.mxu0 %v5357
        %v5359 = vand.u32 %v1632, 4294901760
        %v5360 = vsub.f32 %v1632, %v5359
        %v5361 = vand.u32 %v5360, 4294901760
        %5362 = vmatpush1.msra.mxu0 %v5361
        %5363 = vmatprep.subr.mxu0 0.0
        %5364 = vmatpush1.msra.mxu0 0.0
        %5365 = vmatprep.subr.mxu0 0.0
        %5366 = vmatpush1.msra.mxu0 0.0
        %5367 = vmatprep.subr.mxu0 0.0
        %5368 = vmatpush1.msra.mxu0 0.0
        %5369 = vmatprep.subr.mxu0 0.0
        %5370 = vmatpush1.msra.mxu0 0.0
        %5371 = vmatprep.subr.mxu0 0.0
        %5372 = vmatpush1.msra.mxu0 0.0
        %5373 = vmatprep.subr.mxu0 0.0
        %5374 = vmatpush1.msra.mxu0 0.0
        %5375 = vmatprep.subr.mxu0 0.0
        %5376 = vmatpush1.msra.mxu0 0.0
        %5377 = vmatprep.subr.mxu0 0.0
        %5378 = vmatpush1.msra.mxu0 0.0
        %5379 = vmatprep.subr.mxu0 0.0
        %5380 = vmatpush1.msra.mxu0 0.0
        %5381 = vmatprep.subr.mxu0 0.0
        %5382 = vmatpush1.msra.mxu0 0.0
        %5383 = vmatprep.subr.mxu0 0.0
        %5384 = vmatpush1.msra.mxu0 0.0
        %5385 = vmatprep.subr.mxu0 0.0
        %5386 = vmatpush1.msra.mxu0 0.0
        %5387 = vmatprep.subr.mxu0 0.0
        %5388 = vmatpush1.msra.mxu0 0.0
        %5389 = vmatprep.subr.mxu0 0.0
        %5390 = vmatpush1.msra.mxu0 0.0
        %5391 = vmatprep.subr.mxu0 0.0
        %5392 = vmatpush1.msra.mxu0 0.0
        %5393 = vmatprep.subr.mxu0 0.0
        %5394 = vmatpush1.msra.mxu0 0.0
        %5395 = vmatprep.subr.mxu0 0.0
        %5396 = vmatpush1.msra.mxu0 0.0
        %5397 = vmatprep.subr.mxu0 0.0
        %5398 = vmatpush1.msra.mxu0 0.0
        %5399 = vmatprep.subr.mxu0 0.0
        %5400 = vmatpush1.msra.mxu0 0.0
        %5401 = vmatprep.subr.mxu0 0.0
        %5402 = vmatpush1.msra.mxu0 0.0
        %5403 = vmatprep.subr.mxu0 0.0
        %5404 = vmatpush1.msra.mxu0 0.0
        %5405 = vmatprep.subr.mxu0 0.0
        %5406 = vmatpush1.msra.mxu0 0.0
        %5407 = vmatprep.subr.mxu0 0.0
        %5408 = vmatpush1.msra.mxu0 0.0
        %5409 = vmatprep.subr.mxu0 0.0
        %5410 = vmatpush1.msra.mxu0 0.0
        %5411 = vmatprep.subr.mxu0 0.0
        %5412 = vmatpush1.msra.mxu0 0.0
        %5413 = vmatprep.subr.mxu0 0.0
        %5414 = vmatpush1.msra.mxu0 0.0
        %5415 = vmatprep.subr.mxu0 0.0
        %5416 = vmatpush1.msra.mxu0 0.0
        %5417 = vmatprep.subr.mxu0 0.0
        %5418 = vmatpush1.msra.mxu0 0.0
        %5419 = vmatprep.mubr.f32.mxu0 0.0
        %v5420 = vand.u32 %v271, 4294901760
        %5421 = vmatmul.mubr.f32.gmra.mrb[0].mxu0 %v5420
        %v5422 = vpop.f32.mrb[0].mxu0
        %v5423 = vadd.f32 %v5327, %v5422
        %v5424 = vpop.f32.mrb[0].mxu0
        %v5425 = vadd.f32 %v5329, %v5424
        %5426 = vdwg.mxu0
        %v5427 = vand.u32 %v1627, 4294901760
        %5428 = vmatprep.subr.mxu0 %v5427
        %v5429 = vand.u32 %v1626, 4294901760
        %5430 = vmatpush1.msra.mxu0 %v5429
        %v5431 = vand.u32 %v1629, 4294901760
        %5432 = vmatprep.subr.mxu0 %v5431
        %v5433 = vand.u32 %v1628, 4294901760
        %5434 = vmatpush1.msra.mxu0 %v5433
        %v5435 = vand.u32 %v1631, 4294901760
        %5436 = vmatprep.subr.mxu0 %v5435
        %v5437 = vand.u32 %v1630, 4294901760
        %5438 = vmatpush1.msra.mxu0 %v5437
        %v5439 = vand.u32 %v1633, 4294901760
        %5440 = vmatprep.subr.mxu0 %v5439
        %v5441 = vand.u32 %v1632, 4294901760
        %5442 = vmatpush1.msra.mxu0 %v5441
        %5443 = vmatprep.subr.mxu0 0.0
        %5444 = vmatpush1.msra.mxu0 0.0
        %5445 = vmatprep.subr.mxu0 0.0
        %5446 = vmatpush1.msra.mxu0 0.0
        %5447 = vmatprep.subr.mxu0 0.0
        %5448 = vmatpush1.msra.mxu0 0.0
        %5449 = vmatprep.subr.mxu0 0.0
        %5450 = vmatpush1.msra.mxu0 0.0
        %5451 = vmatprep.subr.mxu0 0.0
        %5452 = vmatpush1.msra.mxu0 0.0
        %5453 = vmatprep.subr.mxu0 0.0
        %5454 = vmatpush1.msra.mxu0 0.0
        %5455 = vmatprep.subr.mxu0 0.0
        %5456 = vmatpush1.msra.mxu0 0.0
        %5457 = vmatprep.subr.mxu0 0.0
        %5458 = vmatpush1.msra.mxu0 0.0
        %5459 = vmatprep.subr.mxu0 0.0
        %5460 = vmatpush1.msra.mxu0 0.0
        %5461 = vmatprep.subr.mxu0 0.0
        %5462 = vmatpush1.msra.mxu0 0.0
        %5463 = vmatprep.subr.mxu0 0.0
        %5464 = vmatpush1.msra.mxu0 0.0
        %5465 = vmatprep.subr.mxu0 0.0
        %5466 = vmatpush1.msra.mxu0 0.0
        %5467 = vmatprep.subr.mxu0 0.0
        %5468 = vmatpush1.msra.mxu0 0.0
        %5469 = vmatprep.subr.mxu0 0.0
        %5470 = vmatpush1.msra.mxu0 0.0
        %5471 = vmatprep.subr.mxu0 0.0
        %5472 = vmatpush1.msra.mxu0 0.0
        %5473 = vmatprep.subr.mxu0 0.0
        %5474 = vmatpush1.msra.mxu0 0.0
        %5475 = vmatprep.subr.mxu0 0.0
        %5476 = vmatpush1.msra.mxu0 0.0
        %5477 = vmatprep.subr.mxu0 0.0
        %5478 = vmatpush1.msra.mxu0 0.0
        %5479 = vmatprep.subr.mxu0 0.0
        %5480 = vmatpush1.msra.mxu0 0.0
        %5481 = vmatprep.subr.mxu0 0.0
        %5482 = vmatpush1.msra.mxu0 0.0
        %5483 = vmatprep.subr.mxu0 0.0
        %5484 = vmatpush1.msra.mxu0 0.0
        %5485 = vmatprep.subr.mxu0 0.0
        %5486 = vmatpush1.msra.mxu0 0.0
        %5487 = vmatprep.subr.mxu0 0.0
        %5488 = vmatpush1.msra.mxu0 0.0
        %5489 = vmatprep.subr.mxu0 0.0
        %5490 = vmatpush1.msra.mxu0 0.0
        %5491 = vmatprep.subr.mxu0 0.0
        %5492 = vmatpush1.msra.mxu0 0.0
        %5493 = vmatprep.subr.mxu0 0.0
        %5494 = vmatpush1.msra.mxu0 0.0
        %5495 = vmatprep.subr.mxu0 0.0
        %5496 = vmatpush1.msra.mxu0 0.0
        %5497 = vmatprep.subr.mxu0 0.0
        %5498 = vmatpush1.msra.mxu0 0.0
        %5499 = vmatprep.mubr.f32.mxu0 0.0
        %v5500 = vand.u32 %v271, 4294901760
        %5501 = vmatmul.mubr.f32.gmra.mrb[0].mxu0 %v5500
        %v5502 = vpop.f32.mrb[0].mxu0
        %v5503 = vadd.f32 %v5423, %v5502
        %v5504 = vpop.f32.mrb[0].mxu0
        %v5505 = vadd.f32 %v5425, %v5504
        %5506 = vdwg.mxu0
        %v5507 = vand.u32 %v1635, 4294901760
        %5508 = vmatprep.subr.mxu0 %v5507
        %v5509 = vand.u32 %v1634, 4294901760
        %5510 = vmatpush1.msra.mxu0 %v5509
        %v5511 = vand.u32 %v1637, 4294901760
        %5512 = vmatprep.subr.mxu0 %v5511
        %v5513 = vand.u32 %v1636, 4294901760
        %5514 = vmatpush1.msra.mxu0 %v5513
        %v5515 = vand.u32 %v1639, 4294901760
        %5516 = vmatprep.subr.mxu0 %v5515
        %v5517 = vand.u32 %v1638, 4294901760
        %5518 = vmatpush1.msra.mxu0 %v5517
        %v5519 = vand.u32 %v1641, 4294901760
        %5520 = vmatprep.subr.mxu0 %v5519
        %v5521 = vand.u32 %v1640, 4294901760
        %5522 = vmatpush1.msra.mxu0 %v5521
        %5523 = vmatprep.subr.mxu0 0.0
        %5524 = vmatpush1.msra.mxu0 0.0
        %5525 = vmatprep.subr.mxu0 0.0
        %5526 = vmatpush1.msra.mxu0 0.0
        %5527 = vmatprep.subr.mxu0 0.0
        %5528 = vmatpush1.msra.mxu0 0.0
        %5529 = vmatprep.subr.mxu0 0.0
        %5530 = vmatpush1.msra.mxu0 0.0
        %5531 = vmatprep.subr.mxu0 0.0
        %5532 = vmatpush1.msra.mxu0 0.0
        %5533 = vmatprep.subr.mxu0 0.0
        %5534 = vmatpush1.msra.mxu0 0.0
        %5535 = vmatprep.subr.mxu0 0.0
        %5536 = vmatpush1.msra.mxu0 0.0
        %5537 = vmatprep.subr.mxu0 0.0
        %5538 = vmatpush1.msra.mxu0 0.0
        %5539 = vmatprep.subr.mxu0 0.0
        %5540 = vmatpush1.msra.mxu0 0.0
        %5541 = vmatprep.subr.mxu0 0.0
        %5542 = vmatpush1.msra.mxu0 0.0
        %5543 = vmatprep.subr.mxu0 0.0
        %5544 = vmatpush1.msra.mxu0 0.0
        %5545 = vmatprep.subr.mxu0 0.0
        %5546 = vmatpush1.msra.mxu0 0.0
        %5547 = vmatprep.subr.mxu0 0.0
        %5548 = vmatpush1.msra.mxu0 0.0
        %5549 = vmatprep.subr.mxu0 0.0
        %5550 = vmatpush1.msra.mxu0 0.0
        %5551 = vmatprep.subr.mxu0 0.0
        %5552 = vmatpush1.msra.mxu0 0.0
        %5553 = vmatprep.subr.mxu0 0.0
        %5554 = vmatpush1.msra.mxu0 0.0
        %5555 = vmatprep.subr.mxu0 0.0
        %5556 = vmatpush1.msra.mxu0 0.0
        %5557 = vmatprep.subr.mxu0 0.0
        %5558 = vmatpush1.msra.mxu0 0.0
        %5559 = vmatprep.subr.mxu0 0.0
        %5560 = vmatpush1.msra.mxu0 0.0
        %5561 = vmatprep.subr.mxu0 0.0
        %5562 = vmatpush1.msra.mxu0 0.0
        %5563 = vmatprep.subr.mxu0 0.0
        %5564 = vmatpush1.msra.mxu0 0.0
        %5565 = vmatprep.subr.mxu0 0.0
        %5566 = vmatpush1.msra.mxu0 0.0
        %5567 = vmatprep.subr.mxu0 0.0
        %5568 = vmatpush1.msra.mxu0 0.0
        %5569 = vmatprep.subr.mxu0 0.0
        %5570 = vmatpush1.msra.mxu0 0.0
        %5571 = vmatprep.subr.mxu0 0.0
        %5572 = vmatpush1.msra.mxu0 0.0
        %5573 = vmatprep.subr.mxu0 0.0
        %5574 = vmatpush1.msra.mxu0 0.0
        %5575 = vmatprep.subr.mxu0 0.0
        %5576 = vmatpush1.msra.mxu0 0.0
        %5577 = vmatprep.subr.mxu0 0.0
        %5578 = vmatpush1.msra.mxu0 0.0
        %5579 = vmatprep.mubr.f32.mxu0 0.0
        %v5580 = vand.u32 %v274, 4294901760
        %v5581 = vsub.f32 %v274, %v5580
        %v5582 = vand.u32 %v5581, 4294901760
        %v5583 = vsub.f32 %v5581, %v5582
        %v5584 = vand.u32 %v5583, 4294901760
        %5585 = vmatmul.mubr.f32.gmra.mrb[0].mxu0 %v5584
        %v5586 = vpop.f32.mrb[0].mxu0
        %v5587 = vadd.f32 0.0, %v5586
        %v5588 = vpop.f32.mrb[0].mxu0
        %v5589 = vadd.f32 0.0, %v5588
        %5590 = vdwg.mxu0
        %v5591 = vand.u32 %v1635, 4294901760
        %v5592 = vsub.f32 %v1635, %v5591
        %v5593 = vand.u32 %v5592, 4294901760
        %v5594 = vsub.f32 %v5592, %v5593
        %v5595 = vand.u32 %v5594, 4294901760
        %5596 = vmatprep.subr.mxu0 %v5595
        %v5597 = vand.u32 %v1634, 4294901760
        %v5598 = vsub.f32 %v1634, %v5597
        %v5599 = vand.u32 %v5598, 4294901760
        %v5600 = vsub.f32 %v5598, %v5599
        %v5601 = vand.u32 %v5600, 4294901760
        %5602 = vmatpush1.msra.mxu0 %v5601
        %v5603 = vand.u32 %v1637, 4294901760
        %v5604 = vsub.f32 %v1637, %v5603
        %v5605 = vand.u32 %v5604, 4294901760
        %v5606 = vsub.f32 %v5604, %v5605
        %v5607 = vand.u32 %v5606, 4294901760
        %5608 = vmatprep.subr.mxu0 %v5607
        %v5609 = vand.u32 %v1636, 4294901760
        %v5610 = vsub.f32 %v1636, %v5609
        %v5611 = vand.u32 %v5610, 4294901760
        %v5612 = vsub.f32 %v5610, %v5611
        %v5613 = vand.u32 %v5612, 4294901760
        %5614 = vmatpush1.msra.mxu0 %v5613
        %v5615 = vand.u32 %v1639, 4294901760
        %v5616 = vsub.f32 %v1639, %v5615
        %v5617 = vand.u32 %v5616, 4294901760
        %v5618 = vsub.f32 %v5616, %v5617
        %v5619 = vand.u32 %v5618, 4294901760
        %5620 = vmatprep.subr.mxu0 %v5619
        %v5621 = vand.u32 %v1638, 4294901760
        %v5622 = vsub.f32 %v1638, %v5621
        %v5623 = vand.u32 %v5622, 4294901760
        %v5624 = vsub.f32 %v5622, %v5623
        %v5625 = vand.u32 %v5624, 4294901760
        %5626 = vmatpush1.msra.mxu0 %v5625
        %v5627 = vand.u32 %v1641, 4294901760
        %v5628 = vsub.f32 %v1641, %v5627
        %v5629 = vand.u32 %v5628, 4294901760
        %v5630 = vsub.f32 %v5628, %v5629
        %v5631 = vand.u32 %v5630, 4294901760
        %5632 = vmatprep.subr.mxu0 %v5631
        %v5633 = vand.u32 %v1640, 4294901760
        %v5634 = vsub.f32 %v1640, %v5633
        %v5635 = vand.u32 %v5634, 4294901760
        %v5636 = vsub.f32 %v5634, %v5635
        %v5637 = vand.u32 %v5636, 4294901760
        %5638 = vmatpush1.msra.mxu0 %v5637
        %5639 = vmatprep.subr.mxu0 0.0
        %5640 = vmatpush1.msra.mxu0 0.0
        %5641 = vmatprep.subr.mxu0 0.0
        %5642 = vmatpush1.msra.mxu0 0.0
        %5643 = vmatprep.subr.mxu0 0.0
        %5644 = vmatpush1.msra.mxu0 0.0
        %5645 = vmatprep.subr.mxu0 0.0
        %5646 = vmatpush1.msra.mxu0 0.0
        %5647 = vmatprep.subr.mxu0 0.0
        %5648 = vmatpush1.msra.mxu0 0.0
        %5649 = vmatprep.subr.mxu0 0.0
        %5650 = vmatpush1.msra.mxu0 0.0
        %5651 = vmatprep.subr.mxu0 0.0
        %5652 = vmatpush1.msra.mxu0 0.0
        %5653 = vmatprep.subr.mxu0 0.0
        %5654 = vmatpush1.msra.mxu0 0.0
        %5655 = vmatprep.subr.mxu0 0.0
        %5656 = vmatpush1.msra.mxu0 0.0
        %5657 = vmatprep.subr.mxu0 0.0
        %5658 = vmatpush1.msra.mxu0 0.0
        %5659 = vmatprep.subr.mxu0 0.0
        %5660 = vmatpush1.msra.mxu0 0.0
        %5661 = vmatprep.subr.mxu0 0.0
        %5662 = vmatpush1.msra.mxu0 0.0
        %5663 = vmatprep.subr.mxu0 0.0
        %5664 = vmatpush1.msra.mxu0 0.0
        %5665 = vmatprep.subr.mxu0 0.0
        %5666 = vmatpush1.msra.mxu0 0.0
        %5667 = vmatprep.subr.mxu0 0.0
        %5668 = vmatpush1.msra.mxu0 0.0
        %5669 = vmatprep.subr.mxu0 0.0
        %5670 = vmatpush1.msra.mxu0 0.0
        %5671 = vmatprep.subr.mxu0 0.0
        %5672 = vmatpush1.msra.mxu0 0.0
        %5673 = vmatprep.subr.mxu0 0.0
        %5674 = vmatpush1.msra.mxu0 0.0
        %5675 = vmatprep.subr.mxu0 0.0
        %5676 = vmatpush1.msra.mxu0 0.0
        %5677 = vmatprep.subr.mxu0 0.0
        %5678 = vmatpush1.msra.mxu0 0.0
        %5679 = vmatprep.subr.mxu0 0.0
        %5680 = vmatpush1.msra.mxu0 0.0
        %5681 = vmatprep.subr.mxu0 0.0
        %5682 = vmatpush1.msra.mxu0 0.0
        %5683 = vmatprep.subr.mxu0 0.0
        %5684 = vmatpush1.msra.mxu0 0.0
        %5685 = vmatprep.subr.mxu0 0.0
        %5686 = vmatpush1.msra.mxu0 0.0
        %5687 = vmatprep.subr.mxu0 0.0
        %5688 = vmatpush1.msra.mxu0 0.0
        %5689 = vmatprep.subr.mxu0 0.0
        %5690 = vmatpush1.msra.mxu0 0.0
        %5691 = vmatprep.subr.mxu0 0.0
        %5692 = vmatpush1.msra.mxu0 0.0
        %5693 = vmatprep.subr.mxu0 0.0
        %5694 = vmatpush1.msra.mxu0 0.0
        %5695 = vmatprep.mubr.f32.mxu0 0.0
        %v5696 = vand.u32 %v274, 4294901760
        %5697 = vmatmul.mubr.f32.gmra.mrb[0].mxu0 %v5696
        %v5698 = vpop.f32.mrb[0].mxu0
        %v5699 = vadd.f32 %v5587, %v5698
        %v5700 = vpop.f32.mrb[0].mxu0
        %v5701 = vadd.f32 %v5589, %v5700
        %5702 = vdwg.mxu0
        %v5703 = vand.u32 %v1635, 4294901760
        %v5704 = vsub.f32 %v1635, %v5703
        %5705 = vmatprep.subr.mxu0 %v5704
        %v5706 = vand.u32 %v1634, 4294901760
        %v5707 = vsub.f32 %v1634, %v5706
        %5708 = vmatpush1.msra.mxu0 %v5707
        %v5709 = vand.u32 %v1637, 4294901760
        %v5710 = vsub.f32 %v1637, %v5709
        %5711 = vmatprep.subr.mxu0 %v5710
        %v5712 = vand.u32 %v1636, 4294901760
        %v5713 = vsub.f32 %v1636, %v5712
        %5714 = vmatpush1.msra.mxu0 %v5713
        %v5715 = vand.u32 %v1639, 4294901760
        %v5716 = vsub.f32 %v1639, %v5715
        %5717 = vmatprep.subr.mxu0 %v5716
        %v5718 = vand.u32 %v1638, 4294901760
        %v5719 = vsub.f32 %v1638, %v5718
        %5720 = vmatpush1.msra.mxu0 %v5719
        %v5721 = vand.u32 %v1641, 4294901760
        %v5722 = vsub.f32 %v1641, %v5721
        %5723 = vmatprep.subr.mxu0 %v5722
        %v5724 = vand.u32 %v1640, 4294901760
        %v5725 = vsub.f32 %v1640, %v5724
        %5726 = vmatpush1.msra.mxu0 %v5725
        %5727 = vmatprep.subr.mxu0 0.0
        %5728 = vmatpush1.msra.mxu0 0.0
        %5729 = vmatprep.subr.mxu0 0.0
        %5730 = vmatpush1.msra.mxu0 0.0
        %5731 = vmatprep.subr.mxu0 0.0
        %5732 = vmatpush1.msra.mxu0 0.0
        %5733 = vmatprep.subr.mxu0 0.0
        %5734 = vmatpush1.msra.mxu0 0.0
        %5735 = vmatprep.subr.mxu0 0.0
        %5736 = vmatpush1.msra.mxu0 0.0
        %5737 = vmatprep.subr.mxu0 0.0
        %5738 = vmatpush1.msra.mxu0 0.0
        %5739 = vmatprep.subr.mxu0 0.0
        %5740 = vmatpush1.msra.mxu0 0.0
        %5741 = vmatprep.subr.mxu0 0.0
        %5742 = vmatpush1.msra.mxu0 0.0
        %5743 = vmatprep.subr.mxu0 0.0
        %5744 = vmatpush1.msra.mxu0 0.0
        %5745 = vmatprep.subr.mxu0 0.0
        %5746 = vmatpush1.msra.mxu0 0.0
        %5747 = vmatprep.subr.mxu0 0.0
        %5748 = vmatpush1.msra.mxu0 0.0
        %5749 = vmatprep.subr.mxu0 0.0
        %5750 = vmatpush1.msra.mxu0 0.0
        %5751 = vmatprep.subr.mxu0 0.0
        %5752 = vmatpush1.msra.mxu0 0.0
        %5753 = vmatprep.subr.mxu0 0.0
        %5754 = vmatpush1.msra.mxu0 0.0
        %5755 = vmatprep.subr.mxu0 0.0
        %5756 = vmatpush1.msra.mxu0 0.0
        %5757 = vmatprep.subr.mxu0 0.0
        %5758 = vmatpush1.msra.mxu0 0.0
        %5759 = vmatprep.subr.mxu0 0.0
        %5760 = vmatpush1.msra.mxu0 0.0
        %5761 = vmatprep.subr.mxu0 0.0
        %5762 = vmatpush1.msra.mxu0 0.0
        %5763 = vmatprep.subr.mxu0 0.0
        %5764 = vmatpush1.msra.mxu0 0.0
        %5765 = vmatprep.subr.mxu0 0.0
        %5766 = vmatpush1.msra.mxu0 0.0
        %5767 = vmatprep.subr.mxu0 0.0
        %5768 = vmatpush1.msra.mxu0 0.0
        %5769 = vmatprep.subr.mxu0 0.0
        %5770 = vmatpush1.msra.mxu0 0.0
        %5771 = vmatprep.subr.mxu0 0.0
        %5772 = vmatpush1.msra.mxu0 0.0
        %5773 = vmatprep.subr.mxu0 0.0
        %5774 = vmatpush1.msra.mxu0 0.0
        %5775 = vmatprep.subr.mxu0 0.0
        %5776 = vmatpush1.msra.mxu0 0.0
        %5777 = vmatprep.subr.mxu0 0.0
        %5778 = vmatpush1.msra.mxu0 0.0
        %5779 = vmatprep.subr.mxu0 0.0
        %5780 = vmatpush1.msra.mxu0 0.0
        %5781 = vmatprep.subr.mxu0 0.0
        %5782 = vmatpush1.msra.mxu0 0.0
        %5783 = vmatprep.mubr.f32.mxu0 0.0
        %v5784 = vand.u32 %v274, 4294901760
        %v5785 = vsub.f32 %v274, %v5784
        %5786 = vmatmul.mubr.f32.gmra.mrb[0].mxu0 %v5785
        %v5787 = vpop.f32.mrb[0].mxu0
        %v5788 = vadd.f32 %v5699, %v5787
        %v5789 = vpop.f32.mrb[0].mxu0
        %v5790 = vadd.f32 %v5701, %v5789
        %5791 = vdwg.mxu0
        %v5792 = vand.u32 %v1635, 4294901760
        %5793 = vmatprep.subr.mxu0 %v5792
        %v5794 = vand.u32 %v1634, 4294901760
        %5795 = vmatpush1.msra.mxu0 %v5794
        %v5796 = vand.u32 %v1637, 4294901760
        %5797 = vmatprep.subr.mxu0 %v5796
        %v5798 = vand.u32 %v1636, 4294901760
        %5799 = vmatpush1.msra.mxu0 %v5798
        %v5800 = vand.u32 %v1639, 4294901760
        %5801 = vmatprep.subr.mxu0 %v5800
        %v5802 = vand.u32 %v1638, 4294901760
        %5803 = vmatpush1.msra.mxu0 %v5802
        %v5804 = vand.u32 %v1641, 4294901760
        %5805 = vmatprep.subr.mxu0 %v5804
        %v5806 = vand.u32 %v1640, 4294901760
        %5807 = vmatpush1.msra.mxu0 %v5806
        %5808 = vmatprep.subr.mxu0 0.0
        %5809 = vmatpush1.msra.mxu0 0.0
        %5810 = vmatprep.subr.mxu0 0.0
        %5811 = vmatpush1.msra.mxu0 0.0
        %5812 = vmatprep.subr.mxu0 0.0
        %5813 = vmatpush1.msra.mxu0 0.0
        %5814 = vmatprep.subr.mxu0 0.0
        %5815 = vmatpush1.msra.mxu0 0.0
        %5816 = vmatprep.subr.mxu0 0.0
        %5817 = vmatpush1.msra.mxu0 0.0
        %5818 = vmatprep.subr.mxu0 0.0
        %5819 = vmatpush1.msra.mxu0 0.0
        %5820 = vmatprep.subr.mxu0 0.0
        %5821 = vmatpush1.msra.mxu0 0.0
        %5822 = vmatprep.subr.mxu0 0.0
        %5823 = vmatpush1.msra.mxu0 0.0
        %5824 = vmatprep.subr.mxu0 0.0
        %5825 = vmatpush1.msra.mxu0 0.0
        %5826 = vmatprep.subr.mxu0 0.0
        %5827 = vmatpush1.msra.mxu0 0.0
        %5828 = vmatprep.subr.mxu0 0.0
        %5829 = vmatpush1.msra.mxu0 0.0
        %5830 = vmatprep.subr.mxu0 0.0
        %5831 = vmatpush1.msra.mxu0 0.0
        %5832 = vmatprep.subr.mxu0 0.0
        %5833 = vmatpush1.msra.mxu0 0.0
        %5834 = vmatprep.subr.mxu0 0.0
        %5835 = vmatpush1.msra.mxu0 0.0
        %5836 = vmatprep.subr.mxu0 0.0
        %5837 = vmatpush1.msra.mxu0 0.0
        %5838 = vmatprep.subr.mxu0 0.0
        %5839 = vmatpush1.msra.mxu0 0.0
        %5840 = vmatprep.subr.mxu0 0.0
        %5841 = vmatpush1.msra.mxu0 0.0
        %5842 = vmatprep.subr.mxu0 0.0
        %5843 = vmatpush1.msra.mxu0 0.0
        %5844 = vmatprep.subr.mxu0 0.0
        %5845 = vmatpush1.msra.mxu0 0.0
        %5846 = vmatprep.subr.mxu0 0.0
        %5847 = vmatpush1.msra.mxu0 0.0
        %5848 = vmatprep.subr.mxu0 0.0
        %5849 = vmatpush1.msra.mxu0 0.0
        %5850 = vmatprep.subr.mxu0 0.0
        %5851 = vmatpush1.msra.mxu0 0.0
        %5852 = vmatprep.subr.mxu0 0.0
        %5853 = vmatpush1.msra.mxu0 0.0
        %5854 = vmatprep.subr.mxu0 0.0
        %5855 = vmatpush1.msra.mxu0 0.0
        %5856 = vmatprep.subr.mxu0 0.0
        %5857 = vmatpush1.msra.mxu0 0.0
        %5858 = vmatprep.subr.mxu0 0.0
        %5859 = vmatpush1.msra.mxu0 0.0
        %5860 = vmatprep.subr.mxu0 0.0
        %5861 = vmatpush1.msra.mxu0 0.0
        %5862 = vmatprep.subr.mxu0 0.0
        %5863 = vmatpush1.msra.mxu0 0.0
        %5864 = vmatprep.mubr.f32.mxu0 0.0
        %v5865 = vand.u32 %v274, 4294901760
        %v5866 = vsub.f32 %v274, %v5865
        %v5867 = vand.u32 %v5866, 4294901760
        %5868 = vmatmul.mubr.f32.gmra.mrb[0].mxu0 %v5867
        %v5869 = vpop.f32.mrb[0].mxu0
        %v5870 = vadd.f32 %v5788, %v5869
        %v5871 = vpop.f32.mrb[0].mxu0
        %v5872 = vadd.f32 %v5790, %v5871
        %5873 = vdwg.mxu0
        %v5874 = vand.u32 %v1635, 4294901760
        %v5875 = vsub.f32 %v1635, %v5874
        %v5876 = vand.u32 %v5875, 4294901760
        %5877 = vmatprep.subr.mxu0 %v5876
        %v5878 = vand.u32 %v1634, 4294901760
        %v5879 = vsub.f32 %v1634, %v5878
        %v5880 = vand.u32 %v5879, 4294901760
        %5881 = vmatpush1.msra.mxu0 %v5880
        %v5882 = vand.u32 %v1637, 4294901760
        %v5883 = vsub.f32 %v1637, %v5882
        %v5884 = vand.u32 %v5883, 4294901760
        %5885 = vmatprep.subr.mxu0 %v5884
        %v5886 = vand.u32 %v1636, 4294901760
        %v5887 = vsub.f32 %v1636, %v5886
        %v5888 = vand.u32 %v5887, 4294901760
        %5889 = vmatpush1.msra.mxu0 %v5888
        %v5890 = vand.u32 %v1639, 4294901760
        %v5891 = vsub.f32 %v1639, %v5890
        %v5892 = vand.u32 %v5891, 4294901760
        %5893 = vmatprep.subr.mxu0 %v5892
        %v5894 = vand.u32 %v1638, 4294901760
        %v5895 = vsub.f32 %v1638, %v5894
        %v5896 = vand.u32 %v5895, 4294901760
        %5897 = vmatpush1.msra.mxu0 %v5896
        %v5898 = vand.u32 %v1641, 4294901760
        %v5899 = vsub.f32 %v1641, %v5898
        %v5900 = vand.u32 %v5899, 4294901760
        %5901 = vmatprep.subr.mxu0 %v5900
        %v5902 = vand.u32 %v1640, 4294901760
        %v5903 = vsub.f32 %v1640, %v5902
        %v5904 = vand.u32 %v5903, 4294901760
        %5905 = vmatpush1.msra.mxu0 %v5904
        %5906 = vmatprep.subr.mxu0 0.0
        %5907 = vmatpush1.msra.mxu0 0.0
        %5908 = vmatprep.subr.mxu0 0.0
        %5909 = vmatpush1.msra.mxu0 0.0
        %5910 = vmatprep.subr.mxu0 0.0
        %5911 = vmatpush1.msra.mxu0 0.0
        %5912 = vmatprep.subr.mxu0 0.0
        %5913 = vmatpush1.msra.mxu0 0.0
        %5914 = vmatprep.subr.mxu0 0.0
        %5915 = vmatpush1.msra.mxu0 0.0
        %5916 = vmatprep.subr.mxu0 0.0
        %5917 = vmatpush1.msra.mxu0 0.0
        %5918 = vmatprep.subr.mxu0 0.0
        %5919 = vmatpush1.msra.mxu0 0.0
        %5920 = vmatprep.subr.mxu0 0.0
        %5921 = vmatpush1.msra.mxu0 0.0
        %5922 = vmatprep.subr.mxu0 0.0
        %5923 = vmatpush1.msra.mxu0 0.0
        %5924 = vmatprep.subr.mxu0 0.0
        %5925 = vmatpush1.msra.mxu0 0.0
        %5926 = vmatprep.subr.mxu0 0.0
        %5927 = vmatpush1.msra.mxu0 0.0
        %5928 = vmatprep.subr.mxu0 0.0
        %5929 = vmatpush1.msra.mxu0 0.0
        %5930 = vmatprep.subr.mxu0 0.0
        %5931 = vmatpush1.msra.mxu0 0.0
        %5932 = vmatprep.subr.mxu0 0.0
        %5933 = vmatpush1.msra.mxu0 0.0
        %5934 = vmatprep.subr.mxu0 0.0
        %5935 = vmatpush1.msra.mxu0 0.0
        %5936 = vmatprep.subr.mxu0 0.0
        %5937 = vmatpush1.msra.mxu0 0.0
        %5938 = vmatprep.subr.mxu0 0.0
        %5939 = vmatpush1.msra.mxu0 0.0
        %5940 = vmatprep.subr.mxu0 0.0
        %5941 = vmatpush1.msra.mxu0 0.0
        %5942 = vmatprep.subr.mxu0 0.0
        %5943 = vmatpush1.msra.mxu0 0.0
        %5944 = vmatprep.subr.mxu0 0.0
        %5945 = vmatpush1.msra.mxu0 0.0
        %5946 = vmatprep.subr.mxu0 0.0
        %5947 = vmatpush1.msra.mxu0 0.0
        %5948 = vmatprep.subr.mxu0 0.0
        %5949 = vmatpush1.msra.mxu0 0.0
        %5950 = vmatprep.subr.mxu0 0.0
        %5951 = vmatpush1.msra.mxu0 0.0
        %5952 = vmatprep.subr.mxu0 0.0
        %5953 = vmatpush1.msra.mxu0 0.0
        %5954 = vmatprep.subr.mxu0 0.0
        %5955 = vmatpush1.msra.mxu0 0.0
        %5956 = vmatprep.subr.mxu0 0.0
        %5957 = vmatpush1.msra.mxu0 0.0
        %5958 = vmatprep.subr.mxu0 0.0
        %5959 = vmatpush1.msra.mxu0 0.0
        %5960 = vmatprep.subr.mxu0 0.0
        %5961 = vmatpush1.msra.mxu0 0.0
        %5962 = vmatprep.mubr.f32.mxu0 0.0
        %v5963 = vand.u32 %v274, 4294901760
        %5964 = vmatmul.mubr.f32.gmra.mrb[0].mxu0 %v5963
        %v5965 = vpop.f32.mrb[0].mxu0
        %v5966 = vadd.f32 %v5870, %v5965
        %v5967 = vpop.f32.mrb[0].mxu0
        %v5968 = vadd.f32 %v5872, %v5967
        %5969 = vdwg.mxu0
        %v5970 = vand.u32 %v1635, 4294901760
        %5971 = vmatprep.subr.mxu0 %v5970
        %v5972 = vand.u32 %v1634, 4294901760
        %5973 = vmatpush1.msra.mxu0 %v5972
        %v5974 = vand.u32 %v1637, 4294901760
        %5975 = vmatprep.subr.mxu0 %v5974
        %v5976 = vand.u32 %v1636, 4294901760
        %5977 = vmatpush1.msra.mxu0 %v5976
        %v5978 = vand.u32 %v1639, 4294901760
        %5979 = vmatprep.subr.mxu0 %v5978
        %v5980 = vand.u32 %v1638, 4294901760
        %5981 = vmatpush1.msra.mxu0 %v5980
        %v5982 = vand.u32 %v1641, 4294901760
        %5983 = vmatprep.subr.mxu0 %v5982
        %v5984 = vand.u32 %v1640, 4294901760
        %5985 = vmatpush1.msra.mxu0 %v5984
        %5986 = vmatprep.subr.mxu0 0.0
        %5987 = vmatpush1.msra.mxu0 0.0
        %5988 = vmatprep.subr.mxu0 0.0
        %5989 = vmatpush1.msra.mxu0 0.0
        %5990 = vmatprep.subr.mxu0 0.0
        %5991 = vmatpush1.msra.mxu0 0.0
        %5992 = vmatprep.subr.mxu0 0.0
        %5993 = vmatpush1.msra.mxu0 0.0
        %5994 = vmatprep.subr.mxu0 0.0
        %5995 = vmatpush1.msra.mxu0 0.0
        %5996 = vmatprep.subr.mxu0 0.0
        %5997 = vmatpush1.msra.mxu0 0.0
        %5998 = vmatprep.subr.mxu0 0.0
        %5999 = vmatpush1.msra.mxu0 0.0
        %6000 = vmatprep.subr.mxu0 0.0
        %6001 = vmatpush1.msra.mxu0 0.0
        %6002 = vmatprep.subr.mxu0 0.0
        %6003 = vmatpush1.msra.mxu0 0.0
        %6004 = vmatprep.subr.mxu0 0.0
        %6005 = vmatpush1.msra.mxu0 0.0
        %6006 = vmatprep.subr.mxu0 0.0
        %6007 = vmatpush1.msra.mxu0 0.0
        %6008 = vmatprep.subr.mxu0 0.0
        %6009 = vmatpush1.msra.mxu0 0.0
        %6010 = vmatprep.subr.mxu0 0.0
        %6011 = vmatpush1.msra.mxu0 0.0
        %6012 = vmatprep.subr.mxu0 0.0
        %6013 = vmatpush1.msra.mxu0 0.0
        %6014 = vmatprep.subr.mxu0 0.0
        %6015 = vmatpush1.msra.mxu0 0.0
        %6016 = vmatprep.subr.mxu0 0.0
        %6017 = vmatpush1.msra.mxu0 0.0
        %6018 = vmatprep.subr.mxu0 0.0
        %6019 = vmatpush1.msra.mxu0 0.0
        %6020 = vmatprep.subr.mxu0 0.0
        %6021 = vmatpush1.msra.mxu0 0.0
        %6022 = vmatprep.subr.mxu0 0.0
        %6023 = vmatpush1.msra.mxu0 0.0
        %6024 = vmatprep.subr.mxu0 0.0
        %6025 = vmatpush1.msra.mxu0 0.0
        %6026 = vmatprep.subr.mxu0 0.0
        %6027 = vmatpush1.msra.mxu0 0.0
        %6028 = vmatprep.subr.mxu0 0.0
        %6029 = vmatpush1.msra.mxu0 0.0
        %6030 = vmatprep.subr.mxu0 0.0
        %6031 = vmatpush1.msra.mxu0 0.0
        %6032 = vmatprep.subr.mxu0 0.0
        %6033 = vmatpush1.msra.mxu0 0.0
        %6034 = vmatprep.subr.mxu0 0.0
        %6035 = vmatpush1.msra.mxu0 0.0
        %6036 = vmatprep.subr.mxu0 0.0
        %6037 = vmatpush1.msra.mxu0 0.0
        %6038 = vmatprep.subr.mxu0 0.0
        %6039 = vmatpush1.msra.mxu0 0.0
        %6040 = vmatprep.subr.mxu0 0.0
        %6041 = vmatpush1.msra.mxu0 0.0
        %6042 = vmatprep.mubr.f32.mxu0 0.0
        %v6043 = vand.u32 %v274, 4294901760
        %6044 = vmatmul.mubr.f32.gmra.mrb[0].mxu0 %v6043
        %v6045 = vpop.f32.mrb[0].mxu0
        %v6046 = vadd.f32 %v5966, %v6045
        %v6047 = vpop.f32.mrb[0].mxu0
        %v6048 = vadd.f32 %v5968, %v6047
        %6049 = vdwg.mxu0
        %v6050 = vand.u32 %v1643, 4294901760
        %6051 = vmatprep.subr.mxu0 %v6050
        %v6052 = vand.u32 %v1642, 4294901760
        %6053 = vmatpush1.msra.mxu0 %v6052
        %v6054 = vand.u32 %v1645, 4294901760
        %6055 = vmatprep.subr.mxu0 %v6054
        %v6056 = vand.u32 %v1644, 4294901760
        %6057 = vmatpush1.msra.mxu0 %v6056
        %v6058 = vand.u32 %v1647, 4294901760
        %6059 = vmatprep.subr.mxu0 %v6058
        %v6060 = vand.u32 %v1646, 4294901760
        %6061 = vmatpush1.msra.mxu0 %v6060
        %v6062 = vand.u32 %v1649, 4294901760
        %6063 = vmatprep.subr.mxu0 %v6062
        %v6064 = vand.u32 %v1648, 4294901760
        %6065 = vmatpush1.msra.mxu0 %v6064
        %6066 = vmatprep.subr.mxu0 0.0
        %6067 = vmatpush1.msra.mxu0 0.0
        %6068 = vmatprep.subr.mxu0 0.0
        %6069 = vmatpush1.msra.mxu0 0.0
        %6070 = vmatprep.subr.mxu0 0.0
        %6071 = vmatpush1.msra.mxu0 0.0
        %6072 = vmatprep.subr.mxu0 0.0
        %6073 = vmatpush1.msra.mxu0 0.0
        %6074 = vmatprep.subr.mxu0 0.0
        %6075 = vmatpush1.msra.mxu0 0.0
        %6076 = vmatprep.subr.mxu0 0.0
        %6077 = vmatpush1.msra.mxu0 0.0
        %6078 = vmatprep.subr.mxu0 0.0
        %6079 = vmatpush1.msra.mxu0 0.0
        %6080 = vmatprep.subr.mxu0 0.0
        %6081 = vmatpush1.msra.mxu0 0.0
        %6082 = vmatprep.subr.mxu0 0.0
        %6083 = vmatpush1.msra.mxu0 0.0
        %6084 = vmatprep.subr.mxu0 0.0
        %6085 = vmatpush1.msra.mxu0 0.0
        %6086 = vmatprep.subr.mxu0 0.0
        %6087 = vmatpush1.msra.mxu0 0.0
        %6088 = vmatprep.subr.mxu0 0.0
        %6089 = vmatpush1.msra.mxu0 0.0
        %6090 = vmatprep.subr.mxu0 0.0
        %6091 = vmatpush1.msra.mxu0 0.0
        %6092 = vmatprep.subr.mxu0 0.0
        %6093 = vmatpush1.msra.mxu0 0.0
        %6094 = vmatprep.subr.mxu0 0.0
        %6095 = vmatpush1.msra.mxu0 0.0
        %6096 = vmatprep.subr.mxu0 0.0
        %6097 = vmatpush1.msra.mxu0 0.0
        %6098 = vmatprep.subr.mxu0 0.0
        %6099 = vmatpush1.msra.mxu0 0.0
        %6100 = vmatprep.subr.mxu0 0.0
        %6101 = vmatpush1.msra.mxu0 0.0
        %6102 = vmatprep.subr.mxu0 0.0
        %6103 = vmatpush1.msra.mxu0 0.0
        %6104 = vmatprep.subr.mxu0 0.0
        %6105 = vmatpush1.msra.mxu0 0.0
        %6106 = vmatprep.subr.mxu0 0.0
        %6107 = vmatpush1.msra.mxu0 0.0
        %6108 = vmatprep.subr.mxu0 0.0
        %6109 = vmatpush1.msra.mxu0 0.0
        %6110 = vmatprep.subr.mxu0 0.0
        %6111 = vmatpush1.msra.mxu0 0.0
        %6112 = vmatprep.subr.mxu0 0.0
        %6113 = vmatpush1.msra.mxu0 0.0
        %6114 = vmatprep.subr.mxu0 0.0
        %6115 = vmatpush1.msra.mxu0 0.0
        %6116 = vmatprep.subr.mxu0 0.0
        %6117 = vmatpush1.msra.mxu0 0.0
        %6118 = vmatprep.subr.mxu0 0.0
        %6119 = vmatpush1.msra.mxu0 0.0
        %6120 = vmatprep.subr.mxu0 0.0
        %6121 = vmatpush1.msra.mxu0 0.0
        %6122 = vmatprep.mubr.f32.mxu0 0.0
        %v6123 = vand.u32 %v277, 4294901760
        %v6124 = vsub.f32 %v277, %v6123
        %v6125 = vand.u32 %v6124, 4294901760
        %v6126 = vsub.f32 %v6124, %v6125
        %v6127 = vand.u32 %v6126, 4294901760
        %6128 = vmatmul.mubr.f32.gmra.mrb[0].mxu0 %v6127
        %v6129 = vpop.f32.mrb[0].mxu0
        %v6130 = vadd.f32 0.0, %v6129
        %v6131 = vpop.f32.mrb[0].mxu0
        %v6132 = vadd.f32 0.0, %v6131
        %6133 = vdwg.mxu0
        %v6134 = vand.u32 %v1643, 4294901760
        %v6135 = vsub.f32 %v1643, %v6134
        %v6136 = vand.u32 %v6135, 4294901760
        %v6137 = vsub.f32 %v6135, %v6136
        %v6138 = vand.u32 %v6137, 4294901760
        %6139 = vmatprep.subr.mxu0 %v6138
        %v6140 = vand.u32 %v1642, 4294901760
        %v6141 = vsub.f32 %v1642, %v6140
        %v6142 = vand.u32 %v6141, 4294901760
        %v6143 = vsub.f32 %v6141, %v6142
        %v6144 = vand.u32 %v6143, 4294901760
        %6145 = vmatpush1.msra.mxu0 %v6144
        %v6146 = vand.u32 %v1645, 4294901760
        %v6147 = vsub.f32 %v1645, %v6146
        %v6148 = vand.u32 %v6147, 4294901760
        %v6149 = vsub.f32 %v6147, %v6148
        %v6150 = vand.u32 %v6149, 4294901760
        %6151 = vmatprep.subr.mxu0 %v6150
        %v6152 = vand.u32 %v1644, 4294901760
        %v6153 = vsub.f32 %v1644, %v6152
        %v6154 = vand.u32 %v6153, 4294901760
        %v6155 = vsub.f32 %v6153, %v6154
        %v6156 = vand.u32 %v6155, 4294901760
        %6157 = vmatpush1.msra.mxu0 %v6156
        %v6158 = vand.u32 %v1647, 4294901760
        %v6159 = vsub.f32 %v1647, %v6158
        %v6160 = vand.u32 %v6159, 4294901760
        %v6161 = vsub.f32 %v6159, %v6160
        %v6162 = vand.u32 %v6161, 4294901760
        %6163 = vmatprep.subr.mxu0 %v6162
        %v6164 = vand.u32 %v1646, 4294901760
        %v6165 = vsub.f32 %v1646, %v6164
        %v6166 = vand.u32 %v6165, 4294901760
        %v6167 = vsub.f32 %v6165, %v6166
        %v6168 = vand.u32 %v6167, 4294901760
        %6169 = vmatpush1.msra.mxu0 %v6168
        %v6170 = vand.u32 %v1649, 4294901760
        %v6171 = vsub.f32 %v1649, %v6170
        %v6172 = vand.u32 %v6171, 4294901760
        %v6173 = vsub.f32 %v6171, %v6172
        %v6174 = vand.u32 %v6173, 4294901760
        %6175 = vmatprep.subr.mxu0 %v6174
        %v6176 = vand.u32 %v1648, 4294901760
        %v6177 = vsub.f32 %v1648, %v6176
        %v6178 = vand.u32 %v6177, 4294901760
        %v6179 = vsub.f32 %v6177, %v6178
        %v6180 = vand.u32 %v6179, 4294901760
        %6181 = vmatpush1.msra.mxu0 %v6180
        %6182 = vmatprep.subr.mxu0 0.0
        %6183 = vmatpush1.msra.mxu0 0.0
        %6184 = vmatprep.subr.mxu0 0.0
        %6185 = vmatpush1.msra.mxu0 0.0
        %6186 = vmatprep.subr.mxu0 0.0
        %6187 = vmatpush1.msra.mxu0 0.0
        %6188 = vmatprep.subr.mxu0 0.0
        %6189 = vmatpush1.msra.mxu0 0.0
        %6190 = vmatprep.subr.mxu0 0.0
        %6191 = vmatpush1.msra.mxu0 0.0
        %6192 = vmatprep.subr.mxu0 0.0
        %6193 = vmatpush1.msra.mxu0 0.0
        %6194 = vmatprep.subr.mxu0 0.0
        %6195 = vmatpush1.msra.mxu0 0.0
        %6196 = vmatprep.subr.mxu0 0.0
        %6197 = vmatpush1.msra.mxu0 0.0
        %6198 = vmatprep.subr.mxu0 0.0
        %6199 = vmatpush1.msra.mxu0 0.0
        %6200 = vmatprep.subr.mxu0 0.0
        %6201 = vmatpush1.msra.mxu0 0.0
        %6202 = vmatprep.subr.mxu0 0.0
        %6203 = vmatpush1.msra.mxu0 0.0
        %6204 = vmatprep.subr.mxu0 0.0
        %6205 = vmatpush1.msra.mxu0 0.0
        %6206 = vmatprep.subr.mxu0 0.0
        %6207 = vmatpush1.msra.mxu0 0.0
        %6208 = vmatprep.subr.mxu0 0.0
        %6209 = vmatpush1.msra.mxu0 0.0
        %6210 = vmatprep.subr.mxu0 0.0
        %6211 = vmatpush1.msra.mxu0 0.0
        %6212 = vmatprep.subr.mxu0 0.0
        %6213 = vmatpush1.msra.mxu0 0.0
        %6214 = vmatprep.subr.mxu0 0.0
        %6215 = vmatpush1.msra.mxu0 0.0
        %6216 = vmatprep.subr.mxu0 0.0
        %6217 = vmatpush1.msra.mxu0 0.0
        %6218 = vmatprep.subr.mxu0 0.0
        %6219 = vmatpush1.msra.mxu0 0.0
        %6220 = vmatprep.subr.mxu0 0.0
        %6221 = vmatpush1.msra.mxu0 0.0
        %6222 = vmatprep.subr.mxu0 0.0
        %6223 = vmatpush1.msra.mxu0 0.0
        %6224 = vmatprep.subr.mxu0 0.0
        %6225 = vmatpush1.msra.mxu0 0.0
        %6226 = vmatprep.subr.mxu0 0.0
        %6227 = vmatpush1.msra.mxu0 0.0
        %6228 = vmatprep.subr.mxu0 0.0
        %6229 = vmatpush1.msra.mxu0 0.0
        %6230 = vmatprep.subr.mxu0 0.0
        %6231 = vmatpush1.msra.mxu0 0.0
        %6232 = vmatprep.subr.mxu0 0.0
        %6233 = vmatpush1.msra.mxu0 0.0
        %6234 = vmatprep.subr.mxu0 0.0
        %6235 = vmatpush1.msra.mxu0 0.0
        %6236 = vmatprep.subr.mxu0 0.0
        %6237 = vmatpush1.msra.mxu0 0.0
        %6238 = vmatprep.mubr.f32.mxu0 0.0
        %v6239 = vand.u32 %v277, 4294901760
        %6240 = vmatmul.mubr.f32.gmra.mrb[0].mxu0 %v6239
        %v6241 = vpop.f32.mrb[0].mxu0
        %v6242 = vadd.f32 %v6130, %v6241
        %v6243 = vpop.f32.mrb[0].mxu0
        %v6244 = vadd.f32 %v6132, %v6243
        %6245 = vdwg.mxu0
        %v6246 = vand.u32 %v1643, 4294901760
        %v6247 = vsub.f32 %v1643, %v6246
        %6248 = vmatprep.subr.mxu0 %v6247
        %v6249 = vand.u32 %v1642, 4294901760
        %v6250 = vsub.f32 %v1642, %v6249
        %6251 = vmatpush1.msra.mxu0 %v6250
        %v6252 = vand.u32 %v1645, 4294901760
        %v6253 = vsub.f32 %v1645, %v6252
        %6254 = vmatprep.subr.mxu0 %v6253
        %v6255 = vand.u32 %v1644, 4294901760
        %v6256 = vsub.f32 %v1644, %v6255
        %6257 = vmatpush1.msra.mxu0 %v6256
        %v6258 = vand.u32 %v1647, 4294901760
        %v6259 = vsub.f32 %v1647, %v6258
        %6260 = vmatprep.subr.mxu0 %v6259
        %v6261 = vand.u32 %v1646, 4294901760
        %v6262 = vsub.f32 %v1646, %v6261
        %6263 = vmatpush1.msra.mxu0 %v6262
        %v6264 = vand.u32 %v1649, 4294901760
        %v6265 = vsub.f32 %v1649, %v6264
        %6266 = vmatprep.subr.mxu0 %v6265
        %v6267 = vand.u32 %v1648, 4294901760
        %v6268 = vsub.f32 %v1648, %v6267
        %6269 = vmatpush1.msra.mxu0 %v6268
        %6270 = vmatprep.subr.mxu0 0.0
        %6271 = vmatpush1.msra.mxu0 0.0
        %6272 = vmatprep.subr.mxu0 0.0
        %6273 = vmatpush1.msra.mxu0 0.0
        %6274 = vmatprep.subr.mxu0 0.0
        %6275 = vmatpush1.msra.mxu0 0.0
        %6276 = vmatprep.subr.mxu0 0.0
        %6277 = vmatpush1.msra.mxu0 0.0
        %6278 = vmatprep.subr.mxu0 0.0
        %6279 = vmatpush1.msra.mxu0 0.0
        %6280 = vmatprep.subr.mxu0 0.0
        %6281 = vmatpush1.msra.mxu0 0.0
        %6282 = vmatprep.subr.mxu0 0.0
        %6283 = vmatpush1.msra.mxu0 0.0
        %6284 = vmatprep.subr.mxu0 0.0
        %6285 = vmatpush1.msra.mxu0 0.0
        %6286 = vmatprep.subr.mxu0 0.0
        %6287 = vmatpush1.msra.mxu0 0.0
        %6288 = vmatprep.subr.mxu0 0.0
        %6289 = vmatpush1.msra.mxu0 0.0
        %6290 = vmatprep.subr.mxu0 0.0
        %6291 = vmatpush1.msra.mxu0 0.0
        %6292 = vmatprep.subr.mxu0 0.0
        %6293 = vmatpush1.msra.mxu0 0.0
        %6294 = vmatprep.subr.mxu0 0.0
        %6295 = vmatpush1.msra.mxu0 0.0
        %6296 = vmatprep.subr.mxu0 0.0
        %6297 = vmatpush1.msra.mxu0 0.0
        %6298 = vmatprep.subr.mxu0 0.0
        %6299 = vmatpush1.msra.mxu0 0.0
        %6300 = vmatprep.subr.mxu0 0.0
        %6301 = vmatpush1.msra.mxu0 0.0
        %6302 = vmatprep.subr.mxu0 0.0
        %6303 = vmatpush1.msra.mxu0 0.0
        %6304 = vmatprep.subr.mxu0 0.0
        %6305 = vmatpush1.msra.mxu0 0.0
        %6306 = vmatprep.subr.mxu0 0.0
        %6307 = vmatpush1.msra.mxu0 0.0
        %6308 = vmatprep.subr.mxu0 0.0
        %6309 = vmatpush1.msra.mxu0 0.0
        %6310 = vmatprep.subr.mxu0 0.0
        %6311 = vmatpush1.msra.mxu0 0.0
        %6312 = vmatprep.subr.mxu0 0.0
        %6313 = vmatpush1.msra.mxu0 0.0
        %6314 = vmatprep.subr.mxu0 0.0
        %6315 = vmatpush1.msra.mxu0 0.0
        %6316 = vmatprep.subr.mxu0 0.0
        %6317 = vmatpush1.msra.mxu0 0.0
        %6318 = vmatprep.subr.mxu0 0.0
        %6319 = vmatpush1.msra.mxu0 0.0
        %6320 = vmatprep.subr.mxu0 0.0
        %6321 = vmatpush1.msra.mxu0 0.0
        %6322 = vmatprep.subr.mxu0 0.0
        %6323 = vmatpush1.msra.mxu0 0.0
        %6324 = vmatprep.subr.mxu0 0.0
        %6325 = vmatpush1.msra.mxu0 0.0
        %6326 = vmatprep.mubr.f32.mxu0 0.0
        %v6327 = vand.u32 %v277, 4294901760
        %v6328 = vsub.f32 %v277, %v6327
        %6329 = vmatmul.mubr.f32.gmra.mrb[0].mxu0 %v6328
        %v6330 = vpop.f32.mrb[0].mxu0
        %v6331 = vadd.f32 %v6242, %v6330
        %v6332 = vpop.f32.mrb[0].mxu0
        %v6333 = vadd.f32 %v6244, %v6332
        %6334 = vdwg.mxu0
        %v6335 = vand.u32 %v1643, 4294901760
        %6336 = vmatprep.subr.mxu0 %v6335
        %v6337 = vand.u32 %v1642, 4294901760
        %6338 = vmatpush1.msra.mxu0 %v6337
        %v6339 = vand.u32 %v1645, 4294901760
        %6340 = vmatprep.subr.mxu0 %v6339
        %v6341 = vand.u32 %v1644, 4294901760
        %6342 = vmatpush1.msra.mxu0 %v6341
        %v6343 = vand.u32 %v1647, 4294901760
        %6344 = vmatprep.subr.mxu0 %v6343
        %v6345 = vand.u32 %v1646, 4294901760
        %6346 = vmatpush1.msra.mxu0 %v6345
        %v6347 = vand.u32 %v1649, 4294901760
        %6348 = vmatprep.subr.mxu0 %v6347
        %v6349 = vand.u32 %v1648, 4294901760
        %6350 = vmatpush1.msra.mxu0 %v6349
        %6351 = vmatprep.subr.mxu0 0.0
        %6352 = vmatpush1.msra.mxu0 0.0
        %6353 = vmatprep.subr.mxu0 0.0
        %6354 = vmatpush1.msra.mxu0 0.0
        %6355 = vmatprep.subr.mxu0 0.0
        %6356 = vmatpush1.msra.mxu0 0.0
        %6357 = vmatprep.subr.mxu0 0.0
        %6358 = vmatpush1.msra.mxu0 0.0
        %6359 = vmatprep.subr.mxu0 0.0
        %6360 = vmatpush1.msra.mxu0 0.0
        %6361 = vmatprep.subr.mxu0 0.0
        %6362 = vmatpush1.msra.mxu0 0.0
        %6363 = vmatprep.subr.mxu0 0.0
        %6364 = vmatpush1.msra.mxu0 0.0
        %6365 = vmatprep.subr.mxu0 0.0
        %6366 = vmatpush1.msra.mxu0 0.0
        %6367 = vmatprep.subr.mxu0 0.0
        %6368 = vmatpush1.msra.mxu0 0.0
        %6369 = vmatprep.subr.mxu0 0.0
        %6370 = vmatpush1.msra.mxu0 0.0
        %6371 = vmatprep.subr.mxu0 0.0
        %6372 = vmatpush1.msra.mxu0 0.0
        %6373 = vmatprep.subr.mxu0 0.0
        %6374 = vmatpush1.msra.mxu0 0.0
        %6375 = vmatprep.subr.mxu0 0.0
        %6376 = vmatpush1.msra.mxu0 0.0
        %6377 = vmatprep.subr.mxu0 0.0
        %6378 = vmatpush1.msra.mxu0 0.0
        %6379 = vmatprep.subr.mxu0 0.0
        %6380 = vmatpush1.msra.mxu0 0.0
        %6381 = vmatprep.subr.mxu0 0.0
        %6382 = vmatpush1.msra.mxu0 0.0
        %6383 = vmatprep.subr.mxu0 0.0
        %6384 = vmatpush1.msra.mxu0 0.0
        %6385 = vmatprep.subr.mxu0 0.0
        %6386 = vmatpush1.msra.mxu0 0.0
        %6387 = vmatprep.subr.mxu0 0.0
        %6388 = vmatpush1.msra.mxu0 0.0
        %6389 = vmatprep.subr.mxu0 0.0
        %6390 = vmatpush1.msra.mxu0 0.0
        %6391 = vmatprep.subr.mxu0 0.0
        %6392 = vmatpush1.msra.mxu0 0.0
        %6393 = vmatprep.subr.mxu0 0.0
        %6394 = vmatpush1.msra.mxu0 0.0
        %6395 = vmatprep.subr.mxu0 0.0
        %6396 = vmatpush1.msra.mxu0 0.0
        %6397 = vmatprep.subr.mxu0 0.0
        %6398 = vmatpush1.msra.mxu0 0.0
        %6399 = vmatprep.subr.mxu0 0.0
        %6400 = vmatpush1.msra.mxu0 0.0
        %6401 = vmatprep.subr.mxu0 0.0
        %6402 = vmatpush1.msra.mxu0 0.0
        %6403 = vmatprep.subr.mxu0 0.0
        %6404 = vmatpush1.msra.mxu0 0.0
        %6405 = vmatprep.subr.mxu0 0.0
        %6406 = vmatpush1.msra.mxu0 0.0
        %6407 = vmatprep.mubr.f32.mxu0 0.0
        %v6408 = vand.u32 %v277, 4294901760
        %v6409 = vsub.f32 %v277, %v6408
        %v6410 = vand.u32 %v6409, 4294901760
        %6411 = vmatmul.mubr.f32.gmra.mrb[0].mxu0 %v6410
        %v6412 = vpop.f32.mrb[0].mxu0
        %v6413 = vadd.f32 %v6331, %v6412
        %v6414 = vpop.f32.mrb[0].mxu0
        %v6415 = vadd.f32 %v6333, %v6414
        %6416 = vdwg.mxu0
        %v6417 = vand.u32 %v1643, 4294901760
        %v6418 = vsub.f32 %v1643, %v6417
        %v6419 = vand.u32 %v6418, 4294901760
        %6420 = vmatprep.subr.mxu0 %v6419
        %v6421 = vand.u32 %v1642, 4294901760
        %v6422 = vsub.f32 %v1642, %v6421
        %v6423 = vand.u32 %v6422, 4294901760
        %6424 = vmatpush1.msra.mxu0 %v6423
        %v6425 = vand.u32 %v1645, 4294901760
        %v6426 = vsub.f32 %v1645, %v6425
        %v6427 = vand.u32 %v6426, 4294901760
        %6428 = vmatprep.subr.mxu0 %v6427
        %v6429 = vand.u32 %v1644, 4294901760
        %v6430 = vsub.f32 %v1644, %v6429
        %v6431 = vand.u32 %v6430, 4294901760
        %6432 = vmatpush1.msra.mxu0 %v6431
        %v6433 = vand.u32 %v1647, 4294901760
        %v6434 = vsub.f32 %v1647, %v6433
        %v6435 = vand.u32 %v6434, 4294901760
        %6436 = vmatprep.subr.mxu0 %v6435
        %v6437 = vand.u32 %v1646, 4294901760
        %v6438 = vsub.f32 %v1646, %v6437
        %v6439 = vand.u32 %v6438, 4294901760
        %6440 = vmatpush1.msra.mxu0 %v6439
        %v6441 = vand.u32 %v1649, 4294901760
        %v6442 = vsub.f32 %v1649, %v6441
        %v6443 = vand.u32 %v6442, 4294901760
        %6444 = vmatprep.subr.mxu0 %v6443
        %v6445 = vand.u32 %v1648, 4294901760
        %v6446 = vsub.f32 %v1648, %v6445
        %v6447 = vand.u32 %v6446, 4294901760
        %6448 = vmatpush1.msra.mxu0 %v6447
        %6449 = vmatprep.subr.mxu0 0.0
        %6450 = vmatpush1.msra.mxu0 0.0
        %6451 = vmatprep.subr.mxu0 0.0
        %6452 = vmatpush1.msra.mxu0 0.0
        %6453 = vmatprep.subr.mxu0 0.0
        %6454 = vmatpush1.msra.mxu0 0.0
        %6455 = vmatprep.subr.mxu0 0.0
        %6456 = vmatpush1.msra.mxu0 0.0
        %6457 = vmatprep.subr.mxu0 0.0
        %6458 = vmatpush1.msra.mxu0 0.0
        %6459 = vmatprep.subr.mxu0 0.0
        %6460 = vmatpush1.msra.mxu0 0.0
        %6461 = vmatprep.subr.mxu0 0.0
        %6462 = vmatpush1.msra.mxu0 0.0
        %6463 = vmatprep.subr.mxu0 0.0
        %6464 = vmatpush1.msra.mxu0 0.0
        %6465 = vmatprep.subr.mxu0 0.0
        %6466 = vmatpush1.msra.mxu0 0.0
        %6467 = vmatprep.subr.mxu0 0.0
        %6468 = vmatpush1.msra.mxu0 0.0
        %6469 = vmatprep.subr.mxu0 0.0
        %6470 = vmatpush1.msra.mxu0 0.0
        %6471 = vmatprep.subr.mxu0 0.0
        %6472 = vmatpush1.msra.mxu0 0.0
        %6473 = vmatprep.subr.mxu0 0.0
        %6474 = vmatpush1.msra.mxu0 0.0
        %6475 = vmatprep.subr.mxu0 0.0
        %6476 = vmatpush1.msra.mxu0 0.0
        %6477 = vmatprep.subr.mxu0 0.0
        %6478 = vmatpush1.msra.mxu0 0.0
        %6479 = vmatprep.subr.mxu0 0.0
        %6480 = vmatpush1.msra.mxu0 0.0
        %6481 = vmatprep.subr.mxu0 0.0
        %6482 = vmatpush1.msra.mxu0 0.0
        %6483 = vmatprep.subr.mxu0 0.0
        %6484 = vmatpush1.msra.mxu0 0.0
        %6485 = vmatprep.subr.mxu0 0.0
        %6486 = vmatpush1.msra.mxu0 0.0
        %6487 = vmatprep.subr.mxu0 0.0
        %6488 = vmatpush1.msra.mxu0 0.0
        %6489 = vmatprep.subr.mxu0 0.0
        %6490 = vmatpush1.msra.mxu0 0.0
        %6491 = vmatprep.subr.mxu0 0.0
        %6492 = vmatpush1.msra.mxu0 0.0
        %6493 = vmatprep.subr.mxu0 0.0
        %6494 = vmatpush1.msra.mxu0 0.0
        %6495 = vmatprep.subr.mxu0 0.0
        %6496 = vmatpush1.msra.mxu0 0.0
        %6497 = vmatprep.subr.mxu0 0.0
        %6498 = vmatpush1.msra.mxu0 0.0
        %6499 = vmatprep.subr.mxu0 0.0
        %6500 = vmatpush1.msra.mxu0 0.0
        %6501 = vmatprep.subr.mxu0 0.0
        %6502 = vmatpush1.msra.mxu0 0.0
        %6503 = vmatprep.subr.mxu0 0.0
        %6504 = vmatpush1.msra.mxu0 0.0
        %6505 = vmatprep.mubr.f32.mxu0 0.0
        %v6506 = vand.u32 %v277, 4294901760
        %6507 = vmatmul.mubr.f32.gmra.mrb[0].mxu0 %v6506
        %v6508 = vpop.f32.mrb[0].mxu0
        %v6509 = vadd.f32 %v6413, %v6508
        %v6510 = vpop.f32.mrb[0].mxu0
        %v6511 = vadd.f32 %v6415, %v6510
        %6512 = vdwg.mxu0
        %v6513 = vand.u32 %v1643, 4294901760
        %6514 = vmatprep.subr.mxu0 %v6513
        %v6515 = vand.u32 %v1642, 4294901760
        %6516 = vmatpush1.msra.mxu0 %v6515
        %v6517 = vand.u32 %v1645, 4294901760
        %6518 = vmatprep.subr.mxu0 %v6517
        %v6519 = vand.u32 %v1644, 4294901760
        %6520 = vmatpush1.msra.mxu0 %v6519
        %v6521 = vand.u32 %v1647, 4294901760
        %6522 = vmatprep.subr.mxu0 %v6521
        %v6523 = vand.u32 %v1646, 4294901760
        %6524 = vmatpush1.msra.mxu0 %v6523
        %v6525 = vand.u32 %v1649, 4294901760
        %6526 = vmatprep.subr.mxu0 %v6525
        %v6527 = vand.u32 %v1648, 4294901760
        %6528 = vmatpush1.msra.mxu0 %v6527
        %6529 = vmatprep.subr.mxu0 0.0
        %6530 = vmatpush1.msra.mxu0 0.0
        %6531 = vmatprep.subr.mxu0 0.0
        %6532 = vmatpush1.msra.mxu0 0.0
        %6533 = vmatprep.subr.mxu0 0.0
        %6534 = vmatpush1.msra.mxu0 0.0
        %6535 = vmatprep.subr.mxu0 0.0
        %6536 = vmatpush1.msra.mxu0 0.0
        %6537 = vmatprep.subr.mxu0 0.0
        %6538 = vmatpush1.msra.mxu0 0.0
        %6539 = vmatprep.subr.mxu0 0.0
        %6540 = vmatpush1.msra.mxu0 0.0
        %6541 = vmatprep.subr.mxu0 0.0
        %6542 = vmatpush1.msra.mxu0 0.0
        %6543 = vmatprep.subr.mxu0 0.0
        %6544 = vmatpush1.msra.mxu0 0.0
        %6545 = vmatprep.subr.mxu0 0.0
        %6546 = vmatpush1.msra.mxu0 0.0
        %6547 = vmatprep.subr.mxu0 0.0
        %6548 = vmatpush1.msra.mxu0 0.0
        %6549 = vmatprep.subr.mxu0 0.0
        %6550 = vmatpush1.msra.mxu0 0.0
        %6551 = vmatprep.subr.mxu0 0.0
        %6552 = vmatpush1.msra.mxu0 0.0
        %6553 = vmatprep.subr.mxu0 0.0
        %6554 = vmatpush1.msra.mxu0 0.0
        %6555 = vmatprep.subr.mxu0 0.0
        %6556 = vmatpush1.msra.mxu0 0.0
        %6557 = vmatprep.subr.mxu0 0.0
        %6558 = vmatpush1.msra.mxu0 0.0
        %6559 = vmatprep.subr.mxu0 0.0
        %6560 = vmatpush1.msra.mxu0 0.0
        %6561 = vmatprep.subr.mxu0 0.0
        %6562 = vmatpush1.msra.mxu0 0.0
        %6563 = vmatprep.subr.mxu0 0.0
        %6564 = vmatpush1.msra.mxu0 0.0
        %6565 = vmatprep.subr.mxu0 0.0
        %6566 = vmatpush1.msra.mxu0 0.0
        %6567 = vmatprep.subr.mxu0 0.0
        %6568 = vmatpush1.msra.mxu0 0.0
        %6569 = vmatprep.subr.mxu0 0.0
        %6570 = vmatpush1.msra.mxu0 0.0
        %6571 = vmatprep.subr.mxu0 0.0
        %6572 = vmatpush1.msra.mxu0 0.0
        %6573 = vmatprep.subr.mxu0 0.0
        %6574 = vmatpush1.msra.mxu0 0.0
        %6575 = vmatprep.subr.mxu0 0.0
        %6576 = vmatpush1.msra.mxu0 0.0
        %6577 = vmatprep.subr.mxu0 0.0
        %6578 = vmatpush1.msra.mxu0 0.0
        %6579 = vmatprep.subr.mxu0 0.0
        %6580 = vmatpush1.msra.mxu0 0.0
        %6581 = vmatprep.subr.mxu0 0.0
        %6582 = vmatpush1.msra.mxu0 0.0
        %6583 = vmatprep.subr.mxu0 0.0
        %6584 = vmatpush1.msra.mxu0 0.0
        %6585 = vmatprep.mubr.f32.mxu0 0.0
        %v6586 = vand.u32 %v277, 4294901760
        %6587 = vmatmul.mubr.f32.gmra.mrb[0].mxu0 %v6586
        %v6588 = vpop.f32.mrb[0].mxu0
        %v6589 = vadd.f32 %v6509, %v6588
        %v6590 = vpop.f32.mrb[0].mxu0
        %v6591 = vadd.f32 %v6511, %v6590
        %6592 = vdwg.mxu0
        %v6593 = vand.u32 %v1651, 4294901760
        %6594 = vmatprep.subr.mxu0 %v6593
        %v6595 = vand.u32 %v1650, 4294901760
        %6596 = vmatpush1.msra.mxu0 %v6595
        %v6597 = vand.u32 %v1653, 4294901760
        %6598 = vmatprep.subr.mxu0 %v6597
        %v6599 = vand.u32 %v1652, 4294901760
        %6600 = vmatpush1.msra.mxu0 %v6599
        %v6601 = vand.u32 %v1655, 4294901760
        %6602 = vmatprep.subr.mxu0 %v6601
        %v6603 = vand.u32 %v1654, 4294901760
        %6604 = vmatpush1.msra.mxu0 %v6603
        %v6605 = vand.u32 %v1657, 4294901760
        %6606 = vmatprep.subr.mxu0 %v6605
        %v6607 = vand.u32 %v1656, 4294901760
        %6608 = vmatpush1.msra.mxu0 %v6607
        %6609 = vmatprep.subr.mxu0 0.0
        %6610 = vmatpush1.msra.mxu0 0.0
        %6611 = vmatprep.subr.mxu0 0.0
        %6612 = vmatpush1.msra.mxu0 0.0
        %6613 = vmatprep.subr.mxu0 0.0
        %6614 = vmatpush1.msra.mxu0 0.0
        %6615 = vmatprep.subr.mxu0 0.0
        %6616 = vmatpush1.msra.mxu0 0.0
        %6617 = vmatprep.subr.mxu0 0.0
        %6618 = vmatpush1.msra.mxu0 0.0
        %6619 = vmatprep.subr.mxu0 0.0
        %6620 = vmatpush1.msra.mxu0 0.0
        %6621 = vmatprep.subr.mxu0 0.0
        %6622 = vmatpush1.msra.mxu0 0.0
        %6623 = vmatprep.subr.mxu0 0.0
        %6624 = vmatpush1.msra.mxu0 0.0
        %6625 = vmatprep.subr.mxu0 0.0
        %6626 = vmatpush1.msra.mxu0 0.0
        %6627 = vmatprep.subr.mxu0 0.0
        %6628 = vmatpush1.msra.mxu0 0.0
        %6629 = vmatprep.subr.mxu0 0.0
        %6630 = vmatpush1.msra.mxu0 0.0
        %6631 = vmatprep.subr.mxu0 0.0
        %6632 = vmatpush1.msra.mxu0 0.0
        %6633 = vmatprep.subr.mxu0 0.0
        %6634 = vmatpush1.msra.mxu0 0.0
        %6635 = vmatprep.subr.mxu0 0.0
        %6636 = vmatpush1.msra.mxu0 0.0
        %6637 = vmatprep.subr.mxu0 0.0
        %6638 = vmatpush1.msra.mxu0 0.0
        %6639 = vmatprep.subr.mxu0 0.0
        %6640 = vmatpush1.msra.mxu0 0.0
        %6641 = vmatprep.subr.mxu0 0.0
        %6642 = vmatpush1.msra.mxu0 0.0
        %6643 = vmatprep.subr.mxu0 0.0
        %6644 = vmatpush1.msra.mxu0 0.0
        %6645 = vmatprep.subr.mxu0 0.0
        %6646 = vmatpush1.msra.mxu0 0.0
        %6647 = vmatprep.subr.mxu0 0.0
        %6648 = vmatpush1.msra.mxu0 0.0
        %6649 = vmatprep.subr.mxu0 0.0
        %6650 = vmatpush1.msra.mxu0 0.0
        %6651 = vmatprep.subr.mxu0 0.0
        %6652 = vmatpush1.msra.mxu0 0.0
        %6653 = vmatprep.subr.mxu0 0.0
        %6654 = vmatpush1.msra.mxu0 0.0
        %6655 = vmatprep.subr.mxu0 0.0
        %6656 = vmatpush1.msra.mxu0 0.0
        %6657 = vmatprep.subr.mxu0 0.0
        %6658 = vmatpush1.msra.mxu0 0.0
        %6659 = vmatprep.subr.mxu0 0.0
        %6660 = vmatpush1.msra.mxu0 0.0
        %6661 = vmatprep.subr.mxu0 0.0
        %6662 = vmatpush1.msra.mxu0 0.0
        %6663 = vmatprep.subr.mxu0 0.0
        %6664 = vmatpush1.msra.mxu0 0.0
        %6665 = vmatprep.mubr.f32.mxu0 0.0
        %v6666 = vand.u32 %v280, 4294901760
        %v6667 = vsub.f32 %v280, %v6666
        %v6668 = vand.u32 %v6667, 4294901760
        %v6669 = vsub.f32 %v6667, %v6668
        %v6670 = vand.u32 %v6669, 4294901760
        %6671 = vmatmul.mubr.f32.gmra.mrb[0].mxu0 %v6670
        %v6672 = vpop.f32.mrb[0].mxu0
        %v6673 = vadd.f32 0.0, %v6672
        %v6674 = vpop.f32.mrb[0].mxu0
        %v6675 = vadd.f32 0.0, %v6674
        %6676 = vdwg.mxu0
        %v6677 = vand.u32 %v1651, 4294901760
        %v6678 = vsub.f32 %v1651, %v6677
        %v6679 = vand.u32 %v6678, 4294901760
        %v6680 = vsub.f32 %v6678, %v6679
        %v6681 = vand.u32 %v6680, 4294901760
        %6682 = vmatprep.subr.mxu0 %v6681
        %v6683 = vand.u32 %v1650, 4294901760
        %v6684 = vsub.f32 %v1650, %v6683
        %v6685 = vand.u32 %v6684, 4294901760
        %v6686 = vsub.f32 %v6684, %v6685
        %v6687 = vand.u32 %v6686, 4294901760
        %6688 = vmatpush1.msra.mxu0 %v6687
        %v6689 = vand.u32 %v1653, 4294901760
        %v6690 = vsub.f32 %v1653, %v6689
        %v6691 = vand.u32 %v6690, 4294901760
        %v6692 = vsub.f32 %v6690, %v6691
        %v6693 = vand.u32 %v6692, 4294901760
        %6694 = vmatprep.subr.mxu0 %v6693
        %v6695 = vand.u32 %v1652, 4294901760
        %v6696 = vsub.f32 %v1652, %v6695
        %v6697 = vand.u32 %v6696, 4294901760
        %v6698 = vsub.f32 %v6696, %v6697
        %v6699 = vand.u32 %v6698, 4294901760
        %6700 = vmatpush1.msra.mxu0 %v6699
        %v6701 = vand.u32 %v1655, 4294901760
        %v6702 = vsub.f32 %v1655, %v6701
        %v6703 = vand.u32 %v6702, 4294901760
        %v6704 = vsub.f32 %v6702, %v6703
        %v6705 = vand.u32 %v6704, 4294901760
        %6706 = vmatprep.subr.mxu0 %v6705
        %v6707 = vand.u32 %v1654, 4294901760
        %v6708 = vsub.f32 %v1654, %v6707
        %v6709 = vand.u32 %v6708, 4294901760
        %v6710 = vsub.f32 %v6708, %v6709
        %v6711 = vand.u32 %v6710, 4294901760
        %6712 = vmatpush1.msra.mxu0 %v6711
        %v6713 = vand.u32 %v1657, 4294901760
        %v6714 = vsub.f32 %v1657, %v6713
        %v6715 = vand.u32 %v6714, 4294901760
        %v6716 = vsub.f32 %v6714, %v6715
        %v6717 = vand.u32 %v6716, 4294901760
        %6718 = vmatprep.subr.mxu0 %v6717
        %v6719 = vand.u32 %v1656, 4294901760
        %v6720 = vsub.f32 %v1656, %v6719
        %v6721 = vand.u32 %v6720, 4294901760
        %v6722 = vsub.f32 %v6720, %v6721
        %v6723 = vand.u32 %v6722, 4294901760
        %6724 = vmatpush1.msra.mxu0 %v6723
        %6725 = vmatprep.subr.mxu0 0.0
        %6726 = vmatpush1.msra.mxu0 0.0
        %6727 = vmatprep.subr.mxu0 0.0
        %6728 = vmatpush1.msra.mxu0 0.0
        %6729 = vmatprep.subr.mxu0 0.0
        %6730 = vmatpush1.msra.mxu0 0.0
        %6731 = vmatprep.subr.mxu0 0.0
        %6732 = vmatpush1.msra.mxu0 0.0
        %6733 = vmatprep.subr.mxu0 0.0
        %6734 = vmatpush1.msra.mxu0 0.0
        %6735 = vmatprep.subr.mxu0 0.0
        %6736 = vmatpush1.msra.mxu0 0.0
        %6737 = vmatprep.subr.mxu0 0.0
        %6738 = vmatpush1.msra.mxu0 0.0
        %6739 = vmatprep.subr.mxu0 0.0
        %6740 = vmatpush1.msra.mxu0 0.0
        %6741 = vmatprep.subr.mxu0 0.0
        %6742 = vmatpush1.msra.mxu0 0.0
        %6743 = vmatprep.subr.mxu0 0.0
        %6744 = vmatpush1.msra.mxu0 0.0
        %6745 = vmatprep.subr.mxu0 0.0
        %6746 = vmatpush1.msra.mxu0 0.0
        %6747 = vmatprep.subr.mxu0 0.0
        %6748 = vmatpush1.msra.mxu0 0.0
        %6749 = vmatprep.subr.mxu0 0.0
        %6750 = vmatpush1.msra.mxu0 0.0
        %6751 = vmatprep.subr.mxu0 0.0
        %6752 = vmatpush1.msra.mxu0 0.0
        %6753 = vmatprep.subr.mxu0 0.0
        %6754 = vmatpush1.msra.mxu0 0.0
        %6755 = vmatprep.subr.mxu0 0.0
        %6756 = vmatpush1.msra.mxu0 0.0
        %6757 = vmatprep.subr.mxu0 0.0
        %6758 = vmatpush1.msra.mxu0 0.0
        %6759 = vmatprep.subr.mxu0 0.0
        %6760 = vmatpush1.msra.mxu0 0.0
        %6761 = vmatprep.subr.mxu0 0.0
        %6762 = vmatpush1.msra.mxu0 0.0
        %6763 = vmatprep.subr.mxu0 0.0
        %6764 = vmatpush1.msra.mxu0 0.0
        %6765 = vmatprep.subr.mxu0 0.0
        %6766 = vmatpush1.msra.mxu0 0.0
        %6767 = vmatprep.subr.mxu0 0.0
        %6768 = vmatpush1.msra.mxu0 0.0
        %6769 = vmatprep.subr.mxu0 0.0
        %6770 = vmatpush1.msra.mxu0 0.0
        %6771 = vmatprep.subr.mxu0 0.0
        %6772 = vmatpush1.msra.mxu0 0.0
        %6773 = vmatprep.subr.mxu0 0.0
        %6774 = vmatpush1.msra.mxu0 0.0
        %6775 = vmatprep.subr.mxu0 0.0
        %6776 = vmatpush1.msra.mxu0 0.0
        %6777 = vmatprep.subr.mxu0 0.0
        %6778 = vmatpush1.msra.mxu0 0.0
        %6779 = vmatprep.subr.mxu0 0.0
        %6780 = vmatpush1.msra.mxu0 0.0
        %6781 = vmatprep.mubr.f32.mxu0 0.0
        %v6782 = vand.u32 %v280, 4294901760
        %6783 = vmatmul.mubr.f32.gmra.mrb[0].mxu0 %v6782
        %v6784 = vpop.f32.mrb[0].mxu0
        %v6785 = vadd.f32 %v6673, %v6784
        %v6786 = vpop.f32.mrb[0].mxu0
        %v6787 = vadd.f32 %v6675, %v6786
        %6788 = vdwg.mxu0
        %v6789 = vand.u32 %v1651, 4294901760
        %v6790 = vsub.f32 %v1651, %v6789
        %6791 = vmatprep.subr.mxu0 %v6790
        %v6792 = vand.u32 %v1650, 4294901760
        %v6793 = vsub.f32 %v1650, %v6792
        %6794 = vmatpush1.msra.mxu0 %v6793
        %v6795 = vand.u32 %v1653, 4294901760
        %v6796 = vsub.f32 %v1653, %v6795
        %6797 = vmatprep.subr.mxu0 %v6796
        %v6798 = vand.u32 %v1652, 4294901760
        %v6799 = vsub.f32 %v1652, %v6798
        %6800 = vmatpush1.msra.mxu0 %v6799
        %v6801 = vand.u32 %v1655, 4294901760
        %v6802 = vsub.f32 %v1655, %v6801
        %6803 = vmatprep.subr.mxu0 %v6802
        %v6804 = vand.u32 %v1654, 4294901760
        %v6805 = vsub.f32 %v1654, %v6804
        %6806 = vmatpush1.msra.mxu0 %v6805
        %v6807 = vand.u32 %v1657, 4294901760
        %v6808 = vsub.f32 %v1657, %v6807
        %6809 = vmatprep.subr.mxu0 %v6808
        %v6810 = vand.u32 %v1656, 4294901760
        %v6811 = vsub.f32 %v1656, %v6810
        %6812 = vmatpush1.msra.mxu0 %v6811
        %6813 = vmatprep.subr.mxu0 0.0
        %6814 = vmatpush1.msra.mxu0 0.0
        %6815 = vmatprep.subr.mxu0 0.0
        %6816 = vmatpush1.msra.mxu0 0.0
        %6817 = vmatprep.subr.mxu0 0.0
        %6818 = vmatpush1.msra.mxu0 0.0
        %6819 = vmatprep.subr.mxu0 0.0
        %6820 = vmatpush1.msra.mxu0 0.0
        %6821 = vmatprep.subr.mxu0 0.0
        %6822 = vmatpush1.msra.mxu0 0.0
        %6823 = vmatprep.subr.mxu0 0.0
        %6824 = vmatpush1.msra.mxu0 0.0
        %6825 = vmatprep.subr.mxu0 0.0
        %6826 = vmatpush1.msra.mxu0 0.0
        %6827 = vmatprep.subr.mxu0 0.0
        %6828 = vmatpush1.msra.mxu0 0.0
        %6829 = vmatprep.subr.mxu0 0.0
        %6830 = vmatpush1.msra.mxu0 0.0
        %6831 = vmatprep.subr.mxu0 0.0
        %6832 = vmatpush1.msra.mxu0 0.0
        %6833 = vmatprep.subr.mxu0 0.0
        %6834 = vmatpush1.msra.mxu0 0.0
        %6835 = vmatprep.subr.mxu0 0.0
        %6836 = vmatpush1.msra.mxu0 0.0
        %6837 = vmatprep.subr.mxu0 0.0
        %6838 = vmatpush1.msra.mxu0 0.0
        %6839 = vmatprep.subr.mxu0 0.0
        %6840 = vmatpush1.msra.mxu0 0.0
        %6841 = vmatprep.subr.mxu0 0.0
        %6842 = vmatpush1.msra.mxu0 0.0
        %6843 = vmatprep.subr.mxu0 0.0
        %6844 = vmatpush1.msra.mxu0 0.0
        %6845 = vmatprep.subr.mxu0 0.0
        %6846 = vmatpush1.msra.mxu0 0.0
        %6847 = vmatprep.subr.mxu0 0.0
        %6848 = vmatpush1.msra.mxu0 0.0
        %6849 = vmatprep.subr.mxu0 0.0
        %6850 = vmatpush1.msra.mxu0 0.0
        %6851 = vmatprep.subr.mxu0 0.0
        %6852 = vmatpush1.msra.mxu0 0.0
        %6853 = vmatprep.subr.mxu0 0.0
        %6854 = vmatpush1.msra.mxu0 0.0
        %6855 = vmatprep.subr.mxu0 0.0
        %6856 = vmatpush1.msra.mxu0 0.0
        %6857 = vmatprep.subr.mxu0 0.0
        %6858 = vmatpush1.msra.mxu0 0.0
        %6859 = vmatprep.subr.mxu0 0.0
        %6860 = vmatpush1.msra.mxu0 0.0
        %6861 = vmatprep.subr.mxu0 0.0
        %6862 = vmatpush1.msra.mxu0 0.0
        %6863 = vmatprep.subr.mxu0 0.0
        %6864 = vmatpush1.msra.mxu0 0.0
        %6865 = vmatprep.subr.mxu0 0.0
        %6866 = vmatpush1.msra.mxu0 0.0
        %6867 = vmatprep.subr.mxu0 0.0
        %6868 = vmatpush1.msra.mxu0 0.0
        %6869 = vmatprep.mubr.f32.mxu0 0.0
        %v6870 = vand.u32 %v280, 4294901760
        %v6871 = vsub.f32 %v280, %v6870
        %6872 = vmatmul.mubr.f32.gmra.mrb[0].mxu0 %v6871
        %v6873 = vpop.f32.mrb[0].mxu0
        %v6874 = vadd.f32 %v6785, %v6873
        %v6875 = vpop.f32.mrb[0].mxu0
        %v6876 = vadd.f32 %v6787, %v6875
        %6877 = vdwg.mxu0
        %v6878 = vand.u32 %v1651, 4294901760
        %6879 = vmatprep.subr.mxu0 %v6878
        %v6880 = vand.u32 %v1650, 4294901760
        %6881 = vmatpush1.msra.mxu0 %v6880
        %v6882 = vand.u32 %v1653, 4294901760
        %6883 = vmatprep.subr.mxu0 %v6882
        %v6884 = vand.u32 %v1652, 4294901760
        %6885 = vmatpush1.msra.mxu0 %v6884
        %v6886 = vand.u32 %v1655, 4294901760
        %6887 = vmatprep.subr.mxu0 %v6886
        %v6888 = vand.u32 %v1654, 4294901760
        %6889 = vmatpush1.msra.mxu0 %v6888
        %v6890 = vand.u32 %v1657, 4294901760
        %6891 = vmatprep.subr.mxu0 %v6890
        %v6892 = vand.u32 %v1656, 4294901760
        %6893 = vmatpush1.msra.mxu0 %v6892
        %6894 = vmatprep.subr.mxu0 0.0
        %6895 = vmatpush1.msra.mxu0 0.0
        %6896 = vmatprep.subr.mxu0 0.0
        %6897 = vmatpush1.msra.mxu0 0.0
        %6898 = vmatprep.subr.mxu0 0.0
        %6899 = vmatpush1.msra.mxu0 0.0
        %6900 = vmatprep.subr.mxu0 0.0
        %6901 = vmatpush1.msra.mxu0 0.0
        %6902 = vmatprep.subr.mxu0 0.0
        %6903 = vmatpush1.msra.mxu0 0.0
        %6904 = vmatprep.subr.mxu0 0.0
        %6905 = vmatpush1.msra.mxu0 0.0
        %6906 = vmatprep.subr.mxu0 0.0
        %6907 = vmatpush1.msra.mxu0 0.0
        %6908 = vmatprep.subr.mxu0 0.0
        %6909 = vmatpush1.msra.mxu0 0.0
        %6910 = vmatprep.subr.mxu0 0.0
        %6911 = vmatpush1.msra.mxu0 0.0
        %6912 = vmatprep.subr.mxu0 0.0
        %6913 = vmatpush1.msra.mxu0 0.0
        %6914 = vmatprep.subr.mxu0 0.0
        %6915 = vmatpush1.msra.mxu0 0.0
        %6916 = vmatprep.subr.mxu0 0.0
        %6917 = vmatpush1.msra.mxu0 0.0
        %6918 = vmatprep.subr.mxu0 0.0
        %6919 = vmatpush1.msra.mxu0 0.0
        %6920 = vmatprep.subr.mxu0 0.0
        %6921 = vmatpush1.msra.mxu0 0.0
        %6922 = vmatprep.subr.mxu0 0.0
        %6923 = vmatpush1.msra.mxu0 0.0
        %6924 = vmatprep.subr.mxu0 0.0
        %6925 = vmatpush1.msra.mxu0 0.0
        %6926 = vmatprep.subr.mxu0 0.0
        %6927 = vmatpush1.msra.mxu0 0.0
        %6928 = vmatprep.subr.mxu0 0.0
        %6929 = vmatpush1.msra.mxu0 0.0
        %6930 = vmatprep.subr.mxu0 0.0
        %6931 = vmatpush1.msra.mxu0 0.0
        %6932 = vmatprep.subr.mxu0 0.0
        %6933 = vmatpush1.msra.mxu0 0.0
        %6934 = vmatprep.subr.mxu0 0.0
        %6935 = vmatpush1.msra.mxu0 0.0
        %6936 = vmatprep.subr.mxu0 0.0
        %6937 = vmatpush1.msra.mxu0 0.0
        %6938 = vmatprep.subr.mxu0 0.0
        %6939 = vmatpush1.msra.mxu0 0.0
        %6940 = vmatprep.subr.mxu0 0.0
        %6941 = vmatpush1.msra.mxu0 0.0
        %6942 = vmatprep.subr.mxu0 0.0
        %6943 = vmatpush1.msra.mxu0 0.0
        %6944 = vmatprep.subr.mxu0 0.0
        %6945 = vmatpush1.msra.mxu0 0.0
        %6946 = vmatprep.subr.mxu0 0.0
        %6947 = vmatpush1.msra.mxu0 0.0
        %6948 = vmatprep.subr.mxu0 0.0
        %6949 = vmatpush1.msra.mxu0 0.0
        %6950 = vmatprep.mubr.f32.mxu0 0.0
        %v6951 = vand.u32 %v280, 4294901760
        %v6952 = vsub.f32 %v280, %v6951
        %v6953 = vand.u32 %v6952, 4294901760
        %6954 = vmatmul.mubr.f32.gmra.mrb[0].mxu0 %v6953
        %v6955 = vpop.f32.mrb[0].mxu0
        %v6956 = vadd.f32 %v6874, %v6955
        %v6957 = vpop.f32.mrb[0].mxu0
        %v6958 = vadd.f32 %v6876, %v6957
        %6959 = vdwg.mxu0
        %v6960 = vand.u32 %v1651, 4294901760
        %v6961 = vsub.f32 %v1651, %v6960
        %v6962 = vand.u32 %v6961, 4294901760
        %6963 = vmatprep.subr.mxu0 %v6962
        %v6964 = vand.u32 %v1650, 4294901760
        %v6965 = vsub.f32 %v1650, %v6964
        %v6966 = vand.u32 %v6965, 4294901760
        %6967 = vmatpush1.msra.mxu0 %v6966
        %v6968 = vand.u32 %v1653, 4294901760
        %v6969 = vsub.f32 %v1653, %v6968
        %v6970 = vand.u32 %v6969, 4294901760
        %6971 = vmatprep.subr.mxu0 %v6970
        %v6972 = vand.u32 %v1652, 4294901760
        %v6973 = vsub.f32 %v1652, %v6972
        %v6974 = vand.u32 %v6973, 4294901760
        %6975 = vmatpush1.msra.mxu0 %v6974
        %v6976 = vand.u32 %v1655, 4294901760
        %v6977 = vsub.f32 %v1655, %v6976
        %v6978 = vand.u32 %v6977, 4294901760
        %6979 = vmatprep.subr.mxu0 %v6978
        %v6980 = vand.u32 %v1654, 4294901760
        %v6981 = vsub.f32 %v1654, %v6980
        %v6982 = vand.u32 %v6981, 4294901760
        %6983 = vmatpush1.msra.mxu0 %v6982
        %v6984 = vand.u32 %v1657, 4294901760
        %v6985 = vsub.f32 %v1657, %v6984
        %v6986 = vand.u32 %v6985, 4294901760
        %6987 = vmatprep.subr.mxu0 %v6986
        %v6988 = vand.u32 %v1656, 4294901760
        %v6989 = vsub.f32 %v1656, %v6988
        %v6990 = vand.u32 %v6989, 4294901760
        %6991 = vmatpush1.msra.mxu0 %v6990
        %6992 = vmatprep.subr.mxu0 0.0
        %6993 = vmatpush1.msra.mxu0 0.0
        %6994 = vmatprep.subr.mxu0 0.0
        %6995 = vmatpush1.msra.mxu0 0.0
        %6996 = vmatprep.subr.mxu0 0.0
        %6997 = vmatpush1.msra.mxu0 0.0
        %6998 = vmatprep.subr.mxu0 0.0
        %6999 = vmatpush1.msra.mxu0 0.0
        %7000 = vmatprep.subr.mxu0 0.0
        %7001 = vmatpush1.msra.mxu0 0.0
        %7002 = vmatprep.subr.mxu0 0.0
        %7003 = vmatpush1.msra.mxu0 0.0
        %7004 = vmatprep.subr.mxu0 0.0
        %7005 = vmatpush1.msra.mxu0 0.0
        %7006 = vmatprep.subr.mxu0 0.0
        %7007 = vmatpush1.msra.mxu0 0.0
        %7008 = vmatprep.subr.mxu0 0.0
        %7009 = vmatpush1.msra.mxu0 0.0
        %7010 = vmatprep.subr.mxu0 0.0
        %7011 = vmatpush1.msra.mxu0 0.0
        %7012 = vmatprep.subr.mxu0 0.0
        %7013 = vmatpush1.msra.mxu0 0.0
        %7014 = vmatprep.subr.mxu0 0.0
        %7015 = vmatpush1.msra.mxu0 0.0
        %7016 = vmatprep.subr.mxu0 0.0
        %7017 = vmatpush1.msra.mxu0 0.0
        %7018 = vmatprep.subr.mxu0 0.0
        %7019 = vmatpush1.msra.mxu0 0.0
        %7020 = vmatprep.subr.mxu0 0.0
        %7021 = vmatpush1.msra.mxu0 0.0
        %7022 = vmatprep.subr.mxu0 0.0
        %7023 = vmatpush1.msra.mxu0 0.0
        %7024 = vmatprep.subr.mxu0 0.0
        %7025 = vmatpush1.msra.mxu0 0.0
        %7026 = vmatprep.subr.mxu0 0.0
        %7027 = vmatpush1.msra.mxu0 0.0
        %7028 = vmatprep.subr.mxu0 0.0
        %7029 = vmatpush1.msra.mxu0 0.0
        %7030 = vmatprep.subr.mxu0 0.0
        %7031 = vmatpush1.msra.mxu0 0.0
        %7032 = vmatprep.subr.mxu0 0.0
        %7033 = vmatpush1.msra.mxu0 0.0
        %7034 = vmatprep.subr.mxu0 0.0
        %7035 = vmatpush1.msra.mxu0 0.0
        %7036 = vmatprep.subr.mxu0 0.0
        %7037 = vmatpush1.msra.mxu0 0.0
        %7038 = vmatprep.subr.mxu0 0.0
        %7039 = vmatpush1.msra.mxu0 0.0
        %7040 = vmatprep.subr.mxu0 0.0
        %7041 = vmatpush1.msra.mxu0 0.0
        %7042 = vmatprep.subr.mxu0 0.0
        %7043 = vmatpush1.msra.mxu0 0.0
        %7044 = vmatprep.subr.mxu0 0.0
        %7045 = vmatpush1.msra.mxu0 0.0
        %7046 = vmatprep.subr.mxu0 0.0
        %7047 = vmatpush1.msra.mxu0 0.0
        %7048 = vmatprep.mubr.f32.mxu0 0.0
        %v7049 = vand.u32 %v280, 4294901760
        %7050 = vmatmul.mubr.f32.gmra.mrb[0].mxu0 %v7049
        %v7051 = vpop.f32.mrb[0].mxu0
        %v7052 = vadd.f32 %v6956, %v7051
        %v7053 = vpop.f32.mrb[0].mxu0
        %v7054 = vadd.f32 %v6958, %v7053
        %7055 = vdwg.mxu0
        %v7056 = vand.u32 %v1651, 4294901760
        %7057 = vmatprep.subr.mxu0 %v7056
        %v7058 = vand.u32 %v1650, 4294901760
        %7059 = vmatpush1.msra.mxu0 %v7058
        %v7060 = vand.u32 %v1653, 4294901760
        %7061 = vmatprep.subr.mxu0 %v7060
        %v7062 = vand.u32 %v1652, 4294901760
        %7063 = vmatpush1.msra.mxu0 %v7062
        %v7064 = vand.u32 %v1655, 4294901760
        %7065 = vmatprep.subr.mxu0 %v7064
        %v7066 = vand.u32 %v1654, 4294901760
        %7067 = vmatpush1.msra.mxu0 %v7066
        %v7068 = vand.u32 %v1657, 4294901760
        %7069 = vmatprep.subr.mxu0 %v7068
        %v7070 = vand.u32 %v1656, 4294901760
        %7071 = vmatpush1.msra.mxu0 %v7070
        %7072 = vmatprep.subr.mxu0 0.0
        %7073 = vmatpush1.msra.mxu0 0.0
        %7074 = vmatprep.subr.mxu0 0.0
        %7075 = vmatpush1.msra.mxu0 0.0
        %7076 = vmatprep.subr.mxu0 0.0
        %7077 = vmatpush1.msra.mxu0 0.0
        %7078 = vmatprep.subr.mxu0 0.0
        %7079 = vmatpush1.msra.mxu0 0.0
        %7080 = vmatprep.subr.mxu0 0.0
        %7081 = vmatpush1.msra.mxu0 0.0
        %7082 = vmatprep.subr.mxu0 0.0
        %7083 = vmatpush1.msra.mxu0 0.0
        %7084 = vmatprep.subr.mxu0 0.0
        %7085 = vmatpush1.msra.mxu0 0.0
        %7086 = vmatprep.subr.mxu0 0.0
        %7087 = vmatpush1.msra.mxu0 0.0
        %7088 = vmatprep.subr.mxu0 0.0
        %7089 = vmatpush1.msra.mxu0 0.0
        %7090 = vmatprep.subr.mxu0 0.0
        %7091 = vmatpush1.msra.mxu0 0.0
        %7092 = vmatprep.subr.mxu0 0.0
        %7093 = vmatpush1.msra.mxu0 0.0
        %7094 = vmatprep.subr.mxu0 0.0
        %7095 = vmatpush1.msra.mxu0 0.0
        %7096 = vmatprep.subr.mxu0 0.0
        %7097 = vmatpush1.msra.mxu0 0.0
        %7098 = vmatprep.subr.mxu0 0.0
        %7099 = vmatpush1.msra.mxu0 0.0
        %7100 = vmatprep.subr.mxu0 0.0
        %7101 = vmatpush1.msra.mxu0 0.0
        %7102 = vmatprep.subr.mxu0 0.0
        %7103 = vmatpush1.msra.mxu0 0.0
        %7104 = vmatprep.subr.mxu0 0.0
        %7105 = vmatpush1.msra.mxu0 0.0
        %7106 = vmatprep.subr.mxu0 0.0
        %7107 = vmatpush1.msra.mxu0 0.0
        %7108 = vmatprep.subr.mxu0 0.0
        %7109 = vmatpush1.msra.mxu0 0.0
        %7110 = vmatprep.subr.mxu0 0.0
        %7111 = vmatpush1.msra.mxu0 0.0
        %7112 = vmatprep.subr.mxu0 0.0
        %7113 = vmatpush1.msra.mxu0 0.0
        %7114 = vmatprep.subr.mxu0 0.0
        %7115 = vmatpush1.msra.mxu0 0.0
        %7116 = vmatprep.subr.mxu0 0.0
        %7117 = vmatpush1.msra.mxu0 0.0
        %7118 = vmatprep.subr.mxu0 0.0
        %7119 = vmatpush1.msra.mxu0 0.0
        %7120 = vmatprep.subr.mxu0 0.0
        %7121 = vmatpush1.msra.mxu0 0.0
        %7122 = vmatprep.subr.mxu0 0.0
        %7123 = vmatpush1.msra.mxu0 0.0
        %7124 = vmatprep.subr.mxu0 0.0
        %7125 = vmatpush1.msra.mxu0 0.0
        %7126 = vmatprep.subr.mxu0 0.0
        %7127 = vmatpush1.msra.mxu0 0.0
        %7128 = vmatprep.mubr.f32.mxu0 0.0
        %v7129 = vand.u32 %v280, 4294901760
        %7130 = vmatmul.mubr.f32.gmra.mrb[0].mxu0 %v7129
        %v7131 = vpop.f32.mrb[0].mxu0
        %v7132 = vadd.f32 %v7052, %v7131
        %v7133 = vpop.f32.mrb[0].mxu0
        %v7134 = vadd.f32 %v7054, %v7133
        %7135 = vdwg.mxu0
        %v7136 = vand.u32 %v1659, 4294901760
        %7137 = vmatprep.subr.mxu0 %v7136
        %v7138 = vand.u32 %v1658, 4294901760
        %7139 = vmatpush1.msra.mxu0 %v7138
        %v7140 = vand.u32 %v1661, 4294901760
        %7141 = vmatprep.subr.mxu0 %v7140
        %v7142 = vand.u32 %v1660, 4294901760
        %7143 = vmatpush1.msra.mxu0 %v7142
        %v7144 = vand.u32 %v1663, 4294901760
        %7145 = vmatprep.subr.mxu0 %v7144
        %v7146 = vand.u32 %v1662, 4294901760
        %7147 = vmatpush1.msra.mxu0 %v7146
        %v7148 = vand.u32 %v1665, 4294901760
        %7149 = vmatprep.subr.mxu0 %v7148
        %v7150 = vand.u32 %v1664, 4294901760
        %7151 = vmatpush1.msra.mxu0 %v7150
        %7152 = vmatprep.subr.mxu0 0.0
        %7153 = vmatpush1.msra.mxu0 0.0
        %7154 = vmatprep.subr.mxu0 0.0
        %7155 = vmatpush1.msra.mxu0 0.0
        %7156 = vmatprep.subr.mxu0 0.0
        %7157 = vmatpush1.msra.mxu0 0.0
        %7158 = vmatprep.subr.mxu0 0.0
        %7159 = vmatpush1.msra.mxu0 0.0
        %7160 = vmatprep.subr.mxu0 0.0
        %7161 = vmatpush1.msra.mxu0 0.0
        %7162 = vmatprep.subr.mxu0 0.0
        %7163 = vmatpush1.msra.mxu0 0.0
        %7164 = vmatprep.subr.mxu0 0.0
        %7165 = vmatpush1.msra.mxu0 0.0
        %7166 = vmatprep.subr.mxu0 0.0
        %7167 = vmatpush1.msra.mxu0 0.0
        %7168 = vmatprep.subr.mxu0 0.0
        %7169 = vmatpush1.msra.mxu0 0.0
        %7170 = vmatprep.subr.mxu0 0.0
        %7171 = vmatpush1.msra.mxu0 0.0
        %7172 = vmatprep.subr.mxu0 0.0
        %7173 = vmatpush1.msra.mxu0 0.0
        %7174 = vmatprep.subr.mxu0 0.0
        %7175 = vmatpush1.msra.mxu0 0.0
        %7176 = vmatprep.subr.mxu0 0.0
        %7177 = vmatpush1.msra.mxu0 0.0
        %7178 = vmatprep.subr.mxu0 0.0
        %7179 = vmatpush1.msra.mxu0 0.0
        %7180 = vmatprep.subr.mxu0 0.0
        %7181 = vmatpush1.msra.mxu0 0.0
        %7182 = vmatprep.subr.mxu0 0.0
        %7183 = vmatpush1.msra.mxu0 0.0
        %7184 = vmatprep.subr.mxu0 0.0
        %7185 = vmatpush1.msra.mxu0 0.0
        %7186 = vmatprep.subr.mxu0 0.0
        %7187 = vmatpush1.msra.mxu0 0.0
        %7188 = vmatprep.subr.mxu0 0.0
        %7189 = vmatpush1.msra.mxu0 0.0
        %7190 = vmatprep.subr.mxu0 0.0
        %7191 = vmatpush1.msra.mxu0 0.0
        %7192 = vmatprep.subr.mxu0 0.0
        %7193 = vmatpush1.msra.mxu0 0.0
        %7194 = vmatprep.subr.mxu0 0.0
        %7195 = vmatpush1.msra.mxu0 0.0
        %7196 = vmatprep.subr.mxu0 0.0
        %7197 = vmatpush1.msra.mxu0 0.0
        %7198 = vmatprep.subr.mxu0 0.0
        %7199 = vmatpush1.msra.mxu0 0.0
        %7200 = vmatprep.subr.mxu0 0.0
        %7201 = vmatpush1.msra.mxu0 0.0
        %7202 = vmatprep.subr.mxu0 0.0
        %7203 = vmatpush1.msra.mxu0 0.0
        %7204 = vmatprep.subr.mxu0 0.0
        %7205 = vmatpush1.msra.mxu0 0.0
        %7206 = vmatprep.subr.mxu0 0.0
        %7207 = vmatpush1.msra.mxu0 0.0
        %7208 = vmatprep.mubr.f32.mxu0 0.0
        %v7209 = vand.u32 %v283, 4294901760
        %v7210 = vsub.f32 %v283, %v7209
        %v7211 = vand.u32 %v7210, 4294901760
        %v7212 = vsub.f32 %v7210, %v7211
        %v7213 = vand.u32 %v7212, 4294901760
        %7214 = vmatmul.mubr.f32.gmra.mrb[0].mxu0 %v7213
        %v7215 = vpop.f32.mrb[0].mxu0
        %v7216 = vadd.f32 0.0, %v7215
        %v7217 = vpop.f32.mrb[0].mxu0
        %v7218 = vadd.f32 0.0, %v7217
        %7219 = vdwg.mxu0
        %v7220 = vand.u32 %v1659, 4294901760
        %v7221 = vsub.f32 %v1659, %v7220
        %v7222 = vand.u32 %v7221, 4294901760
        %v7223 = vsub.f32 %v7221, %v7222
        %v7224 = vand.u32 %v7223, 4294901760
        %7225 = vmatprep.subr.mxu0 %v7224
        %v7226 = vand.u32 %v1658, 4294901760
        %v7227 = vsub.f32 %v1658, %v7226
        %v7228 = vand.u32 %v7227, 4294901760
        %v7229 = vsub.f32 %v7227, %v7228
        %v7230 = vand.u32 %v7229, 4294901760
        %7231 = vmatpush1.msra.mxu0 %v7230
        %v7232 = vand.u32 %v1661, 4294901760
        %v7233 = vsub.f32 %v1661, %v7232
        %v7234 = vand.u32 %v7233, 4294901760
        %v7235 = vsub.f32 %v7233, %v7234
        %v7236 = vand.u32 %v7235, 4294901760
        %7237 = vmatprep.subr.mxu0 %v7236
        %v7238 = vand.u32 %v1660, 4294901760
        %v7239 = vsub.f32 %v1660, %v7238
        %v7240 = vand.u32 %v7239, 4294901760
        %v7241 = vsub.f32 %v7239, %v7240
        %v7242 = vand.u32 %v7241, 4294901760
        %7243 = vmatpush1.msra.mxu0 %v7242
        %v7244 = vand.u32 %v1663, 4294901760
        %v7245 = vsub.f32 %v1663, %v7244
        %v7246 = vand.u32 %v7245, 4294901760
        %v7247 = vsub.f32 %v7245, %v7246
        %v7248 = vand.u32 %v7247, 4294901760
        %7249 = vmatprep.subr.mxu0 %v7248
        %v7250 = vand.u32 %v1662, 4294901760
        %v7251 = vsub.f32 %v1662, %v7250
        %v7252 = vand.u32 %v7251, 4294901760
        %v7253 = vsub.f32 %v7251, %v7252
        %v7254 = vand.u32 %v7253, 4294901760
        %7255 = vmatpush1.msra.mxu0 %v7254
        %v7256 = vand.u32 %v1665, 4294901760
        %v7257 = vsub.f32 %v1665, %v7256
        %v7258 = vand.u32 %v7257, 4294901760
        %v7259 = vsub.f32 %v7257, %v7258
        %v7260 = vand.u32 %v7259, 4294901760
        %7261 = vmatprep.subr.mxu0 %v7260
        %v7262 = vand.u32 %v1664, 4294901760
        %v7263 = vsub.f32 %v1664, %v7262
        %v7264 = vand.u32 %v7263, 4294901760
        %v7265 = vsub.f32 %v7263, %v7264
        %v7266 = vand.u32 %v7265, 4294901760
        %7267 = vmatpush1.msra.mxu0 %v7266
        %7268 = vmatprep.subr.mxu0 0.0
        %7269 = vmatpush1.msra.mxu0 0.0
        %7270 = vmatprep.subr.mxu0 0.0
        %7271 = vmatpush1.msra.mxu0 0.0
        %7272 = vmatprep.subr.mxu0 0.0
        %7273 = vmatpush1.msra.mxu0 0.0
        %7274 = vmatprep.subr.mxu0 0.0
        %7275 = vmatpush1.msra.mxu0 0.0
        %7276 = vmatprep.subr.mxu0 0.0
        %7277 = vmatpush1.msra.mxu0 0.0
        %7278 = vmatprep.subr.mxu0 0.0
        %7279 = vmatpush1.msra.mxu0 0.0
        %7280 = vmatprep.subr.mxu0 0.0
        %7281 = vmatpush1.msra.mxu0 0.0
        %7282 = vmatprep.subr.mxu0 0.0
        %7283 = vmatpush1.msra.mxu0 0.0
        %7284 = vmatprep.subr.mxu0 0.0
        %7285 = vmatpush1.msra.mxu0 0.0
        %7286 = vmatprep.subr.mxu0 0.0
        %7287 = vmatpush1.msra.mxu0 0.0
        %7288 = vmatprep.subr.mxu0 0.0
        %7289 = vmatpush1.msra.mxu0 0.0
        %7290 = vmatprep.subr.mxu0 0.0
        %7291 = vmatpush1.msra.mxu0 0.0
        %7292 = vmatprep.subr.mxu0 0.0
        %7293 = vmatpush1.msra.mxu0 0.0
        %7294 = vmatprep.subr.mxu0 0.0
        %7295 = vmatpush1.msra.mxu0 0.0
        %7296 = vmatprep.subr.mxu0 0.0
        %7297 = vmatpush1.msra.mxu0 0.0
        %7298 = vmatprep.subr.mxu0 0.0
        %7299 = vmatpush1.msra.mxu0 0.0
        %7300 = vmatprep.subr.mxu0 0.0
        %7301 = vmatpush1.msra.mxu0 0.0
        %7302 = vmatprep.subr.mxu0 0.0
        %7303 = vmatpush1.msra.mxu0 0.0
        %7304 = vmatprep.subr.mxu0 0.0
        %7305 = vmatpush1.msra.mxu0 0.0
        %7306 = vmatprep.subr.mxu0 0.0
        %7307 = vmatpush1.msra.mxu0 0.0
        %7308 = vmatprep.subr.mxu0 0.0
        %7309 = vmatpush1.msra.mxu0 0.0
        %7310 = vmatprep.subr.mxu0 0.0
        %7311 = vmatpush1.msra.mxu0 0.0
        %7312 = vmatprep.subr.mxu0 0.0
        %7313 = vmatpush1.msra.mxu0 0.0
        %7314 = vmatprep.subr.mxu0 0.0
        %7315 = vmatpush1.msra.mxu0 0.0
        %7316 = vmatprep.subr.mxu0 0.0
        %7317 = vmatpush1.msra.mxu0 0.0
        %7318 = vmatprep.subr.mxu0 0.0
        %7319 = vmatpush1.msra.mxu0 0.0
        %7320 = vmatprep.subr.mxu0 0.0
        %7321 = vmatpush1.msra.mxu0 0.0
        %7322 = vmatprep.subr.mxu0 0.0
        %7323 = vmatpush1.msra.mxu0 0.0
        %7324 = vmatprep.mubr.f32.mxu0 0.0
        %v7325 = vand.u32 %v283, 4294901760
        %7326 = vmatmul.mubr.f32.gmra.mrb[0].mxu0 %v7325
        %v7327 = vpop.f32.mrb[0].mxu0
        %v7328 = vadd.f32 %v7216, %v7327
        %v7329 = vpop.f32.mrb[0].mxu0
        %v7330 = vadd.f32 %v7218, %v7329
        %7331 = vdwg.mxu0
        %v7332 = vand.u32 %v1659, 4294901760
        %v7333 = vsub.f32 %v1659, %v7332
        %7334 = vmatprep.subr.mxu0 %v7333
        %v7335 = vand.u32 %v1658, 4294901760
        %v7336 = vsub.f32 %v1658, %v7335
        %7337 = vmatpush1.msra.mxu0 %v7336
        %v7338 = vand.u32 %v1661, 4294901760
        %v7339 = vsub.f32 %v1661, %v7338
        %7340 = vmatprep.subr.mxu0 %v7339
        %v7341 = vand.u32 %v1660, 4294901760
        %v7342 = vsub.f32 %v1660, %v7341
        %7343 = vmatpush1.msra.mxu0 %v7342
        %v7344 = vand.u32 %v1663, 4294901760
        %v7345 = vsub.f32 %v1663, %v7344
        %7346 = vmatprep.subr.mxu0 %v7345
        %v7347 = vand.u32 %v1662, 4294901760
        %v7348 = vsub.f32 %v1662, %v7347
        %7349 = vmatpush1.msra.mxu0 %v7348
        %v7350 = vand.u32 %v1665, 4294901760
        %v7351 = vsub.f32 %v1665, %v7350
        %7352 = vmatprep.subr.mxu0 %v7351
        %v7353 = vand.u32 %v1664, 4294901760
        %v7354 = vsub.f32 %v1664, %v7353
        %7355 = vmatpush1.msra.mxu0 %v7354
        %7356 = vmatprep.subr.mxu0 0.0
        %7357 = vmatpush1.msra.mxu0 0.0
        %7358 = vmatprep.subr.mxu0 0.0
        %7359 = vmatpush1.msra.mxu0 0.0
        %7360 = vmatprep.subr.mxu0 0.0
        %7361 = vmatpush1.msra.mxu0 0.0
        %7362 = vmatprep.subr.mxu0 0.0
        %7363 = vmatpush1.msra.mxu0 0.0
        %7364 = vmatprep.subr.mxu0 0.0
        %7365 = vmatpush1.msra.mxu0 0.0
        %7366 = vmatprep.subr.mxu0 0.0
        %7367 = vmatpush1.msra.mxu0 0.0
        %7368 = vmatprep.subr.mxu0 0.0
        %7369 = vmatpush1.msra.mxu0 0.0
        %7370 = vmatprep.subr.mxu0 0.0
        %7371 = vmatpush1.msra.mxu0 0.0
        %7372 = vmatprep.subr.mxu0 0.0
        %7373 = vmatpush1.msra.mxu0 0.0
        %7374 = vmatprep.subr.mxu0 0.0
        %7375 = vmatpush1.msra.mxu0 0.0
        %7376 = vmatprep.subr.mxu0 0.0
        %7377 = vmatpush1.msra.mxu0 0.0
        %7378 = vmatprep.subr.mxu0 0.0
        %7379 = vmatpush1.msra.mxu0 0.0
        %7380 = vmatprep.subr.mxu0 0.0
        %7381 = vmatpush1.msra.mxu0 0.0
        %7382 = vmatprep.subr.mxu0 0.0
        %7383 = vmatpush1.msra.mxu0 0.0
        %7384 = vmatprep.subr.mxu0 0.0
        %7385 = vmatpush1.msra.mxu0 0.0
        %7386 = vmatprep.subr.mxu0 0.0
        %7387 = vmatpush1.msra.mxu0 0.0
        %7388 = vmatprep.subr.mxu0 0.0
        %7389 = vmatpush1.msra.mxu0 0.0
        %7390 = vmatprep.subr.mxu0 0.0
        %7391 = vmatpush1.msra.mxu0 0.0
        %7392 = vmatprep.subr.mxu0 0.0
        %7393 = vmatpush1.msra.mxu0 0.0
        %7394 = vmatprep.subr.mxu0 0.0
        %7395 = vmatpush1.msra.mxu0 0.0
        %7396 = vmatprep.subr.mxu0 0.0
        %7397 = vmatpush1.msra.mxu0 0.0
        %7398 = vmatprep.subr.mxu0 0.0
        %7399 = vmatpush1.msra.mxu0 0.0
        %7400 = vmatprep.subr.mxu0 0.0
        %7401 = vmatpush1.msra.mxu0 0.0
        %7402 = vmatprep.subr.mxu0 0.0
        %7403 = vmatpush1.msra.mxu0 0.0
        %7404 = vmatprep.subr.mxu0 0.0
        %7405 = vmatpush1.msra.mxu0 0.0
        %7406 = vmatprep.subr.mxu0 0.0
        %7407 = vmatpush1.msra.mxu0 0.0
        %7408 = vmatprep.subr.mxu0 0.0
        %7409 = vmatpush1.msra.mxu0 0.0
        %7410 = vmatprep.subr.mxu0 0.0
        %7411 = vmatpush1.msra.mxu0 0.0
        %7412 = vmatprep.mubr.f32.mxu0 0.0
        %v7413 = vand.u32 %v283, 4294901760
        %v7414 = vsub.f32 %v283, %v7413
        %7415 = vmatmul.mubr.f32.gmra.mrb[0].mxu0 %v7414
        %v7416 = vpop.f32.mrb[0].mxu0
        %v7417 = vadd.f32 %v7328, %v7416
        %v7418 = vpop.f32.mrb[0].mxu0
        %v7419 = vadd.f32 %v7330, %v7418
        %7420 = vdwg.mxu0
        %v7421 = vand.u32 %v1659, 4294901760
        %7422 = vmatprep.subr.mxu0 %v7421
        %v7423 = vand.u32 %v1658, 4294901760
        %7424 = vmatpush1.msra.mxu0 %v7423
        %v7425 = vand.u32 %v1661, 4294901760
        %7426 = vmatprep.subr.mxu0 %v7425
        %v7427 = vand.u32 %v1660, 4294901760
        %7428 = vmatpush1.msra.mxu0 %v7427
        %v7429 = vand.u32 %v1663, 4294901760
        %7430 = vmatprep.subr.mxu0 %v7429
        %v7431 = vand.u32 %v1662, 4294901760
        %7432 = vmatpush1.msra.mxu0 %v7431
        %v7433 = vand.u32 %v1665, 4294901760
        %7434 = vmatprep.subr.mxu0 %v7433
        %v7435 = vand.u32 %v1664, 4294901760
        %7436 = vmatpush1.msra.mxu0 %v7435
        %7437 = vmatprep.subr.mxu0 0.0
        %7438 = vmatpush1.msra.mxu0 0.0
        %7439 = vmatprep.subr.mxu0 0.0
        %7440 = vmatpush1.msra.mxu0 0.0
        %7441 = vmatprep.subr.mxu0 0.0
        %7442 = vmatpush1.msra.mxu0 0.0
        %7443 = vmatprep.subr.mxu0 0.0
        %7444 = vmatpush1.msra.mxu0 0.0
        %7445 = vmatprep.subr.mxu0 0.0
        %7446 = vmatpush1.msra.mxu0 0.0
        %7447 = vmatprep.subr.mxu0 0.0
        %7448 = vmatpush1.msra.mxu0 0.0
        %7449 = vmatprep.subr.mxu0 0.0
        %7450 = vmatpush1.msra.mxu0 0.0
        %7451 = vmatprep.subr.mxu0 0.0
        %7452 = vmatpush1.msra.mxu0 0.0
        %7453 = vmatprep.subr.mxu0 0.0
        %7454 = vmatpush1.msra.mxu0 0.0
        %7455 = vmatprep.subr.mxu0 0.0
        %7456 = vmatpush1.msra.mxu0 0.0
        %7457 = vmatprep.subr.mxu0 0.0
        %7458 = vmatpush1.msra.mxu0 0.0
        %7459 = vmatprep.subr.mxu0 0.0
        %7460 = vmatpush1.msra.mxu0 0.0
        %7461 = vmatprep.subr.mxu0 0.0
        %7462 = vmatpush1.msra.mxu0 0.0
        %7463 = vmatprep.subr.mxu0 0.0
        %7464 = vmatpush1.msra.mxu0 0.0
        %7465 = vmatprep.subr.mxu0 0.0
        %7466 = vmatpush1.msra.mxu0 0.0
        %7467 = vmatprep.subr.mxu0 0.0
        %7468 = vmatpush1.msra.mxu0 0.0
        %7469 = vmatprep.subr.mxu0 0.0
        %7470 = vmatpush1.msra.mxu0 0.0
        %7471 = vmatprep.subr.mxu0 0.0
        %7472 = vmatpush1.msra.mxu0 0.0
        %7473 = vmatprep.subr.mxu0 0.0
        %7474 = vmatpush1.msra.mxu0 0.0
        %7475 = vmatprep.subr.mxu0 0.0
        %7476 = vmatpush1.msra.mxu0 0.0
        %7477 = vmatprep.subr.mxu0 0.0
        %7478 = vmatpush1.msra.mxu0 0.0
        %7479 = vmatprep.subr.mxu0 0.0
        %7480 = vmatpush1.msra.mxu0 0.0
        %7481 = vmatprep.subr.mxu0 0.0
        %7482 = vmatpush1.msra.mxu0 0.0
        %7483 = vmatprep.subr.mxu0 0.0
        %7484 = vmatpush1.msra.mxu0 0.0
        %7485 = vmatprep.subr.mxu0 0.0
        %7486 = vmatpush1.msra.mxu0 0.0
        %7487 = vmatprep.subr.mxu0 0.0
        %7488 = vmatpush1.msra.mxu0 0.0
        %7489 = vmatprep.subr.mxu0 0.0
        %7490 = vmatpush1.msra.mxu0 0.0
        %7491 = vmatprep.subr.mxu0 0.0
        %7492 = vmatpush1.msra.mxu0 0.0
        %7493 = vmatprep.mubr.f32.mxu0 0.0
        %v7494 = vand.u32 %v283, 4294901760
        %v7495 = vsub.f32 %v283, %v7494
        %v7496 = vand.u32 %v7495, 4294901760
        %7497 = vmatmul.mubr.f32.gmra.mrb[0].mxu0 %v7496
        %v7498 = vpop.f32.mrb[0].mxu0
        %v7499 = vadd.f32 %v7417, %v7498
        %v7500 = vpop.f32.mrb[0].mxu0
        %v7501 = vadd.f32 %v7419, %v7500
        %7502 = vdwg.mxu0
        %v7503 = vand.u32 %v1659, 4294901760
        %v7504 = vsub.f32 %v1659, %v7503
        %v7505 = vand.u32 %v7504, 4294901760
        %7506 = vmatprep.subr.mxu0 %v7505
        %v7507 = vand.u32 %v1658, 4294901760
        %v7508 = vsub.f32 %v1658, %v7507
        %v7509 = vand.u32 %v7508, 4294901760
        %7510 = vmatpush1.msra.mxu0 %v7509
        %v7511 = vand.u32 %v1661, 4294901760
        %v7512 = vsub.f32 %v1661, %v7511
        %v7513 = vand.u32 %v7512, 4294901760
        %7514 = vmatprep.subr.mxu0 %v7513
        %v7515 = vand.u32 %v1660, 4294901760
        %v7516 = vsub.f32 %v1660, %v7515
        %v7517 = vand.u32 %v7516, 4294901760
        %7518 = vmatpush1.msra.mxu0 %v7517
        %v7519 = vand.u32 %v1663, 4294901760
        %v7520 = vsub.f32 %v1663, %v7519
        %v7521 = vand.u32 %v7520, 4294901760
        %7522 = vmatprep.subr.mxu0 %v7521
        %v7523 = vand.u32 %v1662, 4294901760
        %v7524 = vsub.f32 %v1662, %v7523
        %v7525 = vand.u32 %v7524, 4294901760
        %7526 = vmatpush1.msra.mxu0 %v7525
        %v7527 = vand.u32 %v1665, 4294901760
        %v7528 = vsub.f32 %v1665, %v7527
        %v7529 = vand.u32 %v7528, 4294901760
        %7530 = vmatprep.subr.mxu0 %v7529
        %v7531 = vand.u32 %v1664, 4294901760
        %v7532 = vsub.f32 %v1664, %v7531
        %v7533 = vand.u32 %v7532, 4294901760
        %7534 = vmatpush1.msra.mxu0 %v7533
        %7535 = vmatprep.subr.mxu0 0.0
        %7536 = vmatpush1.msra.mxu0 0.0
        %7537 = vmatprep.subr.mxu0 0.0
        %7538 = vmatpush1.msra.mxu0 0.0
        %7539 = vmatprep.subr.mxu0 0.0
        %7540 = vmatpush1.msra.mxu0 0.0
        %7541 = vmatprep.subr.mxu0 0.0
        %7542 = vmatpush1.msra.mxu0 0.0
        %7543 = vmatprep.subr.mxu0 0.0
        %7544 = vmatpush1.msra.mxu0 0.0
        %7545 = vmatprep.subr.mxu0 0.0
        %7546 = vmatpush1.msra.mxu0 0.0
        %7547 = vmatprep.subr.mxu0 0.0
        %7548 = vmatpush1.msra.mxu0 0.0
        %7549 = vmatprep.subr.mxu0 0.0
        %7550 = vmatpush1.msra.mxu0 0.0
        %7551 = vmatprep.subr.mxu0 0.0
        %7552 = vmatpush1.msra.mxu0 0.0
        %7553 = vmatprep.subr.mxu0 0.0
        %7554 = vmatpush1.msra.mxu0 0.0
        %7555 = vmatprep.subr.mxu0 0.0
        %7556 = vmatpush1.msra.mxu0 0.0
        %7557 = vmatprep.subr.mxu0 0.0
        %7558 = vmatpush1.msra.mxu0 0.0
        %7559 = vmatprep.subr.mxu0 0.0
        %7560 = vmatpush1.msra.mxu0 0.0
        %7561 = vmatprep.subr.mxu0 0.0
        %7562 = vmatpush1.msra.mxu0 0.0
        %7563 = vmatprep.subr.mxu0 0.0
        %7564 = vmatpush1.msra.mxu0 0.0
        %7565 = vmatprep.subr.mxu0 0.0
        %7566 = vmatpush1.msra.mxu0 0.0
        %7567 = vmatprep.subr.mxu0 0.0
        %7568 = vmatpush1.msra.mxu0 0.0
        %7569 = vmatprep.subr.mxu0 0.0
        %7570 = vmatpush1.msra.mxu0 0.0
        %7571 = vmatprep.subr.mxu0 0.0
        %7572 = vmatpush1.msra.mxu0 0.0
        %7573 = vmatprep.subr.mxu0 0.0
        %7574 = vmatpush1.msra.mxu0 0.0
        %7575 = vmatprep.subr.mxu0 0.0
        %7576 = vmatpush1.msra.mxu0 0.0
        %7577 = vmatprep.subr.mxu0 0.0
        %7578 = vmatpush1.msra.mxu0 0.0
        %7579 = vmatprep.subr.mxu0 0.0
        %7580 = vmatpush1.msra.mxu0 0.0
        %7581 = vmatprep.subr.mxu0 0.0
        %7582 = vmatpush1.msra.mxu0 0.0
        %7583 = vmatprep.subr.mxu0 0.0
        %7584 = vmatpush1.msra.mxu0 0.0
        %7585 = vmatprep.subr.mxu0 0.0
        %7586 = vmatpush1.msra.mxu0 0.0
        %7587 = vmatprep.subr.mxu0 0.0
        %7588 = vmatpush1.msra.mxu0 0.0
        %7589 = vmatprep.subr.mxu0 0.0
        %7590 = vmatpush1.msra.mxu0 0.0
        %7591 = vmatprep.mubr.f32.mxu0 0.0
        %v7592 = vand.u32 %v283, 4294901760
        %7593 = vmatmul.mubr.f32.gmra.mrb[0].mxu0 %v7592
        %v7594 = vpop.f32.mrb[0].mxu0
        %v7595 = vadd.f32 %v7499, %v7594
        %v7596 = vpop.f32.mrb[0].mxu0
        %v7597 = vadd.f32 %v7501, %v7596
        %7598 = vdwg.mxu0
        %v7599 = vand.u32 %v1659, 4294901760
        %7600 = vmatprep.subr.mxu0 %v7599
        %v7601 = vand.u32 %v1658, 4294901760
        %7602 = vmatpush1.msra.mxu0 %v7601
        %v7603 = vand.u32 %v1661, 4294901760
        %7604 = vmatprep.subr.mxu0 %v7603
        %v7605 = vand.u32 %v1660, 4294901760
        %7606 = vmatpush1.msra.mxu0 %v7605
        %v7607 = vand.u32 %v1663, 4294901760
        %7608 = vmatprep.subr.mxu0 %v7607
        %v7609 = vand.u32 %v1662, 4294901760
        %7610 = vmatpush1.msra.mxu0 %v7609
        %v7611 = vand.u32 %v1665, 4294901760
        %7612 = vmatprep.subr.mxu0 %v7611
        %v7613 = vand.u32 %v1664, 4294901760
        %7614 = vmatpush1.msra.mxu0 %v7613
        %7615 = vmatprep.subr.mxu0 0.0
        %7616 = vmatpush1.msra.mxu0 0.0
        %7617 = vmatprep.subr.mxu0 0.0
        %7618 = vmatpush1.msra.mxu0 0.0
        %7619 = vmatprep.subr.mxu0 0.0
        %7620 = vmatpush1.msra.mxu0 0.0
        %7621 = vmatprep.subr.mxu0 0.0
        %7622 = vmatpush1.msra.mxu0 0.0
        %7623 = vmatprep.subr.mxu0 0.0
        %7624 = vmatpush1.msra.mxu0 0.0
        %7625 = vmatprep.subr.mxu0 0.0
        %7626 = vmatpush1.msra.mxu0 0.0
        %7627 = vmatprep.subr.mxu0 0.0
        %7628 = vmatpush1.msra.mxu0 0.0
        %7629 = vmatprep.subr.mxu0 0.0
        %7630 = vmatpush1.msra.mxu0 0.0
        %7631 = vmatprep.subr.mxu0 0.0
        %7632 = vmatpush1.msra.mxu0 0.0
        %7633 = vmatprep.subr.mxu0 0.0
        %7634 = vmatpush1.msra.mxu0 0.0
        %7635 = vmatprep.subr.mxu0 0.0
        %7636 = vmatpush1.msra.mxu0 0.0
        %7637 = vmatprep.subr.mxu0 0.0
        %7638 = vmatpush1.msra.mxu0 0.0
        %7639 = vmatprep.subr.mxu0 0.0
        %7640 = vmatpush1.msra.mxu0 0.0
        %7641 = vmatprep.subr.mxu0 0.0
        %7642 = vmatpush1.msra.mxu0 0.0
        %7643 = vmatprep.subr.mxu0 0.0
        %7644 = vmatpush1.msra.mxu0 0.0
        %7645 = vmatprep.subr.mxu0 0.0
        %7646 = vmatpush1.msra.mxu0 0.0
        %7647 = vmatprep.subr.mxu0 0.0
        %7648 = vmatpush1.msra.mxu0 0.0
        %7649 = vmatprep.subr.mxu0 0.0
        %7650 = vmatpush1.msra.mxu0 0.0
        %7651 = vmatprep.subr.mxu0 0.0
        %7652 = vmatpush1.msra.mxu0 0.0
        %7653 = vmatprep.subr.mxu0 0.0
        %7654 = vmatpush1.msra.mxu0 0.0
        %7655 = vmatprep.subr.mxu0 0.0
        %7656 = vmatpush1.msra.mxu0 0.0
        %7657 = vmatprep.subr.mxu0 0.0
        %7658 = vmatpush1.msra.mxu0 0.0
        %7659 = vmatprep.subr.mxu0 0.0
        %7660 = vmatpush1.msra.mxu0 0.0
        %7661 = vmatprep.subr.mxu0 0.0
        %7662 = vmatpush1.msra.mxu0 0.0
        %7663 = vmatprep.subr.mxu0 0.0
        %7664 = vmatpush1.msra.mxu0 0.0
        %7665 = vmatprep.subr.mxu0 0.0
        %7666 = vmatpush1.msra.mxu0 0.0
        %7667 = vmatprep.subr.mxu0 0.0
        %7668 = vmatpush1.msra.mxu0 0.0
        %7669 = vmatprep.subr.mxu0 0.0
        %7670 = vmatpush1.msra.mxu0 0.0
        %7671 = vmatprep.mubr.f32.mxu0 0.0
        %v7672 = vand.u32 %v283, 4294901760
        %7673 = vmatmul.mubr.f32.gmra.mrb[0].mxu0 %v7672
        %v7674 = vpop.f32.mrb[0].mxu0
        %v7675 = vadd.f32 %v7595, %v7674
        %v7676 = vpop.f32.mrb[0].mxu0
        %v7677 = vadd.f32 %v7597, %v7676
        %7678 = vdwg.mxu0
        %v7679 = vand.u32 %v1667, 4294901760
        %7680 = vmatprep.subr.mxu0 %v7679
        %v7681 = vand.u32 %v1666, 4294901760
        %7682 = vmatpush1.msra.mxu0 %v7681
        %v7683 = vand.u32 %v1669, 4294901760
        %7684 = vmatprep.subr.mxu0 %v7683
        %v7685 = vand.u32 %v1668, 4294901760
        %7686 = vmatpush1.msra.mxu0 %v7685
        %v7687 = vand.u32 %v1671, 4294901760
        %7688 = vmatprep.subr.mxu0 %v7687
        %v7689 = vand.u32 %v1670, 4294901760
        %7690 = vmatpush1.msra.mxu0 %v7689
        %v7691 = vand.u32 %v1673, 4294901760
        %7692 = vmatprep.subr.mxu0 %v7691
        %v7693 = vand.u32 %v1672, 4294901760
        %7694 = vmatpush1.msra.mxu0 %v7693
        %7695 = vmatprep.subr.mxu0 0.0
        %7696 = vmatpush1.msra.mxu0 0.0
        %7697 = vmatprep.subr.mxu0 0.0
        %7698 = vmatpush1.msra.mxu0 0.0
        %7699 = vmatprep.subr.mxu0 0.0
        %7700 = vmatpush1.msra.mxu0 0.0
        %7701 = vmatprep.subr.mxu0 0.0
        %7702 = vmatpush1.msra.mxu0 0.0
        %7703 = vmatprep.subr.mxu0 0.0
        %7704 = vmatpush1.msra.mxu0 0.0
        %7705 = vmatprep.subr.mxu0 0.0
        %7706 = vmatpush1.msra.mxu0 0.0
        %7707 = vmatprep.subr.mxu0 0.0
        %7708 = vmatpush1.msra.mxu0 0.0
        %7709 = vmatprep.subr.mxu0 0.0
        %7710 = vmatpush1.msra.mxu0 0.0
        %7711 = vmatprep.subr.mxu0 0.0
        %7712 = vmatpush1.msra.mxu0 0.0
        %7713 = vmatprep.subr.mxu0 0.0
        %7714 = vmatpush1.msra.mxu0 0.0
        %7715 = vmatprep.subr.mxu0 0.0
        %7716 = vmatpush1.msra.mxu0 0.0
        %7717 = vmatprep.subr.mxu0 0.0
        %7718 = vmatpush1.msra.mxu0 0.0
        %7719 = vmatprep.subr.mxu0 0.0
        %7720 = vmatpush1.msra.mxu0 0.0
        %7721 = vmatprep.subr.mxu0 0.0
        %7722 = vmatpush1.msra.mxu0 0.0
        %7723 = vmatprep.subr.mxu0 0.0
        %7724 = vmatpush1.msra.mxu0 0.0
        %7725 = vmatprep.subr.mxu0 0.0
        %7726 = vmatpush1.msra.mxu0 0.0
        %7727 = vmatprep.subr.mxu0 0.0
        %7728 = vmatpush1.msra.mxu0 0.0
        %7729 = vmatprep.subr.mxu0 0.0
        %7730 = vmatpush1.msra.mxu0 0.0
        %7731 = vmatprep.subr.mxu0 0.0
        %7732 = vmatpush1.msra.mxu0 0.0
        %7733 = vmatprep.subr.mxu0 0.0
        %7734 = vmatpush1.msra.mxu0 0.0
        %7735 = vmatprep.subr.mxu0 0.0
        %7736 = vmatpush1.msra.mxu0 0.0
        %7737 = vmatprep.subr.mxu0 0.0
        %7738 = vmatpush1.msra.mxu0 0.0
        %7739 = vmatprep.subr.mxu0 0.0
        %7740 = vmatpush1.msra.mxu0 0.0
        %7741 = vmatprep.subr.mxu0 0.0
        %7742 = vmatpush1.msra.mxu0 0.0
        %7743 = vmatprep.subr.mxu0 0.0
        %7744 = vmatpush1.msra.mxu0 0.0
        %7745 = vmatprep.subr.mxu0 0.0
        %7746 = vmatpush1.msra.mxu0 0.0
        %7747 = vmatprep.subr.mxu0 0.0
        %7748 = vmatpush1.msra.mxu0 0.0
        %7749 = vmatprep.subr.mxu0 0.0
        %7750 = vmatpush1.msra.mxu0 0.0
        %7751 = vmatprep.mubr.f32.mxu0 0.0
        %v7752 = vand.u32 %v286, 4294901760
        %v7753 = vsub.f32 %v286, %v7752
        %v7754 = vand.u32 %v7753, 4294901760
        %v7755 = vsub.f32 %v7753, %v7754
        %v7756 = vand.u32 %v7755, 4294901760
        %7757 = vmatmul.mubr.f32.gmra.mrb[0].mxu0 %v7756
        %v7758 = vpop.f32.mrb[0].mxu0
        %v7759 = vadd.f32 0.0, %v7758
        %v7760 = vpop.f32.mrb[0].mxu0
        %v7761 = vadd.f32 0.0, %v7760
        %7762 = vdwg.mxu0
        %v7763 = vand.u32 %v1667, 4294901760
        %v7764 = vsub.f32 %v1667, %v7763
        %v7765 = vand.u32 %v7764, 4294901760
        %v7766 = vsub.f32 %v7764, %v7765
        %v7767 = vand.u32 %v7766, 4294901760
        %7768 = vmatprep.subr.mxu0 %v7767
        %v7769 = vand.u32 %v1666, 4294901760
        %v7770 = vsub.f32 %v1666, %v7769
        %v7771 = vand.u32 %v7770, 4294901760
        %v7772 = vsub.f32 %v7770, %v7771
        %v7773 = vand.u32 %v7772, 4294901760
        %7774 = vmatpush1.msra.mxu0 %v7773
        %v7775 = vand.u32 %v1669, 4294901760
        %v7776 = vsub.f32 %v1669, %v7775
        %v7777 = vand.u32 %v7776, 4294901760
        %v7778 = vsub.f32 %v7776, %v7777
        %v7779 = vand.u32 %v7778, 4294901760
        %7780 = vmatprep.subr.mxu0 %v7779
        %v7781 = vand.u32 %v1668, 4294901760
        %v7782 = vsub.f32 %v1668, %v7781
        %v7783 = vand.u32 %v7782, 4294901760
        %v7784 = vsub.f32 %v7782, %v7783
        %v7785 = vand.u32 %v7784, 4294901760
        %7786 = vmatpush1.msra.mxu0 %v7785
        %v7787 = vand.u32 %v1671, 4294901760
        %v7788 = vsub.f32 %v1671, %v7787
        %v7789 = vand.u32 %v7788, 4294901760
        %v7790 = vsub.f32 %v7788, %v7789
        %v7791 = vand.u32 %v7790, 4294901760
        %7792 = vmatprep.subr.mxu0 %v7791
        %v7793 = vand.u32 %v1670, 4294901760
        %v7794 = vsub.f32 %v1670, %v7793
        %v7795 = vand.u32 %v7794, 4294901760
        %v7796 = vsub.f32 %v7794, %v7795
        %v7797 = vand.u32 %v7796, 4294901760
        %7798 = vmatpush1.msra.mxu0 %v7797
        %v7799 = vand.u32 %v1673, 4294901760
        %v7800 = vsub.f32 %v1673, %v7799
        %v7801 = vand.u32 %v7800, 4294901760
        %v7802 = vsub.f32 %v7800, %v7801
        %v7803 = vand.u32 %v7802, 4294901760
        %7804 = vmatprep.subr.mxu0 %v7803
        %v7805 = vand.u32 %v1672, 4294901760
        %v7806 = vsub.f32 %v1672, %v7805
        %v7807 = vand.u32 %v7806, 4294901760
        %v7808 = vsub.f32 %v7806, %v7807
        %v7809 = vand.u32 %v7808, 4294901760
        %7810 = vmatpush1.msra.mxu0 %v7809
        %7811 = vmatprep.subr.mxu0 0.0
        %7812 = vmatpush1.msra.mxu0 0.0
        %7813 = vmatprep.subr.mxu0 0.0
        %7814 = vmatpush1.msra.mxu0 0.0
        %7815 = vmatprep.subr.mxu0 0.0
        %7816 = vmatpush1.msra.mxu0 0.0
        %7817 = vmatprep.subr.mxu0 0.0
        %7818 = vmatpush1.msra.mxu0 0.0
        %7819 = vmatprep.subr.mxu0 0.0
        %7820 = vmatpush1.msra.mxu0 0.0
        %7821 = vmatprep.subr.mxu0 0.0
        %7822 = vmatpush1.msra.mxu0 0.0
        %7823 = vmatprep.subr.mxu0 0.0
        %7824 = vmatpush1.msra.mxu0 0.0
        %7825 = vmatprep.subr.mxu0 0.0
        %7826 = vmatpush1.msra.mxu0 0.0
        %7827 = vmatprep.subr.mxu0 0.0
        %7828 = vmatpush1.msra.mxu0 0.0
        %7829 = vmatprep.subr.mxu0 0.0
        %7830 = vmatpush1.msra.mxu0 0.0
        %7831 = vmatprep.subr.mxu0 0.0
        %7832 = vmatpush1.msra.mxu0 0.0
        %7833 = vmatprep.subr.mxu0 0.0
        %7834 = vmatpush1.msra.mxu0 0.0
        %7835 = vmatprep.subr.mxu0 0.0
        %7836 = vmatpush1.msra.mxu0 0.0
        %7837 = vmatprep.subr.mxu0 0.0
        %7838 = vmatpush1.msra.mxu0 0.0
        %7839 = vmatprep.subr.mxu0 0.0
        %7840 = vmatpush1.msra.mxu0 0.0
        %7841 = vmatprep.subr.mxu0 0.0
        %7842 = vmatpush1.msra.mxu0 0.0
        %7843 = vmatprep.subr.mxu0 0.0
        %7844 = vmatpush1.msra.mxu0 0.0
        %7845 = vmatprep.subr.mxu0 0.0
        %7846 = vmatpush1.msra.mxu0 0.0
        %7847 = vmatprep.subr.mxu0 0.0
        %7848 = vmatpush1.msra.mxu0 0.0
        %7849 = vmatprep.subr.mxu0 0.0
        %7850 = vmatpush1.msra.mxu0 0.0
        %7851 = vmatprep.subr.mxu0 0.0
        %7852 = vmatpush1.msra.mxu0 0.0
        %7853 = vmatprep.subr.mxu0 0.0
        %7854 = vmatpush1.msra.mxu0 0.0
        %7855 = vmatprep.subr.mxu0 0.0
        %7856 = vmatpush1.msra.mxu0 0.0
        %7857 = vmatprep.subr.mxu0 0.0
        %7858 = vmatpush1.msra.mxu0 0.0
        %7859 = vmatprep.subr.mxu0 0.0
        %7860 = vmatpush1.msra.mxu0 0.0
        %7861 = vmatprep.subr.mxu0 0.0
        %7862 = vmatpush1.msra.mxu0 0.0
        %7863 = vmatprep.subr.mxu0 0.0
        %7864 = vmatpush1.msra.mxu0 0.0
        %7865 = vmatprep.subr.mxu0 0.0
        %7866 = vmatpush1.msra.mxu0 0.0
        %7867 = vmatprep.mubr.f32.mxu0 0.0
        %v7868 = vand.u32 %v286, 4294901760
        %7869 = vmatmul.mubr.f32.gmra.mrb[0].mxu0 %v7868
        %v7870 = vpop.f32.mrb[0].mxu0
        %v7871 = vadd.f32 %v7759, %v7870
        %v7872 = vpop.f32.mrb[0].mxu0
        %v7873 = vadd.f32 %v7761, %v7872
        %7874 = vdwg.mxu0
        %v7875 = vand.u32 %v1667, 4294901760
        %v7876 = vsub.f32 %v1667, %v7875
        %7877 = vmatprep.subr.mxu0 %v7876
        %v7878 = vand.u32 %v1666, 4294901760
        %v7879 = vsub.f32 %v1666, %v7878
        %7880 = vmatpush1.msra.mxu0 %v7879
        %v7881 = vand.u32 %v1669, 4294901760
        %v7882 = vsub.f32 %v1669, %v7881
        %7883 = vmatprep.subr.mxu0 %v7882
        %v7884 = vand.u32 %v1668, 4294901760
        %v7885 = vsub.f32 %v1668, %v7884
        %7886 = vmatpush1.msra.mxu0 %v7885
        %v7887 = vand.u32 %v1671, 4294901760
        %v7888 = vsub.f32 %v1671, %v7887
        %7889 = vmatprep.subr.mxu0 %v7888
        %v7890 = vand.u32 %v1670, 4294901760
        %v7891 = vsub.f32 %v1670, %v7890
        %7892 = vmatpush1.msra.mxu0 %v7891
        %v7893 = vand.u32 %v1673, 4294901760
        %v7894 = vsub.f32 %v1673, %v7893
        %7895 = vmatprep.subr.mxu0 %v7894
        %v7896 = vand.u32 %v1672, 4294901760
        %v7897 = vsub.f32 %v1672, %v7896
        %7898 = vmatpush1.msra.mxu0 %v7897
        %7899 = vmatprep.subr.mxu0 0.0
        %7900 = vmatpush1.msra.mxu0 0.0
        %7901 = vmatprep.subr.mxu0 0.0
        %7902 = vmatpush1.msra.mxu0 0.0
        %7903 = vmatprep.subr.mxu0 0.0
        %7904 = vmatpush1.msra.mxu0 0.0
        %7905 = vmatprep.subr.mxu0 0.0
        %7906 = vmatpush1.msra.mxu0 0.0
        %7907 = vmatprep.subr.mxu0 0.0
        %7908 = vmatpush1.msra.mxu0 0.0
        %7909 = vmatprep.subr.mxu0 0.0
        %7910 = vmatpush1.msra.mxu0 0.0
        %7911 = vmatprep.subr.mxu0 0.0
        %7912 = vmatpush1.msra.mxu0 0.0
        %7913 = vmatprep.subr.mxu0 0.0
        %7914 = vmatpush1.msra.mxu0 0.0
        %7915 = vmatprep.subr.mxu0 0.0
        %7916 = vmatpush1.msra.mxu0 0.0
        %7917 = vmatprep.subr.mxu0 0.0
        %7918 = vmatpush1.msra.mxu0 0.0
        %7919 = vmatprep.subr.mxu0 0.0
        %7920 = vmatpush1.msra.mxu0 0.0
        %7921 = vmatprep.subr.mxu0 0.0
        %7922 = vmatpush1.msra.mxu0 0.0
        %7923 = vmatprep.subr.mxu0 0.0
        %7924 = vmatpush1.msra.mxu0 0.0
        %7925 = vmatprep.subr.mxu0 0.0
        %7926 = vmatpush1.msra.mxu0 0.0
        %7927 = vmatprep.subr.mxu0 0.0
        %7928 = vmatpush1.msra.mxu0 0.0
        %7929 = vmatprep.subr.mxu0 0.0
        %7930 = vmatpush1.msra.mxu0 0.0
        %7931 = vmatprep.subr.mxu0 0.0
        %7932 = vmatpush1.msra.mxu0 0.0
        %7933 = vmatprep.subr.mxu0 0.0
        %7934 = vmatpush1.msra.mxu0 0.0
        %7935 = vmatprep.subr.mxu0 0.0
        %7936 = vmatpush1.msra.mxu0 0.0
        %7937 = vmatprep.subr.mxu0 0.0
        %7938 = vmatpush1.msra.mxu0 0.0
        %7939 = vmatprep.subr.mxu0 0.0
        %7940 = vmatpush1.msra.mxu0 0.0
        %7941 = vmatprep.subr.mxu0 0.0
        %7942 = vmatpush1.msra.mxu0 0.0
        %7943 = vmatprep.subr.mxu0 0.0
        %7944 = vmatpush1.msra.mxu0 0.0
        %7945 = vmatprep.subr.mxu0 0.0
        %7946 = vmatpush1.msra.mxu0 0.0
        %7947 = vmatprep.subr.mxu0 0.0
        %7948 = vmatpush1.msra.mxu0 0.0
        %7949 = vmatprep.subr.mxu0 0.0
        %7950 = vmatpush1.msra.mxu0 0.0
        %7951 = vmatprep.subr.mxu0 0.0
        %7952 = vmatpush1.msra.mxu0 0.0
        %7953 = vmatprep.subr.mxu0 0.0
        %7954 = vmatpush1.msra.mxu0 0.0
        %7955 = vmatprep.mubr.f32.mxu0 0.0
        %v7956 = vand.u32 %v286, 4294901760
        %v7957 = vsub.f32 %v286, %v7956
        %7958 = vmatmul.mubr.f32.gmra.mrb[0].mxu0 %v7957
        %v7959 = vpop.f32.mrb[0].mxu0
        %v7960 = vadd.f32 %v7871, %v7959
        %v7961 = vpop.f32.mrb[0].mxu0
        %v7962 = vadd.f32 %v7873, %v7961
        %7963 = vdwg.mxu0
        %v7964 = vand.u32 %v1667, 4294901760
        %7965 = vmatprep.subr.mxu0 %v7964
        %v7966 = vand.u32 %v1666, 4294901760
        %7967 = vmatpush1.msra.mxu0 %v7966
        %v7968 = vand.u32 %v1669, 4294901760
        %7969 = vmatprep.subr.mxu0 %v7968
        %v7970 = vand.u32 %v1668, 4294901760
        %7971 = vmatpush1.msra.mxu0 %v7970
        %v7972 = vand.u32 %v1671, 4294901760
        %7973 = vmatprep.subr.mxu0 %v7972
        %v7974 = vand.u32 %v1670, 4294901760
        %7975 = vmatpush1.msra.mxu0 %v7974
        %v7976 = vand.u32 %v1673, 4294901760
        %7977 = vmatprep.subr.mxu0 %v7976
        %v7978 = vand.u32 %v1672, 4294901760
        %7979 = vmatpush1.msra.mxu0 %v7978
        %7980 = vmatprep.subr.mxu0 0.0
        %7981 = vmatpush1.msra.mxu0 0.0
        %7982 = vmatprep.subr.mxu0 0.0
        %7983 = vmatpush1.msra.mxu0 0.0
        %7984 = vmatprep.subr.mxu0 0.0
        %7985 = vmatpush1.msra.mxu0 0.0
        %7986 = vmatprep.subr.mxu0 0.0
        %7987 = vmatpush1.msra.mxu0 0.0
        %7988 = vmatprep.subr.mxu0 0.0
        %7989 = vmatpush1.msra.mxu0 0.0
        %7990 = vmatprep.subr.mxu0 0.0
        %7991 = vmatpush1.msra.mxu0 0.0
        %7992 = vmatprep.subr.mxu0 0.0
        %7993 = vmatpush1.msra.mxu0 0.0
        %7994 = vmatprep.subr.mxu0 0.0
        %7995 = vmatpush1.msra.mxu0 0.0
        %7996 = vmatprep.subr.mxu0 0.0
        %7997 = vmatpush1.msra.mxu0 0.0
        %7998 = vmatprep.subr.mxu0 0.0
        %7999 = vmatpush1.msra.mxu0 0.0
        %8000 = vmatprep.subr.mxu0 0.0
        %8001 = vmatpush1.msra.mxu0 0.0
        %8002 = vmatprep.subr.mxu0 0.0
        %8003 = vmatpush1.msra.mxu0 0.0
        %8004 = vmatprep.subr.mxu0 0.0
        %8005 = vmatpush1.msra.mxu0 0.0
        %8006 = vmatprep.subr.mxu0 0.0
        %8007 = vmatpush1.msra.mxu0 0.0
        %8008 = vmatprep.subr.mxu0 0.0
        %8009 = vmatpush1.msra.mxu0 0.0
        %8010 = vmatprep.subr.mxu0 0.0
        %8011 = vmatpush1.msra.mxu0 0.0
        %8012 = vmatprep.subr.mxu0 0.0
        %8013 = vmatpush1.msra.mxu0 0.0
        %8014 = vmatprep.subr.mxu0 0.0
        %8015 = vmatpush1.msra.mxu0 0.0
        %8016 = vmatprep.subr.mxu0 0.0
        %8017 = vmatpush1.msra.mxu0 0.0
        %8018 = vmatprep.subr.mxu0 0.0
        %8019 = vmatpush1.msra.mxu0 0.0
        %8020 = vmatprep.subr.mxu0 0.0
        %8021 = vmatpush1.msra.mxu0 0.0
        %8022 = vmatprep.subr.mxu0 0.0
        %8023 = vmatpush1.msra.mxu0 0.0
        %8024 = vmatprep.subr.mxu0 0.0
        %8025 = vmatpush1.msra.mxu0 0.0
        %8026 = vmatprep.subr.mxu0 0.0
        %8027 = vmatpush1.msra.mxu0 0.0
        %8028 = vmatprep.subr.mxu0 0.0
        %8029 = vmatpush1.msra.mxu0 0.0
        %8030 = vmatprep.subr.mxu0 0.0
        %8031 = vmatpush1.msra.mxu0 0.0
        %8032 = vmatprep.subr.mxu0 0.0
        %8033 = vmatpush1.msra.mxu0 0.0
        %8034 = vmatprep.subr.mxu0 0.0
        %8035 = vmatpush1.msra.mxu0 0.0
        %8036 = vmatprep.mubr.f32.mxu0 0.0
        %v8037 = vand.u32 %v286, 4294901760
        %v8038 = vsub.f32 %v286, %v8037
        %v8039 = vand.u32 %v8038, 4294901760
        %8040 = vmatmul.mubr.f32.gmra.mrb[0].mxu0 %v8039
        %v8041 = vpop.f32.mrb[0].mxu0
        %v8042 = vadd.f32 %v7960, %v8041
        %v8043 = vpop.f32.mrb[0].mxu0
        %v8044 = vadd.f32 %v7962, %v8043
        %8045 = vdwg.mxu0
        %v8046 = vand.u32 %v1667, 4294901760
        %v8047 = vsub.f32 %v1667, %v8046
        %v8048 = vand.u32 %v8047, 4294901760
        %8049 = vmatprep.subr.mxu0 %v8048
        %v8050 = vand.u32 %v1666, 4294901760
        %v8051 = vsub.f32 %v1666, %v8050
        %v8052 = vand.u32 %v8051, 4294901760
        %8053 = vmatpush1.msra.mxu0 %v8052
        %v8054 = vand.u32 %v1669, 4294901760
        %v8055 = vsub.f32 %v1669, %v8054
        %v8056 = vand.u32 %v8055, 4294901760
        %8057 = vmatprep.subr.mxu0 %v8056
        %v8058 = vand.u32 %v1668, 4294901760
        %v8059 = vsub.f32 %v1668, %v8058
        %v8060 = vand.u32 %v8059, 4294901760
        %8061 = vmatpush1.msra.mxu0 %v8060
        %v8062 = vand.u32 %v1671, 4294901760
        %v8063 = vsub.f32 %v1671, %v8062
        %v8064 = vand.u32 %v8063, 4294901760
        %8065 = vmatprep.subr.mxu0 %v8064
        %v8066 = vand.u32 %v1670, 4294901760
        %v8067 = vsub.f32 %v1670, %v8066
        %v8068 = vand.u32 %v8067, 4294901760
        %8069 = vmatpush1.msra.mxu0 %v8068
        %v8070 = vand.u32 %v1673, 4294901760
        %v8071 = vsub.f32 %v1673, %v8070
        %v8072 = vand.u32 %v8071, 4294901760
        %8073 = vmatprep.subr.mxu0 %v8072
        %v8074 = vand.u32 %v1672, 4294901760
        %v8075 = vsub.f32 %v1672, %v8074
        %v8076 = vand.u32 %v8075, 4294901760
        %8077 = vmatpush1.msra.mxu0 %v8076
        %8078 = vmatprep.subr.mxu0 0.0
        %8079 = vmatpush1.msra.mxu0 0.0
        %8080 = vmatprep.subr.mxu0 0.0
        %8081 = vmatpush1.msra.mxu0 0.0
        %8082 = vmatprep.subr.mxu0 0.0
        %8083 = vmatpush1.msra.mxu0 0.0
        %8084 = vmatprep.subr.mxu0 0.0
        %8085 = vmatpush1.msra.mxu0 0.0
        %8086 = vmatprep.subr.mxu0 0.0
        %8087 = vmatpush1.msra.mxu0 0.0
        %8088 = vmatprep.subr.mxu0 0.0
        %8089 = vmatpush1.msra.mxu0 0.0
        %8090 = vmatprep.subr.mxu0 0.0
        %8091 = vmatpush1.msra.mxu0 0.0
        %8092 = vmatprep.subr.mxu0 0.0
        %8093 = vmatpush1.msra.mxu0 0.0
        %8094 = vmatprep.subr.mxu0 0.0
        %8095 = vmatpush1.msra.mxu0 0.0
        %8096 = vmatprep.subr.mxu0 0.0
        %8097 = vmatpush1.msra.mxu0 0.0
        %8098 = vmatprep.subr.mxu0 0.0
        %8099 = vmatpush1.msra.mxu0 0.0
        %8100 = vmatprep.subr.mxu0 0.0
        %8101 = vmatpush1.msra.mxu0 0.0
        %8102 = vmatprep.subr.mxu0 0.0
        %8103 = vmatpush1.msra.mxu0 0.0
        %8104 = vmatprep.subr.mxu0 0.0
        %8105 = vmatpush1.msra.mxu0 0.0
        %8106 = vmatprep.subr.mxu0 0.0
        %8107 = vmatpush1.msra.mxu0 0.0
        %8108 = vmatprep.subr.mxu0 0.0
        %8109 = vmatpush1.msra.mxu0 0.0
        %8110 = vmatprep.subr.mxu0 0.0
        %8111 = vmatpush1.msra.mxu0 0.0
        %8112 = vmatprep.subr.mxu0 0.0
        %8113 = vmatpush1.msra.mxu0 0.0
        %8114 = vmatprep.subr.mxu0 0.0
        %8115 = vmatpush1.msra.mxu0 0.0
        %8116 = vmatprep.subr.mxu0 0.0
        %8117 = vmatpush1.msra.mxu0 0.0
        %8118 = vmatprep.subr.mxu0 0.0
        %8119 = vmatpush1.msra.mxu0 0.0
        %8120 = vmatprep.subr.mxu0 0.0
        %8121 = vmatpush1.msra.mxu0 0.0
        %8122 = vmatprep.subr.mxu0 0.0
        %8123 = vmatpush1.msra.mxu0 0.0
        %8124 = vmatprep.subr.mxu0 0.0
        %8125 = vmatpush1.msra.mxu0 0.0
        %8126 = vmatprep.subr.mxu0 0.0
        %8127 = vmatpush1.msra.mxu0 0.0
        %8128 = vmatprep.subr.mxu0 0.0
        %8129 = vmatpush1.msra.mxu0 0.0
        %8130 = vmatprep.subr.mxu0 0.0
        %8131 = vmatpush1.msra.mxu0 0.0
        %8132 = vmatprep.subr.mxu0 0.0
        %8133 = vmatpush1.msra.mxu0 0.0
        %8134 = vmatprep.mubr.f32.mxu0 0.0
        %v8135 = vand.u32 %v286, 4294901760
        %8136 = vmatmul.mubr.f32.gmra.mrb[0].mxu0 %v8135
        %v8137 = vpop.f32.mrb[0].mxu0
        %v8138 = vadd.f32 %v8042, %v8137
        %v8139 = vpop.f32.mrb[0].mxu0
        %v8140 = vadd.f32 %v8044, %v8139
        %8141 = vdwg.mxu0
        %v8142 = vand.u32 %v1667, 4294901760
        %8143 = vmatprep.subr.mxu0 %v8142
        %v8144 = vand.u32 %v1666, 4294901760
        %8145 = vmatpush1.msra.mxu0 %v8144
        %v8146 = vand.u32 %v1669, 4294901760
        %8147 = vmatprep.subr.mxu0 %v8146
        %v8148 = vand.u32 %v1668, 4294901760
        %8149 = vmatpush1.msra.mxu0 %v8148
        %v8150 = vand.u32 %v1671, 4294901760
        %8151 = vmatprep.subr.mxu0 %v8150
        %v8152 = vand.u32 %v1670, 4294901760
        %8153 = vmatpush1.msra.mxu0 %v8152
        %v8154 = vand.u32 %v1673, 4294901760
        %8155 = vmatprep.subr.mxu0 %v8154
        %v8156 = vand.u32 %v1672, 4294901760
        %8157 = vmatpush1.msra.mxu0 %v8156
        %8158 = vmatprep.subr.mxu0 0.0
        %8159 = vmatpush1.msra.mxu0 0.0
        %8160 = vmatprep.subr.mxu0 0.0
        %8161 = vmatpush1.msra.mxu0 0.0
        %8162 = vmatprep.subr.mxu0 0.0
        %8163 = vmatpush1.msra.mxu0 0.0
        %8164 = vmatprep.subr.mxu0 0.0
        %8165 = vmatpush1.msra.mxu0 0.0
        %8166 = vmatprep.subr.mxu0 0.0
        %8167 = vmatpush1.msra.mxu0 0.0
        %8168 = vmatprep.subr.mxu0 0.0
        %8169 = vmatpush1.msra.mxu0 0.0
        %8170 = vmatprep.subr.mxu0 0.0
        %8171 = vmatpush1.msra.mxu0 0.0
        %8172 = vmatprep.subr.mxu0 0.0
        %8173 = vmatpush1.msra.mxu0 0.0
        %8174 = vmatprep.subr.mxu0 0.0
        %8175 = vmatpush1.msra.mxu0 0.0
        %8176 = vmatprep.subr.mxu0 0.0
        %8177 = vmatpush1.msra.mxu0 0.0
        %8178 = vmatprep.subr.mxu0 0.0
        %8179 = vmatpush1.msra.mxu0 0.0
        %8180 = vmatprep.subr.mxu0 0.0
        %8181 = vmatpush1.msra.mxu0 0.0
        %8182 = vmatprep.subr.mxu0 0.0
        %8183 = vmatpush1.msra.mxu0 0.0
        %8184 = vmatprep.subr.mxu0 0.0
        %8185 = vmatpush1.msra.mxu0 0.0
        %8186 = vmatprep.subr.mxu0 0.0
        %8187 = vmatpush1.msra.mxu0 0.0
        %8188 = vmatprep.subr.mxu0 0.0
        %8189 = vmatpush1.msra.mxu0 0.0
        %8190 = vmatprep.subr.mxu0 0.0
        %8191 = vmatpush1.msra.mxu0 0.0
        %8192 = vmatprep.subr.mxu0 0.0
        %8193 = vmatpush1.msra.mxu0 0.0
        %8194 = vmatprep.subr.mxu0 0.0
        %8195 = vmatpush1.msra.mxu0 0.0
        %8196 = vmatprep.subr.mxu0 0.0
        %8197 = vmatpush1.msra.mxu0 0.0
        %8198 = vmatprep.subr.mxu0 0.0
        %8199 = vmatpush1.msra.mxu0 0.0
        %8200 = vmatprep.subr.mxu0 0.0
        %8201 = vmatpush1.msra.mxu0 0.0
        %8202 = vmatprep.subr.mxu0 0.0
        %8203 = vmatpush1.msra.mxu0 0.0
        %8204 = vmatprep.subr.mxu0 0.0
        %8205 = vmatpush1.msra.mxu0 0.0
        %8206 = vmatprep.subr.mxu0 0.0
        %8207 = vmatpush1.msra.mxu0 0.0
        %8208 = vmatprep.subr.mxu0 0.0
        %8209 = vmatpush1.msra.mxu0 0.0
        %8210 = vmatprep.subr.mxu0 0.0
        %8211 = vmatpush1.msra.mxu0 0.0
        %8212 = vmatprep.subr.mxu0 0.0
        %8213 = vmatpush1.msra.mxu0 0.0
        %8214 = vmatprep.mubr.f32.mxu0 0.0
        %v8215 = vand.u32 %v286, 4294901760
        %8216 = vmatmul.mubr.f32.gmra.mrb[0].mxu0 %v8215
        %v8217 = vpop.f32.mrb[0].mxu0
        %v8218 = vadd.f32 %v8138, %v8217
        %v8219 = vpop.f32.mrb[0].mxu0
        %v8220 = vadd.f32 %v8140, %v8219
        %8221 = vdwg.mxu0
        %v8222 = vand.u32 %v1675, 4294901760
        %8223 = vmatprep.subr.mxu0 %v8222
        %v8224 = vand.u32 %v1674, 4294901760
        %8225 = vmatpush1.msra.mxu0 %v8224
        %v8226 = vand.u32 %v1677, 4294901760
        %8227 = vmatprep.subr.mxu0 %v8226
        %v8228 = vand.u32 %v1676, 4294901760
        %8229 = vmatpush1.msra.mxu0 %v8228
        %v8230 = vand.u32 %v1679, 4294901760
        %8231 = vmatprep.subr.mxu0 %v8230
        %v8232 = vand.u32 %v1678, 4294901760
        %8233 = vmatpush1.msra.mxu0 %v8232
        %v8234 = vand.u32 %v1681, 4294901760
        %8235 = vmatprep.subr.mxu0 %v8234
        %v8236 = vand.u32 %v1680, 4294901760
        %8237 = vmatpush1.msra.mxu0 %v8236
        %8238 = vmatprep.subr.mxu0 0.0
        %8239 = vmatpush1.msra.mxu0 0.0
        %8240 = vmatprep.subr.mxu0 0.0
        %8241 = vmatpush1.msra.mxu0 0.0
        %8242 = vmatprep.subr.mxu0 0.0
        %8243 = vmatpush1.msra.mxu0 0.0
        %8244 = vmatprep.subr.mxu0 0.0
        %8245 = vmatpush1.msra.mxu0 0.0
        %8246 = vmatprep.subr.mxu0 0.0
        %8247 = vmatpush1.msra.mxu0 0.0
        %8248 = vmatprep.subr.mxu0 0.0
        %8249 = vmatpush1.msra.mxu0 0.0
        %8250 = vmatprep.subr.mxu0 0.0
        %8251 = vmatpush1.msra.mxu0 0.0
        %8252 = vmatprep.subr.mxu0 0.0
        %8253 = vmatpush1.msra.mxu0 0.0
        %8254 = vmatprep.subr.mxu0 0.0
        %8255 = vmatpush1.msra.mxu0 0.0
        %8256 = vmatprep.subr.mxu0 0.0
        %8257 = vmatpush1.msra.mxu0 0.0
        %8258 = vmatprep.subr.mxu0 0.0
        %8259 = vmatpush1.msra.mxu0 0.0
        %8260 = vmatprep.subr.mxu0 0.0
        %8261 = vmatpush1.msra.mxu0 0.0
        %8262 = vmatprep.subr.mxu0 0.0
        %8263 = vmatpush1.msra.mxu0 0.0
        %8264 = vmatprep.subr.mxu0 0.0
        %8265 = vmatpush1.msra.mxu0 0.0
        %8266 = vmatprep.subr.mxu0 0.0
        %8267 = vmatpush1.msra.mxu0 0.0
        %8268 = vmatprep.subr.mxu0 0.0
        %8269 = vmatpush1.msra.mxu0 0.0
        %8270 = vmatprep.subr.mxu0 0.0
        %8271 = vmatpush1.msra.mxu0 0.0
        %8272 = vmatprep.subr.mxu0 0.0
        %8273 = vmatpush1.msra.mxu0 0.0
        %8274 = vmatprep.subr.mxu0 0.0
        %8275 = vmatpush1.msra.mxu0 0.0
        %8276 = vmatprep.subr.mxu0 0.0
        %8277 = vmatpush1.msra.mxu0 0.0
        %8278 = vmatprep.subr.mxu0 0.0
        %8279 = vmatpush1.msra.mxu0 0.0
        %8280 = vmatprep.subr.mxu0 0.0
        %8281 = vmatpush1.msra.mxu0 0.0
        %8282 = vmatprep.subr.mxu0 0.0
        %8283 = vmatpush1.msra.mxu0 0.0
        %8284 = vmatprep.subr.mxu0 0.0
        %8285 = vmatpush1.msra.mxu0 0.0
        %8286 = vmatprep.subr.mxu0 0.0
        %8287 = vmatpush1.msra.mxu0 0.0
        %8288 = vmatprep.subr.mxu0 0.0
        %8289 = vmatpush1.msra.mxu0 0.0
        %8290 = vmatprep.subr.mxu0 0.0
        %8291 = vmatpush1.msra.mxu0 0.0
        %8292 = vmatprep.subr.mxu0 0.0
        %8293 = vmatpush1.msra.mxu0 0.0
        %8294 = vmatprep.mubr.f32.mxu0 0.0
        %v8295 = vand.u32 %v289, 4294901760
        %v8296 = vsub.f32 %v289, %v8295
        %v8297 = vand.u32 %v8296, 4294901760
        %v8298 = vsub.f32 %v8296, %v8297
        %v8299 = vand.u32 %v8298, 4294901760
        %8300 = vmatmul.mubr.f32.gmra.mrb[0].mxu0 %v8299
        %v8301 = vpop.f32.mrb[0].mxu0
        %v8302 = vadd.f32 0.0, %v8301
        %v8303 = vpop.f32.mrb[0].mxu0
        %v8304 = vadd.f32 0.0, %v8303
        %8305 = vdwg.mxu0
        %v8306 = vand.u32 %v1675, 4294901760
        %v8307 = vsub.f32 %v1675, %v8306
        %v8308 = vand.u32 %v8307, 4294901760
        %v8309 = vsub.f32 %v8307, %v8308
        %v8310 = vand.u32 %v8309, 4294901760
        %8311 = vmatprep.subr.mxu0 %v8310
        %v8312 = vand.u32 %v1674, 4294901760
        %v8313 = vsub.f32 %v1674, %v8312
        %v8314 = vand.u32 %v8313, 4294901760
        %v8315 = vsub.f32 %v8313, %v8314
        %v8316 = vand.u32 %v8315, 4294901760
        %8317 = vmatpush1.msra.mxu0 %v8316
        %v8318 = vand.u32 %v1677, 4294901760
        %v8319 = vsub.f32 %v1677, %v8318
        %v8320 = vand.u32 %v8319, 4294901760
        %v8321 = vsub.f32 %v8319, %v8320
        %v8322 = vand.u32 %v8321, 4294901760
        %8323 = vmatprep.subr.mxu0 %v8322
        %v8324 = vand.u32 %v1676, 4294901760
        %v8325 = vsub.f32 %v1676, %v8324
        %v8326 = vand.u32 %v8325, 4294901760
        %v8327 = vsub.f32 %v8325, %v8326
        %v8328 = vand.u32 %v8327, 4294901760
        %8329 = vmatpush1.msra.mxu0 %v8328
        %v8330 = vand.u32 %v1679, 4294901760
        %v8331 = vsub.f32 %v1679, %v8330
        %v8332 = vand.u32 %v8331, 4294901760
        %v8333 = vsub.f32 %v8331, %v8332
        %v8334 = vand.u32 %v8333, 4294901760
        %8335 = vmatprep.subr.mxu0 %v8334
        %v8336 = vand.u32 %v1678, 4294901760
        %v8337 = vsub.f32 %v1678, %v8336
        %v8338 = vand.u32 %v8337, 4294901760
        %v8339 = vsub.f32 %v8337, %v8338
        %v8340 = vand.u32 %v8339, 4294901760
        %8341 = vmatpush1.msra.mxu0 %v8340
        %v8342 = vand.u32 %v1681, 4294901760
        %v8343 = vsub.f32 %v1681, %v8342
        %v8344 = vand.u32 %v8343, 4294901760
        %v8345 = vsub.f32 %v8343, %v8344
        %v8346 = vand.u32 %v8345, 4294901760
        %8347 = vmatprep.subr.mxu0 %v8346
        %v8348 = vand.u32 %v1680, 4294901760
        %v8349 = vsub.f32 %v1680, %v8348
        %v8350 = vand.u32 %v8349, 4294901760
        %v8351 = vsub.f32 %v8349, %v8350
        %v8352 = vand.u32 %v8351, 4294901760
        %8353 = vmatpush1.msra.mxu0 %v8352
        %8354 = vmatprep.subr.mxu0 0.0
        %8355 = vmatpush1.msra.mxu0 0.0
        %8356 = vmatprep.subr.mxu0 0.0
        %8357 = vmatpush1.msra.mxu0 0.0
        %8358 = vmatprep.subr.mxu0 0.0
        %8359 = vmatpush1.msra.mxu0 0.0
        %8360 = vmatprep.subr.mxu0 0.0
        %8361 = vmatpush1.msra.mxu0 0.0
        %8362 = vmatprep.subr.mxu0 0.0
        %8363 = vmatpush1.msra.mxu0 0.0
        %8364 = vmatprep.subr.mxu0 0.0
        %8365 = vmatpush1.msra.mxu0 0.0
        %8366 = vmatprep.subr.mxu0 0.0
        %8367 = vmatpush1.msra.mxu0 0.0
        %8368 = vmatprep.subr.mxu0 0.0
        %8369 = vmatpush1.msra.mxu0 0.0
        %8370 = vmatprep.subr.mxu0 0.0
        %8371 = vmatpush1.msra.mxu0 0.0
        %8372 = vmatprep.subr.mxu0 0.0
        %8373 = vmatpush1.msra.mxu0 0.0
        %8374 = vmatprep.subr.mxu0 0.0
        %8375 = vmatpush1.msra.mxu0 0.0
        %8376 = vmatprep.subr.mxu0 0.0
        %8377 = vmatpush1.msra.mxu0 0.0
        %8378 = vmatprep.subr.mxu0 0.0
        %8379 = vmatpush1.msra.mxu0 0.0
        %8380 = vmatprep.subr.mxu0 0.0
        %8381 = vmatpush1.msra.mxu0 0.0
        %8382 = vmatprep.subr.mxu0 0.0
        %8383 = vmatpush1.msra.mxu0 0.0
        %8384 = vmatprep.subr.mxu0 0.0
        %8385 = vmatpush1.msra.mxu0 0.0
        %8386 = vmatprep.subr.mxu0 0.0
        %8387 = vmatpush1.msra.mxu0 0.0
        %8388 = vmatprep.subr.mxu0 0.0
        %8389 = vmatpush1.msra.mxu0 0.0
        %8390 = vmatprep.subr.mxu0 0.0
        %8391 = vmatpush1.msra.mxu0 0.0
        %8392 = vmatprep.subr.mxu0 0.0
        %8393 = vmatpush1.msra.mxu0 0.0
        %8394 = vmatprep.subr.mxu0 0.0
        %8395 = vmatpush1.msra.mxu0 0.0
        %8396 = vmatprep.subr.mxu0 0.0
        %8397 = vmatpush1.msra.mxu0 0.0
        %8398 = vmatprep.subr.mxu0 0.0
        %8399 = vmatpush1.msra.mxu0 0.0
        %8400 = vmatprep.subr.mxu0 0.0
        %8401 = vmatpush1.msra.mxu0 0.0
        %8402 = vmatprep.subr.mxu0 0.0
        %8403 = vmatpush1.msra.mxu0 0.0
        %8404 = vmatprep.subr.mxu0 0.0
        %8405 = vmatpush1.msra.mxu0 0.0
        %8406 = vmatprep.subr.mxu0 0.0
        %8407 = vmatpush1.msra.mxu0 0.0
        %8408 = vmatprep.subr.mxu0 0.0
        %8409 = vmatpush1.msra.mxu0 0.0
        %8410 = vmatprep.mubr.f32.mxu0 0.0
        %v8411 = vand.u32 %v289, 4294901760
        %8412 = vmatmul.mubr.f32.gmra.mrb[0].mxu0 %v8411
        %v8413 = vpop.f32.mrb[0].mxu0
        %v8414 = vadd.f32 %v8302, %v8413
        %v8415 = vpop.f32.mrb[0].mxu0
        %v8416 = vadd.f32 %v8304, %v8415
        %8417 = vdwg.mxu0
        %v8418 = vand.u32 %v1675, 4294901760
        %v8419 = vsub.f32 %v1675, %v8418
        %8420 = vmatprep.subr.mxu0 %v8419
        %v8421 = vand.u32 %v1674, 4294901760
        %v8422 = vsub.f32 %v1674, %v8421
        %8423 = vmatpush1.msra.mxu0 %v8422
        %v8424 = vand.u32 %v1677, 4294901760
        %v8425 = vsub.f32 %v1677, %v8424
        %8426 = vmatprep.subr.mxu0 %v8425
        %v8427 = vand.u32 %v1676, 4294901760
        %v8428 = vsub.f32 %v1676, %v8427
        %8429 = vmatpush1.msra.mxu0 %v8428
        %v8430 = vand.u32 %v1679, 4294901760
        %v8431 = vsub.f32 %v1679, %v8430
        %8432 = vmatprep.subr.mxu0 %v8431
        %v8433 = vand.u32 %v1678, 4294901760
        %v8434 = vsub.f32 %v1678, %v8433
        %8435 = vmatpush1.msra.mxu0 %v8434
        %v8436 = vand.u32 %v1681, 4294901760
        %v8437 = vsub.f32 %v1681, %v8436
        %8438 = vmatprep.subr.mxu0 %v8437
        %v8439 = vand.u32 %v1680, 4294901760
        %v8440 = vsub.f32 %v1680, %v8439
        %8441 = vmatpush1.msra.mxu0 %v8440
        %8442 = vmatprep.subr.mxu0 0.0
        %8443 = vmatpush1.msra.mxu0 0.0
        %8444 = vmatprep.subr.mxu0 0.0
        %8445 = vmatpush1.msra.mxu0 0.0
        %8446 = vmatprep.subr.mxu0 0.0
        %8447 = vmatpush1.msra.mxu0 0.0
        %8448 = vmatprep.subr.mxu0 0.0
        %8449 = vmatpush1.msra.mxu0 0.0
        %8450 = vmatprep.subr.mxu0 0.0
        %8451 = vmatpush1.msra.mxu0 0.0
        %8452 = vmatprep.subr.mxu0 0.0
        %8453 = vmatpush1.msra.mxu0 0.0
        %8454 = vmatprep.subr.mxu0 0.0
        %8455 = vmatpush1.msra.mxu0 0.0
        %8456 = vmatprep.subr.mxu0 0.0
        %8457 = vmatpush1.msra.mxu0 0.0
        %8458 = vmatprep.subr.mxu0 0.0
        %8459 = vmatpush1.msra.mxu0 0.0
        %8460 = vmatprep.subr.mxu0 0.0
        %8461 = vmatpush1.msra.mxu0 0.0
        %8462 = vmatprep.subr.mxu0 0.0
        %8463 = vmatpush1.msra.mxu0 0.0
        %8464 = vmatprep.subr.mxu0 0.0
        %8465 = vmatpush1.msra.mxu0 0.0
        %8466 = vmatprep.subr.mxu0 0.0
        %8467 = vmatpush1.msra.mxu0 0.0
        %8468 = vmatprep.subr.mxu0 0.0
        %8469 = vmatpush1.msra.mxu0 0.0
        %8470 = vmatprep.subr.mxu0 0.0
        %8471 = vmatpush1.msra.mxu0 0.0
        %8472 = vmatprep.subr.mxu0 0.0
        %8473 = vmatpush1.msra.mxu0 0.0
        %8474 = vmatprep.subr.mxu0 0.0
        %8475 = vmatpush1.msra.mxu0 0.0
        %8476 = vmatprep.subr.mxu0 0.0
        %8477 = vmatpush1.msra.mxu0 0.0
        %8478 = vmatprep.subr.mxu0 0.0
        %8479 = vmatpush1.msra.mxu0 0.0
        %8480 = vmatprep.subr.mxu0 0.0
        %8481 = vmatpush1.msra.mxu0 0.0
        %8482 = vmatprep.subr.mxu0 0.0
        %8483 = vmatpush1.msra.mxu0 0.0
        %8484 = vmatprep.subr.mxu0 0.0
        %8485 = vmatpush1.msra.mxu0 0.0
        %8486 = vmatprep.subr.mxu0 0.0
        %8487 = vmatpush1.msra.mxu0 0.0
        %8488 = vmatprep.subr.mxu0 0.0
        %8489 = vmatpush1.msra.mxu0 0.0
        %8490 = vmatprep.subr.mxu0 0.0
        %8491 = vmatpush1.msra.mxu0 0.0
        %8492 = vmatprep.subr.mxu0 0.0
        %8493 = vmatpush1.msra.mxu0 0.0
        %8494 = vmatprep.subr.mxu0 0.0
        %8495 = vmatpush1.msra.mxu0 0.0
        %8496 = vmatprep.subr.mxu0 0.0
        %8497 = vmatpush1.msra.mxu0 0.0
        %8498 = vmatprep.mubr.f32.mxu0 0.0
        %v8499 = vand.u32 %v289, 4294901760
        %v8500 = vsub.f32 %v289, %v8499
        %8501 = vmatmul.mubr.f32.gmra.mrb[0].mxu0 %v8500
        %v8502 = vpop.f32.mrb[0].mxu0
        %v8503 = vadd.f32 %v8414, %v8502
        %v8504 = vpop.f32.mrb[0].mxu0
        %v8505 = vadd.f32 %v8416, %v8504
        %8506 = vdwg.mxu0
        %v8507 = vand.u32 %v1675, 4294901760
        %8508 = vmatprep.subr.mxu0 %v8507
        %v8509 = vand.u32 %v1674, 4294901760
        %8510 = vmatpush1.msra.mxu0 %v8509
        %v8511 = vand.u32 %v1677, 4294901760
        %8512 = vmatprep.subr.mxu0 %v8511
        %v8513 = vand.u32 %v1676, 4294901760
        %8514 = vmatpush1.msra.mxu0 %v8513
        %v8515 = vand.u32 %v1679, 4294901760
        %8516 = vmatprep.subr.mxu0 %v8515
        %v8517 = vand.u32 %v1678, 4294901760
        %8518 = vmatpush1.msra.mxu0 %v8517
        %v8519 = vand.u32 %v1681, 4294901760
        %8520 = vmatprep.subr.mxu0 %v8519
        %v8521 = vand.u32 %v1680, 4294901760
        %8522 = vmatpush1.msra.mxu0 %v8521
        %8523 = vmatprep.subr.mxu0 0.0
        %8524 = vmatpush1.msra.mxu0 0.0
        %8525 = vmatprep.subr.mxu0 0.0
        %8526 = vmatpush1.msra.mxu0 0.0
        %8527 = vmatprep.subr.mxu0 0.0
        %8528 = vmatpush1.msra.mxu0 0.0
        %8529 = vmatprep.subr.mxu0 0.0
        %8530 = vmatpush1.msra.mxu0 0.0
        %8531 = vmatprep.subr.mxu0 0.0
        %8532 = vmatpush1.msra.mxu0 0.0
        %8533 = vmatprep.subr.mxu0 0.0
        %8534 = vmatpush1.msra.mxu0 0.0
        %8535 = vmatprep.subr.mxu0 0.0
        %8536 = vmatpush1.msra.mxu0 0.0
        %8537 = vmatprep.subr.mxu0 0.0
        %8538 = vmatpush1.msra.mxu0 0.0
        %8539 = vmatprep.subr.mxu0 0.0
        %8540 = vmatpush1.msra.mxu0 0.0
        %8541 = vmatprep.subr.mxu0 0.0
        %8542 = vmatpush1.msra.mxu0 0.0
        %8543 = vmatprep.subr.mxu0 0.0
        %8544 = vmatpush1.msra.mxu0 0.0
        %8545 = vmatprep.subr.mxu0 0.0
        %8546 = vmatpush1.msra.mxu0 0.0
        %8547 = vmatprep.subr.mxu0 0.0
        %8548 = vmatpush1.msra.mxu0 0.0
        %8549 = vmatprep.subr.mxu0 0.0
        %8550 = vmatpush1.msra.mxu0 0.0
        %8551 = vmatprep.subr.mxu0 0.0
        %8552 = vmatpush1.msra.mxu0 0.0
        %8553 = vmatprep.subr.mxu0 0.0
        %8554 = vmatpush1.msra.mxu0 0.0
        %8555 = vmatprep.subr.mxu0 0.0
        %8556 = vmatpush1.msra.mxu0 0.0
        %8557 = vmatprep.subr.mxu0 0.0
        %8558 = vmatpush1.msra.mxu0 0.0
        %8559 = vmatprep.subr.mxu0 0.0
        %8560 = vmatpush1.msra.mxu0 0.0
        %8561 = vmatprep.subr.mxu0 0.0
        %8562 = vmatpush1.msra.mxu0 0.0
        %8563 = vmatprep.subr.mxu0 0.0
        %8564 = vmatpush1.msra.mxu0 0.0
        %8565 = vmatprep.subr.mxu0 0.0
        %8566 = vmatpush1.msra.mxu0 0.0
        %8567 = vmatprep.subr.mxu0 0.0
        %8568 = vmatpush1.msra.mxu0 0.0
        %8569 = vmatprep.subr.mxu0 0.0
        %8570 = vmatpush1.msra.mxu0 0.0
        %8571 = vmatprep.subr.mxu0 0.0
        %8572 = vmatpush1.msra.mxu0 0.0
        %8573 = vmatprep.subr.mxu0 0.0
        %8574 = vmatpush1.msra.mxu0 0.0
        %8575 = vmatprep.subr.mxu0 0.0
        %8576 = vmatpush1.msra.mxu0 0.0
        %8577 = vmatprep.subr.mxu0 0.0
        %8578 = vmatpush1.msra.mxu0 0.0
        %8579 = vmatprep.mubr.f32.mxu0 0.0
        %v8580 = vand.u32 %v289, 4294901760
        %v8581 = vsub.f32 %v289, %v8580
        %v8582 = vand.u32 %v8581, 4294901760
        %8583 = vmatmul.mubr.f32.gmra.mrb[0].mxu0 %v8582
        %v8584 = vpop.f32.mrb[0].mxu0
        %v8585 = vadd.f32 %v8503, %v8584
        %v8586 = vpop.f32.mrb[0].mxu0
        %v8587 = vadd.f32 %v8505, %v8586
        %8588 = vdwg.mxu0
        %v8589 = vand.u32 %v1675, 4294901760
        %v8590 = vsub.f32 %v1675, %v8589
        %v8591 = vand.u32 %v8590, 4294901760
        %8592 = vmatprep.subr.mxu0 %v8591
        %v8593 = vand.u32 %v1674, 4294901760
        %v8594 = vsub.f32 %v1674, %v8593
        %v8595 = vand.u32 %v8594, 4294901760
        %8596 = vmatpush1.msra.mxu0 %v8595
        %v8597 = vand.u32 %v1677, 4294901760
        %v8598 = vsub.f32 %v1677, %v8597
        %v8599 = vand.u32 %v8598, 4294901760
        %8600 = vmatprep.subr.mxu0 %v8599
        %v8601 = vand.u32 %v1676, 4294901760
        %v8602 = vsub.f32 %v1676, %v8601
        %v8603 = vand.u32 %v8602, 4294901760
        %8604 = vmatpush1.msra.mxu0 %v8603
        %v8605 = vand.u32 %v1679, 4294901760
        %v8606 = vsub.f32 %v1679, %v8605
        %v8607 = vand.u32 %v8606, 4294901760
        %8608 = vmatprep.subr.mxu0 %v8607
        %v8609 = vand.u32 %v1678, 4294901760
        %v8610 = vsub.f32 %v1678, %v8609
        %v8611 = vand.u32 %v8610, 4294901760
        %8612 = vmatpush1.msra.mxu0 %v8611
        %v8613 = vand.u32 %v1681, 4294901760
        %v8614 = vsub.f32 %v1681, %v8613
        %v8615 = vand.u32 %v8614, 4294901760
        %8616 = vmatprep.subr.mxu0 %v8615
        %v8617 = vand.u32 %v1680, 4294901760
        %v8618 = vsub.f32 %v1680, %v8617
        %v8619 = vand.u32 %v8618, 4294901760
        %8620 = vmatpush1.msra.mxu0 %v8619
        %8621 = vmatprep.subr.mxu0 0.0
        %8622 = vmatpush1.msra.mxu0 0.0
        %8623 = vmatprep.subr.mxu0 0.0
        %8624 = vmatpush1.msra.mxu0 0.0
        %8625 = vmatprep.subr.mxu0 0.0
        %8626 = vmatpush1.msra.mxu0 0.0
        %8627 = vmatprep.subr.mxu0 0.0
        %8628 = vmatpush1.msra.mxu0 0.0
        %8629 = vmatprep.subr.mxu0 0.0
        %8630 = vmatpush1.msra.mxu0 0.0
        %8631 = vmatprep.subr.mxu0 0.0
        %8632 = vmatpush1.msra.mxu0 0.0
        %8633 = vmatprep.subr.mxu0 0.0
        %8634 = vmatpush1.msra.mxu0 0.0
        %8635 = vmatprep.subr.mxu0 0.0
        %8636 = vmatpush1.msra.mxu0 0.0
        %8637 = vmatprep.subr.mxu0 0.0
        %8638 = vmatpush1.msra.mxu0 0.0
        %8639 = vmatprep.subr.mxu0 0.0
        %8640 = vmatpush1.msra.mxu0 0.0
        %8641 = vmatprep.subr.mxu0 0.0
        %8642 = vmatpush1.msra.mxu0 0.0
        %8643 = vmatprep.subr.mxu0 0.0
        %8644 = vmatpush1.msra.mxu0 0.0
        %8645 = vmatprep.subr.mxu0 0.0
        %8646 = vmatpush1.msra.mxu0 0.0
        %8647 = vmatprep.subr.mxu0 0.0
        %8648 = vmatpush1.msra.mxu0 0.0
        %8649 = vmatprep.subr.mxu0 0.0
        %8650 = vmatpush1.msra.mxu0 0.0
        %8651 = vmatprep.subr.mxu0 0.0
        %8652 = vmatpush1.msra.mxu0 0.0
        %8653 = vmatprep.subr.mxu0 0.0
        %8654 = vmatpush1.msra.mxu0 0.0
        %8655 = vmatprep.subr.mxu0 0.0
        %8656 = vmatpush1.msra.mxu0 0.0
        %8657 = vmatprep.subr.mxu0 0.0
        %8658 = vmatpush1.msra.mxu0 0.0
        %8659 = vmatprep.subr.mxu0 0.0
        %8660 = vmatpush1.msra.mxu0 0.0
        %8661 = vmatprep.subr.mxu0 0.0
        %8662 = vmatpush1.msra.mxu0 0.0
        %8663 = vmatprep.subr.mxu0 0.0
        %8664 = vmatpush1.msra.mxu0 0.0
        %8665 = vmatprep.subr.mxu0 0.0
        %8666 = vmatpush1.msra.mxu0 0.0
        %8667 = vmatprep.subr.mxu0 0.0
        %8668 = vmatpush1.msra.mxu0 0.0
        %8669 = vmatprep.subr.mxu0 0.0
        %8670 = vmatpush1.msra.mxu0 0.0
        %8671 = vmatprep.subr.mxu0 0.0
        %8672 = vmatpush1.msra.mxu0 0.0
        %8673 = vmatprep.subr.mxu0 0.0
        %8674 = vmatpush1.msra.mxu0 0.0
        %8675 = vmatprep.subr.mxu0 0.0
        %8676 = vmatpush1.msra.mxu0 0.0
        %8677 = vmatprep.mubr.f32.mxu0 0.0
        %v8678 = vand.u32 %v289, 4294901760
        %8679 = vmatmul.mubr.f32.gmra.mrb[0].mxu0 %v8678
        %v8680 = vpop.f32.mrb[0].mxu0
        %v8681 = vadd.f32 %v8585, %v8680
        %v8682 = vpop.f32.mrb[0].mxu0
        %v8683 = vadd.f32 %v8587, %v8682
        %8684 = vdwg.mxu0
        %v8685 = vand.u32 %v1675, 4294901760
        %8686 = vmatprep.subr.mxu0 %v8685
        %v8687 = vand.u32 %v1674, 4294901760
        %8688 = vmatpush1.msra.mxu0 %v8687
        %v8689 = vand.u32 %v1677, 4294901760
        %8690 = vmatprep.subr.mxu0 %v8689
        %v8691 = vand.u32 %v1676, 4294901760
        %8692 = vmatpush1.msra.mxu0 %v8691
        %v8693 = vand.u32 %v1679, 4294901760
        %8694 = vmatprep.subr.mxu0 %v8693
        %v8695 = vand.u32 %v1678, 4294901760
        %8696 = vmatpush1.msra.mxu0 %v8695
        %v8697 = vand.u32 %v1681, 4294901760
        %8698 = vmatprep.subr.mxu0 %v8697
        %v8699 = vand.u32 %v1680, 4294901760
        %8700 = vmatpush1.msra.mxu0 %v8699
        %8701 = vmatprep.subr.mxu0 0.0
        %8702 = vmatpush1.msra.mxu0 0.0
        %8703 = vmatprep.subr.mxu0 0.0
        %8704 = vmatpush1.msra.mxu0 0.0
        %8705 = vmatprep.subr.mxu0 0.0
        %8706 = vmatpush1.msra.mxu0 0.0
        %8707 = vmatprep.subr.mxu0 0.0
        %8708 = vmatpush1.msra.mxu0 0.0
        %8709 = vmatprep.subr.mxu0 0.0
        %8710 = vmatpush1.msra.mxu0 0.0
        %8711 = vmatprep.subr.mxu0 0.0
        %8712 = vmatpush1.msra.mxu0 0.0
        %8713 = vmatprep.subr.mxu0 0.0
        %8714 = vmatpush1.msra.mxu0 0.0
        %8715 = vmatprep.subr.mxu0 0.0
        %8716 = vmatpush1.msra.mxu0 0.0
        %8717 = vmatprep.subr.mxu0 0.0
        %8718 = vmatpush1.msra.mxu0 0.0
        %8719 = vmatprep.subr.mxu0 0.0
        %8720 = vmatpush1.msra.mxu0 0.0
        %8721 = vmatprep.subr.mxu0 0.0
        %8722 = vmatpush1.msra.mxu0 0.0
        %8723 = vmatprep.subr.mxu0 0.0
        %8724 = vmatpush1.msra.mxu0 0.0
        %8725 = vmatprep.subr.mxu0 0.0
        %8726 = vmatpush1.msra.mxu0 0.0
        %8727 = vmatprep.subr.mxu0 0.0
        %8728 = vmatpush1.msra.mxu0 0.0
        %8729 = vmatprep.subr.mxu0 0.0
        %8730 = vmatpush1.msra.mxu0 0.0
        %8731 = vmatprep.subr.mxu0 0.0
        %8732 = vmatpush1.msra.mxu0 0.0
        %8733 = vmatprep.subr.mxu0 0.0
        %8734 = vmatpush1.msra.mxu0 0.0
        %8735 = vmatprep.subr.mxu0 0.0
        %8736 = vmatpush1.msra.mxu0 0.0
        %8737 = vmatprep.subr.mxu0 0.0
        %8738 = vmatpush1.msra.mxu0 0.0
        %8739 = vmatprep.subr.mxu0 0.0
        %8740 = vmatpush1.msra.mxu0 0.0
        %8741 = vmatprep.subr.mxu0 0.0
        %8742 = vmatpush1.msra.mxu0 0.0
        %8743 = vmatprep.subr.mxu0 0.0
        %8744 = vmatpush1.msra.mxu0 0.0
        %8745 = vmatprep.subr.mxu0 0.0
        %8746 = vmatpush1.msra.mxu0 0.0
        %8747 = vmatprep.subr.mxu0 0.0
        %8748 = vmatpush1.msra.mxu0 0.0
        %8749 = vmatprep.subr.mxu0 0.0
        %8750 = vmatpush1.msra.mxu0 0.0
        %8751 = vmatprep.subr.mxu0 0.0
        %8752 = vmatpush1.msra.mxu0 0.0
        %8753 = vmatprep.subr.mxu0 0.0
        %8754 = vmatpush1.msra.mxu0 0.0
        %8755 = vmatprep.subr.mxu0 0.0
        %8756 = vmatpush1.msra.mxu0 0.0
        %8757 = vmatprep.mubr.f32.mxu0 0.0
        %v8758 = vand.u32 %v289, 4294901760
        %8759 = vmatmul.mubr.f32.gmra.mrb[0].mxu0 %v8758
        %v8760 = vpop.f32.mrb[0].mxu0
        %v8761 = vadd.f32 %v8681, %v8760
        %v8762 = vpop.f32.mrb[0].mxu0
        %v8763 = vadd.f32 %v8683, %v8762
        %8764 = vdwg.mxu0
        %v8765 = vand.u32 %v1683, 4294901760
        %8766 = vmatprep.subr.mxu0 %v8765
        %v8767 = vand.u32 %v1682, 4294901760
        %8768 = vmatpush1.msra.mxu0 %v8767
        %v8769 = vand.u32 %v1685, 4294901760
        %8770 = vmatprep.subr.mxu0 %v8769
        %v8771 = vand.u32 %v1684, 4294901760
        %8772 = vmatpush1.msra.mxu0 %v8771
        %v8773 = vand.u32 %v1687, 4294901760
        %8774 = vmatprep.subr.mxu0 %v8773
        %v8775 = vand.u32 %v1686, 4294901760
        %8776 = vmatpush1.msra.mxu0 %v8775
        %v8777 = vand.u32 %v1689, 4294901760
        %8778 = vmatprep.subr.mxu0 %v8777
        %v8779 = vand.u32 %v1688, 4294901760
        %8780 = vmatpush1.msra.mxu0 %v8779
        %8781 = vmatprep.subr.mxu0 0.0
        %8782 = vmatpush1.msra.mxu0 0.0
        %8783 = vmatprep.subr.mxu0 0.0
        %8784 = vmatpush1.msra.mxu0 0.0
        %8785 = vmatprep.subr.mxu0 0.0
        %8786 = vmatpush1.msra.mxu0 0.0
        %8787 = vmatprep.subr.mxu0 0.0
        %8788 = vmatpush1.msra.mxu0 0.0
        %8789 = vmatprep.subr.mxu0 0.0
        %8790 = vmatpush1.msra.mxu0 0.0
        %8791 = vmatprep.subr.mxu0 0.0
        %8792 = vmatpush1.msra.mxu0 0.0
        %8793 = vmatprep.subr.mxu0 0.0
        %8794 = vmatpush1.msra.mxu0 0.0
        %8795 = vmatprep.subr.mxu0 0.0
        %8796 = vmatpush1.msra.mxu0 0.0
        %8797 = vmatprep.subr.mxu0 0.0
        %8798 = vmatpush1.msra.mxu0 0.0
        %8799 = vmatprep.subr.mxu0 0.0
        %8800 = vmatpush1.msra.mxu0 0.0
        %8801 = vmatprep.subr.mxu0 0.0
        %8802 = vmatpush1.msra.mxu0 0.0
        %8803 = vmatprep.subr.mxu0 0.0
        %8804 = vmatpush1.msra.mxu0 0.0
        %8805 = vmatprep.subr.mxu0 0.0
        %8806 = vmatpush1.msra.mxu0 0.0
        %8807 = vmatprep.subr.mxu0 0.0
        %8808 = vmatpush1.msra.mxu0 0.0
        %8809 = vmatprep.subr.mxu0 0.0
        %8810 = vmatpush1.msra.mxu0 0.0
        %8811 = vmatprep.subr.mxu0 0.0
        %8812 = vmatpush1.msra.mxu0 0.0
        %8813 = vmatprep.subr.mxu0 0.0
        %8814 = vmatpush1.msra.mxu0 0.0
        %8815 = vmatprep.subr.mxu0 0.0
        %8816 = vmatpush1.msra.mxu0 0.0
        %8817 = vmatprep.subr.mxu0 0.0
        %8818 = vmatpush1.msra.mxu0 0.0
        %8819 = vmatprep.subr.mxu0 0.0
        %8820 = vmatpush1.msra.mxu0 0.0
        %8821 = vmatprep.subr.mxu0 0.0
        %8822 = vmatpush1.msra.mxu0 0.0
        %8823 = vmatprep.subr.mxu0 0.0
        %8824 = vmatpush1.msra.mxu0 0.0
        %8825 = vmatprep.subr.mxu0 0.0
        %8826 = vmatpush1.msra.mxu0 0.0
        %8827 = vmatprep.subr.mxu0 0.0
        %8828 = vmatpush1.msra.mxu0 0.0
        %8829 = vmatprep.subr.mxu0 0.0
        %8830 = vmatpush1.msra.mxu0 0.0
        %8831 = vmatprep.subr.mxu0 0.0
        %8832 = vmatpush1.msra.mxu0 0.0
        %8833 = vmatprep.subr.mxu0 0.0
        %8834 = vmatpush1.msra.mxu0 0.0
        %8835 = vmatprep.subr.mxu0 0.0
        %8836 = vmatpush1.msra.mxu0 0.0
        %8837 = vmatprep.mubr.f32.mxu0 0.0
        %v8838 = vand.u32 %v292, 4294901760
        %v8839 = vsub.f32 %v292, %v8838
        %v8840 = vand.u32 %v8839, 4294901760
        %v8841 = vsub.f32 %v8839, %v8840
        %v8842 = vand.u32 %v8841, 4294901760
        %8843 = vmatmul.mubr.f32.gmra.mrb[0].mxu0 %v8842
        %v8844 = vpop.f32.mrb[0].mxu0
        %v8845 = vadd.f32 0.0, %v8844
        %v8846 = vpop.f32.mrb[0].mxu0
        %v8847 = vadd.f32 0.0, %v8846
        %8848 = vdwg.mxu0
        %v8849 = vand.u32 %v1683, 4294901760
        %v8850 = vsub.f32 %v1683, %v8849
        %v8851 = vand.u32 %v8850, 4294901760
        %v8852 = vsub.f32 %v8850, %v8851
        %v8853 = vand.u32 %v8852, 4294901760
        %8854 = vmatprep.subr.mxu0 %v8853
        %v8855 = vand.u32 %v1682, 4294901760
        %v8856 = vsub.f32 %v1682, %v8855
        %v8857 = vand.u32 %v8856, 4294901760
        %v8858 = vsub.f32 %v8856, %v8857
        %v8859 = vand.u32 %v8858, 4294901760
        %8860 = vmatpush1.msra.mxu0 %v8859
        %v8861 = vand.u32 %v1685, 4294901760
        %v8862 = vsub.f32 %v1685, %v8861
        %v8863 = vand.u32 %v8862, 4294901760
        %v8864 = vsub.f32 %v8862, %v8863
        %v8865 = vand.u32 %v8864, 4294901760
        %8866 = vmatprep.subr.mxu0 %v8865
        %v8867 = vand.u32 %v1684, 4294901760
        %v8868 = vsub.f32 %v1684, %v8867
        %v8869 = vand.u32 %v8868, 4294901760
        %v8870 = vsub.f32 %v8868, %v8869
        %v8871 = vand.u32 %v8870, 4294901760
        %8872 = vmatpush1.msra.mxu0 %v8871
        %v8873 = vand.u32 %v1687, 4294901760
        %v8874 = vsub.f32 %v1687, %v8873
        %v8875 = vand.u32 %v8874, 4294901760
        %v8876 = vsub.f32 %v8874, %v8875
        %v8877 = vand.u32 %v8876, 4294901760
        %8878 = vmatprep.subr.mxu0 %v8877
        %v8879 = vand.u32 %v1686, 4294901760
        %v8880 = vsub.f32 %v1686, %v8879
        %v8881 = vand.u32 %v8880, 4294901760
        %v8882 = vsub.f32 %v8880, %v8881
        %v8883 = vand.u32 %v8882, 4294901760
        %8884 = vmatpush1.msra.mxu0 %v8883
        %v8885 = vand.u32 %v1689, 4294901760
        %v8886 = vsub.f32 %v1689, %v8885
        %v8887 = vand.u32 %v8886, 4294901760
        %v8888 = vsub.f32 %v8886, %v8887
        %v8889 = vand.u32 %v8888, 4294901760
        %8890 = vmatprep.subr.mxu0 %v8889
        %v8891 = vand.u32 %v1688, 4294901760
        %v8892 = vsub.f32 %v1688, %v8891
        %v8893 = vand.u32 %v8892, 4294901760
        %v8894 = vsub.f32 %v8892, %v8893
        %v8895 = vand.u32 %v8894, 4294901760
        %8896 = vmatpush1.msra.mxu0 %v8895
        %8897 = vmatprep.subr.mxu0 0.0
        %8898 = vmatpush1.msra.mxu0 0.0
        %8899 = vmatprep.subr.mxu0 0.0
        %8900 = vmatpush1.msra.mxu0 0.0
        %8901 = vmatprep.subr.mxu0 0.0
        %8902 = vmatpush1.msra.mxu0 0.0
        %8903 = vmatprep.subr.mxu0 0.0
        %8904 = vmatpush1.msra.mxu0 0.0
        %8905 = vmatprep.subr.mxu0 0.0
        %8906 = vmatpush1.msra.mxu0 0.0
        %8907 = vmatprep.subr.mxu0 0.0
        %8908 = vmatpush1.msra.mxu0 0.0
        %8909 = vmatprep.subr.mxu0 0.0
        %8910 = vmatpush1.msra.mxu0 0.0
        %8911 = vmatprep.subr.mxu0 0.0
        %8912 = vmatpush1.msra.mxu0 0.0
        %8913 = vmatprep.subr.mxu0 0.0
        %8914 = vmatpush1.msra.mxu0 0.0
        %8915 = vmatprep.subr.mxu0 0.0
        %8916 = vmatpush1.msra.mxu0 0.0
        %8917 = vmatprep.subr.mxu0 0.0
        %8918 = vmatpush1.msra.mxu0 0.0
        %8919 = vmatprep.subr.mxu0 0.0
        %8920 = vmatpush1.msra.mxu0 0.0
        %8921 = vmatprep.subr.mxu0 0.0
        %8922 = vmatpush1.msra.mxu0 0.0
        %8923 = vmatprep.subr.mxu0 0.0
        %8924 = vmatpush1.msra.mxu0 0.0
        %8925 = vmatprep.subr.mxu0 0.0
        %8926 = vmatpush1.msra.mxu0 0.0
        %8927 = vmatprep.subr.mxu0 0.0
        %8928 = vmatpush1.msra.mxu0 0.0
        %8929 = vmatprep.subr.mxu0 0.0
        %8930 = vmatpush1.msra.mxu0 0.0
        %8931 = vmatprep.subr.mxu0 0.0
        %8932 = vmatpush1.msra.mxu0 0.0
        %8933 = vmatprep.subr.mxu0 0.0
        %8934 = vmatpush1.msra.mxu0 0.0
        %8935 = vmatprep.subr.mxu0 0.0
        %8936 = vmatpush1.msra.mxu0 0.0
        %8937 = vmatprep.subr.mxu0 0.0
        %8938 = vmatpush1.msra.mxu0 0.0
        %8939 = vmatprep.subr.mxu0 0.0
        %8940 = vmatpush1.msra.mxu0 0.0
        %8941 = vmatprep.subr.mxu0 0.0
        %8942 = vmatpush1.msra.mxu0 0.0
        %8943 = vmatprep.subr.mxu0 0.0
        %8944 = vmatpush1.msra.mxu0 0.0
        %8945 = vmatprep.subr.mxu0 0.0
        %8946 = vmatpush1.msra.mxu0 0.0
        %8947 = vmatprep.subr.mxu0 0.0
        %8948 = vmatpush1.msra.mxu0 0.0
        %8949 = vmatprep.subr.mxu0 0.0
        %8950 = vmatpush1.msra.mxu0 0.0
        %8951 = vmatprep.subr.mxu0 0.0
        %8952 = vmatpush1.msra.mxu0 0.0
        %8953 = vmatprep.mubr.f32.mxu0 0.0
        %v8954 = vand.u32 %v292, 4294901760
        %8955 = vmatmul.mubr.f32.gmra.mrb[0].mxu0 %v8954
        %v8956 = vpop.f32.mrb[0].mxu0
        %v8957 = vadd.f32 %v8845, %v8956
        %v8958 = vpop.f32.mrb[0].mxu0
        %v8959 = vadd.f32 %v8847, %v8958
        %8960 = vdwg.mxu0
        %v8961 = vand.u32 %v1683, 4294901760
        %v8962 = vsub.f32 %v1683, %v8961
        %8963 = vmatprep.subr.mxu0 %v8962
        %v8964 = vand.u32 %v1682, 4294901760
        %v8965 = vsub.f32 %v1682, %v8964
        %8966 = vmatpush1.msra.mxu0 %v8965
        %v8967 = vand.u32 %v1685, 4294901760
        %v8968 = vsub.f32 %v1685, %v8967
        %8969 = vmatprep.subr.mxu0 %v8968
        %v8970 = vand.u32 %v1684, 4294901760
        %v8971 = vsub.f32 %v1684, %v8970
        %8972 = vmatpush1.msra.mxu0 %v8971
        %v8973 = vand.u32 %v1687, 4294901760
        %v8974 = vsub.f32 %v1687, %v8973
        %8975 = vmatprep.subr.mxu0 %v8974
        %v8976 = vand.u32 %v1686, 4294901760
        %v8977 = vsub.f32 %v1686, %v8976
        %8978 = vmatpush1.msra.mxu0 %v8977
        %v8979 = vand.u32 %v1689, 4294901760
        %v8980 = vsub.f32 %v1689, %v8979
        %8981 = vmatprep.subr.mxu0 %v8980
        %v8982 = vand.u32 %v1688, 4294901760
        %v8983 = vsub.f32 %v1688, %v8982
        %8984 = vmatpush1.msra.mxu0 %v8983
        %8985 = vmatprep.subr.mxu0 0.0
        %8986 = vmatpush1.msra.mxu0 0.0
        %8987 = vmatprep.subr.mxu0 0.0
        %8988 = vmatpush1.msra.mxu0 0.0
        %8989 = vmatprep.subr.mxu0 0.0
        %8990 = vmatpush1.msra.mxu0 0.0
        %8991 = vmatprep.subr.mxu0 0.0
        %8992 = vmatpush1.msra.mxu0 0.0
        %8993 = vmatprep.subr.mxu0 0.0
        %8994 = vmatpush1.msra.mxu0 0.0
        %8995 = vmatprep.subr.mxu0 0.0
        %8996 = vmatpush1.msra.mxu0 0.0
        %8997 = vmatprep.subr.mxu0 0.0
        %8998 = vmatpush1.msra.mxu0 0.0
        %8999 = vmatprep.subr.mxu0 0.0
        %9000 = vmatpush1.msra.mxu0 0.0
        %9001 = vmatprep.subr.mxu0 0.0
        %9002 = vmatpush1.msra.mxu0 0.0
        %9003 = vmatprep.subr.mxu0 0.0
        %9004 = vmatpush1.msra.mxu0 0.0
        %9005 = vmatprep.subr.mxu0 0.0
        %9006 = vmatpush1.msra.mxu0 0.0
        %9007 = vmatprep.subr.mxu0 0.0
        %9008 = vmatpush1.msra.mxu0 0.0
        %9009 = vmatprep.subr.mxu0 0.0
        %9010 = vmatpush1.msra.mxu0 0.0
        %9011 = vmatprep.subr.mxu0 0.0
        %9012 = vmatpush1.msra.mxu0 0.0
        %9013 = vmatprep.subr.mxu0 0.0
        %9014 = vmatpush1.msra.mxu0 0.0
        %9015 = vmatprep.subr.mxu0 0.0
        %9016 = vmatpush1.msra.mxu0 0.0
        %9017 = vmatprep.subr.mxu0 0.0
        %9018 = vmatpush1.msra.mxu0 0.0
        %9019 = vmatprep.subr.mxu0 0.0
        %9020 = vmatpush1.msra.mxu0 0.0
        %9021 = vmatprep.subr.mxu0 0.0
        %9022 = vmatpush1.msra.mxu0 0.0
        %9023 = vmatprep.subr.mxu0 0.0
        %9024 = vmatpush1.msra.mxu0 0.0
        %9025 = vmatprep.subr.mxu0 0.0
        %9026 = vmatpush1.msra.mxu0 0.0
        %9027 = vmatprep.subr.mxu0 0.0
        %9028 = vmatpush1.msra.mxu0 0.0
        %9029 = vmatprep.subr.mxu0 0.0
        %9030 = vmatpush1.msra.mxu0 0.0
        %9031 = vmatprep.subr.mxu0 0.0
        %9032 = vmatpush1.msra.mxu0 0.0
        %9033 = vmatprep.subr.mxu0 0.0
        %9034 = vmatpush1.msra.mxu0 0.0
        %9035 = vmatprep.subr.mxu0 0.0
        %9036 = vmatpush1.msra.mxu0 0.0
        %9037 = vmatprep.subr.mxu0 0.0
        %9038 = vmatpush1.msra.mxu0 0.0
        %9039 = vmatprep.subr.mxu0 0.0
        %9040 = vmatpush1.msra.mxu0 0.0
        %9041 = vmatprep.mubr.f32.mxu0 0.0
        %v9042 = vand.u32 %v292, 4294901760
        %v9043 = vsub.f32 %v292, %v9042
        %9044 = vmatmul.mubr.f32.gmra.mrb[0].mxu0 %v9043
        %v9045 = vpop.f32.mrb[0].mxu0
        %v9046 = vadd.f32 %v8957, %v9045
        %v9047 = vpop.f32.mrb[0].mxu0
        %v9048 = vadd.f32 %v8959, %v9047
        %9049 = vdwg.mxu0
        %v9050 = vand.u32 %v1683, 4294901760
        %9051 = vmatprep.subr.mxu0 %v9050
        %v9052 = vand.u32 %v1682, 4294901760
        %9053 = vmatpush1.msra.mxu0 %v9052
        %v9054 = vand.u32 %v1685, 4294901760
        %9055 = vmatprep.subr.mxu0 %v9054
        %v9056 = vand.u32 %v1684, 4294901760
        %9057 = vmatpush1.msra.mxu0 %v9056
        %v9058 = vand.u32 %v1687, 4294901760
        %9059 = vmatprep.subr.mxu0 %v9058
        %v9060 = vand.u32 %v1686, 4294901760
        %9061 = vmatpush1.msra.mxu0 %v9060
        %v9062 = vand.u32 %v1689, 4294901760
        %9063 = vmatprep.subr.mxu0 %v9062
        %v9064 = vand.u32 %v1688, 4294901760
        %9065 = vmatpush1.msra.mxu0 %v9064
        %9066 = vmatprep.subr.mxu0 0.0
        %9067 = vmatpush1.msra.mxu0 0.0
        %9068 = vmatprep.subr.mxu0 0.0
        %9069 = vmatpush1.msra.mxu0 0.0
        %9070 = vmatprep.subr.mxu0 0.0
        %9071 = vmatpush1.msra.mxu0 0.0
        %9072 = vmatprep.subr.mxu0 0.0
        %9073 = vmatpush1.msra.mxu0 0.0
        %9074 = vmatprep.subr.mxu0 0.0
        %9075 = vmatpush1.msra.mxu0 0.0
        %9076 = vmatprep.subr.mxu0 0.0
        %9077 = vmatpush1.msra.mxu0 0.0
        %9078 = vmatprep.subr.mxu0 0.0
        %9079 = vmatpush1.msra.mxu0 0.0
        %9080 = vmatprep.subr.mxu0 0.0
        %9081 = vmatpush1.msra.mxu0 0.0
        %9082 = vmatprep.subr.mxu0 0.0
        %9083 = vmatpush1.msra.mxu0 0.0
        %9084 = vmatprep.subr.mxu0 0.0
        %9085 = vmatpush1.msra.mxu0 0.0
        %9086 = vmatprep.subr.mxu0 0.0
        %9087 = vmatpush1.msra.mxu0 0.0
        %9088 = vmatprep.subr.mxu0 0.0
        %9089 = vmatpush1.msra.mxu0 0.0
        %9090 = vmatprep.subr.mxu0 0.0
        %9091 = vmatpush1.msra.mxu0 0.0
        %9092 = vmatprep.subr.mxu0 0.0
        %9093 = vmatpush1.msra.mxu0 0.0
        %9094 = vmatprep.subr.mxu0 0.0
        %9095 = vmatpush1.msra.mxu0 0.0
        %9096 = vmatprep.subr.mxu0 0.0
        %9097 = vmatpush1.msra.mxu0 0.0
        %9098 = vmatprep.subr.mxu0 0.0
        %9099 = vmatpush1.msra.mxu0 0.0
        %9100 = vmatprep.subr.mxu0 0.0
        %9101 = vmatpush1.msra.mxu0 0.0
        %9102 = vmatprep.subr.mxu0 0.0
        %9103 = vmatpush1.msra.mxu0 0.0
        %9104 = vmatprep.subr.mxu0 0.0
        %9105 = vmatpush1.msra.mxu0 0.0
        %9106 = vmatprep.subr.mxu0 0.0
        %9107 = vmatpush1.msra.mxu0 0.0
        %9108 = vmatprep.subr.mxu0 0.0
        %9109 = vmatpush1.msra.mxu0 0.0
        %9110 = vmatprep.subr.mxu0 0.0
        %9111 = vmatpush1.msra.mxu0 0.0
        %9112 = vmatprep.subr.mxu0 0.0
        %9113 = vmatpush1.msra.mxu0 0.0
        %9114 = vmatprep.subr.mxu0 0.0
        %9115 = vmatpush1.msra.mxu0 0.0
        %9116 = vmatprep.subr.mxu0 0.0
        %9117 = vmatpush1.msra.mxu0 0.0
        %9118 = vmatprep.subr.mxu0 0.0
        %9119 = vmatpush1.msra.mxu0 0.0
        %9120 = vmatprep.subr.mxu0 0.0
        %9121 = vmatpush1.msra.mxu0 0.0
        %9122 = vmatprep.mubr.f32.mxu0 0.0
        %v9123 = vand.u32 %v292, 4294901760
        %v9124 = vsub.f32 %v292, %v9123
        %v9125 = vand.u32 %v9124, 4294901760
        %9126 = vmatmul.mubr.f32.gmra.mrb[0].mxu0 %v9125
        %v9127 = vpop.f32.mrb[0].mxu0
        %v9128 = vadd.f32 %v9046, %v9127
        %v9129 = vpop.f32.mrb[0].mxu0
        %v9130 = vadd.f32 %v9048, %v9129
        %9131 = vdwg.mxu0
        %v9132 = vand.u32 %v1683, 4294901760
        %v9133 = vsub.f32 %v1683, %v9132
        %v9134 = vand.u32 %v9133, 4294901760
        %9135 = vmatprep.subr.mxu0 %v9134
        %v9136 = vand.u32 %v1682, 4294901760
        %v9137 = vsub.f32 %v1682, %v9136
        %v9138 = vand.u32 %v9137, 4294901760
        %9139 = vmatpush1.msra.mxu0 %v9138
        %v9140 = vand.u32 %v1685, 4294901760
        %v9141 = vsub.f32 %v1685, %v9140
        %v9142 = vand.u32 %v9141, 4294901760
        %9143 = vmatprep.subr.mxu0 %v9142
        %v9144 = vand.u32 %v1684, 4294901760
        %v9145 = vsub.f32 %v1684, %v9144
        %v9146 = vand.u32 %v9145, 4294901760
        %9147 = vmatpush1.msra.mxu0 %v9146
        %v9148 = vand.u32 %v1687, 4294901760
        %v9149 = vsub.f32 %v1687, %v9148
        %v9150 = vand.u32 %v9149, 4294901760
        %9151 = vmatprep.subr.mxu0 %v9150
        %v9152 = vand.u32 %v1686, 4294901760
        %v9153 = vsub.f32 %v1686, %v9152
        %v9154 = vand.u32 %v9153, 4294901760
        %9155 = vmatpush1.msra.mxu0 %v9154
        %v9156 = vand.u32 %v1689, 4294901760
        %v9157 = vsub.f32 %v1689, %v9156
        %v9158 = vand.u32 %v9157, 4294901760
        %9159 = vmatprep.subr.mxu0 %v9158
        %v9160 = vand.u32 %v1688, 4294901760
        %v9161 = vsub.f32 %v1688, %v9160
        %v9162 = vand.u32 %v9161, 4294901760
        %9163 = vmatpush1.msra.mxu0 %v9162
        %9164 = vmatprep.subr.mxu0 0.0
        %9165 = vmatpush1.msra.mxu0 0.0
        %9166 = vmatprep.subr.mxu0 0.0
        %9167 = vmatpush1.msra.mxu0 0.0
        %9168 = vmatprep.subr.mxu0 0.0
        %9169 = vmatpush1.msra.mxu0 0.0
        %9170 = vmatprep.subr.mxu0 0.0
        %9171 = vmatpush1.msra.mxu0 0.0
        %9172 = vmatprep.subr.mxu0 0.0
        %9173 = vmatpush1.msra.mxu0 0.0
        %9174 = vmatprep.subr.mxu0 0.0
        %9175 = vmatpush1.msra.mxu0 0.0
        %9176 = vmatprep.subr.mxu0 0.0
        %9177 = vmatpush1.msra.mxu0 0.0
        %9178 = vmatprep.subr.mxu0 0.0
        %9179 = vmatpush1.msra.mxu0 0.0
        %9180 = vmatprep.subr.mxu0 0.0
        %9181 = vmatpush1.msra.mxu0 0.0
        %9182 = vmatprep.subr.mxu0 0.0
        %9183 = vmatpush1.msra.mxu0 0.0
        %9184 = vmatprep.subr.mxu0 0.0
        %9185 = vmatpush1.msra.mxu0 0.0
        %9186 = vmatprep.subr.mxu0 0.0
        %9187 = vmatpush1.msra.mxu0 0.0
        %9188 = vmatprep.subr.mxu0 0.0
        %9189 = vmatpush1.msra.mxu0 0.0
        %9190 = vmatprep.subr.mxu0 0.0
        %9191 = vmatpush1.msra.mxu0 0.0
        %9192 = vmatprep.subr.mxu0 0.0
        %9193 = vmatpush1.msra.mxu0 0.0
        %9194 = vmatprep.subr.mxu0 0.0
        %9195 = vmatpush1.msra.mxu0 0.0
        %9196 = vmatprep.subr.mxu0 0.0
        %9197 = vmatpush1.msra.mxu0 0.0
        %9198 = vmatprep.subr.mxu0 0.0
        %9199 = vmatpush1.msra.mxu0 0.0
        %9200 = vmatprep.subr.mxu0 0.0
        %9201 = vmatpush1.msra.mxu0 0.0
        %9202 = vmatprep.subr.mxu0 0.0
        %9203 = vmatpush1.msra.mxu0 0.0
        %9204 = vmatprep.subr.mxu0 0.0
        %9205 = vmatpush1.msra.mxu0 0.0
        %9206 = vmatprep.subr.mxu0 0.0
        %9207 = vmatpush1.msra.mxu0 0.0
        %9208 = vmatprep.subr.mxu0 0.0
        %9209 = vmatpush1.msra.mxu0 0.0
        %9210 = vmatprep.subr.mxu0 0.0
        %9211 = vmatpush1.msra.mxu0 0.0
        %9212 = vmatprep.subr.mxu0 0.0
        %9213 = vmatpush1.msra.mxu0 0.0
        %9214 = vmatprep.subr.mxu0 0.0
        %9215 = vmatpush1.msra.mxu0 0.0
        %9216 = vmatprep.subr.mxu0 0.0
        %9217 = vmatpush1.msra.mxu0 0.0
        %9218 = vmatprep.subr.mxu0 0.0
        %9219 = vmatpush1.msra.mxu0 0.0
        %9220 = vmatprep.mubr.f32.mxu0 0.0
        %v9221 = vand.u32 %v292, 4294901760
        %9222 = vmatmul.mubr.f32.gmra.mrb[0].mxu0 %v9221
        %v9223 = vpop.f32.mrb[0].mxu0
        %v9224 = vadd.f32 %v9128, %v9223
        %v9225 = vpop.f32.mrb[0].mxu0
        %v9226 = vadd.f32 %v9130, %v9225
        %9227 = vdwg.mxu0
        %v9228 = vand.u32 %v1683, 4294901760
        %9229 = vmatprep.subr.mxu0 %v9228
        %v9230 = vand.u32 %v1682, 4294901760
        %9231 = vmatpush1.msra.mxu0 %v9230
        %v9232 = vand.u32 %v1685, 4294901760
        %9233 = vmatprep.subr.mxu0 %v9232
        %v9234 = vand.u32 %v1684, 4294901760
        %9235 = vmatpush1.msra.mxu0 %v9234
        %v9236 = vand.u32 %v1687, 4294901760
        %9237 = vmatprep.subr.mxu0 %v9236
        %v9238 = vand.u32 %v1686, 4294901760
        %9239 = vmatpush1.msra.mxu0 %v9238
        %v9240 = vand.u32 %v1689, 4294901760
        %9241 = vmatprep.subr.mxu0 %v9240
        %v9242 = vand.u32 %v1688, 4294901760
        %9243 = vmatpush1.msra.mxu0 %v9242
        %9244 = vmatprep.subr.mxu0 0.0
        %9245 = vmatpush1.msra.mxu0 0.0
        %9246 = vmatprep.subr.mxu0 0.0
        %9247 = vmatpush1.msra.mxu0 0.0
        %9248 = vmatprep.subr.mxu0 0.0
        %9249 = vmatpush1.msra.mxu0 0.0
        %9250 = vmatprep.subr.mxu0 0.0
        %9251 = vmatpush1.msra.mxu0 0.0
        %9252 = vmatprep.subr.mxu0 0.0
        %9253 = vmatpush1.msra.mxu0 0.0
        %9254 = vmatprep.subr.mxu0 0.0
        %9255 = vmatpush1.msra.mxu0 0.0
        %9256 = vmatprep.subr.mxu0 0.0
        %9257 = vmatpush1.msra.mxu0 0.0
        %9258 = vmatprep.subr.mxu0 0.0
        %9259 = vmatpush1.msra.mxu0 0.0
        %9260 = vmatprep.subr.mxu0 0.0
        %9261 = vmatpush1.msra.mxu0 0.0
        %9262 = vmatprep.subr.mxu0 0.0
        %9263 = vmatpush1.msra.mxu0 0.0
        %9264 = vmatprep.subr.mxu0 0.0
        %9265 = vmatpush1.msra.mxu0 0.0
        %9266 = vmatprep.subr.mxu0 0.0
        %9267 = vmatpush1.msra.mxu0 0.0
        %9268 = vmatprep.subr.mxu0 0.0
        %9269 = vmatpush1.msra.mxu0 0.0
        %9270 = vmatprep.subr.mxu0 0.0
        %9271 = vmatpush1.msra.mxu0 0.0
        %9272 = vmatprep.subr.mxu0 0.0
        %9273 = vmatpush1.msra.mxu0 0.0
        %9274 = vmatprep.subr.mxu0 0.0
        %9275 = vmatpush1.msra.mxu0 0.0
        %9276 = vmatprep.subr.mxu0 0.0
        %9277 = vmatpush1.msra.mxu0 0.0
        %9278 = vmatprep.subr.mxu0 0.0
        %9279 = vmatpush1.msra.mxu0 0.0
        %9280 = vmatprep.subr.mxu0 0.0
        %9281 = vmatpush1.msra.mxu0 0.0
        %9282 = vmatprep.subr.mxu0 0.0
        %9283 = vmatpush1.msra.mxu0 0.0
        %9284 = vmatprep.subr.mxu0 0.0
        %9285 = vmatpush1.msra.mxu0 0.0
        %9286 = vmatprep.subr.mxu0 0.0
        %9287 = vmatpush1.msra.mxu0 0.0
        %9288 = vmatprep.subr.mxu0 0.0
        %9289 = vmatpush1.msra.mxu0 0.0
        %9290 = vmatprep.subr.mxu0 0.0
        %9291 = vmatpush1.msra.mxu0 0.0
        %9292 = vmatprep.subr.mxu0 0.0
        %9293 = vmatpush1.msra.mxu0 0.0
        %9294 = vmatprep.subr.mxu0 0.0
        %9295 = vmatpush1.msra.mxu0 0.0
        %9296 = vmatprep.subr.mxu0 0.0
        %9297 = vmatpush1.msra.mxu0 0.0
        %9298 = vmatprep.subr.mxu0 0.0
        %9299 = vmatpush1.msra.mxu0 0.0
        %9300 = vmatprep.mubr.f32.mxu0 0.0
        %v9301 = vand.u32 %v292, 4294901760
        %9302 = vmatmul.mubr.f32.gmra.mrb[0].mxu0 %v9301
        %v9303 = vpop.f32.mrb[0].mxu0
        %v9304 = vadd.f32 %v9224, %v9303
        %v9305 = vpop.f32.mrb[0].mxu0
        %v9306 = vadd.f32 %v9226, %v9305
        %9307 = vdwg.mxu0
        %v9308 = vand.u32 %v1691, 4294901760
        %9309 = vmatprep.subr.mxu0 %v9308
        %v9310 = vand.u32 %v1690, 4294901760
        %9311 = vmatpush1.msra.mxu0 %v9310
        %v9312 = vand.u32 %v1693, 4294901760
        %9313 = vmatprep.subr.mxu0 %v9312
        %v9314 = vand.u32 %v1692, 4294901760
        %9315 = vmatpush1.msra.mxu0 %v9314
        %v9316 = vand.u32 %v1695, 4294901760
        %9317 = vmatprep.subr.mxu0 %v9316
        %v9318 = vand.u32 %v1694, 4294901760
        %9319 = vmatpush1.msra.mxu0 %v9318
        %v9320 = vand.u32 %v1697, 4294901760
        %9321 = vmatprep.subr.mxu0 %v9320
        %v9322 = vand.u32 %v1696, 4294901760
        %9323 = vmatpush1.msra.mxu0 %v9322
        %9324 = vmatprep.subr.mxu0 0.0
        %9325 = vmatpush1.msra.mxu0 0.0
        %9326 = vmatprep.subr.mxu0 0.0
        %9327 = vmatpush1.msra.mxu0 0.0
        %9328 = vmatprep.subr.mxu0 0.0
        %9329 = vmatpush1.msra.mxu0 0.0
        %9330 = vmatprep.subr.mxu0 0.0
        %9331 = vmatpush1.msra.mxu0 0.0
        %9332 = vmatprep.subr.mxu0 0.0
        %9333 = vmatpush1.msra.mxu0 0.0
        %9334 = vmatprep.subr.mxu0 0.0
        %9335 = vmatpush1.msra.mxu0 0.0
        %9336 = vmatprep.subr.mxu0 0.0
        %9337 = vmatpush1.msra.mxu0 0.0
        %9338 = vmatprep.subr.mxu0 0.0
        %9339 = vmatpush1.msra.mxu0 0.0
        %9340 = vmatprep.subr.mxu0 0.0
        %9341 = vmatpush1.msra.mxu0 0.0
        %9342 = vmatprep.subr.mxu0 0.0
        %9343 = vmatpush1.msra.mxu0 0.0
        %9344 = vmatprep.subr.mxu0 0.0
        %9345 = vmatpush1.msra.mxu0 0.0
        %9346 = vmatprep.subr.mxu0 0.0
        %9347 = vmatpush1.msra.mxu0 0.0
        %9348 = vmatprep.subr.mxu0 0.0
        %9349 = vmatpush1.msra.mxu0 0.0
        %9350 = vmatprep.subr.mxu0 0.0
        %9351 = vmatpush1.msra.mxu0 0.0
        %9352 = vmatprep.subr.mxu0 0.0
        %9353 = vmatpush1.msra.mxu0 0.0
        %9354 = vmatprep.subr.mxu0 0.0
        %9355 = vmatpush1.msra.mxu0 0.0
        %9356 = vmatprep.subr.mxu0 0.0
        %9357 = vmatpush1.msra.mxu0 0.0
        %9358 = vmatprep.subr.mxu0 0.0
        %9359 = vmatpush1.msra.mxu0 0.0
        %9360 = vmatprep.subr.mxu0 0.0
        %9361 = vmatpush1.msra.mxu0 0.0
        %9362 = vmatprep.subr.mxu0 0.0
        %9363 = vmatpush1.msra.mxu0 0.0
        %9364 = vmatprep.subr.mxu0 0.0
        %9365 = vmatpush1.msra.mxu0 0.0
        %9366 = vmatprep.subr.mxu0 0.0
        %9367 = vmatpush1.msra.mxu0 0.0
        %9368 = vmatprep.subr.mxu0 0.0
        %9369 = vmatpush1.msra.mxu0 0.0
        %9370 = vmatprep.subr.mxu0 0.0
        %9371 = vmatpush1.msra.mxu0 0.0
        %9372 = vmatprep.subr.mxu0 0.0
        %9373 = vmatpush1.msra.mxu0 0.0
        %9374 = vmatprep.subr.mxu0 0.0
        %9375 = vmatpush1.msra.mxu0 0.0
        %9376 = vmatprep.subr.mxu0 0.0
        %9377 = vmatpush1.msra.mxu0 0.0
        %9378 = vmatprep.subr.mxu0 0.0
        %9379 = vmatpush1.msra.mxu0 0.0
        %9380 = vmatprep.mubr.f32.mxu0 0.0
        %v9381 = vand.u32 %v295, 4294901760
        %v9382 = vsub.f32 %v295, %v9381
        %v9383 = vand.u32 %v9382, 4294901760
        %v9384 = vsub.f32 %v9382, %v9383
        %v9385 = vand.u32 %v9384, 4294901760
        %9386 = vmatmul.mubr.f32.gmra.mrb[0].mxu0 %v9385
        %v9387 = vpop.f32.mrb[0].mxu0
        %v9388 = vadd.f32 0.0, %v9387
        %v9389 = vpop.f32.mrb[0].mxu0
        %v9390 = vadd.f32 0.0, %v9389
        %9391 = vdwg.mxu0
        %v9392 = vand.u32 %v1691, 4294901760
        %v9393 = vsub.f32 %v1691, %v9392
        %v9394 = vand.u32 %v9393, 4294901760
        %v9395 = vsub.f32 %v9393, %v9394
        %v9396 = vand.u32 %v9395, 4294901760
        %9397 = vmatprep.subr.mxu0 %v9396
        %v9398 = vand.u32 %v1690, 4294901760
        %v9399 = vsub.f32 %v1690, %v9398
        %v9400 = vand.u32 %v9399, 4294901760
        %v9401 = vsub.f32 %v9399, %v9400
        %v9402 = vand.u32 %v9401, 4294901760
        %9403 = vmatpush1.msra.mxu0 %v9402
        %v9404 = vand.u32 %v1693, 4294901760
        %v9405 = vsub.f32 %v1693, %v9404
        %v9406 = vand.u32 %v9405, 4294901760
        %v9407 = vsub.f32 %v9405, %v9406
        %v9408 = vand.u32 %v9407, 4294901760
        %9409 = vmatprep.subr.mxu0 %v9408
        %v9410 = vand.u32 %v1692, 4294901760
        %v9411 = vsub.f32 %v1692, %v9410
        %v9412 = vand.u32 %v9411, 4294901760
        %v9413 = vsub.f32 %v9411, %v9412
        %v9414 = vand.u32 %v9413, 4294901760
        %9415 = vmatpush1.msra.mxu0 %v9414
        %v9416 = vand.u32 %v1695, 4294901760
        %v9417 = vsub.f32 %v1695, %v9416
        %v9418 = vand.u32 %v9417, 4294901760
        %v9419 = vsub.f32 %v9417, %v9418
        %v9420 = vand.u32 %v9419, 4294901760
        %9421 = vmatprep.subr.mxu0 %v9420
        %v9422 = vand.u32 %v1694, 4294901760
        %v9423 = vsub.f32 %v1694, %v9422
        %v9424 = vand.u32 %v9423, 4294901760
        %v9425 = vsub.f32 %v9423, %v9424
        %v9426 = vand.u32 %v9425, 4294901760
        %9427 = vmatpush1.msra.mxu0 %v9426
        %v9428 = vand.u32 %v1697, 4294901760
        %v9429 = vsub.f32 %v1697, %v9428
        %v9430 = vand.u32 %v9429, 4294901760
        %v9431 = vsub.f32 %v9429, %v9430
        %v9432 = vand.u32 %v9431, 4294901760
        %9433 = vmatprep.subr.mxu0 %v9432
        %v9434 = vand.u32 %v1696, 4294901760
        %v9435 = vsub.f32 %v1696, %v9434
        %v9436 = vand.u32 %v9435, 4294901760
        %v9437 = vsub.f32 %v9435, %v9436
        %v9438 = vand.u32 %v9437, 4294901760
        %9439 = vmatpush1.msra.mxu0 %v9438
        %9440 = vmatprep.subr.mxu0 0.0
        %9441 = vmatpush1.msra.mxu0 0.0
        %9442 = vmatprep.subr.mxu0 0.0
        %9443 = vmatpush1.msra.mxu0 0.0
        %9444 = vmatprep.subr.mxu0 0.0
        %9445 = vmatpush1.msra.mxu0 0.0
        %9446 = vmatprep.subr.mxu0 0.0
        %9447 = vmatpush1.msra.mxu0 0.0
        %9448 = vmatprep.subr.mxu0 0.0
        %9449 = vmatpush1.msra.mxu0 0.0
        %9450 = vmatprep.subr.mxu0 0.0
        %9451 = vmatpush1.msra.mxu0 0.0
        %9452 = vmatprep.subr.mxu0 0.0
        %9453 = vmatpush1.msra.mxu0 0.0
        %9454 = vmatprep.subr.mxu0 0.0
        %9455 = vmatpush1.msra.mxu0 0.0
        %9456 = vmatprep.subr.mxu0 0.0
        %9457 = vmatpush1.msra.mxu0 0.0
        %9458 = vmatprep.subr.mxu0 0.0
        %9459 = vmatpush1.msra.mxu0 0.0
        %9460 = vmatprep.subr.mxu0 0.0
        %9461 = vmatpush1.msra.mxu0 0.0
        %9462 = vmatprep.subr.mxu0 0.0
        %9463 = vmatpush1.msra.mxu0 0.0
        %9464 = vmatprep.subr.mxu0 0.0
        %9465 = vmatpush1.msra.mxu0 0.0
        %9466 = vmatprep.subr.mxu0 0.0
        %9467 = vmatpush1.msra.mxu0 0.0
        %9468 = vmatprep.subr.mxu0 0.0
        %9469 = vmatpush1.msra.mxu0 0.0
        %9470 = vmatprep.subr.mxu0 0.0
        %9471 = vmatpush1.msra.mxu0 0.0
        %9472 = vmatprep.subr.mxu0 0.0
        %9473 = vmatpush1.msra.mxu0 0.0
        %9474 = vmatprep.subr.mxu0 0.0
        %9475 = vmatpush1.msra.mxu0 0.0
        %9476 = vmatprep.subr.mxu0 0.0
        %9477 = vmatpush1.msra.mxu0 0.0
        %9478 = vmatprep.subr.mxu0 0.0
        %9479 = vmatpush1.msra.mxu0 0.0
        %9480 = vmatprep.subr.mxu0 0.0
        %9481 = vmatpush1.msra.mxu0 0.0
        %9482 = vmatprep.subr.mxu0 0.0
        %9483 = vmatpush1.msra.mxu0 0.0
        %9484 = vmatprep.subr.mxu0 0.0
        %9485 = vmatpush1.msra.mxu0 0.0
        %9486 = vmatprep.subr.mxu0 0.0
        %9487 = vmatpush1.msra.mxu0 0.0
        %9488 = vmatprep.subr.mxu0 0.0
        %9489 = vmatpush1.msra.mxu0 0.0
        %9490 = vmatprep.subr.mxu0 0.0
        %9491 = vmatpush1.msra.mxu0 0.0
        %9492 = vmatprep.subr.mxu0 0.0
        %9493 = vmatpush1.msra.mxu0 0.0
        %9494 = vmatprep.subr.mxu0 0.0
        %9495 = vmatpush1.msra.mxu0 0.0
        %9496 = vmatprep.mubr.f32.mxu0 0.0
        %v9497 = vand.u32 %v295, 4294901760
        %9498 = vmatmul.mubr.f32.gmra.mrb[0].mxu0 %v9497
        %v9499 = vpop.f32.mrb[0].mxu0
        %v9500 = vadd.f32 %v9388, %v9499
        %v9501 = vpop.f32.mrb[0].mxu0
        %v9502 = vadd.f32 %v9390, %v9501
        %9503 = vdwg.mxu0
        %v9504 = vand.u32 %v1691, 4294901760
        %v9505 = vsub.f32 %v1691, %v9504
        %9506 = vmatprep.subr.mxu0 %v9505
        %v9507 = vand.u32 %v1690, 4294901760
        %v9508 = vsub.f32 %v1690, %v9507
        %9509 = vmatpush1.msra.mxu0 %v9508
        %v9510 = vand.u32 %v1693, 4294901760
        %v9511 = vsub.f32 %v1693, %v9510
        %9512 = vmatprep.subr.mxu0 %v9511
        %v9513 = vand.u32 %v1692, 4294901760
        %v9514 = vsub.f32 %v1692, %v9513
        %9515 = vmatpush1.msra.mxu0 %v9514
        %v9516 = vand.u32 %v1695, 4294901760
        %v9517 = vsub.f32 %v1695, %v9516
        %9518 = vmatprep.subr.mxu0 %v9517
        %v9519 = vand.u32 %v1694, 4294901760
        %v9520 = vsub.f32 %v1694, %v9519
        %9521 = vmatpush1.msra.mxu0 %v9520
        %v9522 = vand.u32 %v1697, 4294901760
        %v9523 = vsub.f32 %v1697, %v9522
        %9524 = vmatprep.subr.mxu0 %v9523
        %v9525 = vand.u32 %v1696, 4294901760
        %v9526 = vsub.f32 %v1696, %v9525
        %9527 = vmatpush1.msra.mxu0 %v9526
        %9528 = vmatprep.subr.mxu0 0.0
        %9529 = vmatpush1.msra.mxu0 0.0
        %9530 = vmatprep.subr.mxu0 0.0
        %9531 = vmatpush1.msra.mxu0 0.0
        %9532 = vmatprep.subr.mxu0 0.0
        %9533 = vmatpush1.msra.mxu0 0.0
        %9534 = vmatprep.subr.mxu0 0.0
        %9535 = vmatpush1.msra.mxu0 0.0
        %9536 = vmatprep.subr.mxu0 0.0
        %9537 = vmatpush1.msra.mxu0 0.0
        %9538 = vmatprep.subr.mxu0 0.0
        %9539 = vmatpush1.msra.mxu0 0.0
        %9540 = vmatprep.subr.mxu0 0.0
        %9541 = vmatpush1.msra.mxu0 0.0
        %9542 = vmatprep.subr.mxu0 0.0
        %9543 = vmatpush1.msra.mxu0 0.0
        %9544 = vmatprep.subr.mxu0 0.0
        %9545 = vmatpush1.msra.mxu0 0.0
        %9546 = vmatprep.subr.mxu0 0.0
        %9547 = vmatpush1.msra.mxu0 0.0
        %9548 = vmatprep.subr.mxu0 0.0
        %9549 = vmatpush1.msra.mxu0 0.0
        %9550 = vmatprep.subr.mxu0 0.0
        %9551 = vmatpush1.msra.mxu0 0.0
        %9552 = vmatprep.subr.mxu0 0.0
        %9553 = vmatpush1.msra.mxu0 0.0
        %9554 = vmatprep.subr.mxu0 0.0
        %9555 = vmatpush1.msra.mxu0 0.0
        %9556 = vmatprep.subr.mxu0 0.0
        %9557 = vmatpush1.msra.mxu0 0.0
        %9558 = vmatprep.subr.mxu0 0.0
        %9559 = vmatpush1.msra.mxu0 0.0
        %9560 = vmatprep.subr.mxu0 0.0
        %9561 = vmatpush1.msra.mxu0 0.0
        %9562 = vmatprep.subr.mxu0 0.0
        %9563 = vmatpush1.msra.mxu0 0.0
        %9564 = vmatprep.subr.mxu0 0.0
        %9565 = vmatpush1.msra.mxu0 0.0
        %9566 = vmatprep.subr.mxu0 0.0
        %9567 = vmatpush1.msra.mxu0 0.0
        %9568 = vmatprep.subr.mxu0 0.0
        %9569 = vmatpush1.msra.mxu0 0.0
        %9570 = vmatprep.subr.mxu0 0.0
        %9571 = vmatpush1.msra.mxu0 0.0
        %9572 = vmatprep.subr.mxu0 0.0
        %9573 = vmatpush1.msra.mxu0 0.0
        %9574 = vmatprep.subr.mxu0 0.0
        %9575 = vmatpush1.msra.mxu0 0.0
        %9576 = vmatprep.subr.mxu0 0.0
        %9577 = vmatpush1.msra.mxu0 0.0
        %9578 = vmatprep.subr.mxu0 0.0
        %9579 = vmatpush1.msra.mxu0 0.0
        %9580 = vmatprep.subr.mxu0 0.0
        %9581 = vmatpush1.msra.mxu0 0.0
        %9582 = vmatprep.subr.mxu0 0.0
        %9583 = vmatpush1.msra.mxu0 0.0
        %9584 = vmatprep.mubr.f32.mxu0 0.0
        %v9585 = vand.u32 %v295, 4294901760
        %v9586 = vsub.f32 %v295, %v9585
        %9587 = vmatmul.mubr.f32.gmra.mrb[0].mxu0 %v9586
        %v9588 = vpop.f32.mrb[0].mxu0
        %v9589 = vadd.f32 %v9500, %v9588
        %v9590 = vpop.f32.mrb[0].mxu0
        %v9591 = vadd.f32 %v9502, %v9590
        %9592 = vdwg.mxu0
        %v9593 = vand.u32 %v1691, 4294901760
        %9594 = vmatprep.subr.mxu0 %v9593
        %v9595 = vand.u32 %v1690, 4294901760
        %9596 = vmatpush1.msra.mxu0 %v9595
        %v9597 = vand.u32 %v1693, 4294901760
        %9598 = vmatprep.subr.mxu0 %v9597
        %v9599 = vand.u32 %v1692, 4294901760
        %9600 = vmatpush1.msra.mxu0 %v9599
        %v9601 = vand.u32 %v1695, 4294901760
        %9602 = vmatprep.subr.mxu0 %v9601
        %v9603 = vand.u32 %v1694, 4294901760
        %9604 = vmatpush1.msra.mxu0 %v9603
        %v9605 = vand.u32 %v1697, 4294901760
        %9606 = vmatprep.subr.mxu0 %v9605
        %v9607 = vand.u32 %v1696, 4294901760
        %9608 = vmatpush1.msra.mxu0 %v9607
        %9609 = vmatprep.subr.mxu0 0.0
        %9610 = vmatpush1.msra.mxu0 0.0
        %9611 = vmatprep.subr.mxu0 0.0
        %9612 = vmatpush1.msra.mxu0 0.0
        %9613 = vmatprep.subr.mxu0 0.0
        %9614 = vmatpush1.msra.mxu0 0.0
        %9615 = vmatprep.subr.mxu0 0.0
        %9616 = vmatpush1.msra.mxu0 0.0
        %9617 = vmatprep.subr.mxu0 0.0
        %9618 = vmatpush1.msra.mxu0 0.0
        %9619 = vmatprep.subr.mxu0 0.0
        %9620 = vmatpush1.msra.mxu0 0.0
        %9621 = vmatprep.subr.mxu0 0.0
        %9622 = vmatpush1.msra.mxu0 0.0
        %9623 = vmatprep.subr.mxu0 0.0
        %9624 = vmatpush1.msra.mxu0 0.0
        %9625 = vmatprep.subr.mxu0 0.0
        %9626 = vmatpush1.msra.mxu0 0.0
        %9627 = vmatprep.subr.mxu0 0.0
        %9628 = vmatpush1.msra.mxu0 0.0
        %9629 = vmatprep.subr.mxu0 0.0
        %9630 = vmatpush1.msra.mxu0 0.0
        %9631 = vmatprep.subr.mxu0 0.0
        %9632 = vmatpush1.msra.mxu0 0.0
        %9633 = vmatprep.subr.mxu0 0.0
        %9634 = vmatpush1.msra.mxu0 0.0
        %9635 = vmatprep.subr.mxu0 0.0
        %9636 = vmatpush1.msra.mxu0 0.0
        %9637 = vmatprep.subr.mxu0 0.0
        %9638 = vmatpush1.msra.mxu0 0.0
        %9639 = vmatprep.subr.mxu0 0.0
        %9640 = vmatpush1.msra.mxu0 0.0
        %9641 = vmatprep.subr.mxu0 0.0
        %9642 = vmatpush1.msra.mxu0 0.0
        %9643 = vmatprep.subr.mxu0 0.0
        %9644 = vmatpush1.msra.mxu0 0.0
        %9645 = vmatprep.subr.mxu0 0.0
        %9646 = vmatpush1.msra.mxu0 0.0
        %9647 = vmatprep.subr.mxu0 0.0
        %9648 = vmatpush1.msra.mxu0 0.0
        %9649 = vmatprep.subr.mxu0 0.0
        %9650 = vmatpush1.msra.mxu0 0.0
        %9651 = vmatprep.subr.mxu0 0.0
        %9652 = vmatpush1.msra.mxu0 0.0
        %9653 = vmatprep.subr.mxu0 0.0
        %9654 = vmatpush1.msra.mxu0 0.0
        %9655 = vmatprep.subr.mxu0 0.0
        %9656 = vmatpush1.msra.mxu0 0.0
        %9657 = vmatprep.subr.mxu0 0.0
        %9658 = vmatpush1.msra.mxu0 0.0
        %9659 = vmatprep.subr.mxu0 0.0
        %9660 = vmatpush1.msra.mxu0 0.0
        %9661 = vmatprep.subr.mxu0 0.0
        %9662 = vmatpush1.msra.mxu0 0.0
        %9663 = vmatprep.subr.mxu0 0.0
        %9664 = vmatpush1.msra.mxu0 0.0
        %9665 = vmatprep.mubr.f32.mxu0 0.0
        %v9666 = vand.u32 %v295, 4294901760
        %v9667 = vsub.f32 %v295, %v9666
        %v9668 = vand.u32 %v9667, 4294901760
        %9669 = vmatmul.mubr.f32.gmra.mrb[0].mxu0 %v9668
        %v9670 = vpop.f32.mrb[0].mxu0
        %v9671 = vadd.f32 %v9589, %v9670
        %v9672 = vpop.f32.mrb[0].mxu0
        %v9673 = vadd.f32 %v9591, %v9672
        %9674 = vdwg.mxu0
        %v9675 = vand.u32 %v1691, 4294901760
        %v9676 = vsub.f32 %v1691, %v9675
        %v9677 = vand.u32 %v9676, 4294901760
        %9678 = vmatprep.subr.mxu0 %v9677
        %v9679 = vand.u32 %v1690, 4294901760
        %v9680 = vsub.f32 %v1690, %v9679
        %v9681 = vand.u32 %v9680, 4294901760
        %9682 = vmatpush1.msra.mxu0 %v9681
        %v9683 = vand.u32 %v1693, 4294901760
        %v9684 = vsub.f32 %v1693, %v9683
        %v9685 = vand.u32 %v9684, 4294901760
        %9686 = vmatprep.subr.mxu0 %v9685
        %v9687 = vand.u32 %v1692, 4294901760
        %v9688 = vsub.f32 %v1692, %v9687
        %v9689 = vand.u32 %v9688, 4294901760
        %9690 = vmatpush1.msra.mxu0 %v9689
        %v9691 = vand.u32 %v1695, 4294901760
        %v9692 = vsub.f32 %v1695, %v9691
        %v9693 = vand.u32 %v9692, 4294901760
        %9694 = vmatprep.subr.mxu0 %v9693
        %v9695 = vand.u32 %v1694, 4294901760
        %v9696 = vsub.f32 %v1694, %v9695
        %v9697 = vand.u32 %v9696, 4294901760
        %9698 = vmatpush1.msra.mxu0 %v9697
        %v9699 = vand.u32 %v1697, 4294901760
        %v9700 = vsub.f32 %v1697, %v9699
        %v9701 = vand.u32 %v9700, 4294901760
        %9702 = vmatprep.subr.mxu0 %v9701
        %v9703 = vand.u32 %v1696, 4294901760
        %v9704 = vsub.f32 %v1696, %v9703
        %v9705 = vand.u32 %v9704, 4294901760
        %9706 = vmatpush1.msra.mxu0 %v9705
        %9707 = vmatprep.subr.mxu0 0.0
        %9708 = vmatpush1.msra.mxu0 0.0
        %9709 = vmatprep.subr.mxu0 0.0
        %9710 = vmatpush1.msra.mxu0 0.0
        %9711 = vmatprep.subr.mxu0 0.0
        %9712 = vmatpush1.msra.mxu0 0.0
        %9713 = vmatprep.subr.mxu0 0.0
        %9714 = vmatpush1.msra.mxu0 0.0
        %9715 = vmatprep.subr.mxu0 0.0
        %9716 = vmatpush1.msra.mxu0 0.0
        %9717 = vmatprep.subr.mxu0 0.0
        %9718 = vmatpush1.msra.mxu0 0.0
        %9719 = vmatprep.subr.mxu0 0.0
        %9720 = vmatpush1.msra.mxu0 0.0
        %9721 = vmatprep.subr.mxu0 0.0
        %9722 = vmatpush1.msra.mxu0 0.0
        %9723 = vmatprep.subr.mxu0 0.0
        %9724 = vmatpush1.msra.mxu0 0.0
        %9725 = vmatprep.subr.mxu0 0.0
        %9726 = vmatpush1.msra.mxu0 0.0
        %9727 = vmatprep.subr.mxu0 0.0
        %9728 = vmatpush1.msra.mxu0 0.0
        %9729 = vmatprep.subr.mxu0 0.0
        %9730 = vmatpush1.msra.mxu0 0.0
        %9731 = vmatprep.subr.mxu0 0.0
        %9732 = vmatpush1.msra.mxu0 0.0
        %9733 = vmatprep.subr.mxu0 0.0
        %9734 = vmatpush1.msra.mxu0 0.0
        %9735 = vmatprep.subr.mxu0 0.0
        %9736 = vmatpush1.msra.mxu0 0.0
        %9737 = vmatprep.subr.mxu0 0.0
        %9738 = vmatpush1.msra.mxu0 0.0
        %9739 = vmatprep.subr.mxu0 0.0
        %9740 = vmatpush1.msra.mxu0 0.0
        %9741 = vmatprep.subr.mxu0 0.0
        %9742 = vmatpush1.msra.mxu0 0.0
        %9743 = vmatprep.subr.mxu0 0.0
        %9744 = vmatpush1.msra.mxu0 0.0
        %9745 = vmatprep.subr.mxu0 0.0
        %9746 = vmatpush1.msra.mxu0 0.0
        %9747 = vmatprep.subr.mxu0 0.0
        %9748 = vmatpush1.msra.mxu0 0.0
        %9749 = vmatprep.subr.mxu0 0.0
        %9750 = vmatpush1.msra.mxu0 0.0
        %9751 = vmatprep.subr.mxu0 0.0
        %9752 = vmatpush1.msra.mxu0 0.0
        %9753 = vmatprep.subr.mxu0 0.0
        %9754 = vmatpush1.msra.mxu0 0.0
        %9755 = vmatprep.subr.mxu0 0.0
        %9756 = vmatpush1.msra.mxu0 0.0
        %9757 = vmatprep.subr.mxu0 0.0
        %9758 = vmatpush1.msra.mxu0 0.0
        %9759 = vmatprep.subr.mxu0 0.0
        %9760 = vmatpush1.msra.mxu0 0.0
        %9761 = vmatprep.subr.mxu0 0.0
        %9762 = vmatpush1.msra.mxu0 0.0
        %9763 = vmatprep.mubr.f32.mxu0 0.0
        %v9764 = vand.u32 %v295, 4294901760
        %9765 = vmatmul.mubr.f32.gmra.mrb[0].mxu0 %v9764
        %v9766 = vpop.f32.mrb[0].mxu0
        %v9767 = vadd.f32 %v9671, %v9766
        %v9768 = vpop.f32.mrb[0].mxu0
        %v9769 = vadd.f32 %v9673, %v9768
        %9770 = vdwg.mxu0
        %v9771 = vand.u32 %v1691, 4294901760
        %9772 = vmatprep.subr.mxu0 %v9771
        %v9773 = vand.u32 %v1690, 4294901760
        %9774 = vmatpush1.msra.mxu0 %v9773
        %v9775 = vand.u32 %v1693, 4294901760
        %9776 = vmatprep.subr.mxu0 %v9775
        %v9777 = vand.u32 %v1692, 4294901760
        %9778 = vmatpush1.msra.mxu0 %v9777
        %v9779 = vand.u32 %v1695, 4294901760
        %9780 = vmatprep.subr.mxu0 %v9779
        %v9781 = vand.u32 %v1694, 4294901760
        %9782 = vmatpush1.msra.mxu0 %v9781
        %v9783 = vand.u32 %v1697, 4294901760
        %9784 = vmatprep.subr.mxu0 %v9783
        %v9785 = vand.u32 %v1696, 4294901760
        %9786 = vmatpush1.msra.mxu0 %v9785
        %9787 = vmatprep.subr.mxu0 0.0
        %9788 = vmatpush1.msra.mxu0 0.0
        %9789 = vmatprep.subr.mxu0 0.0
        %9790 = vmatpush1.msra.mxu0 0.0
        %9791 = vmatprep.subr.mxu0 0.0
        %9792 = vmatpush1.msra.mxu0 0.0
        %9793 = vmatprep.subr.mxu0 0.0
        %9794 = vmatpush1.msra.mxu0 0.0
        %9795 = vmatprep.subr.mxu0 0.0
        %9796 = vmatpush1.msra.mxu0 0.0
        %9797 = vmatprep.subr.mxu0 0.0
        %9798 = vmatpush1.msra.mxu0 0.0
        %9799 = vmatprep.subr.mxu0 0.0
        %9800 = vmatpush1.msra.mxu0 0.0
        %9801 = vmatprep.subr.mxu0 0.0
        %9802 = vmatpush1.msra.mxu0 0.0
        %9803 = vmatprep.subr.mxu0 0.0
        %9804 = vmatpush1.msra.mxu0 0.0
        %9805 = vmatprep.subr.mxu0 0.0
        %9806 = vmatpush1.msra.mxu0 0.0
        %9807 = vmatprep.subr.mxu0 0.0
        %9808 = vmatpush1.msra.mxu0 0.0
        %9809 = vmatprep.subr.mxu0 0.0
        %9810 = vmatpush1.msra.mxu0 0.0
        %9811 = vmatprep.subr.mxu0 0.0
        %9812 = vmatpush1.msra.mxu0 0.0
        %9813 = vmatprep.subr.mxu0 0.0
        %9814 = vmatpush1.msra.mxu0 0.0
        %9815 = vmatprep.subr.mxu0 0.0
        %9816 = vmatpush1.msra.mxu0 0.0
        %9817 = vmatprep.subr.mxu0 0.0
        %9818 = vmatpush1.msra.mxu0 0.0
        %9819 = vmatprep.subr.mxu0 0.0
        %9820 = vmatpush1.msra.mxu0 0.0
        %9821 = vmatprep.subr.mxu0 0.0
        %9822 = vmatpush1.msra.mxu0 0.0
        %9823 = vmatprep.subr.mxu0 0.0
        %9824 = vmatpush1.msra.mxu0 0.0
        %9825 = vmatprep.subr.mxu0 0.0
        %9826 = vmatpush1.msra.mxu0 0.0
        %9827 = vmatprep.subr.mxu0 0.0
        %9828 = vmatpush1.msra.mxu0 0.0
        %9829 = vmatprep.subr.mxu0 0.0
        %9830 = vmatpush1.msra.mxu0 0.0
        %9831 = vmatprep.subr.mxu0 0.0
        %9832 = vmatpush1.msra.mxu0 0.0
        %9833 = vmatprep.subr.mxu0 0.0
        %9834 = vmatpush1.msra.mxu0 0.0
        %9835 = vmatprep.subr.mxu0 0.0
        %9836 = vmatpush1.msra.mxu0 0.0
        %9837 = vmatprep.subr.mxu0 0.0
        %9838 = vmatpush1.msra.mxu0 0.0
        %9839 = vmatprep.subr.mxu0 0.0
        %9840 = vmatpush1.msra.mxu0 0.0
        %9841 = vmatprep.subr.mxu0 0.0
        %9842 = vmatpush1.msra.mxu0 0.0
        %9843 = vmatprep.mubr.f32.mxu0 0.0
        %v9844 = vand.u32 %v295, 4294901760
        %9845 = vmatmul.mubr.f32.gmra.mrb[0].mxu0 %v9844
        %v9846 = vpop.f32.mrb[0].mxu0
        %v9847 = vadd.f32 %v9767, %v9846
        %v9848 = vpop.f32.mrb[0].mxu0
        %v9849 = vadd.f32 %v9769, %v9848
        %9850 = vdwg.mxu0
        %v9851 = vand.u32 %v1699, 4294901760
        %9852 = vmatprep.subr.mxu0 %v9851
        %v9853 = vand.u32 %v1698, 4294901760
        %9854 = vmatpush1.msra.mxu0 %v9853
        %v9855 = vand.u32 %v1701, 4294901760
        %9856 = vmatprep.subr.mxu0 %v9855
        %v9857 = vand.u32 %v1700, 4294901760
        %9858 = vmatpush1.msra.mxu0 %v9857
        %v9859 = vand.u32 %v1703, 4294901760
        %9860 = vmatprep.subr.mxu0 %v9859
        %v9861 = vand.u32 %v1702, 4294901760
        %9862 = vmatpush1.msra.mxu0 %v9861
        %v9863 = vand.u32 %v1705, 4294901760
        %9864 = vmatprep.subr.mxu0 %v9863
        %v9865 = vand.u32 %v1704, 4294901760
        %9866 = vmatpush1.msra.mxu0 %v9865
        %9867 = vmatprep.subr.mxu0 0.0
        %9868 = vmatpush1.msra.mxu0 0.0
        %9869 = vmatprep.subr.mxu0 0.0
        %9870 = vmatpush1.msra.mxu0 0.0
        %9871 = vmatprep.subr.mxu0 0.0
        %9872 = vmatpush1.msra.mxu0 0.0
        %9873 = vmatprep.subr.mxu0 0.0
        %9874 = vmatpush1.msra.mxu0 0.0
        %9875 = vmatprep.subr.mxu0 0.0
        %9876 = vmatpush1.msra.mxu0 0.0
        %9877 = vmatprep.subr.mxu0 0.0
        %9878 = vmatpush1.msra.mxu0 0.0
        %9879 = vmatprep.subr.mxu0 0.0
        %9880 = vmatpush1.msra.mxu0 0.0
        %9881 = vmatprep.subr.mxu0 0.0
        %9882 = vmatpush1.msra.mxu0 0.0
        %9883 = vmatprep.subr.mxu0 0.0
        %9884 = vmatpush1.msra.mxu0 0.0
        %9885 = vmatprep.subr.mxu0 0.0
        %9886 = vmatpush1.msra.mxu0 0.0
        %9887 = vmatprep.subr.mxu0 0.0
        %9888 = vmatpush1.msra.mxu0 0.0
        %9889 = vmatprep.subr.mxu0 0.0
        %9890 = vmatpush1.msra.mxu0 0.0
        %9891 = vmatprep.subr.mxu0 0.0
        %9892 = vmatpush1.msra.mxu0 0.0
        %9893 = vmatprep.subr.mxu0 0.0
        %9894 = vmatpush1.msra.mxu0 0.0
        %9895 = vmatprep.subr.mxu0 0.0
        %9896 = vmatpush1.msra.mxu0 0.0
        %9897 = vmatprep.subr.mxu0 0.0
        %9898 = vmatpush1.msra.mxu0 0.0
        %9899 = vmatprep.subr.mxu0 0.0
        %9900 = vmatpush1.msra.mxu0 0.0
        %9901 = vmatprep.subr.mxu0 0.0
        %9902 = vmatpush1.msra.mxu0 0.0
        %9903 = vmatprep.subr.mxu0 0.0
        %9904 = vmatpush1.msra.mxu0 0.0
        %9905 = vmatprep.subr.mxu0 0.0
        %9906 = vmatpush1.msra.mxu0 0.0
        %9907 = vmatprep.subr.mxu0 0.0
        %9908 = vmatpush1.msra.mxu0 0.0
        %9909 = vmatprep.subr.mxu0 0.0
        %9910 = vmatpush1.msra.mxu0 0.0
        %9911 = vmatprep.subr.mxu0 0.0
        %9912 = vmatpush1.msra.mxu0 0.0
        %9913 = vmatprep.subr.mxu0 0.0
        %9914 = vmatpush1.msra.mxu0 0.0
        %9915 = vmatprep.subr.mxu0 0.0
        %9916 = vmatpush1.msra.mxu0 0.0
        %9917 = vmatprep.subr.mxu0 0.0
        %9918 = vmatpush1.msra.mxu0 0.0
        %9919 = vmatprep.subr.mxu0 0.0
        %9920 = vmatpush1.msra.mxu0 0.0
        %9921 = vmatprep.subr.mxu0 0.0
        %9922 = vmatpush1.msra.mxu0 0.0
        %9923 = vmatprep.mubr.f32.mxu0 0.0
        %v9924 = vand.u32 %v298, 4294901760
        %v9925 = vsub.f32 %v298, %v9924
        %v9926 = vand.u32 %v9925, 4294901760
        %v9927 = vsub.f32 %v9925, %v9926
        %v9928 = vand.u32 %v9927, 4294901760
        %9929 = vmatmul.mubr.f32.gmra.mrb[0].mxu0 %v9928
        %v9930 = vpop.f32.mrb[0].mxu0
        %v9931 = vadd.f32 0.0, %v9930
        %v9932 = vpop.f32.mrb[0].mxu0
        %v9933 = vadd.f32 0.0, %v9932
        %9934 = vdwg.mxu0
        %v9935 = vand.u32 %v1699, 4294901760
        %v9936 = vsub.f32 %v1699, %v9935
        %v9937 = vand.u32 %v9936, 4294901760
        %v9938 = vsub.f32 %v9936, %v9937
        %v9939 = vand.u32 %v9938, 4294901760
        %9940 = vmatprep.subr.mxu0 %v9939
        %v9941 = vand.u32 %v1698, 4294901760
        %v9942 = vsub.f32 %v1698, %v9941
        %v9943 = vand.u32 %v9942, 4294901760
        %v9944 = vsub.f32 %v9942, %v9943
        %v9945 = vand.u32 %v9944, 4294901760
        %9946 = vmatpush1.msra.mxu0 %v9945
        %v9947 = vand.u32 %v1701, 4294901760
        %v9948 = vsub.f32 %v1701, %v9947
        %v9949 = vand.u32 %v9948, 4294901760
        %v9950 = vsub.f32 %v9948, %v9949
        %v9951 = vand.u32 %v9950, 4294901760
        %9952 = vmatprep.subr.mxu0 %v9951
        %v9953 = vand.u32 %v1700, 4294901760
        %v9954 = vsub.f32 %v1700, %v9953
        %v9955 = vand.u32 %v9954, 4294901760
        %v9956 = vsub.f32 %v9954, %v9955
        %v9957 = vand.u32 %v9956, 4294901760
        %9958 = vmatpush1.msra.mxu0 %v9957
        %v9959 = vand.u32 %v1703, 4294901760
        %v9960 = vsub.f32 %v1703, %v9959
        %v9961 = vand.u32 %v9960, 4294901760
        %v9962 = vsub.f32 %v9960, %v9961
        %v9963 = vand.u32 %v9962, 4294901760
        %9964 = vmatprep.subr.mxu0 %v9963
        %v9965 = vand.u32 %v1702, 4294901760
        %v9966 = vsub.f32 %v1702, %v9965
        %v9967 = vand.u32 %v9966, 4294901760
        %v9968 = vsub.f32 %v9966, %v9967
        %v9969 = vand.u32 %v9968, 4294901760
        %9970 = vmatpush1.msra.mxu0 %v9969
        %v9971 = vand.u32 %v1705, 4294901760
        %v9972 = vsub.f32 %v1705, %v9971
        %v9973 = vand.u32 %v9972, 4294901760
        %v9974 = vsub.f32 %v9972, %v9973
        %v9975 = vand.u32 %v9974, 4294901760
        %9976 = vmatprep.subr.mxu0 %v9975
        %v9977 = vand.u32 %v1704, 4294901760
        %v9978 = vsub.f32 %v1704, %v9977
        %v9979 = vand.u32 %v9978, 4294901760
        %v9980 = vsub.f32 %v9978, %v9979
        %v9981 = vand.u32 %v9980, 4294901760
        %9982 = vmatpush1.msra.mxu0 %v9981
        %9983 = vmatprep.subr.mxu0 0.0
        %9984 = vmatpush1.msra.mxu0 0.0
        %9985 = vmatprep.subr.mxu0 0.0
        %9986 = vmatpush1.msra.mxu0 0.0
        %9987 = vmatprep.subr.mxu0 0.0
        %9988 = vmatpush1.msra.mxu0 0.0
        %9989 = vmatprep.subr.mxu0 0.0
        %9990 = vmatpush1.msra.mxu0 0.0
        %9991 = vmatprep.subr.mxu0 0.0
        %9992 = vmatpush1.msra.mxu0 0.0
        %9993 = vmatprep.subr.mxu0 0.0
        %9994 = vmatpush1.msra.mxu0 0.0
        %9995 = vmatprep.subr.mxu0 0.0
        %9996 = vmatpush1.msra.mxu0 0.0
        %9997 = vmatprep.subr.mxu0 0.0
        %9998 = vmatpush1.msra.mxu0 0.0
        %9999 = vmatprep.subr.mxu0 0.0
        %10000 = vmatpush1.msra.mxu0 0.0
        %10001 = vmatprep.subr.mxu0 0.0
        %10002 = vmatpush1.msra.mxu0 0.0
        %10003 = vmatprep.subr.mxu0 0.0
        %10004 = vmatpush1.msra.mxu0 0.0
        %10005 = vmatprep.subr.mxu0 0.0
        %10006 = vmatpush1.msra.mxu0 0.0
        %10007 = vmatprep.subr.mxu0 0.0
        %10008 = vmatpush1.msra.mxu0 0.0
        %10009 = vmatprep.subr.mxu0 0.0
        %10010 = vmatpush1.msra.mxu0 0.0
        %10011 = vmatprep.subr.mxu0 0.0
        %10012 = vmatpush1.msra.mxu0 0.0
        %10013 = vmatprep.subr.mxu0 0.0
        %10014 = vmatpush1.msra.mxu0 0.0
        %10015 = vmatprep.subr.mxu0 0.0
        %10016 = vmatpush1.msra.mxu0 0.0
        %10017 = vmatprep.subr.mxu0 0.0
        %10018 = vmatpush1.msra.mxu0 0.0
        %10019 = vmatprep.subr.mxu0 0.0
        %10020 = vmatpush1.msra.mxu0 0.0
        %10021 = vmatprep.subr.mxu0 0.0
        %10022 = vmatpush1.msra.mxu0 0.0
        %10023 = vmatprep.subr.mxu0 0.0
        %10024 = vmatpush1.msra.mxu0 0.0
        %10025 = vmatprep.subr.mxu0 0.0
        %10026 = vmatpush1.msra.mxu0 0.0
        %10027 = vmatprep.subr.mxu0 0.0
        %10028 = vmatpush1.msra.mxu0 0.0
        %10029 = vmatprep.subr.mxu0 0.0
        %10030 = vmatpush1.msra.mxu0 0.0
        %10031 = vmatprep.subr.mxu0 0.0
        %10032 = vmatpush1.msra.mxu0 0.0
        %10033 = vmatprep.subr.mxu0 0.0
        %10034 = vmatpush1.msra.mxu0 0.0
        %10035 = vmatprep.subr.mxu0 0.0
        %10036 = vmatpush1.msra.mxu0 0.0
        %10037 = vmatprep.subr.mxu0 0.0
        %10038 = vmatpush1.msra.mxu0 0.0
        %10039 = vmatprep.mubr.f32.mxu0 0.0
        %v10040 = vand.u32 %v298, 4294901760
        %10041 = vmatmul.mubr.f32.gmra.mrb[0].mxu0 %v10040
        %v10042 = vpop.f32.mrb[0].mxu0
        %v10043 = vadd.f32 %v9931, %v10042
        %v10044 = vpop.f32.mrb[0].mxu0
        %v10045 = vadd.f32 %v9933, %v10044
        %10046 = vdwg.mxu0
        %v10047 = vand.u32 %v1699, 4294901760
        %v10048 = vsub.f32 %v1699, %v10047
        %10049 = vmatprep.subr.mxu0 %v10048
        %v10050 = vand.u32 %v1698, 4294901760
        %v10051 = vsub.f32 %v1698, %v10050
        %10052 = vmatpush1.msra.mxu0 %v10051
        %v10053 = vand.u32 %v1701, 4294901760
        %v10054 = vsub.f32 %v1701, %v10053
        %10055 = vmatprep.subr.mxu0 %v10054
        %v10056 = vand.u32 %v1700, 4294901760
        %v10057 = vsub.f32 %v1700, %v10056
        %10058 = vmatpush1.msra.mxu0 %v10057
        %v10059 = vand.u32 %v1703, 4294901760
        %v10060 = vsub.f32 %v1703, %v10059
        %10061 = vmatprep.subr.mxu0 %v10060
        %v10062 = vand.u32 %v1702, 4294901760
        %v10063 = vsub.f32 %v1702, %v10062
        %10064 = vmatpush1.msra.mxu0 %v10063
        %v10065 = vand.u32 %v1705, 4294901760
        %v10066 = vsub.f32 %v1705, %v10065
        %10067 = vmatprep.subr.mxu0 %v10066
        %v10068 = vand.u32 %v1704, 4294901760
        %v10069 = vsub.f32 %v1704, %v10068
        %10070 = vmatpush1.msra.mxu0 %v10069
        %10071 = vmatprep.subr.mxu0 0.0
        %10072 = vmatpush1.msra.mxu0 0.0
        %10073 = vmatprep.subr.mxu0 0.0
        %10074 = vmatpush1.msra.mxu0 0.0
        %10075 = vmatprep.subr.mxu0 0.0
        %10076 = vmatpush1.msra.mxu0 0.0
        %10077 = vmatprep.subr.mxu0 0.0
        %10078 = vmatpush1.msra.mxu0 0.0
        %10079 = vmatprep.subr.mxu0 0.0
        %10080 = vmatpush1.msra.mxu0 0.0
        %10081 = vmatprep.subr.mxu0 0.0
        %10082 = vmatpush1.msra.mxu0 0.0
        %10083 = vmatprep.subr.mxu0 0.0
        %10084 = vmatpush1.msra.mxu0 0.0
        %10085 = vmatprep.subr.mxu0 0.0
        %10086 = vmatpush1.msra.mxu0 0.0
        %10087 = vmatprep.subr.mxu0 0.0
        %10088 = vmatpush1.msra.mxu0 0.0
        %10089 = vmatprep.subr.mxu0 0.0
        %10090 = vmatpush1.msra.mxu0 0.0
        %10091 = vmatprep.subr.mxu0 0.0
        %10092 = vmatpush1.msra.mxu0 0.0
        %10093 = vmatprep.subr.mxu0 0.0
        %10094 = vmatpush1.msra.mxu0 0.0
        %10095 = vmatprep.subr.mxu0 0.0
        %10096 = vmatpush1.msra.mxu0 0.0
        %10097 = vmatprep.subr.mxu0 0.0
        %10098 = vmatpush1.msra.mxu0 0.0
        %10099 = vmatprep.subr.mxu0 0.0
        %10100 = vmatpush1.msra.mxu0 0.0
        %10101 = vmatprep.subr.mxu0 0.0
        %10102 = vmatpush1.msra.mxu0 0.0
        %10103 = vmatprep.subr.mxu0 0.0
        %10104 = vmatpush1.msra.mxu0 0.0
        %10105 = vmatprep.subr.mxu0 0.0
        %10106 = vmatpush1.msra.mxu0 0.0
        %10107 = vmatprep.subr.mxu0 0.0
        %10108 = vmatpush1.msra.mxu0 0.0
        %10109 = vmatprep.subr.mxu0 0.0
        %10110 = vmatpush1.msra.mxu0 0.0
        %10111 = vmatprep.subr.mxu0 0.0
        %10112 = vmatpush1.msra.mxu0 0.0
        %10113 = vmatprep.subr.mxu0 0.0
        %10114 = vmatpush1.msra.mxu0 0.0
        %10115 = vmatprep.subr.mxu0 0.0
        %10116 = vmatpush1.msra.mxu0 0.0
        %10117 = vmatprep.subr.mxu0 0.0
        %10118 = vmatpush1.msra.mxu0 0.0
        %10119 = vmatprep.subr.mxu0 0.0
        %10120 = vmatpush1.msra.mxu0 0.0
        %10121 = vmatprep.subr.mxu0 0.0
        %10122 = vmatpush1.msra.mxu0 0.0
        %10123 = vmatprep.subr.mxu0 0.0
        %10124 = vmatpush1.msra.mxu0 0.0
        %10125 = vmatprep.subr.mxu0 0.0
        %10126 = vmatpush1.msra.mxu0 0.0
        %10127 = vmatprep.mubr.f32.mxu0 0.0
        %v10128 = vand.u32 %v298, 4294901760
        %v10129 = vsub.f32 %v298, %v10128
        %10130 = vmatmul.mubr.f32.gmra.mrb[0].mxu0 %v10129
        %v10131 = vpop.f32.mrb[0].mxu0
        %v10132 = vadd.f32 %v10043, %v10131
        %v10133 = vpop.f32.mrb[0].mxu0
        %v10134 = vadd.f32 %v10045, %v10133
        %10135 = vdwg.mxu0
        %v10136 = vand.u32 %v1699, 4294901760
        %10137 = vmatprep.subr.mxu0 %v10136
        %v10138 = vand.u32 %v1698, 4294901760
        %10139 = vmatpush1.msra.mxu0 %v10138
        %v10140 = vand.u32 %v1701, 4294901760
        %10141 = vmatprep.subr.mxu0 %v10140
        %v10142 = vand.u32 %v1700, 4294901760
        %10143 = vmatpush1.msra.mxu0 %v10142
        %v10144 = vand.u32 %v1703, 4294901760
        %10145 = vmatprep.subr.mxu0 %v10144
        %v10146 = vand.u32 %v1702, 4294901760
        %10147 = vmatpush1.msra.mxu0 %v10146
        %v10148 = vand.u32 %v1705, 4294901760
        %10149 = vmatprep.subr.mxu0 %v10148
        %v10150 = vand.u32 %v1704, 4294901760
        %10151 = vmatpush1.msra.mxu0 %v10150
        %10152 = vmatprep.subr.mxu0 0.0
        %10153 = vmatpush1.msra.mxu0 0.0
        %10154 = vmatprep.subr.mxu0 0.0
        %10155 = vmatpush1.msra.mxu0 0.0
        %10156 = vmatprep.subr.mxu0 0.0
        %10157 = vmatpush1.msra.mxu0 0.0
        %10158 = vmatprep.subr.mxu0 0.0
        %10159 = vmatpush1.msra.mxu0 0.0
        %10160 = vmatprep.subr.mxu0 0.0
        %10161 = vmatpush1.msra.mxu0 0.0
        %10162 = vmatprep.subr.mxu0 0.0
        %10163 = vmatpush1.msra.mxu0 0.0
        %10164 = vmatprep.subr.mxu0 0.0
        %10165 = vmatpush1.msra.mxu0 0.0
        %10166 = vmatprep.subr.mxu0 0.0
        %10167 = vmatpush1.msra.mxu0 0.0
        %10168 = vmatprep.subr.mxu0 0.0
        %10169 = vmatpush1.msra.mxu0 0.0
        %10170 = vmatprep.subr.mxu0 0.0
        %10171 = vmatpush1.msra.mxu0 0.0
        %10172 = vmatprep.subr.mxu0 0.0
        %10173 = vmatpush1.msra.mxu0 0.0
        %10174 = vmatprep.subr.mxu0 0.0
        %10175 = vmatpush1.msra.mxu0 0.0
        %10176 = vmatprep.subr.mxu0 0.0
        %10177 = vmatpush1.msra.mxu0 0.0
        %10178 = vmatprep.subr.mxu0 0.0
        %10179 = vmatpush1.msra.mxu0 0.0
        %10180 = vmatprep.subr.mxu0 0.0
        %10181 = vmatpush1.msra.mxu0 0.0
        %10182 = vmatprep.subr.mxu0 0.0
        %10183 = vmatpush1.msra.mxu0 0.0
        %10184 = vmatprep.subr.mxu0 0.0
        %10185 = vmatpush1.msra.mxu0 0.0
        %10186 = vmatprep.subr.mxu0 0.0
        %10187 = vmatpush1.msra.mxu0 0.0
        %10188 = vmatprep.subr.mxu0 0.0
        %10189 = vmatpush1.msra.mxu0 0.0
        %10190 = vmatprep.subr.mxu0 0.0
        %10191 = vmatpush1.msra.mxu0 0.0
        %10192 = vmatprep.subr.mxu0 0.0
        %10193 = vmatpush1.msra.mxu0 0.0
        %10194 = vmatprep.subr.mxu0 0.0
        %10195 = vmatpush1.msra.mxu0 0.0
        %10196 = vmatprep.subr.mxu0 0.0
        %10197 = vmatpush1.msra.mxu0 0.0
        %10198 = vmatprep.subr.mxu0 0.0
        %10199 = vmatpush1.msra.mxu0 0.0
        %10200 = vmatprep.subr.mxu0 0.0
        %10201 = vmatpush1.msra.mxu0 0.0
        %10202 = vmatprep.subr.mxu0 0.0
        %10203 = vmatpush1.msra.mxu0 0.0
        %10204 = vmatprep.subr.mxu0 0.0
        %10205 = vmatpush1.msra.mxu0 0.0
        %10206 = vmatprep.subr.mxu0 0.0
        %10207 = vmatpush1.msra.mxu0 0.0
        %10208 = vmatprep.mubr.f32.mxu0 0.0
        %v10209 = vand.u32 %v298, 4294901760
        %v10210 = vsub.f32 %v298, %v10209
        %v10211 = vand.u32 %v10210, 4294901760
        %10212 = vmatmul.mubr.f32.gmra.mrb[0].mxu0 %v10211
        %v10213 = vpop.f32.mrb[0].mxu0
        %v10214 = vadd.f32 %v10132, %v10213
        %v10215 = vpop.f32.mrb[0].mxu0
        %v10216 = vadd.f32 %v10134, %v10215
        %10217 = vdwg.mxu0
        %v10218 = vand.u32 %v1699, 4294901760
        %v10219 = vsub.f32 %v1699, %v10218
        %v10220 = vand.u32 %v10219, 4294901760
        %10221 = vmatprep.subr.mxu0 %v10220
        %v10222 = vand.u32 %v1698, 4294901760
        %v10223 = vsub.f32 %v1698, %v10222
        %v10224 = vand.u32 %v10223, 4294901760
        %10225 = vmatpush1.msra.mxu0 %v10224
        %v10226 = vand.u32 %v1701, 4294901760
        %v10227 = vsub.f32 %v1701, %v10226
        %v10228 = vand.u32 %v10227, 4294901760
        %10229 = vmatprep.subr.mxu0 %v10228
        %v10230 = vand.u32 %v1700, 4294901760
        %v10231 = vsub.f32 %v1700, %v10230
        %v10232 = vand.u32 %v10231, 4294901760
        %10233 = vmatpush1.msra.mxu0 %v10232
        %v10234 = vand.u32 %v1703, 4294901760
        %v10235 = vsub.f32 %v1703, %v10234
        %v10236 = vand.u32 %v10235, 4294901760
        %10237 = vmatprep.subr.mxu0 %v10236
        %v10238 = vand.u32 %v1702, 4294901760
        %v10239 = vsub.f32 %v1702, %v10238
        %v10240 = vand.u32 %v10239, 4294901760
        %10241 = vmatpush1.msra.mxu0 %v10240
        %v10242 = vand.u32 %v1705, 4294901760
        %v10243 = vsub.f32 %v1705, %v10242
        %v10244 = vand.u32 %v10243, 4294901760
        %10245 = vmatprep.subr.mxu0 %v10244
        %v10246 = vand.u32 %v1704, 4294901760
        %v10247 = vsub.f32 %v1704, %v10246
        %v10248 = vand.u32 %v10247, 4294901760
        %10249 = vmatpush1.msra.mxu0 %v10248
        %10250 = vmatprep.subr.mxu0 0.0
        %10251 = vmatpush1.msra.mxu0 0.0
        %10252 = vmatprep.subr.mxu0 0.0
        %10253 = vmatpush1.msra.mxu0 0.0
        %10254 = vmatprep.subr.mxu0 0.0
        %10255 = vmatpush1.msra.mxu0 0.0
        %10256 = vmatprep.subr.mxu0 0.0
        %10257 = vmatpush1.msra.mxu0 0.0
        %10258 = vmatprep.subr.mxu0 0.0
        %10259 = vmatpush1.msra.mxu0 0.0
        %10260 = vmatprep.subr.mxu0 0.0
        %10261 = vmatpush1.msra.mxu0 0.0
        %10262 = vmatprep.subr.mxu0 0.0
        %10263 = vmatpush1.msra.mxu0 0.0
        %10264 = vmatprep.subr.mxu0 0.0
        %10265 = vmatpush1.msra.mxu0 0.0
        %10266 = vmatprep.subr.mxu0 0.0
        %10267 = vmatpush1.msra.mxu0 0.0
        %10268 = vmatprep.subr.mxu0 0.0
        %10269 = vmatpush1.msra.mxu0 0.0
        %10270 = vmatprep.subr.mxu0 0.0
        %10271 = vmatpush1.msra.mxu0 0.0
        %10272 = vmatprep.subr.mxu0 0.0
        %10273 = vmatpush1.msra.mxu0 0.0
        %10274 = vmatprep.subr.mxu0 0.0
        %10275 = vmatpush1.msra.mxu0 0.0
        %10276 = vmatprep.subr.mxu0 0.0
        %10277 = vmatpush1.msra.mxu0 0.0
        %10278 = vmatprep.subr.mxu0 0.0
        %10279 = vmatpush1.msra.mxu0 0.0
        %10280 = vmatprep.subr.mxu0 0.0
        %10281 = vmatpush1.msra.mxu0 0.0
        %10282 = vmatprep.subr.mxu0 0.0
        %10283 = vmatpush1.msra.mxu0 0.0
        %10284 = vmatprep.subr.mxu0 0.0
        %10285 = vmatpush1.msra.mxu0 0.0
        %10286 = vmatprep.subr.mxu0 0.0
        %10287 = vmatpush1.msra.mxu0 0.0
        %10288 = vmatprep.subr.mxu0 0.0
        %10289 = vmatpush1.msra.mxu0 0.0
        %10290 = vmatprep.subr.mxu0 0.0
        %10291 = vmatpush1.msra.mxu0 0.0
        %10292 = vmatprep.subr.mxu0 0.0
        %10293 = vmatpush1.msra.mxu0 0.0
        %10294 = vmatprep.subr.mxu0 0.0
        %10295 = vmatpush1.msra.mxu0 0.0
        %10296 = vmatprep.subr.mxu0 0.0
        %10297 = vmatpush1.msra.mxu0 0.0
        %10298 = vmatprep.subr.mxu0 0.0
        %10299 = vmatpush1.msra.mxu0 0.0
        %10300 = vmatprep.subr.mxu0 0.0
        %10301 = vmatpush1.msra.mxu0 0.0
        %10302 = vmatprep.subr.mxu0 0.0
        %10303 = vmatpush1.msra.mxu0 0.0
        %10304 = vmatprep.subr.mxu0 0.0
        %10305 = vmatpush1.msra.mxu0 0.0
        %10306 = vmatprep.mubr.f32.mxu0 0.0
        %v10307 = vand.u32 %v298, 4294901760
        %10308 = vmatmul.mubr.f32.gmra.mrb[0].mxu0 %v10307
        %v10309 = vpop.f32.mrb[0].mxu0
        %v10310 = vadd.f32 %v10214, %v10309
        %v10311 = vpop.f32.mrb[0].mxu0
        %v10312 = vadd.f32 %v10216, %v10311
        %10313 = vdwg.mxu0
        %v10314 = vand.u32 %v1699, 4294901760
        %10315 = vmatprep.subr.mxu0 %v10314
        %v10316 = vand.u32 %v1698, 4294901760
        %10317 = vmatpush1.msra.mxu0 %v10316
        %v10318 = vand.u32 %v1701, 4294901760
        %10319 = vmatprep.subr.mxu0 %v10318
        %v10320 = vand.u32 %v1700, 4294901760
        %10321 = vmatpush1.msra.mxu0 %v10320
        %v10322 = vand.u32 %v1703, 4294901760
        %10323 = vmatprep.subr.mxu0 %v10322
        %v10324 = vand.u32 %v1702, 4294901760
        %10325 = vmatpush1.msra.mxu0 %v10324
        %v10326 = vand.u32 %v1705, 4294901760
        %10327 = vmatprep.subr.mxu0 %v10326
        %v10328 = vand.u32 %v1704, 4294901760
        %10329 = vmatpush1.msra.mxu0 %v10328
        %10330 = vmatprep.subr.mxu0 0.0
        %10331 = vmatpush1.msra.mxu0 0.0
        %10332 = vmatprep.subr.mxu0 0.0
        %10333 = vmatpush1.msra.mxu0 0.0
        %10334 = vmatprep.subr.mxu0 0.0
        %10335 = vmatpush1.msra.mxu0 0.0
        %10336 = vmatprep.subr.mxu0 0.0
        %10337 = vmatpush1.msra.mxu0 0.0
        %10338 = vmatprep.subr.mxu0 0.0
        %10339 = vmatpush1.msra.mxu0 0.0
        %10340 = vmatprep.subr.mxu0 0.0
        %10341 = vmatpush1.msra.mxu0 0.0
        %10342 = vmatprep.subr.mxu0 0.0
        %10343 = vmatpush1.msra.mxu0 0.0
        %10344 = vmatprep.subr.mxu0 0.0
        %10345 = vmatpush1.msra.mxu0 0.0
        %10346 = vmatprep.subr.mxu0 0.0
        %10347 = vmatpush1.msra.mxu0 0.0
        %10348 = vmatprep.subr.mxu0 0.0
        %10349 = vmatpush1.msra.mxu0 0.0
        %10350 = vmatprep.subr.mxu0 0.0
        %10351 = vmatpush1.msra.mxu0 0.0
        %10352 = vmatprep.subr.mxu0 0.0
        %10353 = vmatpush1.msra.mxu0 0.0
        %10354 = vmatprep.subr.mxu0 0.0
        %10355 = vmatpush1.msra.mxu0 0.0
        %10356 = vmatprep.subr.mxu0 0.0
        %10357 = vmatpush1.msra.mxu0 0.0
        %10358 = vmatprep.subr.mxu0 0.0
        %10359 = vmatpush1.msra.mxu0 0.0
        %10360 = vmatprep.subr.mxu0 0.0
        %10361 = vmatpush1.msra.mxu0 0.0
        %10362 = vmatprep.subr.mxu0 0.0
        %10363 = vmatpush1.msra.mxu0 0.0
        %10364 = vmatprep.subr.mxu0 0.0
        %10365 = vmatpush1.msra.mxu0 0.0
        %10366 = vmatprep.subr.mxu0 0.0
        %10367 = vmatpush1.msra.mxu0 0.0
        %10368 = vmatprep.subr.mxu0 0.0
        %10369 = vmatpush1.msra.mxu0 0.0
        %10370 = vmatprep.subr.mxu0 0.0
        %10371 = vmatpush1.msra.mxu0 0.0
        %10372 = vmatprep.subr.mxu0 0.0
        %10373 = vmatpush1.msra.mxu0 0.0
        %10374 = vmatprep.subr.mxu0 0.0
        %10375 = vmatpush1.msra.mxu0 0.0
        %10376 = vmatprep.subr.mxu0 0.0
        %10377 = vmatpush1.msra.mxu0 0.0
        %10378 = vmatprep.subr.mxu0 0.0
        %10379 = vmatpush1.msra.mxu0 0.0
        %10380 = vmatprep.subr.mxu0 0.0
        %10381 = vmatpush1.msra.mxu0 0.0
        %10382 = vmatprep.subr.mxu0 0.0
        %10383 = vmatpush1.msra.mxu0 0.0
        %10384 = vmatprep.subr.mxu0 0.0
        %10385 = vmatpush1.msra.mxu0 0.0
        %10386 = vmatprep.mubr.f32.mxu0 0.0
        %v10387 = vand.u32 %v298, 4294901760
        %10388 = vmatmul.mubr.f32.gmra.mrb[0].mxu0 %v10387
        %v10389 = vpop.f32.mrb[0].mxu0
        %v10390 = vadd.f32 %v10310, %v10389
        %v10391 = vpop.f32.mrb[0].mxu0
        %v10392 = vadd.f32 %v10312, %v10391
        %10393 = vdwg.mxu0
        %v10394 = vadd.f32 %v1469, %v2245
        %v10395 = vadd.f32 %v1471, %v2247
        %v10396 = vadd.f32 %v1476, %v2788
        %v10397 = vadd.f32 %v1478, %v2790
        %v10398 = vadd.f32 %v1483, %v3331
        %v10399 = vadd.f32 %v1485, %v3333
        %v10400 = vadd.f32 %v1490, %v3874
        %v10401 = vadd.f32 %v1492, %v3876
        %v10402 = vadd.f32 %v1497, %v4417
        %v10403 = vadd.f32 %v1499, %v4419
        %v10404 = vadd.f32 %v1504, %v4960
        %v10405 = vadd.f32 %v1506, %v4962
        %v10406 = vadd.f32 %v1511, %v5503
        %v10407 = vadd.f32 %v1513, %v5505
        %v10408 = vadd.f32 %v1518, %v6046
        %v10409 = vadd.f32 %v1520, %v6048
        %v10410 = vadd.f32 %v1525, %v6589
        %v10411 = vadd.f32 %v1527, %v6591
        %v10412 = vadd.f32 %v1532, %v7132
        %v10413 = vadd.f32 %v1534, %v7134
        %v10414 = vadd.f32 %v1539, %v7675
        %v10415 = vadd.f32 %v1541, %v7677
        %v10416 = vadd.f32 %v1546, %v8218
        %v10417 = vadd.f32 %v1548, %v8220
        %v10418 = vadd.f32 %v1553, %v8761
        %v10419 = vadd.f32 %v1555, %v8763
        %v10420 = vadd.f32 %v1560, %v9304
        %v10421 = vadd.f32 %v1562, %v9306
        %v10422 = vadd.f32 %v1567, %v9847
        %v10423 = vadd.f32 %v1569, %v9849
        %v10424 = vadd.f32 %v1574, %v10390
        %v10425 = vadd.f32 %v1576, %v10392
        %v10426 = vcombine.low %v10394, %v10398
        %v10427 = vcombine.high %v10394, %v10398
        %v10429 = vunpack.c.l.s4 1983009808
        %v10430 = vunpack.c.0.s8 %v10429
        %v10431 = vlaneseq
        %v10432 = vshrl.u32 %v10431, 7
        %v10433 = vsub.s32 %v10430, %v10432
        %v10434 = vrot.slane %v10426, %v10433
        %v10436 = vunpack.c.l.s4 1983009808
        %v10437 = vunpack.c.0.s8 %v10436
        %v10438 = vlaneseq
        %v10439 = vshrl.u32 %v10438, 7
        %v10440 = vsub.s32 %v10437, %v10439
        %v10441 = vrot.slane %v10427, %v10440
        %v10442 = vcombine.low %v10396, %v10400
        %v10443 = vcombine.high %v10396, %v10400
        %v10445 = vunpack.c.l.s4 1983009808
        %v10446 = vunpack.c.0.s8 %v10445
        %v10447 = vlaneseq
        %v10448 = vshrl.u32 %v10447, 7
        %v10449 = vsub.s32 %v10446, %v10448
        %v10450 = vrot.slane %v10442, %v10449
        %v10452 = vunpack.c.l.s4 1983009808
        %v10453 = vunpack.c.0.s8 %v10452
        %v10454 = vlaneseq
        %v10455 = vshrl.u32 %v10454, 7
        %v10456 = vsub.s32 %v10453, %v10455
        %v10457 = vrot.slane %v10443, %v10456
        %v10458 = vcombine.low %v10402, %v10406
        %v10459 = vcombine.high %v10402, %v10406
        %v10461 = vunpack.c.l.s4 1983009808
        %v10462 = vunpack.c.0.s8 %v10461
        %v10463 = vlaneseq
        %v10464 = vshrl.u32 %v10463, 7
        %v10465 = vsub.s32 %v10462, %v10464
        %v10466 = vrot.slane %v10458, %v10465
        %v10468 = vunpack.c.l.s4 1983009808
        %v10469 = vunpack.c.0.s8 %v10468
        %v10470 = vlaneseq
        %v10471 = vshrl.u32 %v10470, 7
        %v10472 = vsub.s32 %v10469, %v10471
        %v10473 = vrot.slane %v10459, %v10472
        %v10474 = vcombine.low %v10404, %v10408
        %v10475 = vcombine.high %v10404, %v10408
        %v10477 = vunpack.c.l.s4 1983009808
        %v10478 = vunpack.c.0.s8 %v10477
        %v10479 = vlaneseq
        %v10480 = vshrl.u32 %v10479, 7
        %v10481 = vsub.s32 %v10478, %v10480
        %v10482 = vrot.slane %v10474, %v10481
        %v10484 = vunpack.c.l.s4 1983009808
        %v10485 = vunpack.c.0.s8 %v10484
        %v10486 = vlaneseq
        %v10487 = vshrl.u32 %v10486, 7
        %v10488 = vsub.s32 %v10485, %v10487
        %v10489 = vrot.slane %v10475, %v10488
        %v10490 = vcombine.low %v10434, %v10450
        %v10491 = vcombine.high %v10434, %v10450
        %v10493 = vunpack.c.l.s4 1934713408
        %v10494 = vunpack.c.0.s8 %v10493
        %v10495 = vlaneseq
        %v10496 = vshrl.u32 %v10495, 7
        %v10497 = vsub.s32 %v10494, %v10496
        %v10498 = vrot.slane %v10490, %v10497
        %v10500 = vunpack.c.l.s4 1934713408
        %v10501 = vunpack.c.0.s8 %v10500
        %v10502 = vlaneseq
        %v10503 = vshrl.u32 %v10502, 7
        %v10504 = vsub.s32 %v10501, %v10503
        %v10505 = vrot.slane %v10491, %v10504
        %v10506 = vcombine.low %v10441, %v10457
        %v10507 = vcombine.high %v10441, %v10457
        %v10509 = vunpack.c.l.s4 1934713408
        %v10510 = vunpack.c.0.s8 %v10509
        %v10511 = vlaneseq
        %v10512 = vshrl.u32 %v10511, 7
        %v10513 = vsub.s32 %v10510, %v10512
        %v10514 = vrot.slane %v10506, %v10513
        %v10516 = vunpack.c.l.s4 1934713408
        %v10517 = vunpack.c.0.s8 %v10516
        %v10518 = vlaneseq
        %v10519 = vshrl.u32 %v10518, 7
        %v10520 = vsub.s32 %v10517, %v10519
        %v10521 = vrot.slane %v10507, %v10520
        %v10522 = vcombine.low %v10466, %v10482
        %v10523 = vcombine.high %v10466, %v10482
        %v10525 = vunpack.c.l.s4 1934713408
        %v10526 = vunpack.c.0.s8 %v10525
        %v10527 = vlaneseq
        %v10528 = vshrl.u32 %v10527, 7
        %v10529 = vsub.s32 %v10526, %v10528
        %v10530 = vrot.slane %v10522, %v10529
        %v10532 = vunpack.c.l.s4 1934713408
        %v10533 = vunpack.c.0.s8 %v10532
        %v10534 = vlaneseq
        %v10535 = vshrl.u32 %v10534, 7
        %v10536 = vsub.s32 %v10533, %v10535
        %v10537 = vrot.slane %v10523, %v10536
        %v10538 = vcombine.low %v10473, %v10489
        %v10539 = vcombine.high %v10473, %v10489
        %v10541 = vunpack.c.l.s4 1934713408
        %v10542 = vunpack.c.0.s8 %v10541
        %v10543 = vlaneseq
        %v10544 = vshrl.u32 %v10543, 7
        %v10545 = vsub.s32 %v10542, %v10544
        %v10546 = vrot.slane %v10538, %v10545
        %v10548 = vunpack.c.l.s4 1934713408
        %v10549 = vunpack.c.0.s8 %v10548
        %v10550 = vlaneseq
        %v10551 = vshrl.u32 %v10550, 7
        %v10552 = vsub.s32 %v10549, %v10551
        %v10553 = vrot.slane %v10539, %v10552
        %v10554 = vcombine.low %v10498, %v10530
        %v10555 = vcombine.high %v10498, %v10530
        %v10556 = vcombine.low %v10505, %v10537
        %v10557 = vcombine.high %v10505, %v10537
        %v10558 = vcombine.low %v10514, %v10546
        %v10559 = vcombine.high %v10514, %v10546
        %v10560 = vcombine.low %v10521, %v10553
        %v10561 = vcombine.high %v10521, %v10553
        %v10562 = vcombine.low %v10410, %v10414
        %v10563 = vcombine.high %v10410, %v10414
        %v10565 = vunpack.c.l.s4 1983009808
        %v10566 = vunpack.c.0.s8 %v10565
        %v10567 = vlaneseq
        %v10568 = vshrl.u32 %v10567, 7
        %v10569 = vsub.s32 %v10566, %v10568
        %v10570 = vrot.slane %v10562, %v10569
        %v10572 = vunpack.c.l.s4 1983009808
        %v10573 = vunpack.c.0.s8 %v10572
        %v10574 = vlaneseq
        %v10575 = vshrl.u32 %v10574, 7
        %v10576 = vsub.s32 %v10573, %v10575
        %v10577 = vrot.slane %v10563, %v10576
        %v10578 = vcombine.low %v10412, %v10416
        %v10579 = vcombine.high %v10412, %v10416
        %v10581 = vunpack.c.l.s4 1983009808
        %v10582 = vunpack.c.0.s8 %v10581
        %v10583 = vlaneseq
        %v10584 = vshrl.u32 %v10583, 7
        %v10585 = vsub.s32 %v10582, %v10584
        %v10586 = vrot.slane %v10578, %v10585
        %v10588 = vunpack.c.l.s4 1983009808
        %v10589 = vunpack.c.0.s8 %v10588
        %v10590 = vlaneseq
        %v10591 = vshrl.u32 %v10590, 7
        %v10592 = vsub.s32 %v10589, %v10591
        %v10593 = vrot.slane %v10579, %v10592
        %v10594 = vcombine.low %v10418, %v10422
        %v10595 = vcombine.high %v10418, %v10422
        %v10597 = vunpack.c.l.s4 1983009808
        %v10598 = vunpack.c.0.s8 %v10597
        %v10599 = vlaneseq
        %v10600 = vshrl.u32 %v10599, 7
        %v10601 = vsub.s32 %v10598, %v10600
        %v10602 = vrot.slane %v10594, %v10601
        %v10604 = vunpack.c.l.s4 1983009808
        %v10605 = vunpack.c.0.s8 %v10604
        %v10606 = vlaneseq
        %v10607 = vshrl.u32 %v10606, 7
        %v10608 = vsub.s32 %v10605, %v10607
        %v10609 = vrot.slane %v10595, %v10608
        %v10610 = vcombine.low %v10420, %v10424
        %v10611 = vcombine.high %v10420, %v10424
        %v10613 = vunpack.c.l.s4 1983009808
        %v10614 = vunpack.c.0.s8 %v10613
        %v10615 = vlaneseq
        %v10616 = vshrl.u32 %v10615, 7
        %v10617 = vsub.s32 %v10614, %v10616
        %v10618 = vrot.slane %v10610, %v10617
        %v10620 = vunpack.c.l.s4 1983009808
        %v10621 = vunpack.c.0.s8 %v10620
        %v10622 = vlaneseq
        %v10623 = vshrl.u32 %v10622, 7
        %v10624 = vsub.s32 %v10621, %v10623
        %v10625 = vrot.slane %v10611, %v10624
        %v10626 = vcombine.low %v10570, %v10586
        %v10627 = vcombine.high %v10570, %v10586
        %v10629 = vunpack.c.l.s4 1934713408
        %v10630 = vunpack.c.0.s8 %v10629
        %v10631 = vlaneseq
        %v10632 = vshrl.u32 %v10631, 7
        %v10633 = vsub.s32 %v10630, %v10632
        %v10634 = vrot.slane %v10626, %v10633
        %v10636 = vunpack.c.l.s4 1934713408
        %v10637 = vunpack.c.0.s8 %v10636
        %v10638 = vlaneseq
        %v10639 = vshrl.u32 %v10638, 7
        %v10640 = vsub.s32 %v10637, %v10639
        %v10641 = vrot.slane %v10627, %v10640
        %v10642 = vcombine.low %v10577, %v10593
        %v10643 = vcombine.high %v10577, %v10593
        %v10645 = vunpack.c.l.s4 1934713408
        %v10646 = vunpack.c.0.s8 %v10645
        %v10647 = vlaneseq
        %v10648 = vshrl.u32 %v10647, 7
        %v10649 = vsub.s32 %v10646, %v10648
        %v10650 = vrot.slane %v10642, %v10649
        %v10652 = vunpack.c.l.s4 1934713408
        %v10653 = vunpack.c.0.s8 %v10652
        %v10654 = vlaneseq
        %v10655 = vshrl.u32 %v10654, 7
        %v10656 = vsub.s32 %v10653, %v10655
        %v10657 = vrot.slane %v10643, %v10656
        %v10658 = vcombine.low %v10602, %v10618
        %v10659 = vcombine.high %v10602, %v10618
        %v10661 = vunpack.c.l.s4 1934713408
        %v10662 = vunpack.c.0.s8 %v10661
        %v10663 = vlaneseq
        %v10664 = vshrl.u32 %v10663, 7
        %v10665 = vsub.s32 %v10662, %v10664
        %v10666 = vrot.slane %v10658, %v10665
        %v10668 = vunpack.c.l.s4 1934713408
        %v10669 = vunpack.c.0.s8 %v10668
        %v10670 = vlaneseq
        %v10671 = vshrl.u32 %v10670, 7
        %v10672 = vsub.s32 %v10669, %v10671
        %v10673 = vrot.slane %v10659, %v10672
        %v10674 = vcombine.low %v10609, %v10625
        %v10675 = vcombine.high %v10609, %v10625
        %v10677 = vunpack.c.l.s4 1934713408
        %v10678 = vunpack.c.0.s8 %v10677
        %v10679 = vlaneseq
        %v10680 = vshrl.u32 %v10679, 7
        %v10681 = vsub.s32 %v10678, %v10680
        %v10682 = vrot.slane %v10674, %v10681
        %v10684 = vunpack.c.l.s4 1934713408
        %v10685 = vunpack.c.0.s8 %v10684
        %v10686 = vlaneseq
        %v10687 = vshrl.u32 %v10686, 7
        %v10688 = vsub.s32 %v10685, %v10687
        %v10689 = vrot.slane %v10675, %v10688
        %v10690 = vcombine.low %v10634, %v10666
        %v10691 = vcombine.high %v10634, %v10666
        %v10692 = vcombine.low %v10641, %v10673
        %v10693 = vcombine.high %v10641, %v10673
        %v10694 = vcombine.low %v10650, %v10682
        %v10695 = vcombine.high %v10650, %v10682
        %v10696 = vcombine.low %v10657, %v10689
        %v10697 = vcombine.high %v10657, %v10689
        %v10698 = vcombine.low %v10395, %v10399
        %v10699 = vcombine.high %v10395, %v10399
        %v10701 = vunpack.c.l.s4 1983009808
        %v10702 = vunpack.c.0.s8 %v10701
        %v10703 = vlaneseq
        %v10704 = vshrl.u32 %v10703, 7
        %v10705 = vsub.s32 %v10702, %v10704
        %v10706 = vrot.slane %v10698, %v10705
        %v10708 = vunpack.c.l.s4 1983009808
        %v10709 = vunpack.c.0.s8 %v10708
        %v10710 = vlaneseq
        %v10711 = vshrl.u32 %v10710, 7
        %v10712 = vsub.s32 %v10709, %v10711
        %v10713 = vrot.slane %v10699, %v10712
        %v10714 = vcombine.low %v10397, %v10401
        %v10715 = vcombine.high %v10397, %v10401
        %v10717 = vunpack.c.l.s4 1983009808
        %v10718 = vunpack.c.0.s8 %v10717
        %v10719 = vlaneseq
        %v10720 = vshrl.u32 %v10719, 7
        %v10721 = vsub.s32 %v10718, %v10720
        %v10722 = vrot.slane %v10714, %v10721
        %v10724 = vunpack.c.l.s4 1983009808
        %v10725 = vunpack.c.0.s8 %v10724
        %v10726 = vlaneseq
        %v10727 = vshrl.u32 %v10726, 7
        %v10728 = vsub.s32 %v10725, %v10727
        %v10729 = vrot.slane %v10715, %v10728
        %v10730 = vcombine.low %v10403, %v10407
        %v10731 = vcombine.high %v10403, %v10407
        %v10733 = vunpack.c.l.s4 1983009808
        %v10734 = vunpack.c.0.s8 %v10733
        %v10735 = vlaneseq
        %v10736 = vshrl.u32 %v10735, 7
        %v10737 = vsub.s32 %v10734, %v10736
        %v10738 = vrot.slane %v10730, %v10737
        %v10740 = vunpack.c.l.s4 1983009808
        %v10741 = vunpack.c.0.s8 %v10740
        %v10742 = vlaneseq
        %v10743 = vshrl.u32 %v10742, 7
        %v10744 = vsub.s32 %v10741, %v10743
        %v10745 = vrot.slane %v10731, %v10744
        %v10746 = vcombine.low %v10405, %v10409
        %v10747 = vcombine.high %v10405, %v10409
        %v10749 = vunpack.c.l.s4 1983009808
        %v10750 = vunpack.c.0.s8 %v10749
        %v10751 = vlaneseq
        %v10752 = vshrl.u32 %v10751, 7
        %v10753 = vsub.s32 %v10750, %v10752
        %v10754 = vrot.slane %v10746, %v10753
        %v10756 = vunpack.c.l.s4 1983009808
        %v10757 = vunpack.c.0.s8 %v10756
        %v10758 = vlaneseq
        %v10759 = vshrl.u32 %v10758, 7
        %v10760 = vsub.s32 %v10757, %v10759
        %v10761 = vrot.slane %v10747, %v10760
        %v10762 = vcombine.low %v10706, %v10722
        %v10763 = vcombine.high %v10706, %v10722
        %v10765 = vunpack.c.l.s4 1934713408
        %v10766 = vunpack.c.0.s8 %v10765
        %v10767 = vlaneseq
        %v10768 = vshrl.u32 %v10767, 7
        %v10769 = vsub.s32 %v10766, %v10768
        %v10770 = vrot.slane %v10762, %v10769
        %v10772 = vunpack.c.l.s4 1934713408
        %v10773 = vunpack.c.0.s8 %v10772
        %v10774 = vlaneseq
        %v10775 = vshrl.u32 %v10774, 7
        %v10776 = vsub.s32 %v10773, %v10775
        %v10777 = vrot.slane %v10763, %v10776
        %v10778 = vcombine.low %v10713, %v10729
        %v10779 = vcombine.high %v10713, %v10729
        %v10781 = vunpack.c.l.s4 1934713408
        %v10782 = vunpack.c.0.s8 %v10781
        %v10783 = vlaneseq
        %v10784 = vshrl.u32 %v10783, 7
        %v10785 = vsub.s32 %v10782, %v10784
        %v10786 = vrot.slane %v10778, %v10785
        %v10788 = vunpack.c.l.s4 1934713408
        %v10789 = vunpack.c.0.s8 %v10788
        %v10790 = vlaneseq
        %v10791 = vshrl.u32 %v10790, 7
        %v10792 = vsub.s32 %v10789, %v10791
        %v10793 = vrot.slane %v10779, %v10792
        %v10794 = vcombine.low %v10738, %v10754
        %v10795 = vcombine.high %v10738, %v10754
        %v10797 = vunpack.c.l.s4 1934713408
        %v10798 = vunpack.c.0.s8 %v10797
        %v10799 = vlaneseq
        %v10800 = vshrl.u32 %v10799, 7
        %v10801 = vsub.s32 %v10798, %v10800
        %v10802 = vrot.slane %v10794, %v10801
        %v10804 = vunpack.c.l.s4 1934713408
        %v10805 = vunpack.c.0.s8 %v10804
        %v10806 = vlaneseq
        %v10807 = vshrl.u32 %v10806, 7
        %v10808 = vsub.s32 %v10805, %v10807
        %v10809 = vrot.slane %v10795, %v10808
        %v10810 = vcombine.low %v10745, %v10761
        %v10811 = vcombine.high %v10745, %v10761
        %v10813 = vunpack.c.l.s4 1934713408
        %v10814 = vunpack.c.0.s8 %v10813
        %v10815 = vlaneseq
        %v10816 = vshrl.u32 %v10815, 7
        %v10817 = vsub.s32 %v10814, %v10816
        %v10818 = vrot.slane %v10810, %v10817
        %v10820 = vunpack.c.l.s4 1934713408
        %v10821 = vunpack.c.0.s8 %v10820
        %v10822 = vlaneseq
        %v10823 = vshrl.u32 %v10822, 7
        %v10824 = vsub.s32 %v10821, %v10823
        %v10825 = vrot.slane %v10811, %v10824
        %v10826 = vcombine.low %v10770, %v10802
        %v10827 = vcombine.high %v10770, %v10802
        %v10828 = vcombine.low %v10777, %v10809
        %v10829 = vcombine.high %v10777, %v10809
        %v10830 = vcombine.low %v10786, %v10818
        %v10831 = vcombine.high %v10786, %v10818
        %v10832 = vcombine.low %v10793, %v10825
        %v10833 = vcombine.high %v10793, %v10825
        %v10834 = vcombine.low %v10411, %v10415
        %v10835 = vcombine.high %v10411, %v10415
        %v10837 = vunpack.c.l.s4 1983009808
        %v10838 = vunpack.c.0.s8 %v10837
        %v10839 = vlaneseq
        %v10840 = vshrl.u32 %v10839, 7
        %v10841 = vsub.s32 %v10838, %v10840
        %v10842 = vrot.slane %v10834, %v10841
        %v10844 = vunpack.c.l.s4 1983009808
        %v10845 = vunpack.c.0.s8 %v10844
        %v10846 = vlaneseq
        %v10847 = vshrl.u32 %v10846, 7
        %v10848 = vsub.s32 %v10845, %v10847
        %v10849 = vrot.slane %v10835, %v10848
        %v10850 = vcombine.low %v10413, %v10417
        %v10851 = vcombine.high %v10413, %v10417
        %v10853 = vunpack.c.l.s4 1983009808
        %v10854 = vunpack.c.0.s8 %v10853
        %v10855 = vlaneseq
        %v10856 = vshrl.u32 %v10855, 7
        %v10857 = vsub.s32 %v10854, %v10856
        %v10858 = vrot.slane %v10850, %v10857
        %v10860 = vunpack.c.l.s4 1983009808
        %v10861 = vunpack.c.0.s8 %v10860
        %v10862 = vlaneseq
        %v10863 = vshrl.u32 %v10862, 7
        %v10864 = vsub.s32 %v10861, %v10863
        %v10865 = vrot.slane %v10851, %v10864
        %v10866 = vcombine.low %v10419, %v10423
        %v10867 = vcombine.high %v10419, %v10423
        %v10869 = vunpack.c.l.s4 1983009808
        %v10870 = vunpack.c.0.s8 %v10869
        %v10871 = vlaneseq
        %v10872 = vshrl.u32 %v10871, 7
        %v10873 = vsub.s32 %v10870, %v10872
        %v10874 = vrot.slane %v10866, %v10873
        %v10876 = vunpack.c.l.s4 1983009808
        %v10877 = vunpack.c.0.s8 %v10876
        %v10878 = vlaneseq
        %v10879 = vshrl.u32 %v10878, 7
        %v10880 = vsub.s32 %v10877, %v10879
        %v10881 = vrot.slane %v10867, %v10880
        %v10882 = vcombine.low %v10421, %v10425
        %v10883 = vcombine.high %v10421, %v10425
        %v10885 = vunpack.c.l.s4 1983009808
        %v10886 = vunpack.c.0.s8 %v10885
        %v10887 = vlaneseq
        %v10888 = vshrl.u32 %v10887, 7
        %v10889 = vsub.s32 %v10886, %v10888
        %v10890 = vrot.slane %v10882, %v10889
        %v10892 = vunpack.c.l.s4 1983009808
        %v10893 = vunpack.c.0.s8 %v10892
        %v10894 = vlaneseq
        %v10895 = vshrl.u32 %v10894, 7
        %v10896 = vsub.s32 %v10893, %v10895
        %v10897 = vrot.slane %v10883, %v10896
        %v10898 = vcombine.low %v10842, %v10858
        %v10899 = vcombine.high %v10842, %v10858
        %v10901 = vunpack.c.l.s4 1934713408
        %v10902 = vunpack.c.0.s8 %v10901
        %v10903 = vlaneseq
        %v10904 = vshrl.u32 %v10903, 7
        %v10905 = vsub.s32 %v10902, %v10904
        %v10906 = vrot.slane %v10898, %v10905
        %v10908 = vunpack.c.l.s4 1934713408
        %v10909 = vunpack.c.0.s8 %v10908
        %v10910 = vlaneseq
        %v10911 = vshrl.u32 %v10910, 7
        %v10912 = vsub.s32 %v10909, %v10911
        %v10913 = vrot.slane %v10899, %v10912
        %v10914 = vcombine.low %v10849, %v10865
        %v10915 = vcombine.high %v10849, %v10865
        %v10917 = vunpack.c.l.s4 1934713408
        %v10918 = vunpack.c.0.s8 %v10917
        %v10919 = vlaneseq
        %v10920 = vshrl.u32 %v10919, 7
        %v10921 = vsub.s32 %v10918, %v10920
        %v10922 = vrot.slane %v10914, %v10921
        %v10924 = vunpack.c.l.s4 1934713408
        %v10925 = vunpack.c.0.s8 %v10924
        %v10926 = vlaneseq
        %v10927 = vshrl.u32 %v10926, 7
        %v10928 = vsub.s32 %v10925, %v10927
        %v10929 = vrot.slane %v10915, %v10928
        %v10930 = vcombine.low %v10874, %v10890
        %v10931 = vcombine.high %v10874, %v10890
        %v10933 = vunpack.c.l.s4 1934713408
        %v10934 = vunpack.c.0.s8 %v10933
        %v10935 = vlaneseq
        %v10936 = vshrl.u32 %v10935, 7
        %v10937 = vsub.s32 %v10934, %v10936
        %v10938 = vrot.slane %v10930, %v10937
        %v10940 = vunpack.c.l.s4 1934713408
        %v10941 = vunpack.c.0.s8 %v10940
        %v10942 = vlaneseq
        %v10943 = vshrl.u32 %v10942, 7
        %v10944 = vsub.s32 %v10941, %v10943
        %v10945 = vrot.slane %v10931, %v10944
        %v10946 = vcombine.low %v10881, %v10897
        %v10947 = vcombine.high %v10881, %v10897
        %v10949 = vunpack.c.l.s4 1934713408
        %v10950 = vunpack.c.0.s8 %v10949
        %v10951 = vlaneseq
        %v10952 = vshrl.u32 %v10951, 7
        %v10953 = vsub.s32 %v10950, %v10952
        %v10954 = vrot.slane %v10946, %v10953
        %v10956 = vunpack.c.l.s4 1934713408
        %v10957 = vunpack.c.0.s8 %v10956
        %v10958 = vlaneseq
        %v10959 = vshrl.u32 %v10958, 7
        %v10960 = vsub.s32 %v10957, %v10959
        %v10961 = vrot.slane %v10947, %v10960
        %v10962 = vcombine.low %v10906, %v10938
        %v10963 = vcombine.high %v10906, %v10938
        %v10964 = vcombine.low %v10913, %v10945
        %v10965 = vcombine.high %v10913, %v10945
        %v10966 = vcombine.low %v10922, %v10954
        %v10967 = vcombine.high %v10922, %v10954
        %v10968 = vcombine.low %v10929, %v10961
        %v10969 = vcombine.high %v10929, %v10961
        %10970 = vst [vmem:[%s219] sm:$0xff] %v10554
        %10971 = vst [vmem:[%s219 + $0x8] sm:$0xff] %v10826
        %10972 = vst [vmem:[%s219 + $0x10] sm:$0xff] %v10690
        %10973 = vst [vmem:[%s219 + $0x18] sm:$0xff] %v10962
        %10974 = vst [vmem:[%s219 + $0x20] sm:$0xff] %v10555
        %10975 = vst [vmem:[%s219 + $0x28] sm:$0xff] %v10827
        %10976 = vst [vmem:[%s219 + $0x30] sm:$0xff] %v10691
        %10977 = vst [vmem:[%s219 + $0x38] sm:$0xff] %v10963
        %10978 = vst [vmem:[%s219 + $0x40] sm:$0xff] %v10556
        %10979 = vst [vmem:[%s219 + $0x48] sm:$0xff] %v10828
        %10980 = vst [vmem:[%s219 + $0x50] sm:$0xff] %v10692
        %10981 = vst [vmem:[%s219 + $0x58] sm:$0xff] %v10964
        %10982 = vst [vmem:[%s219 + $0x60] sm:$0xff] %v10557
        %10983 = vst [vmem:[%s219 + $0x68] sm:$0xff] %v10829
        %10984 = vst [vmem:[%s219 + $0x70] sm:$0xff] %v10693
        %10985 = vst [vmem:[%s219 + $0x78] sm:$0xff] %v10965
        %10986 = vst [vmem:[%s219 + $0x80] sm:$0xff] %v10558
        %10987 = vst [vmem:[%s219 + $0x88] sm:$0xff] %v10830
        %10988 = vst [vmem:[%s219 + $0x90] sm:$0xff] %v10694
        %10989 = vst [vmem:[%s219 + $0x98] sm:$0xff] %v10966
        %10990 = vst [vmem:[%s219 + $0xa0] sm:$0xff] %v10559
        %10991 = vst [vmem:[%s219 + $0xa8] sm:$0xff] %v10831
        %10992 = vst [vmem:[%s219 + $0xb0] sm:$0xff] %v10695
        %10993 = vst [vmem:[%s219 + $0xb8] sm:$0xff] %v10967
        %10994 = vst [vmem:[%s219 + $0xc0] sm:$0xff] %v10560
        %10995 = vst [vmem:[%s219 + $0xc8] sm:$0xff] %v10832
        %10996 = vst [vmem:[%s219 + $0xd0] sm:$0xff] %v10696
        %10997 = vst [vmem:[%s219 + $0xd8] sm:$0xff] %v10968
        %10998 = vst [vmem:[%s219 + $0xe0] sm:$0xff] %v10561
        %10999 = vst [vmem:[%s219 + $0xe8] sm:$0xff] %v10833
        %11000 = vst [vmem:[%s219 + $0xf0] sm:$0xff] %v10697
        %11001 = vst [vmem:[%s219 + $0xf8] sm:$0xff] %v10969
        %s11002 = sand.u32 %s102, 1
        %s11003 = scalar_lea.sflag [#allocation4], %s11002
        %s11004 = sand.u32 %s102, 1
        %s11005 = smul.addr %s11004, 256
        %s11006 = scalar_lea.vmem [#allocation7], %s11005
        // Predicated region
        $region41: #{tpu_custom_call.1} parent=31 // pred_check
          %p11007 = pneg %p112
        $region42: #{tpu_custom_call.1} parent=31 // pred_check_branch
          %11009 = sbr.rel (%p11007) target = $region44
        $region43: #{tpu_custom_call.1} parent=31 // pred_region
          #allocation9 [shape = 'u32[6]{0}', space=smem, size = 0x18, scoped, tag = 'DMA stride descriptor']
          %s11010 = smul.u32 2, %s21
          %s11012 = ssub.s32 4096, 4096
          %11013 = vsyncadd %s11003, %s11012
          %s11014 = smul.addr %s11010, 2
          %s11015 = smul.addr %s11014, 128
          %s11016 = scalar_lea.hbm %s3, %s11015
          %s11018 = sshll.u32 1, 14
          %s11019 = sxor.u32 4294967295, %s11018
          %s11022 = sshll.u32 7, 18
          %s11023 = sxor.u32 4294967295, %s11022
          %s11024 = sand.u32 0, %s11023
          %s11026 = sor.u32 %s11024, 0
          %s11028 = sshll.u32 3, 24
          %s11029 = sxor.u32 4294967295, %s11028
          %s11030 = sand.u32 %s11026, %s11029
          %s11032 = sor.u32 %s11030, 0
          %s11033 = sshll.u32 %s11006, 4
          %s11034 = int_to_ptr.vmem [resolvable:$true] %s11033
          %11040 = sst [smem:[#allocation9]] 512
          %s11041 = scalar_lea.smem [#allocation9], 1
          %11042 = sst [smem:[%s11041]] 8192
          %s11043 = scalar_lea.smem [#allocation9], 2
          %11044 = sst [smem:[%s11043]] 2
          %s11045 = scalar_lea.smem [#allocation9], 3
          %11046 = sst [smem:[%s11045]] 256
          %s11047 = scalar_lea.smem [#allocation9], 4
          %11048 = sst [smem:[%s11047]] 256
          %s11049 = scalar_lea.smem [#allocation9], 5
          %11050 = sst [smem:[%s11049]] 16
          %11052 = dma.general %s11034, 4096, %s11016, %s11003, [#allocation8], [#allocation9], %s11032, 0
        $region44: #{tpu_custom_call.1} parent=31 // pred_fallthru
          _
      $region32: #{tpu_custom_call.1} parent=5 // pred_fallthru
        _
      %p11053 = scmp.le.s32.totalorder 2, %s16
      // Predicated region
      $region45: #{tpu_custom_call.1} parent=5 // pred_check
        %p11054 = pneg %p11053
      $region46: #{tpu_custom_call.1} parent=5 // pred_check_branch
        %11056 = sbr.rel (%p11054) target = $region48
      $region47: #{tpu_custom_call.1} parent=5 // pred_region
        %s11057 = ssub.s32 %s16, 2
        // Predicated region
        $region49: #{tpu_custom_call.1} parent=47 // pred_check
          %p11058 = pneg %p118
        $region50: #{tpu_custom_call.1} parent=47 // pred_check_branch
          %11060 = sbr.rel (%p11058) target = $region52
        $region51: #{tpu_custom_call.1} parent=47 // pred_region
          %s11061 = sand.u32 %s103, 1
          %s11062 = scalar_lea.sflag [#allocation4], %s11061
          %s11063 = sand.u32 %s103, 1
          %s11064 = smul.addr %s11063, 256
          %s11065 = scalar_lea.vmem [#allocation7], %s11064
          %11066 = dma.done %s11062, 4096
        $region52: #{tpu_custom_call.1} parent=47 // pred_fallthru
          _
      $region48: #{tpu_custom_call.1} parent=5 // pred_fallthru
        _
    $region6: #{tpu_custom_call.1} parent=1 // loop_footer
      %s20 = sadd.s32 1, %s16
    $region7: #{tpu_custom_call.1} parent=1 // loop_footer_branch
      %15 = sbr.rel target = $region3
    $region8: #{tpu_custom_call.1} parent=1 // loop_exit
      _
    %11067 = vsyncpa [#allocation3], 1
    %s11068 = scalar_lea.sflag [#allocation3], 1
    %11069 = vsyncpa %s11068, 1
    %11070 = vsyncpa [#allocation6], 1
    %11071 = vsyncpa [#allocation4], 1
    %s11072 = scalar_lea.sflag [#allocation4], 1
    %11073 = vsyncpa %s11072, 1

</llo_original>
